<compile_context>
chip_gen: v7x
topology: tpu7x:2x2x1
jax: 0.10.0
libtpu: 0.0.40
codegen_flags: <defaults>
</compile_context>

<pallas_src>
import jax
import jax.numpy as jnp
import numpy as np
from jax.experimental import pallas as pl
from jax.experimental.pallas import tpu as pltpu

EPS = 1e-5
LANES = 128


def _round_up(n, m):
    return ((n + m - 1) // m) * m


def _bn_scale_bias(acc, gamma, beta, inv_rows):
    """Fold training-mode BatchNorm into a per-channel (scale, bias) FMA.

    One pass over `acc` (rows, C): sum + sum-of-squares -> mean/var ->
    scale = gamma * rsqrt(var + eps), bias = beta - mean * scale.  All f32.
    Padded channels (acc == 0 everywhere, beta padded with 0) stay exactly 0.
    """
    s = jnp.sum(acc, axis=0, keepdims=True)
    ss = jnp.sum(acc * acc, axis=0, keepdims=True)
    mean = s * inv_rows
    var = jnp.maximum(ss * inv_rows - mean * mean, 0.0)
    scale = gamma * jax.lax.rsqrt(var + EPS)
    return scale, beta - mean * scale


def _im2col_3x3(xpad, H, W):
    """(N, H+2, W+2, C) -> ((N*H*W, 9*C) lane-dense patch slab, list of 9 taps)."""
    taps = [xpad[:, kh:kh + H, kw:kw + W, :] for kh in range(3) for kw in range(3)]
    slab = jnp.concatenate(taps, axis=-1).reshape(xpad.shape[0] * H * W, -1)
    return slab, taps


def fused_resblock_kernel(xpad_ref, w1_ref, w2_ref, wsc_ref,
                          g1_ref, b1_ref, g2_ref, b2_ref, gsc_ref, bsc_ref,
                          out_ref, ypad_ref):
    N, H, W, Cop = out_ref.shape
    rows = N * H * W
    inv_rows = 1.0 / rows

    # ---- conv1 (3x3, pad 1) as one im2col matmul + fused BN + ReLU --------------
    xpad = xpad_ref[...]                                     # (N, H+2, W+2, Cp) bf16
    im2col1, taps1 = _im2col_3x3(xpad, H, W)                 # (rows, 9*Cp)
    acc1 = jnp.dot(im2col1, w1_ref[...], preferred_element_type=jnp.float32)
    s1, o1 = _bn_scale_bias(acc1, g1_ref[...], b1_ref[...], inv_rows)
    y1 = jnp.maximum(acc1 * s1 + o1, 0.0)                    # (rows, Cop) f32

    # Keep the intermediate in VMEM, spatially zero-padded for conv2 (no HBM trip).
    ypad_ref[...] = jnp.zeros(ypad_ref.shape, ypad_ref.dtype)
    ypad_ref[:, 1:H + 1, 1:W + 1, :] = y1.reshape(N, H, W, Cop).astype(ypad_ref.dtype)

    # ---- conv2 (3x3, pad 1) + BN2 ------------------------------------------------
    im2col2, _ = _im2col_3x3(ypad_ref[...], H, W)            # (rows, 9*Cop) bf16
    acc2 = jnp.dot(im2col2, w2_ref[...], preferred_element_type=jnp.float32)
    s2, o2 = _bn_scale_bias(acc2, g2_ref[...], b2_ref[...], inv_rows)
    left = acc2 * s2 + o2

    # ---- shortcut: conv1x1 + BN (reuse the centre tap of xpad as the 1x1 input) --
    xflat = taps1[4].reshape(rows, -1)                       # (rows, Cp) bf16
    sc = jnp.dot(xflat, wsc_ref[...], preferred_element_type=jnp.float32)
    ssc, osc = _bn_scale_bias(sc, gsc_ref[...], bsc_ref[...], inv_rows)
    sc = sc * ssc + osc

    # ---- residual add + ReLU, lane-dense (Cop = multiple of 128) store -----------
    out_ref[...] = jnp.maximum(left + sc, 0.0).reshape(N, H, W, Cop)


def resblock_forward(x_nchw, params):
    """ResBlock forward (stride=1, Cin != Cout -> conv shortcut). NCHW in, NCHW out."""
    # TODO(synk): stride > 1 variant (strided 3x3 conv + strided 1x1 shortcut) not implemented.
    w1, g1, b1, w2, g2, b2, wsc, gsc, bsc = params
    N, Cin, H, W = x_nchw.shape
    Cout = w1.shape[0]
    Cp = _round_up(Cin, LANES)      # lane-dense padded input channels
    Cop = _round_up(Cout, LANES)    # lane-dense padded output channels

    # --- XLA-side glue: layout change + channel/spatial padding + weight packing ---
    x = jnp.transpose(x_nchw, (0, 2, 3, 1)).astype(jnp.float32)            # NHWC
    xpad = jnp.pad(x, ((0, 0), (1, 1), (1, 1), (0, Cp - Cin))).astype(jnp.bfloat16)

    def pack3x3(w, cin, cin_p):
        w = jnp.transpose(w, (2, 3, 1, 0))                                 # HWIO
        w = jnp.pad(w, ((0, 0), (0, 0), (0, cin_p - cin), (0, Cop - Cout)))
        return w.reshape(9 * cin_p, Cop).astype(jnp.bfloat16)              # (9*Cin_p, Cop)

    w1_k = pack3x3(w1, Cin, Cp)
    w2_k = pack3x3(w2, Cout, Cop)
    wsc_k = jnp.pad(jnp.transpose(wsc[:, :, 0, 0], (1, 0)),
                    ((0, Cp - Cin), (0, Cop - Cout))).astype(jnp.bfloat16)

    def row(v, fill):
        # (C,) -> (1, Cop) f32, padded channels get `fill` (gamma->1, beta->0).
        return jnp.pad(v.astype(jnp.float32), (0, Cop - Cout),
                       constant_values=fill).reshape(1, Cop)

    vmem = pl.BlockSpec(memory_space=pltpu.MemorySpace.VMEM)

    # TODO(synk): at real ResNet sizes add a row-tiled grid with a two-pass BN
    # reduction and dimension_semantics=("parallel", ...) so the activation streams
    # through VMEM and v7x uses both TensorCores; whole-array-in-VMEM is only valid
    # at small shapes like this benchmark's.
    out = pl.pallas_call(
        fused_resblock_kernel,
        out_shape=jax.ShapeDtypeStruct((N, H, W, Cop), jnp.float32),
        in_specs=[vmem] * 10,
        out_specs=vmem,
        scratch_shapes=[pltpu.VMEM((N, H + 2, W + 2, Cop), jnp.bfloat16)],
        compiler_params=pltpu.CompilerParams(vmem_limit_bytes=48 * 1024 * 1024),
    )(xpad, w1_k, w2_k, wsc_k,
      row(g1, 1.0), row(b1, 0.0), row(g2, 1.0), row(b2, 0.0),
      row(gsc, 1.0), row(bsc, 0.0))

    return jnp.transpose(out[..., :Cout], (0, 3, 1, 2))                    # NCHW


def resblock_reference(x, params):
    """Pure-JAX f32 NCHW reference matching the PyTorch forward (training-mode BN)."""
    w1, g1, b1, w2, g2, b2, wsc, gsc, bsc = params
    dn = ('NCHW', 'OIHW', 'NCHW')

    def bn(y, g, b):
        mean = jnp.mean(y, axis=(0, 2, 3), keepdims=True)
        var = jnp.mean((y - mean) ** 2, axis=(0, 2, 3), keepdims=True)
        return ((y - mean) * jax.lax.rsqrt(var + EPS) * g.reshape(1, -1, 1, 1)
                + b.reshape(1, -1, 1, 1))

    y = jax.lax.conv_general_dilated(x, w1, (1, 1), ((1, 1), (1, 1)),
                                     dimension_numbers=dn)
    y = jnp.maximum(bn(y, g1, b1), 0.0)
    y = jax.lax.conv_general_dilated(y, w2, (1, 1), ((1, 1), (1, 1)),
                                     dimension_numbers=dn)
    left = bn(y, g2, b2)
    sc = jax.lax.conv_general_dilated(x, wsc, (1, 1), ((0, 0), (0, 0)),
                                      dimension_numbers=dn)
    sc = bn(sc, gsc, bsc)
    return jnp.maximum(left + sc, 0.0)


if __name__ == "__main__":
    key = jax.random.PRNGKey(0)
    ks = jax.random.split(key, 10)
    N, Cin, Cout, H, W = 2, 4, 8, 16, 16

    x = jax.random.normal(ks[0], (N, Cin, H, W), jnp.float32)
    w1 = 0.2 * jax.random.normal(ks[1], (Cout, Cin, 3, 3), jnp.float32)
    w2 = 0.2 * jax.random.normal(ks[2], (Cout, Cout, 3, 3), jnp.float32)
    wsc = 0.2 * jax.random.normal(ks[3], (Cout, Cin, 1, 1), jnp.float32)
    g1 = 1.0 + 0.1 * jax.random.normal(ks[4], (Cout,), jnp.float32)
    b1 = 0.1 * jax.random.normal(ks[5], (Cout,), jnp.float32)
    g2 = 1.0 + 0.1 * jax.random.normal(ks[6], (Cout,), jnp.float32)
    b2 = 0.1 * jax.random.normal(ks[7], (Cout,), jnp.float32)
    gsc = 1.0 + 0.1 * jax.random.normal(ks[8], (Cout,), jnp.float32)
    bsc = 0.1 * jax.random.normal(ks[9], (Cout,), jnp.float32)

    params = (w1, g1, b1, w2, g2, b2, wsc, gsc, bsc)

    out = jax.block_until_ready(resblock_forward(x, params))
    ref = jax.block_until_ready(resblock_reference(x, params))

    assert out.shape == (N, Cout, H, W)
    # Tolerance loosened vs the f32 reference because conv operands run on the MXU in
    # bf16 (f32 accumulation); observed error is well inside this bound.
    np.testing.assert_allclose(np.asarray(out), np.asarray(ref), atol=5e-2, rtol=5e-2)
    print("KERNEL_OK")
</pallas_src>

<mosaic_0001>
module attributes {stable_mosaic.version = 11 : i64} {
  func.func @fused_resblock_kernel(%arg0: memref<2x18x18x128xbf16, #tpu.memory_space<vmem>>, %arg1: memref<1152x128xbf16, #tpu.memory_space<vmem>>, %arg2: memref<1152x128xbf16, #tpu.memory_space<vmem>>, %arg3: memref<128x128xbf16, #tpu.memory_space<vmem>>, %arg4: memref<1x128xf32, #tpu.memory_space<vmem>>, %arg5: memref<1x128xf32, #tpu.memory_space<vmem>>, %arg6: memref<1x128xf32, #tpu.memory_space<vmem>>, %arg7: memref<1x128xf32, #tpu.memory_space<vmem>>, %arg8: memref<1x128xf32, #tpu.memory_space<vmem>>, %arg9: memref<1x128xf32, #tpu.memory_space<vmem>>, %arg10: memref<2x16x16x128xf32, #tpu.memory_space<vmem>>, %arg11: memref<2x18x18x128xbf16, #tpu.memory_space<vmem>>) attributes {dimension_semantics = [], scalar_prefetch = 0 : i64, scratch_operands = 1 : i64, tpu.core_type = #tpu.core_type<tc>} {
    %c0 = arith.constant 0 : index
    %c0_0 = arith.constant 0 : index
    %c0_1 = arith.constant 0 : index
    %c0_2 = arith.constant 0 : index
    %0 = vector.load %arg0[%c0, %c0_0, %c0_1, %c0_2] : memref<2x18x18x128xbf16, #tpu.memory_space<vmem>>, vector<2x18x18x128xbf16>
    %1 = vector.extract_strided_slice %0 {offsets = [0, 0, 0, 0], sizes = [2, 16, 16, 128], strides = [1, 1, 1, 1]} : vector<2x18x18x128xbf16> to vector<2x16x16x128xbf16>
    %2 = vector.extract_strided_slice %0 {offsets = [0, 0, 1, 0], sizes = [2, 16, 16, 128], strides = [1, 1, 1, 1]} : vector<2x18x18x128xbf16> to vector<2x16x16x128xbf16>
    %3 = vector.extract_strided_slice %0 {offsets = [0, 0, 2, 0], sizes = [2, 16, 16, 128], strides = [1, 1, 1, 1]} : vector<2x18x18x128xbf16> to vector<2x16x16x128xbf16>
    %4 = vector.extract_strided_slice %0 {offsets = [0, 1, 0, 0], sizes = [2, 16, 16, 128], strides = [1, 1, 1, 1]} : vector<2x18x18x128xbf16> to vector<2x16x16x128xbf16>
    %5 = vector.extract_strided_slice %0 {offsets = [0, 1, 1, 0], sizes = [2, 16, 16, 128], strides = [1, 1, 1, 1]} : vector<2x18x18x128xbf16> to vector<2x16x16x128xbf16>
    %6 = vector.extract_strided_slice %0 {offsets = [0, 1, 2, 0], sizes = [2, 16, 16, 128], strides = [1, 1, 1, 1]} : vector<2x18x18x128xbf16> to vector<2x16x16x128xbf16>
    %7 = vector.extract_strided_slice %0 {offsets = [0, 2, 0, 0], sizes = [2, 16, 16, 128], strides = [1, 1, 1, 1]} : vector<2x18x18x128xbf16> to vector<2x16x16x128xbf16>
    %8 = vector.extract_strided_slice %0 {offsets = [0, 2, 1, 0], sizes = [2, 16, 16, 128], strides = [1, 1, 1, 1]} : vector<2x18x18x128xbf16> to vector<2x16x16x128xbf16>
    %9 = vector.extract_strided_slice %0 {offsets = [0, 2, 2, 0], sizes = [2, 16, 16, 128], strides = [1, 1, 1, 1]} : vector<2x18x18x128xbf16> to vector<2x16x16x128xbf16>
    %10 = tpu.concatenate %1, %2, %3, %4, %5, %6, %7, %8, %9 in 3 : vector<2x16x16x128xbf16>, vector<2x16x16x128xbf16>, vector<2x16x16x128xbf16>, vector<2x16x16x128xbf16>, vector<2x16x16x128xbf16>, vector<2x16x16x128xbf16>, vector<2x16x16x128xbf16>, vector<2x16x16x128xbf16>, vector<2x16x16x128xbf16> -> vector<2x16x16x1152xbf16>
    %11 = vector.shape_cast %10 : vector<2x16x16x1152xbf16> to vector<512x1152xbf16>
    %c0_3 = arith.constant 0 : index
    %c0_4 = arith.constant 0 : index
    %12 = vector.load %arg1[%c0_3, %c0_4] : memref<1152x128xbf16, #tpu.memory_space<vmem>>, vector<1152x128xbf16>
    %cst = arith.constant dense<0.000000e+00> : vector<512x128xf32>
    %13 = tpu.matmul %11, %12, %cst {dimension_numbers = #tpu.dot_dimension_numbers<[1], [0], [0], [1], [0, 0, 1, 1], [], []>} : vector<512x1152xbf16>, vector<1152x128xbf16>, vector<512x128xf32> -> vector<512x128xf32>
    %c0_5 = arith.constant 0 : index
    %c0_6 = arith.constant 0 : index
    %14 = vector.load %arg4[%c0_5, %c0_6] : memref<1x128xf32, #tpu.memory_space<vmem>>, vector<1x128xf32>
    %c0_7 = arith.constant 0 : index
    %c0_8 = arith.constant 0 : index
    %15 = vector.load %arg5[%c0_7, %c0_8] : memref<1x128xf32, #tpu.memory_space<vmem>>, vector<1x128xf32>
    %cst_9 = arith.constant dense<0.000000e+00> : vector<128xf32>
    %16 = vector.multi_reduction <add>, %13, %cst_9 [0] : vector<512x128xf32> to vector<128xf32>
    %17 = vector.shape_cast %16 : vector<128xf32> to vector<1x128xf32>
    %18 = arith.mulf %13, %13 : vector<512x128xf32>
    %cst_10 = arith.constant dense<0.000000e+00> : vector<128xf32>
    %19 = vector.multi_reduction <add>, %18, %cst_10 [0] : vector<512x128xf32> to vector<128xf32>
    %20 = vector.shape_cast %19 : vector<128xf32> to vector<1x128xf32>
    %cst_11 = arith.constant 0.001953125 : f32
    %21 = vector.broadcast %cst_11 : f32 to vector<1x128xf32>
    %22 = arith.mulf %17, %21 : vector<1x128xf32>
    %cst_12 = arith.constant 0.001953125 : f32
    %23 = vector.broadcast %cst_12 : f32 to vector<1x128xf32>
    %24 = arith.mulf %20, %23 : vector<1x128xf32>
    %25 = arith.mulf %22, %22 : vector<1x128xf32>
    %26 = arith.subf %24, %25 : vector<1x128xf32>
    %cst_13 = arith.constant 0.000000e+00 : f32
    %27 = vector.broadcast %cst_13 : f32 to vector<1x128xf32>
    %28 = arith.maximumf %26, %27 : vector<1x128xf32>
    %cst_14 = arith.constant 9.99999974E-6 : f32
    %29 = vector.broadcast %cst_14 : f32 to vector<1x128xf32>
    %30 = arith.addf %28, %29 : vector<1x128xf32>
    %31 = math.rsqrt %30 : vector<1x128xf32>
    %32 = arith.mulf %14, %31 : vector<1x128xf32>
    %33 = arith.mulf %22, %32 : vector<1x128xf32>
    %34 = arith.subf %15, %33 : vector<1x128xf32>
    %35 = vector.broadcast %32 : vector<1x128xf32> to vector<512x128xf32>
    %36 = arith.mulf %13, %35 : vector<512x128xf32>
    %37 = vector.broadcast %34 : vector<1x128xf32> to vector<512x128xf32>
    %38 = arith.addf %36, %37 : vector<512x128xf32>
    %cst_15 = arith.constant 0.000000e+00 : f32
    %39 = vector.broadcast %cst_15 : f32 to vector<512x128xf32>
    %40 = arith.maximumf %38, %39 : vector<512x128xf32>
    %cst_16 = arith.constant 0.000000e+00 : bf16
    %41 = vector.broadcast %cst_16 : bf16 to vector<2x18x18x128xbf16>
    %c0_17 = arith.constant 0 : index
    %c0_18 = arith.constant 0 : index
    %c0_19 = arith.constant 0 : index
    %c0_20 = arith.constant 0 : index
    %42 = vector.load %arg11[%c0_17, %c0_18, %c0_19, %c0_20] : memref<2x18x18x128xbf16, #tpu.memory_space<vmem>>, vector<2x18x18x128xbf16>
    tpu.vector_store %arg11[%c0_17, %c0_18, %c0_19, %c0_20], %41 {strides = array<i32>} : memref<2x18x18x128xbf16, #tpu.memory_space<vmem>>, vector<2x18x18x128xbf16>,
    %43 = vector.shape_cast %40 : vector<512x128xf32> to vector<2x16x16x128xf32>
    %44 = arith.truncf %43 : vector<2x16x16x128xf32> to vector<2x16x16x128xbf16>
    %c0_21 = arith.constant 0 : index
    %c1 = arith.constant 1 : index
    %c1_22 = arith.constant 1 : index
    %c0_23 = arith.constant 0 : index
    %45 = vector.load %arg11[%c0_21, %c1, %c1_22, %c0_23] : memref<2x18x18x128xbf16, #tpu.memory_space<vmem>>, vector<2x16x16x128xbf16>
    tpu.vector_store %arg11[%c0_21, %c1, %c1_22, %c0_23], %44 {strides = array<i32>} : memref<2x18x18x128xbf16, #tpu.memory_space<vmem>>, vector<2x16x16x128xbf16>,
    %c0_24 = arith.constant 0 : index
    %c0_25 = arith.constant 0 : index
    %c0_26 = arith.constant 0 : index
    %c0_27 = arith.constant 0 : index
    %46 = vector.load %arg11[%c0_24, %c0_25, %c0_26, %c0_27] : memref<2x18x18x128xbf16, #tpu.memory_space<vmem>>, vector<2x18x18x128xbf16>
    %47 = vector.extract_strided_slice %46 {offsets = [0, 0, 0, 0], sizes = [2, 16, 16, 128], strides = [1, 1, 1, 1]} : vector<2x18x18x128xbf16> to vector<2x16x16x128xbf16>
    %48 = vector.extract_strided_slice %46 {offsets = [0, 0, 1, 0], sizes = [2, 16, 16, 128], strides = [1, 1, 1, 1]} : vector<2x18x18x128xbf16> to vector<2x16x16x128xbf16>
    %49 = vector.extract_strided_slice %46 {offsets = [0, 0, 2, 0], sizes = [2, 16, 16, 128], strides = [1, 1, 1, 1]} : vector<2x18x18x128xbf16> to vector<2x16x16x128xbf16>
    %50 = vector.extract_strided_slice %46 {offsets = [0, 1, 0, 0], sizes = [2, 16, 16, 128], strides = [1, 1, 1, 1]} : vector<2x18x18x128xbf16> to vector<2x16x16x128xbf16>
    %51 = vector.extract_strided_slice %46 {offsets = [0, 1, 1, 0], sizes = [2, 16, 16, 128], strides = [1, 1, 1, 1]} : vector<2x18x18x128xbf16> to vector<2x16x16x128xbf16>
    %52 = vector.extract_strided_slice %46 {offsets = [0, 1, 2, 0], sizes = [2, 16, 16, 128], strides = [1, 1, 1, 1]} : vector<2x18x18x128xbf16> to vector<2x16x16x128xbf16>
    %53 = vector.extract_strided_slice %46 {offsets = [0, 2, 0, 0], sizes = [2, 16, 16, 128], strides = [1, 1, 1, 1]} : vector<2x18x18x128xbf16> to vector<2x16x16x128xbf16>
    %54 = vector.extract_strided_slice %46 {offsets = [0, 2, 1, 0], sizes = [2, 16, 16, 128], strides = [1, 1, 1, 1]} : vector<2x18x18x128xbf16> to vector<2x16x16x128xbf16>
    %55 = vector.extract_strided_slice %46 {offsets = [0, 2, 2, 0], sizes = [2, 16, 16, 128], strides = [1, 1, 1, 1]} : vector<2x18x18x128xbf16> to vector<2x16x16x128xbf16>
    %56 = tpu.concatenate %47, %48, %49, %50, %51, %52, %53, %54, %55 in 3 : vector<2x16x16x128xbf16>, vector<2x16x16x128xbf16>, vector<2x16x16x128xbf16>, vector<2x16x16x128xbf16>, vector<2x16x16x128xbf16>, vector<2x16x16x128xbf16>, vector<2x16x16x128xbf16>, vector<2x16x16x128xbf16>, vector<2x16x16x128xbf16> -> vector<2x16x16x1152xbf16>
    %57 = vector.shape_cast %56 : vector<2x16x16x1152xbf16> to vector<512x1152xbf16>
    %c0_28 = arith.constant 0 : index
    %c0_29 = arith.constant 0 : index
    %58 = vector.load %arg2[%c0_28, %c0_29] : memref<1152x128xbf16, #tpu.memory_space<vmem>>, vector<1152x128xbf16>
    %cst_30 = arith.constant dense<0.000000e+00> : vector<512x128xf32>
    %59 = tpu.matmul %57, %58, %cst_30 {dimension_numbers = #tpu.dot_dimension_numbers<[1], [0], [0], [1], [0, 0, 1, 1], [], []>} : vector<512x1152xbf16>, vector<1152x128xbf16>, vector<512x128xf32> -> vector<512x128xf32>
    %c0_31 = arith.constant 0 : index
    %c0_32 = arith.constant 0 : index
    %60 = vector.load %arg6[%c0_31, %c0_32] : memref<1x128xf32, #tpu.memory_space<vmem>>, vector<1x128xf32>
    %c0_33 = arith.constant 0 : index
    %c0_34 = arith.constant 0 : index
    %61 = vector.load %arg7[%c0_33, %c0_34] : memref<1x128xf32, #tpu.memory_space<vmem>>, vector<1x128xf32>
    %cst_35 = arith.constant dense<0.000000e+00> : vector<128xf32>
    %62 = vector.multi_reduction <add>, %59, %cst_35 [0] : vector<512x128xf32> to vector<128xf32>
    %63 = vector.shape_cast %62 : vector<128xf32> to vector<1x128xf32>
    %64 = arith.mulf %59, %59 : vector<512x128xf32>
    %cst_36 = arith.constant dense<0.000000e+00> : vector<128xf32>
    %65 = vector.multi_reduction <add>, %64, %cst_36 [0] : vector<512x128xf32> to vector<128xf32>
    %66 = vector.shape_cast %65 : vector<128xf32> to vector<1x128xf32>
    %cst_37 = arith.constant 0.001953125 : f32
    %67 = vector.broadcast %cst_37 : f32 to vector<1x128xf32>
    %68 = arith.mulf %63, %67 : vector<1x128xf32>
    %cst_38 = arith.constant 0.001953125 : f32
    %69 = vector.broadcast %cst_38 : f32 to vector<1x128xf32>
    %70 = arith.mulf %66, %69 : vector<1x128xf32>
    %71 = arith.mulf %68, %68 : vector<1x128xf32>
    %72 = arith.subf %70, %71 : vector<1x128xf32>
    %cst_39 = arith.constant 0.000000e+00 : f32
    %73 = vector.broadcast %cst_39 : f32 to vector<1x128xf32>
    %74 = arith.maximumf %72, %73 : vector<1x128xf32>
    %cst_40 = arith.constant 9.99999974E-6 : f32
    %75 = vector.broadcast %cst_40 : f32 to vector<1x128xf32>
    %76 = arith.addf %74, %75 : vector<1x128xf32>
    %77 = math.rsqrt %76 : vector<1x128xf32>
    %78 = arith.mulf %60, %77 : vector<1x128xf32>
    %79 = arith.mulf %68, %78 : vector<1x128xf32>
    %80 = arith.subf %61, %79 : vector<1x128xf32>
    %81 = vector.broadcast %78 : vector<1x128xf32> to vector<512x128xf32>
    %82 = arith.mulf %59, %81 : vector<512x128xf32>
    %83 = vector.broadcast %80 : vector<1x128xf32> to vector<512x128xf32>
    %84 = arith.addf %82, %83 : vector<512x128xf32>
    %85 = vector.shape_cast %5 : vector<2x16x16x128xbf16> to vector<512x128xbf16>
    %c0_41 = arith.constant 0 : index
    %c0_42 = arith.constant 0 : index
    %86 = vector.load %arg3[%c0_41, %c0_42] : memref<128x128xbf16, #tpu.memory_space<vmem>>, vector<128x128xbf16>
    %cst_43 = arith.constant dense<0.000000e+00> : vector<512x128xf32>
    %87 = tpu.matmul %85, %86, %cst_43 {dimension_numbers = #tpu.dot_dimension_numbers<[1], [0], [0], [1], [0, 0, 1, 1], [], []>} : vector<512x128xbf16>, vector<128x128xbf16>, vector<512x128xf32> -> vector<512x128xf32>
    %c0_44 = arith.constant 0 : index
    %c0_45 = arith.constant 0 : index
    %88 = vector.load %arg8[%c0_44, %c0_45] : memref<1x128xf32, #tpu.memory_space<vmem>>, vector<1x128xf32>
    %c0_46 = arith.constant 0 : index
    %c0_47 = arith.constant 0 : index
    %89 = vector.load %arg9[%c0_46, %c0_47] : memref<1x128xf32, #tpu.memory_space<vmem>>, vector<1x128xf32>
    %cst_48 = arith.constant dense<0.000000e+00> : vector<128xf32>
    %90 = vector.multi_reduction <add>, %87, %cst_48 [0] : vector<512x128xf32> to vector<128xf32>
    %91 = vector.shape_cast %90 : vector<128xf32> to vector<1x128xf32>
    %92 = arith.mulf %87, %87 : vector<512x128xf32>
    %cst_49 = arith.constant dense<0.000000e+00> : vector<128xf32>
    %93 = vector.multi_reduction <add>, %92, %cst_49 [0] : vector<512x128xf32> to vector<128xf32>
    %94 = vector.shape_cast %93 : vector<128xf32> to vector<1x128xf32>
    %cst_50 = arith.constant 0.001953125 : f32
    %95 = vector.broadcast %cst_50 : f32 to vector<1x128xf32>
    %96 = arith.mulf %91, %95 : vector<1x128xf32>
    %cst_51 = arith.constant 0.001953125 : f32
    %97 = vector.broadcast %cst_51 : f32 to vector<1x128xf32>
    %98 = arith.mulf %94, %97 : vector<1x128xf32>
    %99 = arith.mulf %96, %96 : vector<1x128xf32>
    %100 = arith.subf %98, %99 : vector<1x128xf32>
    %cst_52 = arith.constant 0.000000e+00 : f32
    %101 = vector.broadcast %cst_52 : f32 to vector<1x128xf32>
    %102 = arith.maximumf %100, %101 : vector<1x128xf32>
    %cst_53 = arith.constant 9.99999974E-6 : f32
    %103 = vector.broadcast %cst_53 : f32 to vector<1x128xf32>
    %104 = arith.addf %102, %103 : vector<1x128xf32>
    %105 = math.rsqrt %104 : vector<1x128xf32>
    %106 = arith.mulf %88, %105 : vector<1x128xf32>
    %107 = arith.mulf %96, %106 : vector<1x128xf32>
    %108 = arith.subf %89, %107 : vector<1x128xf32>
    %109 = vector.broadcast %106 : vector<1x128xf32> to vector<512x128xf32>
    %110 = arith.mulf %87, %109 : vector<512x128xf32>
    %111 = vector.broadcast %108 : vector<1x128xf32> to vector<512x128xf32>
    %112 = arith.addf %110, %111 : vector<512x128xf32>
    %113 = arith.addf %84, %112 : vector<512x128xf32>
    %cst_54 = arith.constant 0.000000e+00 : f32
    %114 = vector.broadcast %cst_54 : f32 to vector<512x128xf32>
    %115 = arith.maximumf %113, %114 : vector<512x128xf32>
    %116 = vector.shape_cast %115 : vector<512x128xf32> to vector<2x16x16x128xf32>
    %c0_55 = arith.constant 0 : index
    %c0_56 = arith.constant 0 : index
    %c0_57 = arith.constant 0 : index
    %c0_58 = arith.constant 0 : index
    %117 = vector.load %arg10[%c0_55, %c0_56, %c0_57, %c0_58] : memref<2x16x16x128xf32, #tpu.memory_space<vmem>>, vector<2x16x16x128xf32>
    tpu.vector_store %arg10[%c0_55, %c0_56, %c0_57, %c0_58], %116 {strides = array<i32>} : memref<2x16x16x128xf32, #tpu.memory_space<vmem>>, vector<2x16x16x128xf32>,
    return
  }
}

</mosaic_0001>

<llo_original>
// kernel: tpu_custom_call.1
$region0: #{tpu_custom_call.1}
  #allocation0 [shape = 'u32[]', space=smem, size = 0x4, offset = 0x4, fixed_abs, tag = 'smem constant byte address 0x4 - core index']
  #allocation1 [shape = 'u32[144,128]{1,0:T(1,128)}', space=vmem, size = 0x12000, scoped, tag = 'internal scratch']
  #allocation2 [shape = 'bf16[2,18,18,128]{3,2,1,0:T(8,128)(2,1)}', space=vmem, size = 0x36000, scoped, tag = 'scratch operand']
  %s0 = inlined_call_operand.vmem [shape: bf16[2,18,18,128], index: 0, kind: input, shape index: {}]
  %s1 = inlined_call_operand.vmem [shape: bf16[1152,128], index: 1, kind: input, shape index: {}]
  %s2 = inlined_call_operand.hbm [shape: bf16[1152,128], index: 2, kind: input, shape index: {}]
  %s3 = inlined_call_operand.vmem [shape: bf16[128,128], index: 3, kind: input, shape index: {}]
  %s4 = inlined_call_operand.vmem [shape: f32[1,128], index: 4, kind: input, shape index: {}]
  %s5 = inlined_call_operand.vmem [shape: f32[1,128], index: 5, kind: input, shape index: {}]
  %s6 = inlined_call_operand.vmem [shape: f32[1,128], index: 6, kind: input, shape index: {}]
  %s7 = inlined_call_operand.vmem [shape: f32[1,128], index: 7, kind: input, shape index: {}]
  %s8 = inlined_call_operand.vmem [shape: f32[1,128], index: 8, kind: input, shape index: {}]
  %s9 = inlined_call_operand.vmem [shape: f32[1,128], index: 9, kind: input, shape index: {}]
  %s10 = inlined_call_operand.hbm [shape: f32[2,16,16,128], index: 10, kind: output, shape index: {}]
  %s11 = sld [smem:[#allocation0]]
  $region54: #{tpu_custom_call.1} parent=0
    _
  %s13 = ssub.s32 1, %s11
  %s14 = scalar_select 0, %s13, %s11
  $region1: #{tpu_custom_call.1} parent=0
    #allocation3 [shape = 'u8[294912]{0}', space=vmem, size = 0x48000, scoped, tag = 'input window, operand 2, single buffered']
    #allocation4 [shape = 's32[1]{0}', space=sflag, size = 0x4, scoped, tag = 'scoped memory for tpu_custom_call.1']
    #allocation5 [shape = 's32[1]{0}', space=sflag, size = 0x4, scoped, tag = 'scoped memory for tpu_custom_call.1']
    #allocation6 [shape = 'u8[262144]{0}', space=vmem, size = 0x40000, scoped, tag = 'output window, operand 0, single buffered']
    %15 = vsyncpa [#allocation4], 0
    %16 = vsyncpa [#allocation5], 0
    // Predicated region
    $region2: #{tpu_custom_call.1} parent=1 // pred_check
      _
    $region3: #{tpu_custom_call.1} parent=1 // pred_check_branch
      %18 = sbr.rel (0) target = $region5
    $region4: #{tpu_custom_call.1} parent=1 // pred_region
      _
    $region5: #{tpu_custom_call.1} parent=1 // pred_fallthru
      _
    // Predicated region
    $region6: #{tpu_custom_call.1} parent=1 // pred_check
      _
    $region7: #{tpu_custom_call.1} parent=1 // pred_check_branch
      %20 = sbr.rel (0) target = $region9
    $region8: #{tpu_custom_call.1} parent=1 // pred_region
      _
    $region9: #{tpu_custom_call.1} parent=1 // pred_fallthru
      _
    // Predicated region
    $region10: #{tpu_custom_call.1} parent=1 // pred_check
      _
    $region11: #{tpu_custom_call.1} parent=1 // pred_check_branch
      %22 = sbr.rel (0) target = $region13
    $region12: #{tpu_custom_call.1} parent=1 // pred_region
      %s24 = ssub.s32 9216, 9216
      %25 = vsyncadd [#allocation4], %s24
      %s26 = sshll.u32 [#allocation3], 4
      %s27 = int_to_ptr.vmem [resolvable:$true] %s26
      %32 = dma.hbm_to_vmem [thread:$0]  %s2, 9216, %s27, [#allocation4], 64, 64, 4
    $region13: #{tpu_custom_call.1} parent=1 // pred_fallthru
      _
    // Predicated region
    $region14: #{tpu_custom_call.1} parent=1 // pred_check
      _
    $region15: #{tpu_custom_call.1} parent=1 // pred_check_branch
      %34 = sbr.rel (0) target = $region17
    $region16: #{tpu_custom_call.1} parent=1 // pred_region
      _
    $region17: #{tpu_custom_call.1} parent=1 // pred_fallthru
      _
    // Predicated region
    $region18: #{tpu_custom_call.1} parent=1 // pred_check
      _
    $region19: #{tpu_custom_call.1} parent=1 // pred_check_branch
      %36 = sbr.rel (0) target = $region21
    $region20: #{tpu_custom_call.1} parent=1 // pred_region
      _
    $region21: #{tpu_custom_call.1} parent=1 // pred_fallthru
      _
    // Predicated region
    $region22: #{tpu_custom_call.1} parent=1 // pred_check
      _
    $region23: #{tpu_custom_call.1} parent=1 // pred_check_branch
      %38 = sbr.rel (0) target = $region25
    $region24: #{tpu_custom_call.1} parent=1 // pred_region
      _
    $region25: #{tpu_custom_call.1} parent=1 // pred_fallthru
      _
    // Predicated region
    $region26: #{tpu_custom_call.1} parent=1 // pred_check
      _
    $region27: #{tpu_custom_call.1} parent=1 // pred_check_branch
      %40 = sbr.rel (0) target = $region29
    $region28: #{tpu_custom_call.1} parent=1 // pred_region
      _
    $region29: #{tpu_custom_call.1} parent=1 // pred_fallthru
      _
    // Predicated region
    $region30: #{tpu_custom_call.1} parent=1 // pred_check
      _
    $region31: #{tpu_custom_call.1} parent=1 // pred_check_branch
      %42 = sbr.rel (0) target = $region33
    $region32: #{tpu_custom_call.1} parent=1 // pred_region
      _
    $region33: #{tpu_custom_call.1} parent=1 // pred_fallthru
      _
    // Predicated region
    $region34: #{tpu_custom_call.1} parent=1 // pred_check
      _
    $region35: #{tpu_custom_call.1} parent=1 // pred_check_branch
      %44 = sbr.rel (0) target = $region37
    $region36: #{tpu_custom_call.1} parent=1 // pred_region
      _
    $region37: #{tpu_custom_call.1} parent=1 // pred_fallthru
      _
    // Predicated region
    $region38: #{tpu_custom_call.1} parent=1 // pred_check
      _
    $region39: #{tpu_custom_call.1} parent=1 // pred_check_branch
      %46 = sbr.rel (0) target = $region41
    $region40: #{tpu_custom_call.1} parent=1 // pred_region
      _
    $region41: #{tpu_custom_call.1} parent=1 // pred_fallthru
      _
    // Predicated region
    $region42: #{tpu_custom_call.1} parent=1 // pred_check
      _
    $region43: #{tpu_custom_call.1} parent=1 // pred_check_branch
      %48 = sbr.rel (0) target = $region45
    $region44: #{tpu_custom_call.1} parent=1 // pred_region
      %49 = dma.done [#allocation4], 9216
    $region45: #{tpu_custom_call.1} parent=1 // pred_fallthru
      _
    %v51 = vld [vmem:[%s0] sm:$0xf]
    %v52 = vld [vmem:[%s0 + $0x4] sm:$0xf]
    %v53 = vld [vmem:[%s0 + $0x8] sm:$0x1]
    %v54 = vld [vmem:[%s0 + $0xc] sm:$0xf]
    %v55 = vld [vmem:[%s0 + $0x10] sm:$0xf]
    %v56 = vld [vmem:[%s0 + $0x14] sm:$0x1]
    %v57 = vld [vmem:[%s0 + $0x18] sm:$0xf]
    %v58 = vld [vmem:[%s0 + $0x1c] sm:$0xf]
    %v59 = vld [vmem:[%s0 + $0x20] sm:$0x1]
    %v60 = vld [vmem:[%s0 + $0x24] sm:$0xf]
    %v61 = vld [vmem:[%s0 + $0x28] sm:$0xf]
    %v62 = vld [vmem:[%s0 + $0x2c] sm:$0x1]
    %v63 = vld [vmem:[%s0 + $0x30] sm:$0xf]
    %v64 = vld [vmem:[%s0 + $0x34] sm:$0xf]
    %v65 = vld [vmem:[%s0 + $0x38] sm:$0x1]
    %v66 = vld [vmem:[%s0 + $0x3c] sm:$0xf]
    %v67 = vld [vmem:[%s0 + $0x40] sm:$0xf]
    %v68 = vld [vmem:[%s0 + $0x44] sm:$0x1]
    %v69 = vld [vmem:[%s0 + $0x48] sm:$0xf]
    %v70 = vld [vmem:[%s0 + $0x4c] sm:$0xf]
    %v71 = vld [vmem:[%s0 + $0x50] sm:$0x1]
    %v72 = vld [vmem:[%s0 + $0x54] sm:$0xf]
    %v73 = vld [vmem:[%s0 + $0x58] sm:$0xf]
    %v74 = vld [vmem:[%s0 + $0x5c] sm:$0x1]
    %v75 = vld [vmem:[%s0 + $0x60] sm:$0xf]
    %v76 = vld [vmem:[%s0 + $0x64] sm:$0xf]
    %v77 = vld [vmem:[%s0 + $0x68] sm:$0x1]
    %v78 = vld [vmem:[%s0 + $0x6c] sm:$0xf]
    %v79 = vld [vmem:[%s0 + $0x70] sm:$0xf]
    %v80 = vld [vmem:[%s0 + $0x74] sm:$0x1]
    %v81 = vld [vmem:[%s0 + $0x78] sm:$0xf]
    %v82 = vld [vmem:[%s0 + $0x7c] sm:$0xf]
    %v83 = vld [vmem:[%s0 + $0x80] sm:$0x1]
    %v84 = vld [vmem:[%s0 + $0x84] sm:$0xf]
    %v85 = vld [vmem:[%s0 + $0x88] sm:$0xf]
    %v86 = vld [vmem:[%s0 + $0x8c] sm:$0x1]
    %v87 = vld [vmem:[%s0 + $0x90] sm:$0xf]
    %v88 = vld [vmem:[%s0 + $0x94] sm:$0xf]
    %v89 = vld [vmem:[%s0 + $0x98] sm:$0x1]
    %v90 = vld [vmem:[%s0 + $0x9c] sm:$0xf]
    %v91 = vld [vmem:[%s0 + $0xa0] sm:$0xf]
    %v92 = vld [vmem:[%s0 + $0xa4] sm:$0x1]
    %v93 = vld [vmem:[%s0 + $0xa8] sm:$0xf]
    %v94 = vld [vmem:[%s0 + $0xac] sm:$0xf]
    %v95 = vld [vmem:[%s0 + $0xb0] sm:$0x1]
    %v96 = vld [vmem:[%s0 + $0xb4] sm:$0xf]
    %v97 = vld [vmem:[%s0 + $0xb8] sm:$0xf]
    %v98 = vld [vmem:[%s0 + $0xbc] sm:$0x1]
    %v99 = vld [vmem:[%s0 + $0xc0] sm:$0xf]
    %v100 = vld [vmem:[%s0 + $0xc4] sm:$0xf]
    %v101 = vld [vmem:[%s0 + $0xc8] sm:$0x1]
    %v102 = vld [vmem:[%s0 + $0xcc] sm:$0xf]
    %v103 = vld [vmem:[%s0 + $0xd0] sm:$0xf]
    %v104 = vld [vmem:[%s0 + $0xd4] sm:$0x1]
    %v105 = vld [vmem:[%s0 + $0xd8] sm:$0xf]
    %v106 = vld [vmem:[%s0 + $0xdc] sm:$0xf]
    %v107 = vld [vmem:[%s0 + $0xe0] sm:$0x1]
    %v108 = vld [vmem:[%s0 + $0xe4] sm:$0xf]
    %v109 = vld [vmem:[%s0 + $0xe8] sm:$0xf]
    %v110 = vld [vmem:[%s0 + $0xec] sm:$0x1]
    %v111 = vld [vmem:[%s0 + $0xf0] sm:$0xf]
    %v112 = vld [vmem:[%s0 + $0xf4] sm:$0xf]
    %v113 = vld [vmem:[%s0 + $0xf8] sm:$0x1]
    %v114 = vld [vmem:[%s0 + $0xfc] sm:$0xf]
    %v115 = vld [vmem:[%s0 + $0x100] sm:$0xf]
    %v116 = vld [vmem:[%s0 + $0x104] sm:$0x1]
    %v117 = vld [vmem:[%s0 + $0x108] sm:$0xf]
    %v118 = vld [vmem:[%s0 + $0x10c] sm:$0xf]
    %v119 = vld [vmem:[%s0 + $0x110] sm:$0x1]
    %v120 = vld [vmem:[%s0 + $0x114] sm:$0xf]
    %v121 = vld [vmem:[%s0 + $0x118] sm:$0xf]
    %v122 = vld [vmem:[%s0 + $0x11c] sm:$0x1]
    %v123 = vld [vmem:[%s0 + $0x120] sm:$0xf]
    %v124 = vld [vmem:[%s0 + $0x124] sm:$0xf]
    %v125 = vld [vmem:[%s0 + $0x128] sm:$0x1]
    %v126 = vld [vmem:[%s0 + $0x12c] sm:$0xf]
    %v127 = vld [vmem:[%s0 + $0x130] sm:$0xf]
    %v128 = vld [vmem:[%s0 + $0x134] sm:$0x1]
    %v129 = vld [vmem:[%s0 + $0x138] sm:$0xf]
    %v130 = vld [vmem:[%s0 + $0x13c] sm:$0xf]
    %v131 = vld [vmem:[%s0 + $0x140] sm:$0x1]
    %v132 = vld [vmem:[%s0 + $0x144] sm:$0xf]
    %v133 = vld [vmem:[%s0 + $0x148] sm:$0xf]
    %v134 = vld [vmem:[%s0 + $0x14c] sm:$0x1]
    %v135 = vld [vmem:[%s0 + $0x150] sm:$0xf]
    %v136 = vld [vmem:[%s0 + $0x154] sm:$0xf]
    %v137 = vld [vmem:[%s0 + $0x158] sm:$0x1]
    %v138 = vld [vmem:[%s0 + $0x15c] sm:$0xf]
    %v139 = vld [vmem:[%s0 + $0x160] sm:$0xf]
    %v140 = vld [vmem:[%s0 + $0x164] sm:$0x1]
    %v141 = vld [vmem:[%s0 + $0x168] sm:$0xf]
    %v142 = vld [vmem:[%s0 + $0x16c] sm:$0xf]
    %v143 = vld [vmem:[%s0 + $0x170] sm:$0x1]
    %v144 = vld [vmem:[%s0 + $0x174] sm:$0xf]
    %v145 = vld [vmem:[%s0 + $0x178] sm:$0xf]
    %v146 = vld [vmem:[%s0 + $0x17c] sm:$0x1]
    %v147 = vld [vmem:[%s0 + $0x180] sm:$0xf]
    %v148 = vld [vmem:[%s0 + $0x184] sm:$0xf]
    %v149 = vld [vmem:[%s0 + $0x188] sm:$0x1]
    %v150 = vld [vmem:[%s0 + $0x18c] sm:$0xf]
    %v151 = vld [vmem:[%s0 + $0x190] sm:$0xf]
    %v152 = vld [vmem:[%s0 + $0x194] sm:$0x1]
    %v153 = vld [vmem:[%s0 + $0x198] sm:$0xf]
    %v154 = vld [vmem:[%s0 + $0x19c] sm:$0xf]
    %v155 = vld [vmem:[%s0 + $0x1a0] sm:$0x1]
    %v156 = vld [vmem:[%s0 + $0x1a4] sm:$0xf]
    %v157 = vld [vmem:[%s0 + $0x1a8] sm:$0xf]
    %v158 = vld [vmem:[%s0 + $0x1ac] sm:$0x1]
    %v223 = vunpack.c.l.b16 %v51
    %v224 = vunpack.c.l.b16 %v52
    %v225 = vunpack.c.l.b16 %v54
    %v226 = vunpack.c.l.b16 %v55
    %v227 = vunpack.c.l.b16 %v57
    %v228 = vunpack.c.l.b16 %v58
    %v229 = vunpack.c.l.b16 %v60
    %v230 = vunpack.c.l.b16 %v61
    %v231 = vunpack.c.l.b16 %v63
    %v232 = vunpack.c.l.b16 %v64
    %v233 = vunpack.c.l.b16 %v66
    %v234 = vunpack.c.l.b16 %v67
    %v235 = vunpack.c.l.b16 %v69
    %v236 = vunpack.c.l.b16 %v70
    %v237 = vunpack.c.l.b16 %v72
    %v238 = vunpack.c.l.b16 %v73
    %v239 = vunpack.c.l.b16 %v75
    %v240 = vunpack.c.l.b16 %v76
    %v241 = vunpack.c.l.b16 %v78
    %v242 = vunpack.c.l.b16 %v79
    %v243 = vunpack.c.l.b16 %v81
    %v244 = vunpack.c.l.b16 %v82
    %v245 = vunpack.c.l.b16 %v84
    %v246 = vunpack.c.l.b16 %v85
    %v247 = vunpack.c.l.b16 %v87
    %v248 = vunpack.c.l.b16 %v88
    %v249 = vunpack.c.l.b16 %v90
    %v250 = vunpack.c.l.b16 %v91
    %v251 = vunpack.c.l.b16 %v93
    %v252 = vunpack.c.l.b16 %v94
    %v253 = vunpack.c.l.b16 %v96
    %v254 = vunpack.c.l.b16 %v97
    %v255 = vunpack.c.l.b16 %v105
    %v256 = vunpack.c.l.b16 %v106
    %v257 = vunpack.c.l.b16 %v108
    %v258 = vunpack.c.l.b16 %v109
    %v259 = vunpack.c.l.b16 %v111
    %v260 = vunpack.c.l.b16 %v112
    %v261 = vunpack.c.l.b16 %v114
    %v262 = vunpack.c.l.b16 %v115
    %v263 = vunpack.c.l.b16 %v117
    %v264 = vunpack.c.l.b16 %v118
    %v265 = vunpack.c.l.b16 %v120
    %v266 = vunpack.c.l.b16 %v121
    %v267 = vunpack.c.l.b16 %v123
    %v268 = vunpack.c.l.b16 %v124
    %v269 = vunpack.c.l.b16 %v126
    %v270 = vunpack.c.l.b16 %v127
    %v271 = vunpack.c.l.b16 %v129
    %v272 = vunpack.c.l.b16 %v130
    %v273 = vunpack.c.l.b16 %v132
    %v274 = vunpack.c.l.b16 %v133
    %v275 = vunpack.c.l.b16 %v135
    %v276 = vunpack.c.l.b16 %v136
    %v277 = vunpack.c.l.b16 %v138
    %v278 = vunpack.c.l.b16 %v139
    %v279 = vunpack.c.l.b16 %v141
    %v280 = vunpack.c.l.b16 %v142
    %v281 = vunpack.c.l.b16 %v144
    %v282 = vunpack.c.l.b16 %v145
    %v283 = vunpack.c.l.b16 %v147
    %v284 = vunpack.c.l.b16 %v148
    %v285 = vunpack.c.l.b16 %v150
    %v286 = vunpack.c.l.b16 %v151
    %v287 = vpack.c.b16 %v224, %v223
    %v288 = vpack.c.b16 %v226, %v225
    %v289 = vpack.c.b16 %v228, %v227
    %v290 = vpack.c.b16 %v230, %v229
    %v291 = vpack.c.b16 %v232, %v231
    %v292 = vpack.c.b16 %v234, %v233
    %v293 = vpack.c.b16 %v236, %v235
    %v294 = vpack.c.b16 %v238, %v237
    %v295 = vpack.c.b16 %v240, %v239
    %v296 = vpack.c.b16 %v242, %v241
    %v297 = vpack.c.b16 %v244, %v243
    %v298 = vpack.c.b16 %v246, %v245
    %v299 = vpack.c.b16 %v248, %v247
    %v300 = vpack.c.b16 %v250, %v249
    %v301 = vpack.c.b16 %v252, %v251
    %v302 = vpack.c.b16 %v254, %v253
    %v303 = vpack.c.b16 %v256, %v255
    %v304 = vpack.c.b16 %v258, %v257
    %v305 = vpack.c.b16 %v260, %v259
    %v306 = vpack.c.b16 %v262, %v261
    %v307 = vpack.c.b16 %v264, %v263
    %v308 = vpack.c.b16 %v266, %v265
    %v309 = vpack.c.b16 %v268, %v267
    %v310 = vpack.c.b16 %v270, %v269
    %v311 = vpack.c.b16 %v272, %v271
    %v312 = vpack.c.b16 %v274, %v273
    %v313 = vpack.c.b16 %v276, %v275
    %v314 = vpack.c.b16 %v278, %v277
    %v315 = vpack.c.b16 %v280, %v279
    %v316 = vpack.c.b16 %v282, %v281
    %v317 = vpack.c.b16 %v284, %v283
    %v318 = vpack.c.b16 %v286, %v285
    %v383 = vunpack.c.l.b16 %v53
    %v384 = vunpack.c.l.b16 %v56
    %v385 = vunpack.c.l.b16 %v59
    %v386 = vunpack.c.l.b16 %v62
    %v387 = vunpack.c.l.b16 %v65
    %v388 = vunpack.c.l.b16 %v68
    %v389 = vunpack.c.l.b16 %v71
    %v390 = vunpack.c.l.b16 %v74
    %v391 = vunpack.c.l.b16 %v77
    %v392 = vunpack.c.l.b16 %v80
    %v393 = vunpack.c.l.b16 %v83
    %v394 = vunpack.c.l.b16 %v86
    %v395 = vunpack.c.l.b16 %v89
    %v396 = vunpack.c.l.b16 %v92
    %v397 = vunpack.c.l.b16 %v95
    %v398 = vunpack.c.l.b16 %v98
    %v399 = vunpack.c.l.b16 %v107
    %v400 = vunpack.c.l.b16 %v110
    %v401 = vunpack.c.l.b16 %v113
    %v402 = vunpack.c.l.b16 %v116
    %v403 = vunpack.c.l.b16 %v119
    %v404 = vunpack.c.l.b16 %v122
    %v405 = vunpack.c.l.b16 %v125
    %v406 = vunpack.c.l.b16 %v128
    %v407 = vunpack.c.l.b16 %v131
    %v408 = vunpack.c.l.b16 %v134
    %v409 = vunpack.c.l.b16 %v137
    %v410 = vunpack.c.l.b16 %v140
    %v411 = vunpack.c.l.b16 %v143
    %v412 = vunpack.c.l.b16 %v146
    %v413 = vunpack.c.l.b16 %v149
    %v414 = vunpack.c.l.b16 %v152
    %v415 = vpack.c.b16 %v383, %v383
    %v416 = vpack.c.b16 %v384, %v384
    %v417 = vpack.c.b16 %v385, %v385
    %v418 = vpack.c.b16 %v386, %v386
    %v419 = vpack.c.b16 %v387, %v387
    %v420 = vpack.c.b16 %v388, %v388
    %v421 = vpack.c.b16 %v389, %v389
    %v422 = vpack.c.b16 %v390, %v390
    %v423 = vpack.c.b16 %v391, %v391
    %v424 = vpack.c.b16 %v392, %v392
    %v425 = vpack.c.b16 %v393, %v393
    %v426 = vpack.c.b16 %v394, %v394
    %v427 = vpack.c.b16 %v395, %v395
    %v428 = vpack.c.b16 %v396, %v396
    %v429 = vpack.c.b16 %v397, %v397
    %v430 = vpack.c.b16 %v398, %v398
    %v431 = vpack.c.b16 %v399, %v399
    %v432 = vpack.c.b16 %v400, %v400
    %v433 = vpack.c.b16 %v401, %v401
    %v434 = vpack.c.b16 %v402, %v402
    %v435 = vpack.c.b16 %v403, %v403
    %v436 = vpack.c.b16 %v404, %v404
    %v437 = vpack.c.b16 %v405, %v405
    %v438 = vpack.c.b16 %v406, %v406
    %v439 = vpack.c.b16 %v407, %v407
    %v440 = vpack.c.b16 %v408, %v408
    %v441 = vpack.c.b16 %v409, %v409
    %v442 = vpack.c.b16 %v410, %v410
    %v443 = vpack.c.b16 %v411, %v411
    %v444 = vpack.c.b16 %v412, %v412
    %v445 = vpack.c.b16 %v413, %v413
    %v446 = vpack.c.b16 %v414, %v414
    %vm447 = vsmask.f32 7424
    %v449 = vshrl.u32 %v287, 16
    %v451 = vshll.u32 %v287, 16
    %v453 = vrot.slane %v451, 1
    %v454 = vor.u32 %v449, %v453
    %v456 = vshll.u32 %v415, 16
    %v458 = vrot.slane %v456, 1
    %v459 = vsel %vm447, %v454, %v458
    %v461 = vshrl.u32 %v288, 16
    %v463 = vshll.u32 %v288, 16
    %v465 = vrot.slane %v463, 1
    %v466 = vor.u32 %v461, %v465
    %v468 = vshll.u32 %v416, 16
    %v470 = vrot.slane %v468, 1
    %v471 = vsel %vm447, %v466, %v470
    %v473 = vshrl.u32 %v289, 16
    %v475 = vshll.u32 %v289, 16
    %v477 = vrot.slane %v475, 1
    %v478 = vor.u32 %v473, %v477
    %v480 = vshll.u32 %v417, 16
    %v482 = vrot.slane %v480, 1
    %v483 = vsel %vm447, %v478, %v482
    %v485 = vshrl.u32 %v290, 16
    %v487 = vshll.u32 %v290, 16
    %v489 = vrot.slane %v487, 1
    %v490 = vor.u32 %v485, %v489
    %v492 = vshll.u32 %v418, 16
    %v494 = vrot.slane %v492, 1
    %v495 = vsel %vm447, %v490, %v494
    %v497 = vshrl.u32 %v291, 16
    %v499 = vshll.u32 %v291, 16
    %v501 = vrot.slane %v499, 1
    %v502 = vor.u32 %v497, %v501
    %v504 = vshll.u32 %v419, 16
    %v506 = vrot.slane %v504, 1
    %v507 = vsel %vm447, %v502, %v506
    %v509 = vshrl.u32 %v292, 16
    %v511 = vshll.u32 %v292, 16
    %v513 = vrot.slane %v511, 1
    %v514 = vor.u32 %v509, %v513
    %v516 = vshll.u32 %v420, 16
    %v518 = vrot.slane %v516, 1
    %v519 = vsel %vm447, %v514, %v518
    %v521 = vshrl.u32 %v293, 16
    %v523 = vshll.u32 %v293, 16
    %v525 = vrot.slane %v523, 1
    %v526 = vor.u32 %v521, %v525
    %v528 = vshll.u32 %v421, 16
    %v530 = vrot.slane %v528, 1
    %v531 = vsel %vm447, %v526, %v530
    %v533 = vshrl.u32 %v294, 16
    %v535 = vshll.u32 %v294, 16
    %v537 = vrot.slane %v535, 1
    %v538 = vor.u32 %v533, %v537
    %v540 = vshll.u32 %v422, 16
    %v542 = vrot.slane %v540, 1
    %v543 = vsel %vm447, %v538, %v542
    %v545 = vshrl.u32 %v295, 16
    %v547 = vshll.u32 %v295, 16
    %v549 = vrot.slane %v547, 1
    %v550 = vor.u32 %v545, %v549
    %v552 = vshll.u32 %v423, 16
    %v554 = vrot.slane %v552, 1
    %v555 = vsel %vm447, %v550, %v554
    %v557 = vshrl.u32 %v296, 16
    %v559 = vshll.u32 %v296, 16
    %v561 = vrot.slane %v559, 1
    %v562 = vor.u32 %v557, %v561
    %v564 = vshll.u32 %v424, 16
    %v566 = vrot.slane %v564, 1
    %v567 = vsel %vm447, %v562, %v566
    %v569 = vshrl.u32 %v297, 16
    %v571 = vshll.u32 %v297, 16
    %v573 = vrot.slane %v571, 1
    %v574 = vor.u32 %v569, %v573
    %v576 = vshll.u32 %v425, 16
    %v578 = vrot.slane %v576, 1
    %v579 = vsel %vm447, %v574, %v578
    %v581 = vshrl.u32 %v298, 16
    %v583 = vshll.u32 %v298, 16
    %v585 = vrot.slane %v583, 1
    %v586 = vor.u32 %v581, %v585
    %v588 = vshll.u32 %v426, 16
    %v590 = vrot.slane %v588, 1
    %v591 = vsel %vm447, %v586, %v590
    %v593 = vshrl.u32 %v299, 16
    %v595 = vshll.u32 %v299, 16
    %v597 = vrot.slane %v595, 1
    %v598 = vor.u32 %v593, %v597
    %v600 = vshll.u32 %v427, 16
    %v602 = vrot.slane %v600, 1
    %v603 = vsel %vm447, %v598, %v602
    %v605 = vshrl.u32 %v300, 16
    %v607 = vshll.u32 %v300, 16
    %v609 = vrot.slane %v607, 1
    %v610 = vor.u32 %v605, %v609
    %v612 = vshll.u32 %v428, 16
    %v614 = vrot.slane %v612, 1
    %v615 = vsel %vm447, %v610, %v614
    %v617 = vshrl.u32 %v301, 16
    %v619 = vshll.u32 %v301, 16
    %v621 = vrot.slane %v619, 1
    %v622 = vor.u32 %v617, %v621
    %v624 = vshll.u32 %v429, 16
    %v626 = vrot.slane %v624, 1
    %v627 = vsel %vm447, %v622, %v626
    %v629 = vshrl.u32 %v302, 16
    %v631 = vshll.u32 %v302, 16
    %v633 = vrot.slane %v631, 1
    %v634 = vor.u32 %v629, %v633
    %v636 = vshll.u32 %v430, 16
    %v638 = vrot.slane %v636, 1
    %v639 = vsel %vm447, %v634, %v638
    %v641 = vshrl.u32 %v303, 16
    %v643 = vshll.u32 %v303, 16
    %v645 = vrot.slane %v643, 1
    %v646 = vor.u32 %v641, %v645
    %v648 = vshll.u32 %v431, 16
    %v650 = vrot.slane %v648, 1
    %v651 = vsel %vm447, %v646, %v650
    %v653 = vshrl.u32 %v304, 16
    %v655 = vshll.u32 %v304, 16
    %v657 = vrot.slane %v655, 1
    %v658 = vor.u32 %v653, %v657
    %v660 = vshll.u32 %v432, 16
    %v662 = vrot.slane %v660, 1
    %v663 = vsel %vm447, %v658, %v662
    %v665 = vshrl.u32 %v305, 16
    %v667 = vshll.u32 %v305, 16
    %v669 = vrot.slane %v667, 1
    %v670 = vor.u32 %v665, %v669
    %v672 = vshll.u32 %v433, 16
    %v674 = vrot.slane %v672, 1
    %v675 = vsel %vm447, %v670, %v674
    %v677 = vshrl.u32 %v306, 16
    %v679 = vshll.u32 %v306, 16
    %v681 = vrot.slane %v679, 1
    %v682 = vor.u32 %v677, %v681
    %v684 = vshll.u32 %v434, 16
    %v686 = vrot.slane %v684, 1
    %v687 = vsel %vm447, %v682, %v686
    %v689 = vshrl.u32 %v307, 16
    %v691 = vshll.u32 %v307, 16
    %v693 = vrot.slane %v691, 1
    %v694 = vor.u32 %v689, %v693
    %v696 = vshll.u32 %v435, 16
    %v698 = vrot.slane %v696, 1
    %v699 = vsel %vm447, %v694, %v698
    %v701 = vshrl.u32 %v308, 16
    %v703 = vshll.u32 %v308, 16
    %v705 = vrot.slane %v703, 1
    %v706 = vor.u32 %v701, %v705
    %v708 = vshll.u32 %v436, 16
    %v710 = vrot.slane %v708, 1
    %v711 = vsel %vm447, %v706, %v710
    %v713 = vshrl.u32 %v309, 16
    %v715 = vshll.u32 %v309, 16
    %v717 = vrot.slane %v715, 1
    %v718 = vor.u32 %v713, %v717
    %v720 = vshll.u32 %v437, 16
    %v722 = vrot.slane %v720, 1
    %v723 = vsel %vm447, %v718, %v722
    %v725 = vshrl.u32 %v310, 16
    %v727 = vshll.u32 %v310, 16
    %v729 = vrot.slane %v727, 1
    %v730 = vor.u32 %v725, %v729
    %v732 = vshll.u32 %v438, 16
    %v734 = vrot.slane %v732, 1
    %v735 = vsel %vm447, %v730, %v734
    %v737 = vshrl.u32 %v311, 16
    %v739 = vshll.u32 %v311, 16
    %v741 = vrot.slane %v739, 1
    %v742 = vor.u32 %v737, %v741
    %v744 = vshll.u32 %v439, 16
    %v746 = vrot.slane %v744, 1
    %v747 = vsel %vm447, %v742, %v746
    %v749 = vshrl.u32 %v312, 16
    %v751 = vshll.u32 %v312, 16
    %v753 = vrot.slane %v751, 1
    %v754 = vor.u32 %v749, %v753
    %v756 = vshll.u32 %v440, 16
    %v758 = vrot.slane %v756, 1
    %v759 = vsel %vm447, %v754, %v758
    %v761 = vshrl.u32 %v313, 16
    %v763 = vshll.u32 %v313, 16
    %v765 = vrot.slane %v763, 1
    %v766 = vor.u32 %v761, %v765
    %v768 = vshll.u32 %v441, 16
    %v770 = vrot.slane %v768, 1
    %v771 = vsel %vm447, %v766, %v770
    %v773 = vshrl.u32 %v314, 16
    %v775 = vshll.u32 %v314, 16
    %v777 = vrot.slane %v775, 1
    %v778 = vor.u32 %v773, %v777
    %v780 = vshll.u32 %v442, 16
    %v782 = vrot.slane %v780, 1
    %v783 = vsel %vm447, %v778, %v782
    %v785 = vshrl.u32 %v315, 16
    %v787 = vshll.u32 %v315, 16
    %v789 = vrot.slane %v787, 1
    %v790 = vor.u32 %v785, %v789
    %v792 = vshll.u32 %v443, 16
    %v794 = vrot.slane %v792, 1
    %v795 = vsel %vm447, %v790, %v794
    %v797 = vshrl.u32 %v316, 16
    %v799 = vshll.u32 %v316, 16
    %v801 = vrot.slane %v799, 1
    %v802 = vor.u32 %v797, %v801
    %v804 = vshll.u32 %v444, 16
    %v806 = vrot.slane %v804, 1
    %v807 = vsel %vm447, %v802, %v806
    %v809 = vshrl.u32 %v317, 16
    %v811 = vshll.u32 %v317, 16
    %v813 = vrot.slane %v811, 1
    %v814 = vor.u32 %v809, %v813
    %v816 = vshll.u32 %v445, 16
    %v818 = vrot.slane %v816, 1
    %v819 = vsel %vm447, %v814, %v818
    %v821 = vshrl.u32 %v318, 16
    %v823 = vshll.u32 %v318, 16
    %v825 = vrot.slane %v823, 1
    %v826 = vor.u32 %v821, %v825
    %v828 = vshll.u32 %v446, 16
    %v830 = vrot.slane %v828, 1
    %v831 = vsel %vm447, %v826, %v830
    %vm864 = vcmask 1046528
    %v865 = vrot.slane %v287, 1
    %v866 = vrot.slane %v415, 1
    %v867 = vsel %vm864, %v865, %v866
    %v868 = vrot.slane %v288, 1
    %v869 = vrot.slane %v416, 1
    %v870 = vsel %vm864, %v868, %v869
    %v871 = vrot.slane %v289, 1
    %v872 = vrot.slane %v417, 1
    %v873 = vsel %vm864, %v871, %v872
    %v874 = vrot.slane %v290, 1
    %v875 = vrot.slane %v418, 1
    %v876 = vsel %vm864, %v874, %v875
    %v877 = vrot.slane %v291, 1
    %v878 = vrot.slane %v419, 1
    %v879 = vsel %vm864, %v877, %v878
    %v880 = vrot.slane %v292, 1
    %v881 = vrot.slane %v420, 1
    %v882 = vsel %vm864, %v880, %v881
    %v883 = vrot.slane %v293, 1
    %v884 = vrot.slane %v421, 1
    %v885 = vsel %vm864, %v883, %v884
    %v886 = vrot.slane %v294, 1
    %v887 = vrot.slane %v422, 1
    %v888 = vsel %vm864, %v886, %v887
    %v889 = vrot.slane %v295, 1
    %v890 = vrot.slane %v423, 1
    %v891 = vsel %vm864, %v889, %v890
    %v892 = vrot.slane %v296, 1
    %v893 = vrot.slane %v424, 1
    %v894 = vsel %vm864, %v892, %v893
    %v895 = vrot.slane %v297, 1
    %v896 = vrot.slane %v425, 1
    %v897 = vsel %vm864, %v895, %v896
    %v898 = vrot.slane %v298, 1
    %v899 = vrot.slane %v426, 1
    %v900 = vsel %vm864, %v898, %v899
    %v901 = vrot.slane %v299, 1
    %v902 = vrot.slane %v427, 1
    %v903 = vsel %vm864, %v901, %v902
    %v904 = vrot.slane %v300, 1
    %v905 = vrot.slane %v428, 1
    %v906 = vsel %vm864, %v904, %v905
    %v907 = vrot.slane %v301, 1
    %v908 = vrot.slane %v429, 1
    %v909 = vsel %vm864, %v907, %v908
    %v910 = vrot.slane %v302, 1
    %v911 = vrot.slane %v430, 1
    %v912 = vsel %vm864, %v910, %v911
    %v913 = vrot.slane %v303, 1
    %v914 = vrot.slane %v431, 1
    %v915 = vsel %vm864, %v913, %v914
    %v916 = vrot.slane %v304, 1
    %v917 = vrot.slane %v432, 1
    %v918 = vsel %vm864, %v916, %v917
    %v919 = vrot.slane %v305, 1
    %v920 = vrot.slane %v433, 1
    %v921 = vsel %vm864, %v919, %v920
    %v922 = vrot.slane %v306, 1
    %v923 = vrot.slane %v434, 1
    %v924 = vsel %vm864, %v922, %v923
    %v925 = vrot.slane %v307, 1
    %v926 = vrot.slane %v435, 1
    %v927 = vsel %vm864, %v925, %v926
    %v928 = vrot.slane %v308, 1
    %v929 = vrot.slane %v436, 1
    %v930 = vsel %vm864, %v928, %v929
    %v931 = vrot.slane %v309, 1
    %v932 = vrot.slane %v437, 1
    %v933 = vsel %vm864, %v931, %v932
    %v934 = vrot.slane %v310, 1
    %v935 = vrot.slane %v438, 1
    %v936 = vsel %vm864, %v934, %v935
    %v937 = vrot.slane %v311, 1
    %v938 = vrot.slane %v439, 1
    %v939 = vsel %vm864, %v937, %v938
    %v940 = vrot.slane %v312, 1
    %v941 = vrot.slane %v440, 1
    %v942 = vsel %vm864, %v940, %v941
    %v943 = vrot.slane %v313, 1
    %v944 = vrot.slane %v441, 1
    %v945 = vsel %vm864, %v943, %v944
    %v946 = vrot.slane %v314, 1
    %v947 = vrot.slane %v442, 1
    %v948 = vsel %vm864, %v946, %v947
    %v949 = vrot.slane %v315, 1
    %v950 = vrot.slane %v443, 1
    %v951 = vsel %vm864, %v949, %v950
    %v952 = vrot.slane %v316, 1
    %v953 = vrot.slane %v444, 1
    %v954 = vsel %vm864, %v952, %v953
    %v955 = vrot.slane %v317, 1
    %v956 = vrot.slane %v445, 1
    %v957 = vsel %vm864, %v955, %v956
    %v958 = vrot.slane %v318, 1
    %v959 = vrot.slane %v446, 1
    %v960 = vsel %vm864, %v958, %v959
    %v997 = vunpack.c.l.b16 %v99
    %v998 = vunpack.c.l.b16 %v100
    %v999 = vunpack.c.l.b16 %v153
    %v1000 = vunpack.c.l.b16 %v154
    %v1001 = vpack.c.b16 %v998, %v997
    %v1002 = vpack.c.b16 %v1000, %v999
    %v1007 = vunpack.c.l.b16 %v101
    %v1008 = vunpack.c.l.b16 %v155
    %v1009 = vpack.c.b16 %v1007, %v1007
    %v1010 = vpack.c.b16 %v1008, %v1008
    %v1012 = vshrl.u32 %v1001, 16
    %v1014 = vshll.u32 %v1001, 16
    %v1016 = vrot.slane %v1014, 1
    %v1017 = vor.u32 %v1012, %v1016
    %v1019 = vshll.u32 %v1009, 16
    %v1021 = vrot.slane %v1019, 1
    %v1022 = vsel %vm447, %v1017, %v1021
    %v1024 = vshrl.u32 %v1002, 16
    %v1026 = vshll.u32 %v1002, 16
    %v1028 = vrot.slane %v1026, 1
    %v1029 = vor.u32 %v1024, %v1028
    %v1031 = vshll.u32 %v1010, 16
    %v1033 = vrot.slane %v1031, 1
    %v1034 = vsel %vm447, %v1029, %v1033
    %v1037 = vrot.slane %v1001, 1
    %v1038 = vrot.slane %v1009, 1
    %v1039 = vsel %vm864, %v1037, %v1038
    %v1040 = vrot.slane %v1002, 1
    %v1041 = vrot.slane %v1010, 1
    %v1042 = vsel %vm864, %v1040, %v1041
    %v1049 = vunpack.c.l.b16 %v102
    %v1050 = vunpack.c.l.b16 %v103
    %v1051 = vunpack.c.l.b16 %v156
    %v1052 = vunpack.c.l.b16 %v157
    %v1053 = vpack.c.b16 %v1050, %v1049
    %v1054 = vpack.c.b16 %v1052, %v1051
    %v1059 = vunpack.c.l.b16 %v104
    %v1060 = vunpack.c.l.b16 %v158
    %v1061 = vpack.c.b16 %v1059, %v1059
    %v1062 = vpack.c.b16 %v1060, %v1060
    %v1064 = vshrl.u32 %v1053, 16
    %v1066 = vshll.u32 %v1053, 16
    %v1068 = vrot.slane %v1066, 1
    %v1069 = vor.u32 %v1064, %v1068
    %v1071 = vshll.u32 %v1061, 16
    %v1073 = vrot.slane %v1071, 1
    %v1074 = vsel %vm447, %v1069, %v1073
    %v1076 = vshrl.u32 %v1054, 16
    %v1078 = vshll.u32 %v1054, 16
    %v1080 = vrot.slane %v1078, 1
    %v1081 = vor.u32 %v1076, %v1080
    %v1083 = vshll.u32 %v1062, 16
    %v1085 = vrot.slane %v1083, 1
    %v1086 = vsel %vm447, %v1081, %v1085
    %v1089 = vrot.slane %v1053, 1
    %v1090 = vrot.slane %v1061, 1
    %v1091 = vsel %vm864, %v1089, %v1090
    %v1092 = vrot.slane %v1054, 1
    %v1093 = vrot.slane %v1062, 1
    %v1094 = vsel %vm864, %v1092, %v1093
    %v1097 = vld [vmem:[%s1] sm:$0xf]
    %v1098 = vld [vmem:[%s1 + $0x4] sm:$0xf]
    %v1099 = vld [vmem:[%s1 + $0x8] sm:$0xf]
    %v1100 = vld [vmem:[%s1 + $0xc] sm:$0xf]
    %v1101 = vld [vmem:[%s1 + $0x10] sm:$0xf]
    %v1102 = vld [vmem:[%s1 + $0x14] sm:$0xf]
    %v1103 = vld [vmem:[%s1 + $0x18] sm:$0xf]
    %v1104 = vld [vmem:[%s1 + $0x1c] sm:$0xf]
    %v1105 = vld [vmem:[%s1 + $0x20] sm:$0xf]
    %v1106 = vld [vmem:[%s1 + $0x24] sm:$0xf]
    %v1107 = vld [vmem:[%s1 + $0x28] sm:$0xf]
    %v1108 = vld [vmem:[%s1 + $0x2c] sm:$0xf]
    %v1109 = vld [vmem:[%s1 + $0x30] sm:$0xf]
    %v1110 = vld [vmem:[%s1 + $0x34] sm:$0xf]
    %v1111 = vld [vmem:[%s1 + $0x38] sm:$0xf]
    %v1112 = vld [vmem:[%s1 + $0x3c] sm:$0xf]
    %v1113 = vld [vmem:[%s1 + $0x40] sm:$0xf]
    %v1114 = vld [vmem:[%s1 + $0x44] sm:$0xf]
    %v1115 = vld [vmem:[%s1 + $0x48] sm:$0xf]
    %v1116 = vld [vmem:[%s1 + $0x4c] sm:$0xf]
    %v1117 = vld [vmem:[%s1 + $0x50] sm:$0xf]
    %v1118 = vld [vmem:[%s1 + $0x54] sm:$0xf]
    %v1119 = vld [vmem:[%s1 + $0x58] sm:$0xf]
    %v1120 = vld [vmem:[%s1 + $0x5c] sm:$0xf]
    %v1121 = vld [vmem:[%s1 + $0x60] sm:$0xf]
    %v1122 = vld [vmem:[%s1 + $0x64] sm:$0xf]
    %v1123 = vld [vmem:[%s1 + $0x68] sm:$0xf]
    %v1124 = vld [vmem:[%s1 + $0x6c] sm:$0xf]
    %v1125 = vld [vmem:[%s1 + $0x70] sm:$0xf]
    %v1126 = vld [vmem:[%s1 + $0x74] sm:$0xf]
    %v1127 = vld [vmem:[%s1 + $0x78] sm:$0xf]
    %v1128 = vld [vmem:[%s1 + $0x7c] sm:$0xf]
    %v1129 = vld [vmem:[%s1 + $0x80] sm:$0xf]
    %v1130 = vld [vmem:[%s1 + $0x84] sm:$0xf]
    %v1131 = vld [vmem:[%s1 + $0x88] sm:$0xf]
    %v1132 = vld [vmem:[%s1 + $0x8c] sm:$0xf]
    %v1133 = vld [vmem:[%s1 + $0x90] sm:$0xf]
    %v1134 = vld [vmem:[%s1 + $0x94] sm:$0xf]
    %v1135 = vld [vmem:[%s1 + $0x98] sm:$0xf]
    %v1136 = vld [vmem:[%s1 + $0x9c] sm:$0xf]
    %v1137 = vld [vmem:[%s1 + $0xa0] sm:$0xf]
    %v1138 = vld [vmem:[%s1 + $0xa4] sm:$0xf]
    %v1139 = vld [vmem:[%s1 + $0xa8] sm:$0xf]
    %v1140 = vld [vmem:[%s1 + $0xac] sm:$0xf]
    %v1141 = vld [vmem:[%s1 + $0xb0] sm:$0xf]
    %v1142 = vld [vmem:[%s1 + $0xb4] sm:$0xf]
    %v1143 = vld [vmem:[%s1 + $0xb8] sm:$0xf]
    %v1144 = vld [vmem:[%s1 + $0xbc] sm:$0xf]
    %v1145 = vld [vmem:[%s1 + $0xc0] sm:$0xf]
    %v1146 = vld [vmem:[%s1 + $0xc4] sm:$0xf]
    %v1147 = vld [vmem:[%s1 + $0xc8] sm:$0xf]
    %v1148 = vld [vmem:[%s1 + $0xcc] sm:$0xf]
    %v1149 = vld [vmem:[%s1 + $0xd0] sm:$0xf]
    %v1150 = vld [vmem:[%s1 + $0xd4] sm:$0xf]
    %v1151 = vld [vmem:[%s1 + $0xd8] sm:$0xf]
    %v1152 = vld [vmem:[%s1 + $0xdc] sm:$0xf]
    %v1153 = vld [vmem:[%s1 + $0xe0] sm:$0xf]
    %v1154 = vld [vmem:[%s1 + $0xe4] sm:$0xf]
    %v1155 = vld [vmem:[%s1 + $0xe8] sm:$0xf]
    %v1156 = vld [vmem:[%s1 + $0xec] sm:$0xf]
    %v1157 = vld [vmem:[%s1 + $0xf0] sm:$0xf]
    %v1158 = vld [vmem:[%s1 + $0xf4] sm:$0xf]
    %v1159 = vld [vmem:[%s1 + $0xf8] sm:$0xf]
    %v1160 = vld [vmem:[%s1 + $0xfc] sm:$0xf]
    %v1161 = vld [vmem:[%s1 + $0x100] sm:$0xf]
    %v1162 = vld [vmem:[%s1 + $0x104] sm:$0xf]
    %v1163 = vld [vmem:[%s1 + $0x108] sm:$0xf]
    %v1164 = vld [vmem:[%s1 + $0x10c] sm:$0xf]
    %v1165 = vld [vmem:[%s1 + $0x110] sm:$0xf]
    %v1166 = vld [vmem:[%s1 + $0x114] sm:$0xf]
    %v1167 = vld [vmem:[%s1 + $0x118] sm:$0xf]
    %v1168 = vld [vmem:[%s1 + $0x11c] sm:$0xf]
    %v1169 = vld [vmem:[%s1 + $0x120] sm:$0xf]
    %v1170 = vld [vmem:[%s1 + $0x124] sm:$0xf]
    %v1171 = vld [vmem:[%s1 + $0x128] sm:$0xf]
    %v1172 = vld [vmem:[%s1 + $0x12c] sm:$0xf]
    %v1173 = vld [vmem:[%s1 + $0x130] sm:$0xf]
    %v1174 = vld [vmem:[%s1 + $0x134] sm:$0xf]
    %v1175 = vld [vmem:[%s1 + $0x138] sm:$0xf]
    %v1176 = vld [vmem:[%s1 + $0x13c] sm:$0xf]
    %v1177 = vld [vmem:[%s1 + $0x140] sm:$0xf]
    %v1178 = vld [vmem:[%s1 + $0x144] sm:$0xf]
    %v1179 = vld [vmem:[%s1 + $0x148] sm:$0xf]
    %v1180 = vld [vmem:[%s1 + $0x14c] sm:$0xf]
    %v1181 = vld [vmem:[%s1 + $0x150] sm:$0xf]
    %v1182 = vld [vmem:[%s1 + $0x154] sm:$0xf]
    %v1183 = vld [vmem:[%s1 + $0x158] sm:$0xf]
    %v1184 = vld [vmem:[%s1 + $0x15c] sm:$0xf]
    %v1185 = vld [vmem:[%s1 + $0x160] sm:$0xf]
    %v1186 = vld [vmem:[%s1 + $0x164] sm:$0xf]
    %v1187 = vld [vmem:[%s1 + $0x168] sm:$0xf]
    %v1188 = vld [vmem:[%s1 + $0x16c] sm:$0xf]
    %v1189 = vld [vmem:[%s1 + $0x170] sm:$0xf]
    %v1190 = vld [vmem:[%s1 + $0x174] sm:$0xf]
    %v1191 = vld [vmem:[%s1 + $0x178] sm:$0xf]
    %v1192 = vld [vmem:[%s1 + $0x17c] sm:$0xf]
    %v1193 = vld [vmem:[%s1 + $0x180] sm:$0xf]
    %v1194 = vld [vmem:[%s1 + $0x184] sm:$0xf]
    %v1195 = vld [vmem:[%s1 + $0x188] sm:$0xf]
    %v1196 = vld [vmem:[%s1 + $0x18c] sm:$0xf]
    %v1197 = vld [vmem:[%s1 + $0x190] sm:$0xf]
    %v1198 = vld [vmem:[%s1 + $0x194] sm:$0xf]
    %v1199 = vld [vmem:[%s1 + $0x198] sm:$0xf]
    %v1200 = vld [vmem:[%s1 + $0x19c] sm:$0xf]
    %v1201 = vld [vmem:[%s1 + $0x1a0] sm:$0xf]
    %v1202 = vld [vmem:[%s1 + $0x1a4] sm:$0xf]
    %v1203 = vld [vmem:[%s1 + $0x1a8] sm:$0xf]
    %v1204 = vld [vmem:[%s1 + $0x1ac] sm:$0xf]
    %v1205 = vld [vmem:[%s1 + $0x1b0] sm:$0xf]
    %v1206 = vld [vmem:[%s1 + $0x1b4] sm:$0xf]
    %v1207 = vld [vmem:[%s1 + $0x1b8] sm:$0xf]
    %v1208 = vld [vmem:[%s1 + $0x1bc] sm:$0xf]
    %v1209 = vld [vmem:[%s1 + $0x1c0] sm:$0xf]
    %v1210 = vld [vmem:[%s1 + $0x1c4] sm:$0xf]
    %v1211 = vld [vmem:[%s1 + $0x1c8] sm:$0xf]
    %v1212 = vld [vmem:[%s1 + $0x1cc] sm:$0xf]
    %v1213 = vld [vmem:[%s1 + $0x1d0] sm:$0xf]
    %v1214 = vld [vmem:[%s1 + $0x1d4] sm:$0xf]
    %v1215 = vld [vmem:[%s1 + $0x1d8] sm:$0xf]
    %v1216 = vld [vmem:[%s1 + $0x1dc] sm:$0xf]
    %v1217 = vld [vmem:[%s1 + $0x1e0] sm:$0xf]
    %v1218 = vld [vmem:[%s1 + $0x1e4] sm:$0xf]
    %v1219 = vld [vmem:[%s1 + $0x1e8] sm:$0xf]
    %v1220 = vld [vmem:[%s1 + $0x1ec] sm:$0xf]
    %v1221 = vld [vmem:[%s1 + $0x1f0] sm:$0xf]
    %v1222 = vld [vmem:[%s1 + $0x1f4] sm:$0xf]
    %v1223 = vld [vmem:[%s1 + $0x1f8] sm:$0xf]
    %v1224 = vld [vmem:[%s1 + $0x1fc] sm:$0xf]
    %v1225 = vld [vmem:[%s1 + $0x200] sm:$0xf]
    %v1226 = vld [vmem:[%s1 + $0x204] sm:$0xf]
    %v1227 = vld [vmem:[%s1 + $0x208] sm:$0xf]
    %v1228 = vld [vmem:[%s1 + $0x20c] sm:$0xf]
    %v1229 = vld [vmem:[%s1 + $0x210] sm:$0xf]
    %v1230 = vld [vmem:[%s1 + $0x214] sm:$0xf]
    %v1231 = vld [vmem:[%s1 + $0x218] sm:$0xf]
    %v1232 = vld [vmem:[%s1 + $0x21c] sm:$0xf]
    %v1233 = vld [vmem:[%s1 + $0x220] sm:$0xf]
    %v1234 = vld [vmem:[%s1 + $0x224] sm:$0xf]
    %v1235 = vld [vmem:[%s1 + $0x228] sm:$0xf]
    %v1236 = vld [vmem:[%s1 + $0x22c] sm:$0xf]
    %v1237 = vld [vmem:[%s1 + $0x230] sm:$0xf]
    %v1238 = vld [vmem:[%s1 + $0x234] sm:$0xf]
    %v1239 = vld [vmem:[%s1 + $0x238] sm:$0xf]
    %v1240 = vld [vmem:[%s1 + $0x23c] sm:$0xf]
    %v1385 = vunpack.c.l.b16 %v1097
    %v1386 = vunpack.c.l.b16 %v1098
    %v1387 = vunpack.c.l.b16 %v1099
    %v1388 = vunpack.c.l.b16 %v1100
    %v1389 = vunpack.c.l.b16 %v1101
    %v1390 = vunpack.c.l.b16 %v1102
    %v1391 = vunpack.c.l.b16 %v1103
    %v1392 = vunpack.c.l.b16 %v1104
    %v1393 = vunpack.c.l.b16 %v1105
    %v1394 = vunpack.c.l.b16 %v1106
    %v1395 = vunpack.c.l.b16 %v1107
    %v1396 = vunpack.c.l.b16 %v1108
    %v1397 = vunpack.c.l.b16 %v1109
    %v1398 = vunpack.c.l.b16 %v1110
    %v1399 = vunpack.c.l.b16 %v1111
    %v1400 = vunpack.c.l.b16 %v1112
    %v1401 = vunpack.c.l.b16 %v1113
    %v1402 = vunpack.c.l.b16 %v1114
    %v1403 = vunpack.c.l.b16 %v1115
    %v1404 = vunpack.c.l.b16 %v1116
    %v1405 = vunpack.c.l.b16 %v1117
    %v1406 = vunpack.c.l.b16 %v1118
    %v1407 = vunpack.c.l.b16 %v1119
    %v1408 = vunpack.c.l.b16 %v1120
    %v1409 = vunpack.c.l.b16 %v1121
    %v1410 = vunpack.c.l.b16 %v1122
    %v1411 = vunpack.c.l.b16 %v1123
    %v1412 = vunpack.c.l.b16 %v1124
    %v1413 = vunpack.c.l.b16 %v1125
    %v1414 = vunpack.c.l.b16 %v1126
    %v1415 = vunpack.c.l.b16 %v1127
    %v1416 = vunpack.c.l.b16 %v1128
    %v1417 = vunpack.c.l.b16 %v1129
    %v1418 = vunpack.c.l.b16 %v1130
    %v1419 = vunpack.c.l.b16 %v1131
    %v1420 = vunpack.c.l.b16 %v1132
    %v1421 = vunpack.c.l.b16 %v1133
    %v1422 = vunpack.c.l.b16 %v1134
    %v1423 = vunpack.c.l.b16 %v1135
    %v1424 = vunpack.c.l.b16 %v1136
    %v1425 = vunpack.c.l.b16 %v1137
    %v1426 = vunpack.c.l.b16 %v1138
    %v1427 = vunpack.c.l.b16 %v1139
    %v1428 = vunpack.c.l.b16 %v1140
    %v1429 = vunpack.c.l.b16 %v1141
    %v1430 = vunpack.c.l.b16 %v1142
    %v1431 = vunpack.c.l.b16 %v1143
    %v1432 = vunpack.c.l.b16 %v1144
    %v1433 = vunpack.c.l.b16 %v1145
    %v1434 = vunpack.c.l.b16 %v1146
    %v1435 = vunpack.c.l.b16 %v1147
    %v1436 = vunpack.c.l.b16 %v1148
    %v1437 = vunpack.c.l.b16 %v1149
    %v1438 = vunpack.c.l.b16 %v1150
    %v1439 = vunpack.c.l.b16 %v1151
    %v1440 = vunpack.c.l.b16 %v1152
    %v1441 = vunpack.c.l.b16 %v1153
    %v1442 = vunpack.c.l.b16 %v1154
    %v1443 = vunpack.c.l.b16 %v1155
    %v1444 = vunpack.c.l.b16 %v1156
    %v1445 = vunpack.c.l.b16 %v1157
    %v1446 = vunpack.c.l.b16 %v1158
    %v1447 = vunpack.c.l.b16 %v1159
    %v1448 = vunpack.c.l.b16 %v1160
    %v1449 = vunpack.c.l.b16 %v1161
    %v1450 = vunpack.c.l.b16 %v1162
    %v1451 = vunpack.c.l.b16 %v1163
    %v1452 = vunpack.c.l.b16 %v1164
    %v1453 = vunpack.c.l.b16 %v1165
    %v1454 = vunpack.c.l.b16 %v1166
    %v1455 = vunpack.c.l.b16 %v1167
    %v1456 = vunpack.c.l.b16 %v1168
    %v1457 = vunpack.c.l.b16 %v1169
    %v1458 = vunpack.c.l.b16 %v1170
    %v1459 = vunpack.c.l.b16 %v1171
    %v1460 = vunpack.c.l.b16 %v1172
    %v1461 = vunpack.c.l.b16 %v1173
    %v1462 = vunpack.c.l.b16 %v1174
    %v1463 = vunpack.c.l.b16 %v1175
    %v1464 = vunpack.c.l.b16 %v1176
    %v1465 = vunpack.c.l.b16 %v1177
    %v1466 = vunpack.c.l.b16 %v1178
    %v1467 = vunpack.c.l.b16 %v1179
    %v1468 = vunpack.c.l.b16 %v1180
    %v1469 = vunpack.c.l.b16 %v1181
    %v1470 = vunpack.c.l.b16 %v1182
    %v1471 = vunpack.c.l.b16 %v1183
    %v1472 = vunpack.c.l.b16 %v1184
    %v1473 = vunpack.c.l.b16 %v1185
    %v1474 = vunpack.c.l.b16 %v1186
    %v1475 = vunpack.c.l.b16 %v1187
    %v1476 = vunpack.c.l.b16 %v1188
    %v1477 = vunpack.c.l.b16 %v1189
    %v1478 = vunpack.c.l.b16 %v1190
    %v1479 = vunpack.c.l.b16 %v1191
    %v1480 = vunpack.c.l.b16 %v1192
    %v1481 = vunpack.c.l.b16 %v1193
    %v1482 = vunpack.c.l.b16 %v1194
    %v1483 = vunpack.c.l.b16 %v1195
    %v1484 = vunpack.c.l.b16 %v1196
    %v1485 = vunpack.c.l.b16 %v1197
    %v1486 = vunpack.c.l.b16 %v1198
    %v1487 = vunpack.c.l.b16 %v1199
    %v1488 = vunpack.c.l.b16 %v1200
    %v1489 = vunpack.c.l.b16 %v1201
    %v1490 = vunpack.c.l.b16 %v1202
    %v1491 = vunpack.c.l.b16 %v1203
    %v1492 = vunpack.c.l.b16 %v1204
    %v1493 = vunpack.c.l.b16 %v1205
    %v1494 = vunpack.c.l.b16 %v1206
    %v1495 = vunpack.c.l.b16 %v1207
    %v1496 = vunpack.c.l.b16 %v1208
    %v1497 = vunpack.c.l.b16 %v1209
    %v1498 = vunpack.c.l.b16 %v1210
    %v1499 = vunpack.c.l.b16 %v1211
    %v1500 = vunpack.c.l.b16 %v1212
    %v1501 = vunpack.c.l.b16 %v1213
    %v1502 = vunpack.c.l.b16 %v1214
    %v1503 = vunpack.c.l.b16 %v1215
    %v1504 = vunpack.c.l.b16 %v1216
    %v1505 = vunpack.c.l.b16 %v1217
    %v1506 = vunpack.c.l.b16 %v1218
    %v1507 = vunpack.c.l.b16 %v1219
    %v1508 = vunpack.c.l.b16 %v1220
    %v1509 = vunpack.c.l.b16 %v1221
    %v1510 = vunpack.c.l.b16 %v1222
    %v1511 = vunpack.c.l.b16 %v1223
    %v1512 = vunpack.c.l.b16 %v1224
    %v1513 = vunpack.c.l.b16 %v1225
    %v1514 = vunpack.c.l.b16 %v1226
    %v1515 = vunpack.c.l.b16 %v1227
    %v1516 = vunpack.c.l.b16 %v1228
    %v1517 = vunpack.c.l.b16 %v1229
    %v1518 = vunpack.c.l.b16 %v1230
    %v1519 = vunpack.c.l.b16 %v1231
    %v1520 = vunpack.c.l.b16 %v1232
    %v1521 = vunpack.c.l.b16 %v1233
    %v1522 = vunpack.c.l.b16 %v1234
    %v1523 = vunpack.c.l.b16 %v1235
    %v1524 = vunpack.c.l.b16 %v1236
    %v1525 = vunpack.c.l.b16 %v1237
    %v1526 = vunpack.c.l.b16 %v1238
    %v1527 = vunpack.c.l.b16 %v1239
    %v1528 = vunpack.c.l.b16 %v1240
    %v1529 = vpack.c.b16 %v1386, %v1385
    %v1530 = vpack.c.b16 %v1388, %v1387
    %v1531 = vpack.c.b16 %v1390, %v1389
    %v1532 = vpack.c.b16 %v1392, %v1391
    %v1533 = vpack.c.b16 %v1394, %v1393
    %v1534 = vpack.c.b16 %v1396, %v1395
    %v1535 = vpack.c.b16 %v1398, %v1397
    %v1536 = vpack.c.b16 %v1400, %v1399
    %v1537 = vpack.c.b16 %v1402, %v1401
    %v1538 = vpack.c.b16 %v1404, %v1403
    %v1539 = vpack.c.b16 %v1406, %v1405
    %v1540 = vpack.c.b16 %v1408, %v1407
    %v1541 = vpack.c.b16 %v1410, %v1409
    %v1542 = vpack.c.b16 %v1412, %v1411
    %v1543 = vpack.c.b16 %v1414, %v1413
    %v1544 = vpack.c.b16 %v1416, %v1415
    %v1545 = vpack.c.b16 %v1418, %v1417
    %v1546 = vpack.c.b16 %v1420, %v1419
    %v1547 = vpack.c.b16 %v1422, %v1421
    %v1548 = vpack.c.b16 %v1424, %v1423
    %v1549 = vpack.c.b16 %v1426, %v1425
    %v1550 = vpack.c.b16 %v1428, %v1427
    %v1551 = vpack.c.b16 %v1430, %v1429
    %v1552 = vpack.c.b16 %v1432, %v1431
    %v1553 = vpack.c.b16 %v1434, %v1433
    %v1554 = vpack.c.b16 %v1436, %v1435
    %v1555 = vpack.c.b16 %v1438, %v1437
    %v1556 = vpack.c.b16 %v1440, %v1439
    %v1557 = vpack.c.b16 %v1442, %v1441
    %v1558 = vpack.c.b16 %v1444, %v1443
    %v1559 = vpack.c.b16 %v1446, %v1445
    %v1560 = vpack.c.b16 %v1448, %v1447
    %v1561 = vpack.c.b16 %v1450, %v1449
    %v1562 = vpack.c.b16 %v1452, %v1451
    %v1563 = vpack.c.b16 %v1454, %v1453
    %v1564 = vpack.c.b16 %v1456, %v1455
    %v1565 = vpack.c.b16 %v1458, %v1457
    %v1566 = vpack.c.b16 %v1460, %v1459
    %v1567 = vpack.c.b16 %v1462, %v1461
    %v1568 = vpack.c.b16 %v1464, %v1463
    %v1569 = vpack.c.b16 %v1466, %v1465
    %v1570 = vpack.c.b16 %v1468, %v1467
    %v1571 = vpack.c.b16 %v1470, %v1469
    %v1572 = vpack.c.b16 %v1472, %v1471
    %v1573 = vpack.c.b16 %v1474, %v1473
    %v1574 = vpack.c.b16 %v1476, %v1475
    %v1575 = vpack.c.b16 %v1478, %v1477
    %v1576 = vpack.c.b16 %v1480, %v1479
    %v1577 = vpack.c.b16 %v1482, %v1481
    %v1578 = vpack.c.b16 %v1484, %v1483
    %v1579 = vpack.c.b16 %v1486, %v1485
    %v1580 = vpack.c.b16 %v1488, %v1487
    %v1581 = vpack.c.b16 %v1490, %v1489
    %v1582 = vpack.c.b16 %v1492, %v1491
    %v1583 = vpack.c.b16 %v1494, %v1493
    %v1584 = vpack.c.b16 %v1496, %v1495
    %v1585 = vpack.c.b16 %v1498, %v1497
    %v1586 = vpack.c.b16 %v1500, %v1499
    %v1587 = vpack.c.b16 %v1502, %v1501
    %v1588 = vpack.c.b16 %v1504, %v1503
    %v1589 = vpack.c.b16 %v1506, %v1505
    %v1590 = vpack.c.b16 %v1508, %v1507
    %v1591 = vpack.c.b16 %v1510, %v1509
    %v1592 = vpack.c.b16 %v1512, %v1511
    %v1593 = vpack.c.b16 %v1514, %v1513
    %v1594 = vpack.c.b16 %v1516, %v1515
    %v1595 = vpack.c.b16 %v1518, %v1517
    %v1596 = vpack.c.b16 %v1520, %v1519
    %v1597 = vpack.c.b16 %v1522, %v1521
    %v1598 = vpack.c.b16 %v1524, %v1523
    %v1599 = vpack.c.b16 %v1526, %v1525
    %v1600 = vpack.c.b16 %v1528, %v1527
    %1673 = vmatprep.subr.bf16.mxu0 0
    %1674 = vmatpush1.bf16.msra.mxu0 %v1529
    %1675 = vmatprep.subr.bf16.mxu0 0
    %1676 = vmatpush1.bf16.msra.mxu0 %v1530
    %1677 = vmatprep.subr.bf16.mxu0 0
    %1678 = vmatpush1.bf16.msra.mxu0 %v1531
    %1679 = vmatprep.subr.bf16.mxu0 0
    %1680 = vmatpush1.bf16.msra.mxu0 %v1532
    %1681 = vmatprep.subr.bf16.mxu0 0
    %1682 = vmatpush1.bf16.msra.mxu0 %v1533
    %1683 = vmatprep.subr.bf16.mxu0 0
    %1684 = vmatpush1.bf16.msra.mxu0 %v1534
    %1685 = vmatprep.subr.bf16.mxu0 0
    %1686 = vmatpush1.bf16.msra.mxu0 %v1535
    %1687 = vmatprep.subr.bf16.mxu0 0
    %1688 = vmatpush1.bf16.msra.mxu0 %v1536
    %1689 = vmatprep.subr.bf16.mxu0 0
    %1690 = vmatpush1.bf16.msra.mxu0 %v1537
    %1691 = vmatprep.subr.bf16.mxu0 0
    %1692 = vmatpush1.bf16.msra.mxu0 %v1538
    %1693 = vmatprep.subr.bf16.mxu0 0
    %1694 = vmatpush1.bf16.msra.mxu0 %v1539
    %1695 = vmatprep.subr.bf16.mxu0 0
    %1696 = vmatpush1.bf16.msra.mxu0 %v1540
    %1697 = vmatprep.subr.bf16.mxu0 0
    %1698 = vmatpush1.bf16.msra.mxu0 %v1541
    %1699 = vmatprep.subr.bf16.mxu0 0
    %1700 = vmatpush1.bf16.msra.mxu0 %v1542
    %1701 = vmatprep.subr.bf16.mxu0 0
    %1702 = vmatpush1.bf16.msra.mxu0 %v1543
    %1703 = vmatprep.subr.bf16.mxu0 0
    %1704 = vmatpush1.bf16.msra.mxu0 %v1544
    %1705 = vmatprep.mubr.bf16.mxu0 %v459
    %1706 = vmatmul.mubr.bf16.gmra.mrb[0].mxu0 %v287
    %v1707 = vpop.f32.mrb[0].mxu0
    %v1708 = vadd.f32 0.0, %v1707
    %v1709 = vpop.f32.mrb[0].mxu0
    %v1710 = vpop.f32.mrb[0].mxu0
    %v1711 = vadd.f32 0.0, %v1710
    %v1712 = vpop.f32.mrb[0].mxu0
    %1713 = vmatprep.mubr.bf16.mxu0 %v471
    %1714 = vmatmul.mubr.bf16.gmra.mrb[0].mxu0 %v288
    %v1715 = vpop.f32.mrb[0].mxu0
    %v1716 = vadd.f32 0.0, %v1715
    %v1717 = vpop.f32.mrb[0].mxu0
    %v1718 = vpop.f32.mrb[0].mxu0
    %v1719 = vadd.f32 0.0, %v1718
    %v1720 = vpop.f32.mrb[0].mxu0
    %1721 = vmatprep.mubr.bf16.mxu0 %v483
    %1722 = vmatmul.mubr.bf16.gmra.mrb[0].mxu0 %v289
    %v1723 = vpop.f32.mrb[0].mxu0
    %v1724 = vadd.f32 0.0, %v1723
    %v1725 = vpop.f32.mrb[0].mxu0
    %v1726 = vpop.f32.mrb[0].mxu0
    %v1727 = vadd.f32 0.0, %v1726
    %v1728 = vpop.f32.mrb[0].mxu0
    %1729 = vmatprep.mubr.bf16.mxu0 %v495
    %1730 = vmatmul.mubr.bf16.gmra.mrb[0].mxu0 %v290
    %v1731 = vpop.f32.mrb[0].mxu0
    %v1732 = vadd.f32 0.0, %v1731
    %v1733 = vpop.f32.mrb[0].mxu0
    %v1734 = vpop.f32.mrb[0].mxu0
    %v1735 = vadd.f32 0.0, %v1734
    %v1736 = vpop.f32.mrb[0].mxu0
    %1737 = vmatprep.mubr.bf16.mxu0 %v507
    %1738 = vmatmul.mubr.bf16.gmra.mrb[0].mxu0 %v291
    %v1739 = vpop.f32.mrb[0].mxu0
    %v1740 = vadd.f32 0.0, %v1739
    %v1741 = vpop.f32.mrb[0].mxu0
    %v1742 = vpop.f32.mrb[0].mxu0
    %v1743 = vadd.f32 0.0, %v1742
    %v1744 = vpop.f32.mrb[0].mxu0
    %1745 = vmatprep.mubr.bf16.mxu0 %v519
    %1746 = vmatmul.mubr.bf16.gmra.mrb[0].mxu0 %v292
    %v1747 = vpop.f32.mrb[0].mxu0
    %v1748 = vadd.f32 0.0, %v1747
    %v1749 = vpop.f32.mrb[0].mxu0
    %v1750 = vpop.f32.mrb[0].mxu0
    %v1751 = vadd.f32 0.0, %v1750
    %v1752 = vpop.f32.mrb[0].mxu0
    %1753 = vmatprep.mubr.bf16.mxu0 %v531
    %1754 = vmatmul.mubr.bf16.gmra.mrb[0].mxu0 %v293
    %v1755 = vpop.f32.mrb[0].mxu0
    %v1756 = vadd.f32 0.0, %v1755
    %v1757 = vpop.f32.mrb[0].mxu0
    %v1758 = vpop.f32.mrb[0].mxu0
    %v1759 = vadd.f32 0.0, %v1758
    %v1760 = vpop.f32.mrb[0].mxu0
    %1761 = vmatprep.mubr.bf16.mxu0 %v543
    %1762 = vmatmul.mubr.bf16.gmra.mrb[0].mxu0 %v294
    %v1763 = vpop.f32.mrb[0].mxu0
    %v1764 = vadd.f32 0.0, %v1763
    %v1765 = vpop.f32.mrb[0].mxu0
    %v1766 = vpop.f32.mrb[0].mxu0
    %v1767 = vadd.f32 0.0, %v1766
    %v1768 = vpop.f32.mrb[0].mxu0
    %1769 = vmatprep.mubr.bf16.mxu0 %v555
    %1770 = vmatmul.mubr.bf16.gmra.mrb[0].mxu0 %v295
    %v1771 = vpop.f32.mrb[0].mxu0
    %v1772 = vadd.f32 0.0, %v1771
    %v1773 = vpop.f32.mrb[0].mxu0
    %v1774 = vpop.f32.mrb[0].mxu0
    %v1775 = vadd.f32 0.0, %v1774
    %v1776 = vpop.f32.mrb[0].mxu0
    %1777 = vmatprep.mubr.bf16.mxu0 %v567
    %1778 = vmatmul.mubr.bf16.gmra.mrb[0].mxu0 %v296
    %v1779 = vpop.f32.mrb[0].mxu0
    %v1780 = vadd.f32 0.0, %v1779
    %v1781 = vpop.f32.mrb[0].mxu0
    %v1782 = vpop.f32.mrb[0].mxu0
    %v1783 = vadd.f32 0.0, %v1782
    %v1784 = vpop.f32.mrb[0].mxu0
    %1785 = vmatprep.mubr.bf16.mxu0 %v579
    %1786 = vmatmul.mubr.bf16.gmra.mrb[0].mxu0 %v297
    %v1787 = vpop.f32.mrb[0].mxu0
    %v1788 = vadd.f32 0.0, %v1787
    %v1789 = vpop.f32.mrb[0].mxu0
    %v1790 = vpop.f32.mrb[0].mxu0
    %v1791 = vadd.f32 0.0, %v1790
    %v1792 = vpop.f32.mrb[0].mxu0
    %1793 = vmatprep.mubr.bf16.mxu0 %v591
    %1794 = vmatmul.mubr.bf16.gmra.mrb[0].mxu0 %v298
    %v1795 = vpop.f32.mrb[0].mxu0
    %v1796 = vadd.f32 0.0, %v1795
    %v1797 = vpop.f32.mrb[0].mxu0
    %v1798 = vpop.f32.mrb[0].mxu0
    %v1799 = vadd.f32 0.0, %v1798
    %v1800 = vpop.f32.mrb[0].mxu0
    %1801 = vmatprep.mubr.bf16.mxu0 %v603
    %1802 = vmatmul.mubr.bf16.gmra.mrb[0].mxu0 %v299
    %v1803 = vpop.f32.mrb[0].mxu0
    %v1804 = vadd.f32 0.0, %v1803
    %v1805 = vpop.f32.mrb[0].mxu0
    %v1806 = vpop.f32.mrb[0].mxu0
    %v1807 = vadd.f32 0.0, %v1806
    %v1808 = vpop.f32.mrb[0].mxu0
    %1809 = vmatprep.mubr.bf16.mxu0 %v615
    %1810 = vmatmul.mubr.bf16.gmra.mrb[0].mxu0 %v300
    %v1811 = vpop.f32.mrb[0].mxu0
    %v1812 = vadd.f32 0.0, %v1811
    %v1813 = vpop.f32.mrb[0].mxu0
    %v1814 = vpop.f32.mrb[0].mxu0
    %v1815 = vadd.f32 0.0, %v1814
    %v1816 = vpop.f32.mrb[0].mxu0
    %1817 = vmatprep.mubr.bf16.mxu0 %v627
    %1818 = vmatmul.mubr.bf16.gmra.mrb[0].mxu0 %v301
    %v1819 = vpop.f32.mrb[0].mxu0
    %v1820 = vadd.f32 0.0, %v1819
    %v1821 = vpop.f32.mrb[0].mxu0
    %v1822 = vpop.f32.mrb[0].mxu0
    %v1823 = vadd.f32 0.0, %v1822
    %v1824 = vpop.f32.mrb[0].mxu0
    %1825 = vmatprep.mubr.bf16.mxu0 %v639
    %1826 = vmatmul.mubr.bf16.gmra.mrb[0].mxu0 %v302
    %v1827 = vpop.f32.mrb[0].mxu0
    %v1828 = vadd.f32 0.0, %v1827
    %v1829 = vpop.f32.mrb[0].mxu0
    %v1830 = vpop.f32.mrb[0].mxu0
    %v1831 = vadd.f32 0.0, %v1830
    %v1832 = vpop.f32.mrb[0].mxu0
    %1833 = vmatprep.mubr.bf16.mxu0 %v651
    %1834 = vmatmul.mubr.bf16.gmra.mrb[0].mxu0 %v303
    %v1835 = vpop.f32.mrb[0].mxu0
    %v1836 = vadd.f32 0.0, %v1835
    %v1837 = vpop.f32.mrb[0].mxu0
    %v1838 = vpop.f32.mrb[0].mxu0
    %v1839 = vadd.f32 0.0, %v1838
    %v1840 = vpop.f32.mrb[0].mxu0
    %1841 = vmatprep.mubr.bf16.mxu0 %v663
    %1842 = vmatmul.mubr.bf16.gmra.mrb[0].mxu0 %v304
    %v1843 = vpop.f32.mrb[0].mxu0
    %v1844 = vadd.f32 0.0, %v1843
    %v1845 = vpop.f32.mrb[0].mxu0
    %v1846 = vpop.f32.mrb[0].mxu0
    %v1847 = vadd.f32 0.0, %v1846
    %v1848 = vpop.f32.mrb[0].mxu0
    %1849 = vmatprep.mubr.bf16.mxu0 %v675
    %1850 = vmatmul.mubr.bf16.gmra.mrb[0].mxu0 %v305
    %v1851 = vpop.f32.mrb[0].mxu0
    %v1852 = vadd.f32 0.0, %v1851
    %v1853 = vpop.f32.mrb[0].mxu0
    %v1854 = vpop.f32.mrb[0].mxu0
    %v1855 = vadd.f32 0.0, %v1854
    %v1856 = vpop.f32.mrb[0].mxu0
    %1857 = vmatprep.mubr.bf16.mxu0 %v687
    %1858 = vmatmul.mubr.bf16.gmra.mrb[0].mxu0 %v306
    %v1859 = vpop.f32.mrb[0].mxu0
    %v1860 = vadd.f32 0.0, %v1859
    %v1861 = vpop.f32.mrb[0].mxu0
    %v1862 = vpop.f32.mrb[0].mxu0
    %v1863 = vadd.f32 0.0, %v1862
    %v1864 = vpop.f32.mrb[0].mxu0
    %1865 = vmatprep.mubr.bf16.mxu0 %v699
    %1866 = vmatmul.mubr.bf16.gmra.mrb[0].mxu0 %v307
    %v1867 = vpop.f32.mrb[0].mxu0
    %v1868 = vadd.f32 0.0, %v1867
    %v1869 = vpop.f32.mrb[0].mxu0
    %v1870 = vpop.f32.mrb[0].mxu0
    %v1871 = vadd.f32 0.0, %v1870
    %v1872 = vpop.f32.mrb[0].mxu0
    %1873 = vmatprep.mubr.bf16.mxu0 %v711
    %1874 = vmatmul.mubr.bf16.gmra.mrb[0].mxu0 %v308
    %v1875 = vpop.f32.mrb[0].mxu0
    %v1876 = vadd.f32 0.0, %v1875
    %v1877 = vpop.f32.mrb[0].mxu0
    %v1878 = vpop.f32.mrb[0].mxu0
    %v1879 = vadd.f32 0.0, %v1878
    %v1880 = vpop.f32.mrb[0].mxu0
    %1881 = vmatprep.mubr.bf16.mxu0 %v723
    %1882 = vmatmul.mubr.bf16.gmra.mrb[0].mxu0 %v309
    %v1883 = vpop.f32.mrb[0].mxu0
    %v1884 = vadd.f32 0.0, %v1883
    %v1885 = vpop.f32.mrb[0].mxu0
    %v1886 = vpop.f32.mrb[0].mxu0
    %v1887 = vadd.f32 0.0, %v1886
    %v1888 = vpop.f32.mrb[0].mxu0
    %1889 = vmatprep.mubr.bf16.mxu0 %v735
    %1890 = vmatmul.mubr.bf16.gmra.mrb[0].mxu0 %v310
    %v1891 = vpop.f32.mrb[0].mxu0
    %v1892 = vadd.f32 0.0, %v1891
    %v1893 = vpop.f32.mrb[0].mxu0
    %v1894 = vpop.f32.mrb[0].mxu0
    %v1895 = vadd.f32 0.0, %v1894
    %v1896 = vpop.f32.mrb[0].mxu0
    %1897 = vmatprep.mubr.bf16.mxu0 %v747
    %1898 = vmatmul.mubr.bf16.gmra.mrb[0].mxu0 %v311
    %v1899 = vpop.f32.mrb[0].mxu0
    %v1900 = vadd.f32 0.0, %v1899
    %v1901 = vpop.f32.mrb[0].mxu0
    %v1902 = vpop.f32.mrb[0].mxu0
    %v1903 = vadd.f32 0.0, %v1902
    %v1904 = vpop.f32.mrb[0].mxu0
    %1905 = vmatprep.mubr.bf16.mxu0 %v759
    %1906 = vmatmul.mubr.bf16.gmra.mrb[0].mxu0 %v312
    %v1907 = vpop.f32.mrb[0].mxu0
    %v1908 = vadd.f32 0.0, %v1907
    %v1909 = vpop.f32.mrb[0].mxu0
    %v1910 = vpop.f32.mrb[0].mxu0
    %v1911 = vadd.f32 0.0, %v1910
    %v1912 = vpop.f32.mrb[0].mxu0
    %1913 = vmatprep.mubr.bf16.mxu0 %v771
    %1914 = vmatmul.mubr.bf16.gmra.mrb[0].mxu0 %v313
    %v1915 = vpop.f32.mrb[0].mxu0
    %v1916 = vadd.f32 0.0, %v1915
    %v1917 = vpop.f32.mrb[0].mxu0
    %v1918 = vpop.f32.mrb[0].mxu0
    %v1919 = vadd.f32 0.0, %v1918
    %v1920 = vpop.f32.mrb[0].mxu0
    %1921 = vmatprep.mubr.bf16.mxu0 %v783
    %1922 = vmatmul.mubr.bf16.gmra.mrb[0].mxu0 %v314
    %v1923 = vpop.f32.mrb[0].mxu0
    %v1924 = vadd.f32 0.0, %v1923
    %v1925 = vpop.f32.mrb[0].mxu0
    %v1926 = vpop.f32.mrb[0].mxu0
    %v1927 = vadd.f32 0.0, %v1926
    %v1928 = vpop.f32.mrb[0].mxu0
    %1929 = vmatprep.mubr.bf16.mxu0 %v795
    %1930 = vmatmul.mubr.bf16.gmra.mrb[0].mxu0 %v315
    %v1931 = vpop.f32.mrb[0].mxu0
    %v1932 = vadd.f32 0.0, %v1931
    %v1933 = vpop.f32.mrb[0].mxu0
    %v1934 = vpop.f32.mrb[0].mxu0
    %v1935 = vadd.f32 0.0, %v1934
    %v1936 = vpop.f32.mrb[0].mxu0
    %1937 = vmatprep.mubr.bf16.mxu0 %v807
    %1938 = vmatmul.mubr.bf16.gmra.mrb[0].mxu0 %v316
    %v1939 = vpop.f32.mrb[0].mxu0
    %v1940 = vadd.f32 0.0, %v1939
    %v1941 = vpop.f32.mrb[0].mxu0
    %v1942 = vpop.f32.mrb[0].mxu0
    %v1943 = vadd.f32 0.0, %v1942
    %v1944 = vpop.f32.mrb[0].mxu0
    %1945 = vmatprep.mubr.bf16.mxu0 %v819
    %1946 = vmatmul.mubr.bf16.gmra.mrb[0].mxu0 %v317
    %v1947 = vpop.f32.mrb[0].mxu0
    %v1948 = vadd.f32 0.0, %v1947
    %v1949 = vpop.f32.mrb[0].mxu0
    %v1950 = vpop.f32.mrb[0].mxu0
    %v1951 = vadd.f32 0.0, %v1950
    %v1952 = vpop.f32.mrb[0].mxu0
    %1953 = vmatprep.mubr.bf16.mxu0 %v831
    %1954 = vmatmul.mubr.bf16.gmra.mrb[0].mxu0 %v318
    %v1955 = vpop.f32.mrb[0].mxu0
    %v1956 = vadd.f32 0.0, %v1955
    %v1957 = vpop.f32.mrb[0].mxu0
    %v1958 = vpop.f32.mrb[0].mxu0
    %v1959 = vadd.f32 0.0, %v1958
    %v1960 = vpop.f32.mrb[0].mxu0
    %1961 = vdwg.mxu0
    %1962 = vmatprep.subr.bf16.mxu0 0
    %1963 = vmatpush1.bf16.msra.mxu0 %v1545
    %1964 = vmatprep.subr.bf16.mxu0 0
    %1965 = vmatpush1.bf16.msra.mxu0 %v1546
    %1966 = vmatprep.subr.bf16.mxu0 0
    %1967 = vmatpush1.bf16.msra.mxu0 %v1547
    %1968 = vmatprep.subr.bf16.mxu0 0
    %1969 = vmatpush1.bf16.msra.mxu0 %v1548
    %1970 = vmatprep.subr.bf16.mxu0 0
    %1971 = vmatpush1.bf16.msra.mxu0 %v1549
    %1972 = vmatprep.subr.bf16.mxu0 0
    %1973 = vmatpush1.bf16.msra.mxu0 %v1550
    %1974 = vmatprep.subr.bf16.mxu0 0
    %1975 = vmatpush1.bf16.msra.mxu0 %v1551
    %1976 = vmatprep.subr.bf16.mxu0 0
    %1977 = vmatpush1.bf16.msra.mxu0 %v1552
    %1978 = vmatprep.subr.bf16.mxu0 0
    %1979 = vmatpush1.bf16.msra.mxu0 %v1553
    %1980 = vmatprep.subr.bf16.mxu0 0
    %1981 = vmatpush1.bf16.msra.mxu0 %v1554
    %1982 = vmatprep.subr.bf16.mxu0 0
    %1983 = vmatpush1.bf16.msra.mxu0 %v1555
    %1984 = vmatprep.subr.bf16.mxu0 0
    %1985 = vmatpush1.bf16.msra.mxu0 %v1556
    %1986 = vmatprep.subr.bf16.mxu0 0
    %1987 = vmatpush1.bf16.msra.mxu0 %v1557
    %1988 = vmatprep.subr.bf16.mxu0 0
    %1989 = vmatpush1.bf16.msra.mxu0 %v1558
    %1990 = vmatprep.subr.bf16.mxu0 0
    %1991 = vmatpush1.bf16.msra.mxu0 %v1559
    %1992 = vmatprep.subr.bf16.mxu0 0
    %1993 = vmatpush1.bf16.msra.mxu0 %v1560
    %1994 = vmatprep.mubr.bf16.mxu0 %v288
    %1995 = vmatmul.mubr.bf16.gmra.mrb[0].mxu0 %v867
    %v1996 = vpop.f32.mrb[0].mxu0
    %v1997 = vadd.f32 %v1708, %v1996
    %v1998 = vpop.f32.mrb[0].mxu0
    %v1999 = vpop.f32.mrb[0].mxu0
    %v2000 = vadd.f32 %v1711, %v1999
    %v2001 = vpop.f32.mrb[0].mxu0
    %2002 = vmatprep.mubr.bf16.mxu0 %v289
    %2003 = vmatmul.mubr.bf16.gmra.mrb[0].mxu0 %v870
    %v2004 = vpop.f32.mrb[0].mxu0
    %v2005 = vadd.f32 %v1716, %v2004
    %v2006 = vpop.f32.mrb[0].mxu0
    %v2007 = vpop.f32.mrb[0].mxu0
    %v2008 = vadd.f32 %v1719, %v2007
    %v2009 = vpop.f32.mrb[0].mxu0
    %2010 = vmatprep.mubr.bf16.mxu0 %v290
    %2011 = vmatmul.mubr.bf16.gmra.mrb[0].mxu0 %v873
    %v2012 = vpop.f32.mrb[0].mxu0
    %v2013 = vadd.f32 %v1724, %v2012
    %v2014 = vpop.f32.mrb[0].mxu0
    %v2015 = vpop.f32.mrb[0].mxu0
    %v2016 = vadd.f32 %v1727, %v2015
    %v2017 = vpop.f32.mrb[0].mxu0
    %2018 = vmatprep.mubr.bf16.mxu0 %v291
    %2019 = vmatmul.mubr.bf16.gmra.mrb[0].mxu0 %v876
    %v2020 = vpop.f32.mrb[0].mxu0
    %v2021 = vadd.f32 %v1732, %v2020
    %v2022 = vpop.f32.mrb[0].mxu0
    %v2023 = vpop.f32.mrb[0].mxu0
    %v2024 = vadd.f32 %v1735, %v2023
    %v2025 = vpop.f32.mrb[0].mxu0
    %2026 = vmatprep.mubr.bf16.mxu0 %v292
    %2027 = vmatmul.mubr.bf16.gmra.mrb[0].mxu0 %v879
    %v2028 = vpop.f32.mrb[0].mxu0
    %v2029 = vadd.f32 %v1740, %v2028
    %v2030 = vpop.f32.mrb[0].mxu0
    %v2031 = vpop.f32.mrb[0].mxu0
    %v2032 = vadd.f32 %v1743, %v2031
    %v2033 = vpop.f32.mrb[0].mxu0
    %2034 = vmatprep.mubr.bf16.mxu0 %v293
    %2035 = vmatmul.mubr.bf16.gmra.mrb[0].mxu0 %v882
    %v2036 = vpop.f32.mrb[0].mxu0
    %v2037 = vadd.f32 %v1748, %v2036
    %v2038 = vpop.f32.mrb[0].mxu0
    %v2039 = vpop.f32.mrb[0].mxu0
    %v2040 = vadd.f32 %v1751, %v2039
    %v2041 = vpop.f32.mrb[0].mxu0
    %2042 = vmatprep.mubr.bf16.mxu0 %v294
    %2043 = vmatmul.mubr.bf16.gmra.mrb[0].mxu0 %v885
    %v2044 = vpop.f32.mrb[0].mxu0
    %v2045 = vadd.f32 %v1756, %v2044
    %v2046 = vpop.f32.mrb[0].mxu0
    %v2047 = vpop.f32.mrb[0].mxu0
    %v2048 = vadd.f32 %v1759, %v2047
    %v2049 = vpop.f32.mrb[0].mxu0
    %2050 = vmatprep.mubr.bf16.mxu0 %v295
    %2051 = vmatmul.mubr.bf16.gmra.mrb[0].mxu0 %v888
    %v2052 = vpop.f32.mrb[0].mxu0
    %v2053 = vadd.f32 %v1764, %v2052
    %v2054 = vpop.f32.mrb[0].mxu0
    %v2055 = vpop.f32.mrb[0].mxu0
    %v2056 = vadd.f32 %v1767, %v2055
    %v2057 = vpop.f32.mrb[0].mxu0
    %2058 = vmatprep.mubr.bf16.mxu0 %v296
    %2059 = vmatmul.mubr.bf16.gmra.mrb[0].mxu0 %v891
    %v2060 = vpop.f32.mrb[0].mxu0
    %v2061 = vadd.f32 %v1772, %v2060
    %v2062 = vpop.f32.mrb[0].mxu0
    %v2063 = vpop.f32.mrb[0].mxu0
    %v2064 = vadd.f32 %v1775, %v2063
    %v2065 = vpop.f32.mrb[0].mxu0
    %2066 = vmatprep.mubr.bf16.mxu0 %v297
    %2067 = vmatmul.mubr.bf16.gmra.mrb[0].mxu0 %v894
    %v2068 = vpop.f32.mrb[0].mxu0
    %v2069 = vadd.f32 %v1780, %v2068
    %v2070 = vpop.f32.mrb[0].mxu0
    %v2071 = vpop.f32.mrb[0].mxu0
    %v2072 = vadd.f32 %v1783, %v2071
    %v2073 = vpop.f32.mrb[0].mxu0
    %2074 = vmatprep.mubr.bf16.mxu0 %v298
    %2075 = vmatmul.mubr.bf16.gmra.mrb[0].mxu0 %v897
    %v2076 = vpop.f32.mrb[0].mxu0
    %v2077 = vadd.f32 %v1788, %v2076
    %v2078 = vpop.f32.mrb[0].mxu0
    %v2079 = vpop.f32.mrb[0].mxu0
    %v2080 = vadd.f32 %v1791, %v2079
    %v2081 = vpop.f32.mrb[0].mxu0
    %2082 = vmatprep.mubr.bf16.mxu0 %v299
    %2083 = vmatmul.mubr.bf16.gmra.mrb[0].mxu0 %v900
    %v2084 = vpop.f32.mrb[0].mxu0
    %v2085 = vadd.f32 %v1796, %v2084
    %v2086 = vpop.f32.mrb[0].mxu0
    %v2087 = vpop.f32.mrb[0].mxu0
    %v2088 = vadd.f32 %v1799, %v2087
    %v2089 = vpop.f32.mrb[0].mxu0
    %2090 = vmatprep.mubr.bf16.mxu0 %v300
    %2091 = vmatmul.mubr.bf16.gmra.mrb[0].mxu0 %v903
    %v2092 = vpop.f32.mrb[0].mxu0
    %v2093 = vadd.f32 %v1804, %v2092
    %v2094 = vpop.f32.mrb[0].mxu0
    %v2095 = vpop.f32.mrb[0].mxu0
    %v2096 = vadd.f32 %v1807, %v2095
    %v2097 = vpop.f32.mrb[0].mxu0
    %2098 = vmatprep.mubr.bf16.mxu0 %v301
    %2099 = vmatmul.mubr.bf16.gmra.mrb[0].mxu0 %v906
    %v2100 = vpop.f32.mrb[0].mxu0
    %v2101 = vadd.f32 %v1812, %v2100
    %v2102 = vpop.f32.mrb[0].mxu0
    %v2103 = vpop.f32.mrb[0].mxu0
    %v2104 = vadd.f32 %v1815, %v2103
    %v2105 = vpop.f32.mrb[0].mxu0
    %2106 = vmatprep.mubr.bf16.mxu0 %v302
    %2107 = vmatmul.mubr.bf16.gmra.mrb[0].mxu0 %v909
    %v2108 = vpop.f32.mrb[0].mxu0
    %v2109 = vadd.f32 %v1820, %v2108
    %v2110 = vpop.f32.mrb[0].mxu0
    %v2111 = vpop.f32.mrb[0].mxu0
    %v2112 = vadd.f32 %v1823, %v2111
    %v2113 = vpop.f32.mrb[0].mxu0
    %2114 = vmatprep.mubr.bf16.mxu0 %v1001
    %2115 = vmatmul.mubr.bf16.gmra.mrb[0].mxu0 %v912
    %v2116 = vpop.f32.mrb[0].mxu0
    %v2117 = vadd.f32 %v1828, %v2116
    %v2118 = vpop.f32.mrb[0].mxu0
    %v2119 = vpop.f32.mrb[0].mxu0
    %v2120 = vadd.f32 %v1831, %v2119
    %v2121 = vpop.f32.mrb[0].mxu0
    %2122 = vmatprep.mubr.bf16.mxu0 %v304
    %2123 = vmatmul.mubr.bf16.gmra.mrb[0].mxu0 %v915
    %v2124 = vpop.f32.mrb[0].mxu0
    %v2125 = vadd.f32 %v1836, %v2124
    %v2126 = vpop.f32.mrb[0].mxu0
    %v2127 = vpop.f32.mrb[0].mxu0
    %v2128 = vadd.f32 %v1839, %v2127
    %v2129 = vpop.f32.mrb[0].mxu0
    %2130 = vmatprep.mubr.bf16.mxu0 %v305
    %2131 = vmatmul.mubr.bf16.gmra.mrb[0].mxu0 %v918
    %v2132 = vpop.f32.mrb[0].mxu0
    %v2133 = vadd.f32 %v1844, %v2132
    %v2134 = vpop.f32.mrb[0].mxu0
    %v2135 = vpop.f32.mrb[0].mxu0
    %v2136 = vadd.f32 %v1847, %v2135
    %v2137 = vpop.f32.mrb[0].mxu0
    %2138 = vmatprep.mubr.bf16.mxu0 %v306
    %2139 = vmatmul.mubr.bf16.gmra.mrb[0].mxu0 %v921
    %v2140 = vpop.f32.mrb[0].mxu0
    %v2141 = vadd.f32 %v1852, %v2140
    %v2142 = vpop.f32.mrb[0].mxu0
    %v2143 = vpop.f32.mrb[0].mxu0
    %v2144 = vadd.f32 %v1855, %v2143
    %v2145 = vpop.f32.mrb[0].mxu0
    %2146 = vmatprep.mubr.bf16.mxu0 %v307
    %2147 = vmatmul.mubr.bf16.gmra.mrb[0].mxu0 %v924
    %v2148 = vpop.f32.mrb[0].mxu0
    %v2149 = vadd.f32 %v1860, %v2148
    %v2150 = vpop.f32.mrb[0].mxu0
    %v2151 = vpop.f32.mrb[0].mxu0
    %v2152 = vadd.f32 %v1863, %v2151
    %v2153 = vpop.f32.mrb[0].mxu0
    %2154 = vmatprep.mubr.bf16.mxu0 %v308
    %2155 = vmatmul.mubr.bf16.gmra.mrb[0].mxu0 %v927
    %v2156 = vpop.f32.mrb[0].mxu0
    %v2157 = vadd.f32 %v1868, %v2156
    %v2158 = vpop.f32.mrb[0].mxu0
    %v2159 = vpop.f32.mrb[0].mxu0
    %v2160 = vadd.f32 %v1871, %v2159
    %v2161 = vpop.f32.mrb[0].mxu0
    %2162 = vmatprep.mubr.bf16.mxu0 %v309
    %2163 = vmatmul.mubr.bf16.gmra.mrb[0].mxu0 %v930
    %v2164 = vpop.f32.mrb[0].mxu0
    %v2165 = vadd.f32 %v1876, %v2164
    %v2166 = vpop.f32.mrb[0].mxu0
    %v2167 = vpop.f32.mrb[0].mxu0
    %v2168 = vadd.f32 %v1879, %v2167
    %v2169 = vpop.f32.mrb[0].mxu0
    %2170 = vmatprep.mubr.bf16.mxu0 %v310
    %2171 = vmatmul.mubr.bf16.gmra.mrb[0].mxu0 %v933
    %v2172 = vpop.f32.mrb[0].mxu0
    %v2173 = vadd.f32 %v1884, %v2172
    %v2174 = vpop.f32.mrb[0].mxu0
    %v2175 = vpop.f32.mrb[0].mxu0
    %v2176 = vadd.f32 %v1887, %v2175
    %v2177 = vpop.f32.mrb[0].mxu0
    %2178 = vmatprep.mubr.bf16.mxu0 %v311
    %2179 = vmatmul.mubr.bf16.gmra.mrb[0].mxu0 %v936
    %v2180 = vpop.f32.mrb[0].mxu0
    %v2181 = vadd.f32 %v1892, %v2180
    %v2182 = vpop.f32.mrb[0].mxu0
    %v2183 = vpop.f32.mrb[0].mxu0
    %v2184 = vadd.f32 %v1895, %v2183
    %v2185 = vpop.f32.mrb[0].mxu0
    %2186 = vmatprep.mubr.bf16.mxu0 %v312
    %2187 = vmatmul.mubr.bf16.gmra.mrb[0].mxu0 %v939
    %v2188 = vpop.f32.mrb[0].mxu0
    %v2189 = vadd.f32 %v1900, %v2188
    %v2190 = vpop.f32.mrb[0].mxu0
    %v2191 = vpop.f32.mrb[0].mxu0
    %v2192 = vadd.f32 %v1903, %v2191
    %v2193 = vpop.f32.mrb[0].mxu0
    %2194 = vmatprep.mubr.bf16.mxu0 %v313
    %2195 = vmatmul.mubr.bf16.gmra.mrb[0].mxu0 %v942
    %v2196 = vpop.f32.mrb[0].mxu0
    %v2197 = vadd.f32 %v1908, %v2196
    %v2198 = vpop.f32.mrb[0].mxu0
    %v2199 = vpop.f32.mrb[0].mxu0
    %v2200 = vadd.f32 %v1911, %v2199
    %v2201 = vpop.f32.mrb[0].mxu0
    %2202 = vmatprep.mubr.bf16.mxu0 %v314
    %2203 = vmatmul.mubr.bf16.gmra.mrb[0].mxu0 %v945
    %v2204 = vpop.f32.mrb[0].mxu0
    %v2205 = vadd.f32 %v1916, %v2204
    %v2206 = vpop.f32.mrb[0].mxu0
    %v2207 = vpop.f32.mrb[0].mxu0
    %v2208 = vadd.f32 %v1919, %v2207
    %v2209 = vpop.f32.mrb[0].mxu0
    %2210 = vmatprep.mubr.bf16.mxu0 %v315
    %2211 = vmatmul.mubr.bf16.gmra.mrb[0].mxu0 %v948
    %v2212 = vpop.f32.mrb[0].mxu0
    %v2213 = vadd.f32 %v1924, %v2212
    %v2214 = vpop.f32.mrb[0].mxu0
    %v2215 = vpop.f32.mrb[0].mxu0
    %v2216 = vadd.f32 %v1927, %v2215
    %v2217 = vpop.f32.mrb[0].mxu0
    %2218 = vmatprep.mubr.bf16.mxu0 %v316
    %2219 = vmatmul.mubr.bf16.gmra.mrb[0].mxu0 %v951
    %v2220 = vpop.f32.mrb[0].mxu0
    %v2221 = vadd.f32 %v1932, %v2220
    %v2222 = vpop.f32.mrb[0].mxu0
    %v2223 = vpop.f32.mrb[0].mxu0
    %v2224 = vadd.f32 %v1935, %v2223
    %v2225 = vpop.f32.mrb[0].mxu0
    %2226 = vmatprep.mubr.bf16.mxu0 %v317
    %2227 = vmatmul.mubr.bf16.gmra.mrb[0].mxu0 %v954
    %v2228 = vpop.f32.mrb[0].mxu0
    %v2229 = vadd.f32 %v1940, %v2228
    %v2230 = vpop.f32.mrb[0].mxu0
    %v2231 = vpop.f32.mrb[0].mxu0
    %v2232 = vadd.f32 %v1943, %v2231
    %v2233 = vpop.f32.mrb[0].mxu0
    %2234 = vmatprep.mubr.bf16.mxu0 %v318
    %2235 = vmatmul.mubr.bf16.gmra.mrb[0].mxu0 %v957
    %v2236 = vpop.f32.mrb[0].mxu0
    %v2237 = vadd.f32 %v1948, %v2236
    %v2238 = vpop.f32.mrb[0].mxu0
    %v2239 = vpop.f32.mrb[0].mxu0
    %v2240 = vadd.f32 %v1951, %v2239
    %v2241 = vpop.f32.mrb[0].mxu0
    %2242 = vmatprep.mubr.bf16.mxu0 %v1002
    %2243 = vmatmul.mubr.bf16.gmra.mrb[0].mxu0 %v960
    %v2244 = vpop.f32.mrb[0].mxu0
    %v2245 = vadd.f32 %v1956, %v2244
    %v2246 = vpop.f32.mrb[0].mxu0
    %v2247 = vpop.f32.mrb[0].mxu0
    %v2248 = vadd.f32 %v1959, %v2247
    %v2249 = vpop.f32.mrb[0].mxu0
    %2250 = vdwg.mxu0
    %2251 = vmatprep.subr.bf16.mxu0 0
    %2252 = vmatpush1.bf16.msra.mxu0 %v1561
    %2253 = vmatprep.subr.bf16.mxu0 0
    %2254 = vmatpush1.bf16.msra.mxu0 %v1562
    %2255 = vmatprep.subr.bf16.mxu0 0
    %2256 = vmatpush1.bf16.msra.mxu0 %v1563
    %2257 = vmatprep.subr.bf16.mxu0 0
    %2258 = vmatpush1.bf16.msra.mxu0 %v1564
    %2259 = vmatprep.subr.bf16.mxu0 0
    %2260 = vmatpush1.bf16.msra.mxu0 %v1565
    %2261 = vmatprep.subr.bf16.mxu0 0
    %2262 = vmatpush1.bf16.msra.mxu0 %v1566
    %2263 = vmatprep.subr.bf16.mxu0 0
    %2264 = vmatpush1.bf16.msra.mxu0 %v1567
    %2265 = vmatprep.subr.bf16.mxu0 0
    %2266 = vmatpush1.bf16.msra.mxu0 %v1568
    %2267 = vmatprep.subr.bf16.mxu0 0
    %2268 = vmatpush1.bf16.msra.mxu0 %v1569
    %2269 = vmatprep.subr.bf16.mxu0 0
    %2270 = vmatpush1.bf16.msra.mxu0 %v1570
    %2271 = vmatprep.subr.bf16.mxu0 0
    %2272 = vmatpush1.bf16.msra.mxu0 %v1571
    %2273 = vmatprep.subr.bf16.mxu0 0
    %2274 = vmatpush1.bf16.msra.mxu0 %v1572
    %2275 = vmatprep.subr.bf16.mxu0 0
    %2276 = vmatpush1.bf16.msra.mxu0 %v1573
    %2277 = vmatprep.subr.bf16.mxu0 0
    %2278 = vmatpush1.bf16.msra.mxu0 %v1574
    %2279 = vmatprep.subr.bf16.mxu0 0
    %2280 = vmatpush1.bf16.msra.mxu0 %v1575
    %2281 = vmatprep.subr.bf16.mxu0 0
    %2282 = vmatpush1.bf16.msra.mxu0 %v1576
    %2283 = vmatprep.mubr.bf16.mxu0 %v870
    %2284 = vmatmul.mubr.bf16.gmra.mrb[0].mxu0 %v471
    %v2285 = vpop.f32.mrb[0].mxu0
    %v2286 = vadd.f32 %v1997, %v2285
    %v2287 = vpop.f32.mrb[0].mxu0
    %v2288 = vpop.f32.mrb[0].mxu0
    %v2289 = vadd.f32 %v2000, %v2288
    %v2290 = vpop.f32.mrb[0].mxu0
    %2291 = vmatprep.mubr.bf16.mxu0 %v873
    %2292 = vmatmul.mubr.bf16.gmra.mrb[0].mxu0 %v483
    %v2293 = vpop.f32.mrb[0].mxu0
    %v2294 = vadd.f32 %v2005, %v2293
    %v2295 = vpop.f32.mrb[0].mxu0
    %v2296 = vpop.f32.mrb[0].mxu0
    %v2297 = vadd.f32 %v2008, %v2296
    %v2298 = vpop.f32.mrb[0].mxu0
    %2299 = vmatprep.mubr.bf16.mxu0 %v876
    %2300 = vmatmul.mubr.bf16.gmra.mrb[0].mxu0 %v495
    %v2301 = vpop.f32.mrb[0].mxu0
    %v2302 = vadd.f32 %v2013, %v2301
    %v2303 = vpop.f32.mrb[0].mxu0
    %v2304 = vpop.f32.mrb[0].mxu0
    %v2305 = vadd.f32 %v2016, %v2304
    %v2306 = vpop.f32.mrb[0].mxu0
    %2307 = vmatprep.mubr.bf16.mxu0 %v879
    %2308 = vmatmul.mubr.bf16.gmra.mrb[0].mxu0 %v507
    %v2309 = vpop.f32.mrb[0].mxu0
    %v2310 = vadd.f32 %v2021, %v2309
    %v2311 = vpop.f32.mrb[0].mxu0
    %v2312 = vpop.f32.mrb[0].mxu0
    %v2313 = vadd.f32 %v2024, %v2312
    %v2314 = vpop.f32.mrb[0].mxu0
    %2315 = vmatprep.mubr.bf16.mxu0 %v882
    %2316 = vmatmul.mubr.bf16.gmra.mrb[0].mxu0 %v519
    %v2317 = vpop.f32.mrb[0].mxu0
    %v2318 = vadd.f32 %v2029, %v2317
    %v2319 = vpop.f32.mrb[0].mxu0
    %v2320 = vpop.f32.mrb[0].mxu0
    %v2321 = vadd.f32 %v2032, %v2320
    %v2322 = vpop.f32.mrb[0].mxu0
    %2323 = vmatprep.mubr.bf16.mxu0 %v885
    %2324 = vmatmul.mubr.bf16.gmra.mrb[0].mxu0 %v531
    %v2325 = vpop.f32.mrb[0].mxu0
    %v2326 = vadd.f32 %v2037, %v2325
    %v2327 = vpop.f32.mrb[0].mxu0
    %v2328 = vpop.f32.mrb[0].mxu0
    %v2329 = vadd.f32 %v2040, %v2328
    %v2330 = vpop.f32.mrb[0].mxu0
    %2331 = vmatprep.mubr.bf16.mxu0 %v888
    %2332 = vmatmul.mubr.bf16.gmra.mrb[0].mxu0 %v543
    %v2333 = vpop.f32.mrb[0].mxu0
    %v2334 = vadd.f32 %v2045, %v2333
    %v2335 = vpop.f32.mrb[0].mxu0
    %v2336 = vpop.f32.mrb[0].mxu0
    %v2337 = vadd.f32 %v2048, %v2336
    %v2338 = vpop.f32.mrb[0].mxu0
    %2339 = vmatprep.mubr.bf16.mxu0 %v891
    %2340 = vmatmul.mubr.bf16.gmra.mrb[0].mxu0 %v555
    %v2341 = vpop.f32.mrb[0].mxu0
    %v2342 = vadd.f32 %v2053, %v2341
    %v2343 = vpop.f32.mrb[0].mxu0
    %v2344 = vpop.f32.mrb[0].mxu0
    %v2345 = vadd.f32 %v2056, %v2344
    %v2346 = vpop.f32.mrb[0].mxu0
    %2347 = vmatprep.mubr.bf16.mxu0 %v894
    %2348 = vmatmul.mubr.bf16.gmra.mrb[0].mxu0 %v567
    %v2349 = vpop.f32.mrb[0].mxu0
    %v2350 = vadd.f32 %v2061, %v2349
    %v2351 = vpop.f32.mrb[0].mxu0
    %v2352 = vpop.f32.mrb[0].mxu0
    %v2353 = vadd.f32 %v2064, %v2352
    %v2354 = vpop.f32.mrb[0].mxu0
    %2355 = vmatprep.mubr.bf16.mxu0 %v897
    %2356 = vmatmul.mubr.bf16.gmra.mrb[0].mxu0 %v579
    %v2357 = vpop.f32.mrb[0].mxu0
    %v2358 = vadd.f32 %v2069, %v2357
    %v2359 = vpop.f32.mrb[0].mxu0
    %v2360 = vpop.f32.mrb[0].mxu0
    %v2361 = vadd.f32 %v2072, %v2360
    %v2362 = vpop.f32.mrb[0].mxu0
    %2363 = vmatprep.mubr.bf16.mxu0 %v900
    %2364 = vmatmul.mubr.bf16.gmra.mrb[0].mxu0 %v591
    %v2365 = vpop.f32.mrb[0].mxu0
    %v2366 = vadd.f32 %v2077, %v2365
    %v2367 = vpop.f32.mrb[0].mxu0
    %v2368 = vpop.f32.mrb[0].mxu0
    %v2369 = vadd.f32 %v2080, %v2368
    %v2370 = vpop.f32.mrb[0].mxu0
    %2371 = vmatprep.mubr.bf16.mxu0 %v903
    %2372 = vmatmul.mubr.bf16.gmra.mrb[0].mxu0 %v603
    %v2373 = vpop.f32.mrb[0].mxu0
    %v2374 = vadd.f32 %v2085, %v2373
    %v2375 = vpop.f32.mrb[0].mxu0
    %v2376 = vpop.f32.mrb[0].mxu0
    %v2377 = vadd.f32 %v2088, %v2376
    %v2378 = vpop.f32.mrb[0].mxu0
    %2379 = vmatprep.mubr.bf16.mxu0 %v906
    %2380 = vmatmul.mubr.bf16.gmra.mrb[0].mxu0 %v615
    %v2381 = vpop.f32.mrb[0].mxu0
    %v2382 = vadd.f32 %v2093, %v2381
    %v2383 = vpop.f32.mrb[0].mxu0
    %v2384 = vpop.f32.mrb[0].mxu0
    %v2385 = vadd.f32 %v2096, %v2384
    %v2386 = vpop.f32.mrb[0].mxu0
    %2387 = vmatprep.mubr.bf16.mxu0 %v909
    %2388 = vmatmul.mubr.bf16.gmra.mrb[0].mxu0 %v627
    %v2389 = vpop.f32.mrb[0].mxu0
    %v2390 = vadd.f32 %v2101, %v2389
    %v2391 = vpop.f32.mrb[0].mxu0
    %v2392 = vpop.f32.mrb[0].mxu0
    %v2393 = vadd.f32 %v2104, %v2392
    %v2394 = vpop.f32.mrb[0].mxu0
    %2395 = vmatprep.mubr.bf16.mxu0 %v912
    %2396 = vmatmul.mubr.bf16.gmra.mrb[0].mxu0 %v639
    %v2397 = vpop.f32.mrb[0].mxu0
    %v2398 = vadd.f32 %v2109, %v2397
    %v2399 = vpop.f32.mrb[0].mxu0
    %v2400 = vpop.f32.mrb[0].mxu0
    %v2401 = vadd.f32 %v2112, %v2400
    %v2402 = vpop.f32.mrb[0].mxu0
    %2403 = vmatprep.mubr.bf16.mxu0 %v1039
    %2404 = vmatmul.mubr.bf16.gmra.mrb[0].mxu0 %v1022
    %v2405 = vpop.f32.mrb[0].mxu0
    %v2406 = vadd.f32 %v2117, %v2405
    %v2407 = vpop.f32.mrb[0].mxu0
    %v2408 = vpop.f32.mrb[0].mxu0
    %v2409 = vadd.f32 %v2120, %v2408
    %v2410 = vpop.f32.mrb[0].mxu0
    %2411 = vmatprep.mubr.bf16.mxu0 %v918
    %2412 = vmatmul.mubr.bf16.gmra.mrb[0].mxu0 %v663
    %v2413 = vpop.f32.mrb[0].mxu0
    %v2414 = vadd.f32 %v2125, %v2413
    %v2415 = vpop.f32.mrb[0].mxu0
    %v2416 = vpop.f32.mrb[0].mxu0
    %v2417 = vadd.f32 %v2128, %v2416
    %v2418 = vpop.f32.mrb[0].mxu0
    %2419 = vmatprep.mubr.bf16.mxu0 %v921
    %2420 = vmatmul.mubr.bf16.gmra.mrb[0].mxu0 %v675
    %v2421 = vpop.f32.mrb[0].mxu0
    %v2422 = vadd.f32 %v2133, %v2421
    %v2423 = vpop.f32.mrb[0].mxu0
    %v2424 = vpop.f32.mrb[0].mxu0
    %v2425 = vadd.f32 %v2136, %v2424
    %v2426 = vpop.f32.mrb[0].mxu0
    %2427 = vmatprep.mubr.bf16.mxu0 %v924
    %2428 = vmatmul.mubr.bf16.gmra.mrb[0].mxu0 %v687
    %v2429 = vpop.f32.mrb[0].mxu0
    %v2430 = vadd.f32 %v2141, %v2429
    %v2431 = vpop.f32.mrb[0].mxu0
    %v2432 = vpop.f32.mrb[0].mxu0
    %v2433 = vadd.f32 %v2144, %v2432
    %v2434 = vpop.f32.mrb[0].mxu0
    %2435 = vmatprep.mubr.bf16.mxu0 %v927
    %2436 = vmatmul.mubr.bf16.gmra.mrb[0].mxu0 %v699
    %v2437 = vpop.f32.mrb[0].mxu0
    %v2438 = vadd.f32 %v2149, %v2437
    %v2439 = vpop.f32.mrb[0].mxu0
    %v2440 = vpop.f32.mrb[0].mxu0
    %v2441 = vadd.f32 %v2152, %v2440
    %v2442 = vpop.f32.mrb[0].mxu0
    %2443 = vmatprep.mubr.bf16.mxu0 %v930
    %2444 = vmatmul.mubr.bf16.gmra.mrb[0].mxu0 %v711
    %v2445 = vpop.f32.mrb[0].mxu0
    %v2446 = vadd.f32 %v2157, %v2445
    %v2447 = vpop.f32.mrb[0].mxu0
    %v2448 = vpop.f32.mrb[0].mxu0
    %v2449 = vadd.f32 %v2160, %v2448
    %v2450 = vpop.f32.mrb[0].mxu0
    %2451 = vmatprep.mubr.bf16.mxu0 %v933
    %2452 = vmatmul.mubr.bf16.gmra.mrb[0].mxu0 %v723
    %v2453 = vpop.f32.mrb[0].mxu0
    %v2454 = vadd.f32 %v2165, %v2453
    %v2455 = vpop.f32.mrb[0].mxu0
    %v2456 = vpop.f32.mrb[0].mxu0
    %v2457 = vadd.f32 %v2168, %v2456
    %v2458 = vpop.f32.mrb[0].mxu0
    %2459 = vmatprep.mubr.bf16.mxu0 %v936
    %2460 = vmatmul.mubr.bf16.gmra.mrb[0].mxu0 %v735
    %v2461 = vpop.f32.mrb[0].mxu0
    %v2462 = vadd.f32 %v2173, %v2461
    %v2463 = vpop.f32.mrb[0].mxu0
    %v2464 = vpop.f32.mrb[0].mxu0
    %v2465 = vadd.f32 %v2176, %v2464
    %v2466 = vpop.f32.mrb[0].mxu0
    %2467 = vmatprep.mubr.bf16.mxu0 %v939
    %2468 = vmatmul.mubr.bf16.gmra.mrb[0].mxu0 %v747
    %v2469 = vpop.f32.mrb[0].mxu0
    %v2470 = vadd.f32 %v2181, %v2469
    %v2471 = vpop.f32.mrb[0].mxu0
    %v2472 = vpop.f32.mrb[0].mxu0
    %v2473 = vadd.f32 %v2184, %v2472
    %v2474 = vpop.f32.mrb[0].mxu0
    %2475 = vmatprep.mubr.bf16.mxu0 %v942
    %2476 = vmatmul.mubr.bf16.gmra.mrb[0].mxu0 %v759
    %v2477 = vpop.f32.mrb[0].mxu0
    %v2478 = vadd.f32 %v2189, %v2477
    %v2479 = vpop.f32.mrb[0].mxu0
    %v2480 = vpop.f32.mrb[0].mxu0
    %v2481 = vadd.f32 %v2192, %v2480
    %v2482 = vpop.f32.mrb[0].mxu0
    %2483 = vmatprep.mubr.bf16.mxu0 %v945
    %2484 = vmatmul.mubr.bf16.gmra.mrb[0].mxu0 %v771
    %v2485 = vpop.f32.mrb[0].mxu0
    %v2486 = vadd.f32 %v2197, %v2485
    %v2487 = vpop.f32.mrb[0].mxu0
    %v2488 = vpop.f32.mrb[0].mxu0
    %v2489 = vadd.f32 %v2200, %v2488
    %v2490 = vpop.f32.mrb[0].mxu0
    %2491 = vmatprep.mubr.bf16.mxu0 %v948
    %2492 = vmatmul.mubr.bf16.gmra.mrb[0].mxu0 %v783
    %v2493 = vpop.f32.mrb[0].mxu0
    %v2494 = vadd.f32 %v2205, %v2493
    %v2495 = vpop.f32.mrb[0].mxu0
    %v2496 = vpop.f32.mrb[0].mxu0
    %v2497 = vadd.f32 %v2208, %v2496
    %v2498 = vpop.f32.mrb[0].mxu0
    %2499 = vmatprep.mubr.bf16.mxu0 %v951
    %2500 = vmatmul.mubr.bf16.gmra.mrb[0].mxu0 %v795
    %v2501 = vpop.f32.mrb[0].mxu0
    %v2502 = vadd.f32 %v2213, %v2501
    %v2503 = vpop.f32.mrb[0].mxu0
    %v2504 = vpop.f32.mrb[0].mxu0
    %v2505 = vadd.f32 %v2216, %v2504
    %v2506 = vpop.f32.mrb[0].mxu0
    %2507 = vmatprep.mubr.bf16.mxu0 %v954
    %2508 = vmatmul.mubr.bf16.gmra.mrb[0].mxu0 %v807
    %v2509 = vpop.f32.mrb[0].mxu0
    %v2510 = vadd.f32 %v2221, %v2509
    %v2511 = vpop.f32.mrb[0].mxu0
    %v2512 = vpop.f32.mrb[0].mxu0
    %v2513 = vadd.f32 %v2224, %v2512
    %v2514 = vpop.f32.mrb[0].mxu0
    %2515 = vmatprep.mubr.bf16.mxu0 %v957
    %2516 = vmatmul.mubr.bf16.gmra.mrb[0].mxu0 %v819
    %v2517 = vpop.f32.mrb[0].mxu0
    %v2518 = vadd.f32 %v2229, %v2517
    %v2519 = vpop.f32.mrb[0].mxu0
    %v2520 = vpop.f32.mrb[0].mxu0
    %v2521 = vadd.f32 %v2232, %v2520
    %v2522 = vpop.f32.mrb[0].mxu0
    %2523 = vmatprep.mubr.bf16.mxu0 %v960
    %2524 = vmatmul.mubr.bf16.gmra.mrb[0].mxu0 %v831
    %v2525 = vpop.f32.mrb[0].mxu0
    %v2526 = vadd.f32 %v2237, %v2525
    %v2527 = vpop.f32.mrb[0].mxu0
    %v2528 = vpop.f32.mrb[0].mxu0
    %v2529 = vadd.f32 %v2240, %v2528
    %v2530 = vpop.f32.mrb[0].mxu0
    %2531 = vmatprep.mubr.bf16.mxu0 %v1042
    %2532 = vmatmul.mubr.bf16.gmra.mrb[0].mxu0 %v1034
    %v2533 = vpop.f32.mrb[0].mxu0
    %v2534 = vadd.f32 %v2245, %v2533
    %v2535 = vpop.f32.mrb[0].mxu0
    %v2536 = vpop.f32.mrb[0].mxu0
    %v2537 = vadd.f32 %v2248, %v2536
    %v2538 = vpop.f32.mrb[0].mxu0
    %2539 = vdwg.mxu0
    %2540 = vmatprep.subr.bf16.mxu0 0
    %2541 = vmatpush1.bf16.msra.mxu0 %v1577
    %2542 = vmatprep.subr.bf16.mxu0 0
    %2543 = vmatpush1.bf16.msra.mxu0 %v1578
    %2544 = vmatprep.subr.bf16.mxu0 0
    %2545 = vmatpush1.bf16.msra.mxu0 %v1579
    %2546 = vmatprep.subr.bf16.mxu0 0
    %2547 = vmatpush1.bf16.msra.mxu0 %v1580
    %2548 = vmatprep.subr.bf16.mxu0 0
    %2549 = vmatpush1.bf16.msra.mxu0 %v1581
    %2550 = vmatprep.subr.bf16.mxu0 0
    %2551 = vmatpush1.bf16.msra.mxu0 %v1582
    %2552 = vmatprep.subr.bf16.mxu0 0
    %2553 = vmatpush1.bf16.msra.mxu0 %v1583
    %2554 = vmatprep.subr.bf16.mxu0 0
    %2555 = vmatpush1.bf16.msra.mxu0 %v1584
    %2556 = vmatprep.subr.bf16.mxu0 0
    %2557 = vmatpush1.bf16.msra.mxu0 %v1585
    %2558 = vmatprep.subr.bf16.mxu0 0
    %2559 = vmatpush1.bf16.msra.mxu0 %v1586
    %2560 = vmatprep.subr.bf16.mxu0 0
    %2561 = vmatpush1.bf16.msra.mxu0 %v1587
    %2562 = vmatprep.subr.bf16.mxu0 0
    %2563 = vmatpush1.bf16.msra.mxu0 %v1588
    %2564 = vmatprep.subr.bf16.mxu0 0
    %2565 = vmatpush1.bf16.msra.mxu0 %v1589
    %2566 = vmatprep.subr.bf16.mxu0 0
    %2567 = vmatpush1.bf16.msra.mxu0 %v1590
    %2568 = vmatprep.subr.bf16.mxu0 0
    %2569 = vmatpush1.bf16.msra.mxu0 %v1591
    %2570 = vmatprep.subr.bf16.mxu0 0
    %2571 = vmatpush1.bf16.msra.mxu0 %v1592
    %2572 = vmatprep.mubr.bf16.mxu0 %v483
    %2573 = vmatmul.mubr.bf16.gmra.mrb[0].mxu0 %v289
    %v2574 = vpop.f32.mrb[0].mxu0
    %v2575 = vadd.f32 %v2286, %v2574
    %v2576 = vpop.f32.mrb[0].mxu0
    %v2577 = vpop.f32.mrb[0].mxu0
    %v2578 = vadd.f32 %v2289, %v2577
    %v2579 = vpop.f32.mrb[0].mxu0
    %2580 = vmatprep.mubr.bf16.mxu0 %v495
    %2581 = vmatmul.mubr.bf16.gmra.mrb[0].mxu0 %v290
    %v2582 = vpop.f32.mrb[0].mxu0
    %v2583 = vadd.f32 %v2294, %v2582
    %v2584 = vpop.f32.mrb[0].mxu0
    %v2585 = vpop.f32.mrb[0].mxu0
    %v2586 = vadd.f32 %v2297, %v2585
    %v2587 = vpop.f32.mrb[0].mxu0
    %2588 = vmatprep.mubr.bf16.mxu0 %v507
    %2589 = vmatmul.mubr.bf16.gmra.mrb[0].mxu0 %v291
    %v2590 = vpop.f32.mrb[0].mxu0
    %v2591 = vadd.f32 %v2302, %v2590
    %v2592 = vpop.f32.mrb[0].mxu0
    %v2593 = vpop.f32.mrb[0].mxu0
    %v2594 = vadd.f32 %v2305, %v2593
    %v2595 = vpop.f32.mrb[0].mxu0
    %2596 = vmatprep.mubr.bf16.mxu0 %v519
    %2597 = vmatmul.mubr.bf16.gmra.mrb[0].mxu0 %v292
    %v2598 = vpop.f32.mrb[0].mxu0
    %v2599 = vadd.f32 %v2310, %v2598
    %v2600 = vpop.f32.mrb[0].mxu0
    %v2601 = vpop.f32.mrb[0].mxu0
    %v2602 = vadd.f32 %v2313, %v2601
    %v2603 = vpop.f32.mrb[0].mxu0
    %2604 = vmatprep.mubr.bf16.mxu0 %v531
    %2605 = vmatmul.mubr.bf16.gmra.mrb[0].mxu0 %v293
    %v2606 = vpop.f32.mrb[0].mxu0
    %v2607 = vadd.f32 %v2318, %v2606
    %v2608 = vpop.f32.mrb[0].mxu0
    %v2609 = vpop.f32.mrb[0].mxu0
    %v2610 = vadd.f32 %v2321, %v2609
    %v2611 = vpop.f32.mrb[0].mxu0
    %2612 = vmatprep.mubr.bf16.mxu0 %v543
    %2613 = vmatmul.mubr.bf16.gmra.mrb[0].mxu0 %v294
    %v2614 = vpop.f32.mrb[0].mxu0
    %v2615 = vadd.f32 %v2326, %v2614
    %v2616 = vpop.f32.mrb[0].mxu0
    %v2617 = vpop.f32.mrb[0].mxu0
    %v2618 = vadd.f32 %v2329, %v2617
    %v2619 = vpop.f32.mrb[0].mxu0
    %2620 = vmatprep.mubr.bf16.mxu0 %v555
    %2621 = vmatmul.mubr.bf16.gmra.mrb[0].mxu0 %v295
    %v2622 = vpop.f32.mrb[0].mxu0
    %v2623 = vadd.f32 %v2334, %v2622
    %v2624 = vpop.f32.mrb[0].mxu0
    %v2625 = vpop.f32.mrb[0].mxu0
    %v2626 = vadd.f32 %v2337, %v2625
    %v2627 = vpop.f32.mrb[0].mxu0
    %2628 = vmatprep.mubr.bf16.mxu0 %v567
    %2629 = vmatmul.mubr.bf16.gmra.mrb[0].mxu0 %v296
    %v2630 = vpop.f32.mrb[0].mxu0
    %v2631 = vadd.f32 %v2342, %v2630
    %v2632 = vpop.f32.mrb[0].mxu0
    %v2633 = vpop.f32.mrb[0].mxu0
    %v2634 = vadd.f32 %v2345, %v2633
    %v2635 = vpop.f32.mrb[0].mxu0
    %2636 = vmatprep.mubr.bf16.mxu0 %v579
    %2637 = vmatmul.mubr.bf16.gmra.mrb[0].mxu0 %v297
    %v2638 = vpop.f32.mrb[0].mxu0
    %v2639 = vadd.f32 %v2350, %v2638
    %v2640 = vpop.f32.mrb[0].mxu0
    %v2641 = vpop.f32.mrb[0].mxu0
    %v2642 = vadd.f32 %v2353, %v2641
    %v2643 = vpop.f32.mrb[0].mxu0
    %2644 = vmatprep.mubr.bf16.mxu0 %v591
    %2645 = vmatmul.mubr.bf16.gmra.mrb[0].mxu0 %v298
    %v2646 = vpop.f32.mrb[0].mxu0
    %v2647 = vadd.f32 %v2358, %v2646
    %v2648 = vpop.f32.mrb[0].mxu0
    %v2649 = vpop.f32.mrb[0].mxu0
    %v2650 = vadd.f32 %v2361, %v2649
    %v2651 = vpop.f32.mrb[0].mxu0
    %2652 = vmatprep.mubr.bf16.mxu0 %v603
    %2653 = vmatmul.mubr.bf16.gmra.mrb[0].mxu0 %v299
    %v2654 = vpop.f32.mrb[0].mxu0
    %v2655 = vadd.f32 %v2366, %v2654
    %v2656 = vpop.f32.mrb[0].mxu0
    %v2657 = vpop.f32.mrb[0].mxu0
    %v2658 = vadd.f32 %v2369, %v2657
    %v2659 = vpop.f32.mrb[0].mxu0
    %2660 = vmatprep.mubr.bf16.mxu0 %v615
    %2661 = vmatmul.mubr.bf16.gmra.mrb[0].mxu0 %v300
    %v2662 = vpop.f32.mrb[0].mxu0
    %v2663 = vadd.f32 %v2374, %v2662
    %v2664 = vpop.f32.mrb[0].mxu0
    %v2665 = vpop.f32.mrb[0].mxu0
    %v2666 = vadd.f32 %v2377, %v2665
    %v2667 = vpop.f32.mrb[0].mxu0
    %2668 = vmatprep.mubr.bf16.mxu0 %v627
    %2669 = vmatmul.mubr.bf16.gmra.mrb[0].mxu0 %v301
    %v2670 = vpop.f32.mrb[0].mxu0
    %v2671 = vadd.f32 %v2382, %v2670
    %v2672 = vpop.f32.mrb[0].mxu0
    %v2673 = vpop.f32.mrb[0].mxu0
    %v2674 = vadd.f32 %v2385, %v2673
    %v2675 = vpop.f32.mrb[0].mxu0
    %2676 = vmatprep.mubr.bf16.mxu0 %v639
    %2677 = vmatmul.mubr.bf16.gmra.mrb[0].mxu0 %v302
    %v2678 = vpop.f32.mrb[0].mxu0
    %v2679 = vadd.f32 %v2390, %v2678
    %v2680 = vpop.f32.mrb[0].mxu0
    %v2681 = vpop.f32.mrb[0].mxu0
    %v2682 = vadd.f32 %v2393, %v2681
    %v2683 = vpop.f32.mrb[0].mxu0
    %2684 = vmatprep.mubr.bf16.mxu0 %v1022
    %2685 = vmatmul.mubr.bf16.gmra.mrb[0].mxu0 %v1001
    %v2686 = vpop.f32.mrb[0].mxu0
    %v2687 = vadd.f32 %v2398, %v2686
    %v2688 = vpop.f32.mrb[0].mxu0
    %v2689 = vpop.f32.mrb[0].mxu0
    %v2690 = vadd.f32 %v2401, %v2689
    %v2691 = vpop.f32.mrb[0].mxu0
    %2692 = vmatprep.mubr.bf16.mxu0 %v1074
    %2693 = vmatmul.mubr.bf16.gmra.mrb[0].mxu0 %v1053
    %v2694 = vpop.f32.mrb[0].mxu0
    %v2695 = vadd.f32 %v2406, %v2694
    %v2696 = vpop.f32.mrb[0].mxu0
    %v2697 = vpop.f32.mrb[0].mxu0
    %v2698 = vadd.f32 %v2409, %v2697
    %v2699 = vpop.f32.mrb[0].mxu0
    %2700 = vmatprep.mubr.bf16.mxu0 %v675
    %2701 = vmatmul.mubr.bf16.gmra.mrb[0].mxu0 %v305
    %v2702 = vpop.f32.mrb[0].mxu0
    %v2703 = vadd.f32 %v2414, %v2702
    %v2704 = vpop.f32.mrb[0].mxu0
    %v2705 = vpop.f32.mrb[0].mxu0
    %v2706 = vadd.f32 %v2417, %v2705
    %v2707 = vpop.f32.mrb[0].mxu0
    %2708 = vmatprep.mubr.bf16.mxu0 %v687
    %2709 = vmatmul.mubr.bf16.gmra.mrb[0].mxu0 %v306
    %v2710 = vpop.f32.mrb[0].mxu0
    %v2711 = vadd.f32 %v2422, %v2710
    %v2712 = vpop.f32.mrb[0].mxu0
    %v2713 = vpop.f32.mrb[0].mxu0
    %v2714 = vadd.f32 %v2425, %v2713
    %v2715 = vpop.f32.mrb[0].mxu0
    %2716 = vmatprep.mubr.bf16.mxu0 %v699
    %2717 = vmatmul.mubr.bf16.gmra.mrb[0].mxu0 %v307
    %v2718 = vpop.f32.mrb[0].mxu0
    %v2719 = vadd.f32 %v2430, %v2718
    %v2720 = vpop.f32.mrb[0].mxu0
    %v2721 = vpop.f32.mrb[0].mxu0
    %v2722 = vadd.f32 %v2433, %v2721
    %v2723 = vpop.f32.mrb[0].mxu0
    %2724 = vmatprep.mubr.bf16.mxu0 %v711
    %2725 = vmatmul.mubr.bf16.gmra.mrb[0].mxu0 %v308
    %v2726 = vpop.f32.mrb[0].mxu0
    %v2727 = vadd.f32 %v2438, %v2726
    %v2728 = vpop.f32.mrb[0].mxu0
    %v2729 = vpop.f32.mrb[0].mxu0
    %v2730 = vadd.f32 %v2441, %v2729
    %v2731 = vpop.f32.mrb[0].mxu0
    %2732 = vmatprep.mubr.bf16.mxu0 %v723
    %2733 = vmatmul.mubr.bf16.gmra.mrb[0].mxu0 %v309
    %v2734 = vpop.f32.mrb[0].mxu0
    %v2735 = vadd.f32 %v2446, %v2734
    %v2736 = vpop.f32.mrb[0].mxu0
    %v2737 = vpop.f32.mrb[0].mxu0
    %v2738 = vadd.f32 %v2449, %v2737
    %v2739 = vpop.f32.mrb[0].mxu0
    %2740 = vmatprep.mubr.bf16.mxu0 %v735
    %2741 = vmatmul.mubr.bf16.gmra.mrb[0].mxu0 %v310
    %v2742 = vpop.f32.mrb[0].mxu0
    %v2743 = vadd.f32 %v2454, %v2742
    %v2744 = vpop.f32.mrb[0].mxu0
    %v2745 = vpop.f32.mrb[0].mxu0
    %v2746 = vadd.f32 %v2457, %v2745
    %v2747 = vpop.f32.mrb[0].mxu0
    %2748 = vmatprep.mubr.bf16.mxu0 %v747
    %2749 = vmatmul.mubr.bf16.gmra.mrb[0].mxu0 %v311
    %v2750 = vpop.f32.mrb[0].mxu0
    %v2751 = vadd.f32 %v2462, %v2750
    %v2752 = vpop.f32.mrb[0].mxu0
    %v2753 = vpop.f32.mrb[0].mxu0
    %v2754 = vadd.f32 %v2465, %v2753
    %v2755 = vpop.f32.mrb[0].mxu0
    %2756 = vmatprep.mubr.bf16.mxu0 %v759
    %2757 = vmatmul.mubr.bf16.gmra.mrb[0].mxu0 %v312
    %v2758 = vpop.f32.mrb[0].mxu0
    %v2759 = vadd.f32 %v2470, %v2758
    %v2760 = vpop.f32.mrb[0].mxu0
    %v2761 = vpop.f32.mrb[0].mxu0
    %v2762 = vadd.f32 %v2473, %v2761
    %v2763 = vpop.f32.mrb[0].mxu0
    %2764 = vmatprep.mubr.bf16.mxu0 %v771
    %2765 = vmatmul.mubr.bf16.gmra.mrb[0].mxu0 %v313
    %v2766 = vpop.f32.mrb[0].mxu0
    %v2767 = vadd.f32 %v2478, %v2766
    %v2768 = vpop.f32.mrb[0].mxu0
    %v2769 = vpop.f32.mrb[0].mxu0
    %v2770 = vadd.f32 %v2481, %v2769
    %v2771 = vpop.f32.mrb[0].mxu0
    %2772 = vmatprep.mubr.bf16.mxu0 %v783
    %2773 = vmatmul.mubr.bf16.gmra.mrb[0].mxu0 %v314
    %v2774 = vpop.f32.mrb[0].mxu0
    %v2775 = vadd.f32 %v2486, %v2774
    %v2776 = vpop.f32.mrb[0].mxu0
    %v2777 = vpop.f32.mrb[0].mxu0
    %v2778 = vadd.f32 %v2489, %v2777
    %v2779 = vpop.f32.mrb[0].mxu0
    %2780 = vmatprep.mubr.bf16.mxu0 %v795
    %2781 = vmatmul.mubr.bf16.gmra.mrb[0].mxu0 %v315
    %v2782 = vpop.f32.mrb[0].mxu0
    %v2783 = vadd.f32 %v2494, %v2782
    %v2784 = vpop.f32.mrb[0].mxu0
    %v2785 = vpop.f32.mrb[0].mxu0
    %v2786 = vadd.f32 %v2497, %v2785
    %v2787 = vpop.f32.mrb[0].mxu0
    %2788 = vmatprep.mubr.bf16.mxu0 %v807
    %2789 = vmatmul.mubr.bf16.gmra.mrb[0].mxu0 %v316
    %v2790 = vpop.f32.mrb[0].mxu0
    %v2791 = vadd.f32 %v2502, %v2790
    %v2792 = vpop.f32.mrb[0].mxu0
    %v2793 = vpop.f32.mrb[0].mxu0
    %v2794 = vadd.f32 %v2505, %v2793
    %v2795 = vpop.f32.mrb[0].mxu0
    %2796 = vmatprep.mubr.bf16.mxu0 %v819
    %2797 = vmatmul.mubr.bf16.gmra.mrb[0].mxu0 %v317
    %v2798 = vpop.f32.mrb[0].mxu0
    %v2799 = vadd.f32 %v2510, %v2798
    %v2800 = vpop.f32.mrb[0].mxu0
    %v2801 = vpop.f32.mrb[0].mxu0
    %v2802 = vadd.f32 %v2513, %v2801
    %v2803 = vpop.f32.mrb[0].mxu0
    %2804 = vmatprep.mubr.bf16.mxu0 %v831
    %2805 = vmatmul.mubr.bf16.gmra.mrb[0].mxu0 %v318
    %v2806 = vpop.f32.mrb[0].mxu0
    %v2807 = vadd.f32 %v2518, %v2806
    %v2808 = vpop.f32.mrb[0].mxu0
    %v2809 = vpop.f32.mrb[0].mxu0
    %v2810 = vadd.f32 %v2521, %v2809
    %v2811 = vpop.f32.mrb[0].mxu0
    %2812 = vmatprep.mubr.bf16.mxu0 %v1034
    %2813 = vmatmul.mubr.bf16.gmra.mrb[0].mxu0 %v1002
    %v2814 = vpop.f32.mrb[0].mxu0
    %v2815 = vadd.f32 %v2526, %v2814
    %v2816 = vpop.f32.mrb[0].mxu0
    %v2817 = vpop.f32.mrb[0].mxu0
    %v2818 = vadd.f32 %v2529, %v2817
    %v2819 = vpop.f32.mrb[0].mxu0
    %2820 = vmatprep.mubr.bf16.mxu0 %v1086
    %2821 = vmatmul.mubr.bf16.gmra.mrb[0].mxu0 %v1054
    %v2822 = vpop.f32.mrb[0].mxu0
    %v2823 = vadd.f32 %v2534, %v2822
    %v2824 = vpop.f32.mrb[0].mxu0
    %v2825 = vpop.f32.mrb[0].mxu0
    %v2826 = vadd.f32 %v2537, %v2825
    %v2827 = vpop.f32.mrb[0].mxu0
    %2828 = vdwg.mxu0
    %2829 = vmatprep.subr.bf16.mxu0 0
    %2830 = vmatpush1.bf16.msra.mxu0 %v1593
    %2831 = vmatprep.subr.bf16.mxu0 0
    %2832 = vmatpush1.bf16.msra.mxu0 %v1594
    %2833 = vmatprep.subr.bf16.mxu0 0
    %2834 = vmatpush1.bf16.msra.mxu0 %v1595
    %2835 = vmatprep.subr.bf16.mxu0 0
    %2836 = vmatpush1.bf16.msra.mxu0 %v1596
    %2837 = vmatprep.subr.bf16.mxu0 0
    %2838 = vmatpush1.bf16.msra.mxu0 %v1597
    %2839 = vmatprep.subr.bf16.mxu0 0
    %2840 = vmatpush1.bf16.msra.mxu0 %v1598
    %2841 = vmatprep.subr.bf16.mxu0 0
    %2842 = vmatpush1.bf16.msra.mxu0 %v1599
    %2843 = vmatprep.subr.bf16.mxu0 0
    %2844 = vmatpush1.bf16.msra.mxu0 %v1600
    %2845 = vmatprep.subr.bf16.mxu0 0
    %2846 = vmatpush1.bf16.msra.mxu0 0
    %2847 = vmatprep.subr.bf16.mxu0 0
    %2848 = vmatpush1.bf16.msra.mxu0 0
    %2849 = vmatprep.subr.bf16.mxu0 0
    %2850 = vmatpush1.bf16.msra.mxu0 0
    %2851 = vmatprep.subr.bf16.mxu0 0
    %2852 = vmatpush1.bf16.msra.mxu0 0
    %2853 = vmatprep.subr.bf16.mxu0 0
    %2854 = vmatpush1.bf16.msra.mxu0 0
    %2855 = vmatprep.subr.bf16.mxu0 0
    %2856 = vmatpush1.bf16.msra.mxu0 0
    %2857 = vmatprep.subr.bf16.mxu0 0
    %2858 = vmatpush1.bf16.msra.mxu0 0
    %2859 = vmatprep.subr.bf16.mxu0 0
    %2860 = vmatpush1.bf16.msra.mxu0 0
    %2861 = vmatprep.mubr.bf16.mxu0 0
    %2862 = vmatmul.mubr.bf16.gmra.mrb[0].mxu0 %v873
    %v2863 = vpop.f32.mrb[0].mxu0
    %v2864 = vadd.f32 %v2575, %v2863
    %v2865 = vpop.f32.mrb[0].mxu0
    %v2866 = vpop.f32.mrb[0].mxu0
    %v2867 = vadd.f32 %v2578, %v2866
    %v2868 = vpop.f32.mrb[0].mxu0
    %2869 = vmatprep.mubr.bf16.mxu0 0
    %2870 = vmatmul.mubr.bf16.gmra.mrb[0].mxu0 %v876
    %v2871 = vpop.f32.mrb[0].mxu0
    %v2872 = vadd.f32 %v2583, %v2871
    %v2873 = vpop.f32.mrb[0].mxu0
    %v2874 = vpop.f32.mrb[0].mxu0
    %v2875 = vadd.f32 %v2586, %v2874
    %v2876 = vpop.f32.mrb[0].mxu0
    %2877 = vmatprep.mubr.bf16.mxu0 0
    %2878 = vmatmul.mubr.bf16.gmra.mrb[0].mxu0 %v879
    %v2879 = vpop.f32.mrb[0].mxu0
    %v2880 = vadd.f32 %v2591, %v2879
    %v2881 = vpop.f32.mrb[0].mxu0
    %v2882 = vpop.f32.mrb[0].mxu0
    %v2883 = vadd.f32 %v2594, %v2882
    %v2884 = vpop.f32.mrb[0].mxu0
    %2885 = vmatprep.mubr.bf16.mxu0 0
    %2886 = vmatmul.mubr.bf16.gmra.mrb[0].mxu0 %v882
    %v2887 = vpop.f32.mrb[0].mxu0
    %v2888 = vadd.f32 %v2599, %v2887
    %v2889 = vpop.f32.mrb[0].mxu0
    %v2890 = vpop.f32.mrb[0].mxu0
    %v2891 = vadd.f32 %v2602, %v2890
    %v2892 = vpop.f32.mrb[0].mxu0
    %2893 = vmatprep.mubr.bf16.mxu0 0
    %2894 = vmatmul.mubr.bf16.gmra.mrb[0].mxu0 %v885
    %v2895 = vpop.f32.mrb[0].mxu0
    %v2896 = vadd.f32 %v2607, %v2895
    %v2897 = vpop.f32.mrb[0].mxu0
    %v2898 = vpop.f32.mrb[0].mxu0
    %v2899 = vadd.f32 %v2610, %v2898
    %v2900 = vpop.f32.mrb[0].mxu0
    %2901 = vmatprep.mubr.bf16.mxu0 0
    %2902 = vmatmul.mubr.bf16.gmra.mrb[0].mxu0 %v888
    %v2903 = vpop.f32.mrb[0].mxu0
    %v2904 = vadd.f32 %v2615, %v2903
    %v2905 = vpop.f32.mrb[0].mxu0
    %v2906 = vpop.f32.mrb[0].mxu0
    %v2907 = vadd.f32 %v2618, %v2906
    %v2908 = vpop.f32.mrb[0].mxu0
    %2909 = vmatprep.mubr.bf16.mxu0 0
    %2910 = vmatmul.mubr.bf16.gmra.mrb[0].mxu0 %v891
    %v2911 = vpop.f32.mrb[0].mxu0
    %v2912 = vadd.f32 %v2623, %v2911
    %v2913 = vpop.f32.mrb[0].mxu0
    %v2914 = vpop.f32.mrb[0].mxu0
    %v2915 = vadd.f32 %v2626, %v2914
    %v2916 = vpop.f32.mrb[0].mxu0
    %2917 = vmatprep.mubr.bf16.mxu0 0
    %2918 = vmatmul.mubr.bf16.gmra.mrb[0].mxu0 %v894
    %v2919 = vpop.f32.mrb[0].mxu0
    %v2920 = vadd.f32 %v2631, %v2919
    %v2921 = vpop.f32.mrb[0].mxu0
    %v2922 = vpop.f32.mrb[0].mxu0
    %v2923 = vadd.f32 %v2634, %v2922
    %v2924 = vpop.f32.mrb[0].mxu0
    %2925 = vmatprep.mubr.bf16.mxu0 0
    %2926 = vmatmul.mubr.bf16.gmra.mrb[0].mxu0 %v897
    %v2927 = vpop.f32.mrb[0].mxu0
    %v2928 = vadd.f32 %v2639, %v2927
    %v2929 = vpop.f32.mrb[0].mxu0
    %v2930 = vpop.f32.mrb[0].mxu0
    %v2931 = vadd.f32 %v2642, %v2930
    %v2932 = vpop.f32.mrb[0].mxu0
    %2933 = vmatprep.mubr.bf16.mxu0 0
    %2934 = vmatmul.mubr.bf16.gmra.mrb[0].mxu0 %v900
    %v2935 = vpop.f32.mrb[0].mxu0
    %v2936 = vadd.f32 %v2647, %v2935
    %v2937 = vpop.f32.mrb[0].mxu0
    %v2938 = vpop.f32.mrb[0].mxu0
    %v2939 = vadd.f32 %v2650, %v2938
    %v2940 = vpop.f32.mrb[0].mxu0
    %2941 = vmatprep.mubr.bf16.mxu0 0
    %2942 = vmatmul.mubr.bf16.gmra.mrb[0].mxu0 %v903
    %v2943 = vpop.f32.mrb[0].mxu0
    %v2944 = vadd.f32 %v2655, %v2943
    %v2945 = vpop.f32.mrb[0].mxu0
    %v2946 = vpop.f32.mrb[0].mxu0
    %v2947 = vadd.f32 %v2658, %v2946
    %v2948 = vpop.f32.mrb[0].mxu0
    %2949 = vmatprep.mubr.bf16.mxu0 0
    %2950 = vmatmul.mubr.bf16.gmra.mrb[0].mxu0 %v906
    %v2951 = vpop.f32.mrb[0].mxu0
    %v2952 = vadd.f32 %v2663, %v2951
    %v2953 = vpop.f32.mrb[0].mxu0
    %v2954 = vpop.f32.mrb[0].mxu0
    %v2955 = vadd.f32 %v2666, %v2954
    %v2956 = vpop.f32.mrb[0].mxu0
    %2957 = vmatprep.mubr.bf16.mxu0 0
    %2958 = vmatmul.mubr.bf16.gmra.mrb[0].mxu0 %v909
    %v2959 = vpop.f32.mrb[0].mxu0
    %v2960 = vadd.f32 %v2671, %v2959
    %v2961 = vpop.f32.mrb[0].mxu0
    %v2962 = vpop.f32.mrb[0].mxu0
    %v2963 = vadd.f32 %v2674, %v2962
    %v2964 = vpop.f32.mrb[0].mxu0
    %2965 = vmatprep.mubr.bf16.mxu0 0
    %2966 = vmatmul.mubr.bf16.gmra.mrb[0].mxu0 %v912
    %v2967 = vpop.f32.mrb[0].mxu0
    %v2968 = vadd.f32 %v2679, %v2967
    %v2969 = vpop.f32.mrb[0].mxu0
    %v2970 = vpop.f32.mrb[0].mxu0
    %v2971 = vadd.f32 %v2682, %v2970
    %v2972 = vpop.f32.mrb[0].mxu0
    %2973 = vmatprep.mubr.bf16.mxu0 0
    %2974 = vmatmul.mubr.bf16.gmra.mrb[0].mxu0 %v1039
    %v2975 = vpop.f32.mrb[0].mxu0
    %v2976 = vadd.f32 %v2687, %v2975
    %v2977 = vpop.f32.mrb[0].mxu0
    %v2978 = vpop.f32.mrb[0].mxu0
    %v2979 = vadd.f32 %v2690, %v2978
    %v2980 = vpop.f32.mrb[0].mxu0
    %2981 = vmatprep.mubr.bf16.mxu0 0
    %2982 = vmatmul.mubr.bf16.gmra.mrb[0].mxu0 %v1091
    %v2983 = vpop.f32.mrb[0].mxu0
    %v2984 = vadd.f32 %v2695, %v2983
    %v2985 = vpop.f32.mrb[0].mxu0
    %v2986 = vpop.f32.mrb[0].mxu0
    %v2987 = vadd.f32 %v2698, %v2986
    %v2988 = vpop.f32.mrb[0].mxu0
    %2989 = vmatprep.mubr.bf16.mxu0 0
    %2990 = vmatmul.mubr.bf16.gmra.mrb[0].mxu0 %v921
    %v2991 = vpop.f32.mrb[0].mxu0
    %v2992 = vadd.f32 %v2703, %v2991
    %v2993 = vpop.f32.mrb[0].mxu0
    %v2994 = vpop.f32.mrb[0].mxu0
    %v2995 = vadd.f32 %v2706, %v2994
    %v2996 = vpop.f32.mrb[0].mxu0
    %2997 = vmatprep.mubr.bf16.mxu0 0
    %2998 = vmatmul.mubr.bf16.gmra.mrb[0].mxu0 %v924
    %v2999 = vpop.f32.mrb[0].mxu0
    %v3000 = vadd.f32 %v2711, %v2999
    %v3001 = vpop.f32.mrb[0].mxu0
    %v3002 = vpop.f32.mrb[0].mxu0
    %v3003 = vadd.f32 %v2714, %v3002
    %v3004 = vpop.f32.mrb[0].mxu0
    %3005 = vmatprep.mubr.bf16.mxu0 0
    %3006 = vmatmul.mubr.bf16.gmra.mrb[0].mxu0 %v927
    %v3007 = vpop.f32.mrb[0].mxu0
    %v3008 = vadd.f32 %v2719, %v3007
    %v3009 = vpop.f32.mrb[0].mxu0
    %v3010 = vpop.f32.mrb[0].mxu0
    %v3011 = vadd.f32 %v2722, %v3010
    %v3012 = vpop.f32.mrb[0].mxu0
    %3013 = vmatprep.mubr.bf16.mxu0 0
    %3014 = vmatmul.mubr.bf16.gmra.mrb[0].mxu0 %v930
    %v3015 = vpop.f32.mrb[0].mxu0
    %v3016 = vadd.f32 %v2727, %v3015
    %v3017 = vpop.f32.mrb[0].mxu0
    %v3018 = vpop.f32.mrb[0].mxu0
    %v3019 = vadd.f32 %v2730, %v3018
    %v3020 = vpop.f32.mrb[0].mxu0
    %3021 = vmatprep.mubr.bf16.mxu0 0
    %3022 = vmatmul.mubr.bf16.gmra.mrb[0].mxu0 %v933
    %v3023 = vpop.f32.mrb[0].mxu0
    %v3024 = vadd.f32 %v2735, %v3023
    %v3025 = vpop.f32.mrb[0].mxu0
    %v3026 = vpop.f32.mrb[0].mxu0
    %v3027 = vadd.f32 %v2738, %v3026
    %v3028 = vpop.f32.mrb[0].mxu0
    %3029 = vmatprep.mubr.bf16.mxu0 0
    %3030 = vmatmul.mubr.bf16.gmra.mrb[0].mxu0 %v936
    %v3031 = vpop.f32.mrb[0].mxu0
    %v3032 = vadd.f32 %v2743, %v3031
    %v3033 = vpop.f32.mrb[0].mxu0
    %v3034 = vpop.f32.mrb[0].mxu0
    %v3035 = vadd.f32 %v2746, %v3034
    %v3036 = vpop.f32.mrb[0].mxu0
    %3037 = vmatprep.mubr.bf16.mxu0 0
    %3038 = vmatmul.mubr.bf16.gmra.mrb[0].mxu0 %v939
    %v3039 = vpop.f32.mrb[0].mxu0
    %v3040 = vadd.f32 %v2751, %v3039
    %v3041 = vpop.f32.mrb[0].mxu0
    %v3042 = vpop.f32.mrb[0].mxu0
    %v3043 = vadd.f32 %v2754, %v3042
    %v3044 = vpop.f32.mrb[0].mxu0
    %3045 = vmatprep.mubr.bf16.mxu0 0
    %3046 = vmatmul.mubr.bf16.gmra.mrb[0].mxu0 %v942
    %v3047 = vpop.f32.mrb[0].mxu0
    %v3048 = vadd.f32 %v2759, %v3047
    %v3049 = vpop.f32.mrb[0].mxu0
    %v3050 = vpop.f32.mrb[0].mxu0
    %v3051 = vadd.f32 %v2762, %v3050
    %v3052 = vpop.f32.mrb[0].mxu0
    %3053 = vmatprep.mubr.bf16.mxu0 0
    %3054 = vmatmul.mubr.bf16.gmra.mrb[0].mxu0 %v945
    %v3055 = vpop.f32.mrb[0].mxu0
    %v3056 = vadd.f32 %v2767, %v3055
    %v3057 = vpop.f32.mrb[0].mxu0
    %v3058 = vpop.f32.mrb[0].mxu0
    %v3059 = vadd.f32 %v2770, %v3058
    %v3060 = vpop.f32.mrb[0].mxu0
    %3061 = vmatprep.mubr.bf16.mxu0 0
    %3062 = vmatmul.mubr.bf16.gmra.mrb[0].mxu0 %v948
    %v3063 = vpop.f32.mrb[0].mxu0
    %v3064 = vadd.f32 %v2775, %v3063
    %v3065 = vpop.f32.mrb[0].mxu0
    %v3066 = vpop.f32.mrb[0].mxu0
    %v3067 = vadd.f32 %v2778, %v3066
    %v3068 = vpop.f32.mrb[0].mxu0
    %3069 = vmatprep.mubr.bf16.mxu0 0
    %3070 = vmatmul.mubr.bf16.gmra.mrb[0].mxu0 %v951
    %v3071 = vpop.f32.mrb[0].mxu0
    %v3072 = vadd.f32 %v2783, %v3071
    %v3073 = vpop.f32.mrb[0].mxu0
    %v3074 = vpop.f32.mrb[0].mxu0
    %v3075 = vadd.f32 %v2786, %v3074
    %v3076 = vpop.f32.mrb[0].mxu0
    %3077 = vmatprep.mubr.bf16.mxu0 0
    %3078 = vmatmul.mubr.bf16.gmra.mrb[0].mxu0 %v954
    %v3079 = vpop.f32.mrb[0].mxu0
    %v3080 = vadd.f32 %v2791, %v3079
    %v3081 = vpop.f32.mrb[0].mxu0
    %v3082 = vpop.f32.mrb[0].mxu0
    %v3083 = vadd.f32 %v2794, %v3082
    %v3084 = vpop.f32.mrb[0].mxu0
    %3085 = vmatprep.mubr.bf16.mxu0 0
    %3086 = vmatmul.mubr.bf16.gmra.mrb[0].mxu0 %v957
    %v3087 = vpop.f32.mrb[0].mxu0
    %v3088 = vadd.f32 %v2799, %v3087
    %v3089 = vpop.f32.mrb[0].mxu0
    %v3090 = vpop.f32.mrb[0].mxu0
    %v3091 = vadd.f32 %v2802, %v3090
    %v3092 = vpop.f32.mrb[0].mxu0
    %3093 = vmatprep.mubr.bf16.mxu0 0
    %3094 = vmatmul.mubr.bf16.gmra.mrb[0].mxu0 %v960
    %v3095 = vpop.f32.mrb[0].mxu0
    %v3096 = vadd.f32 %v2807, %v3095
    %v3097 = vpop.f32.mrb[0].mxu0
    %v3098 = vpop.f32.mrb[0].mxu0
    %v3099 = vadd.f32 %v2810, %v3098
    %v3100 = vpop.f32.mrb[0].mxu0
    %3101 = vmatprep.mubr.bf16.mxu0 0
    %3102 = vmatmul.mubr.bf16.gmra.mrb[0].mxu0 %v1042
    %v3103 = vpop.f32.mrb[0].mxu0
    %v3104 = vadd.f32 %v2815, %v3103
    %v3105 = vpop.f32.mrb[0].mxu0
    %v3106 = vpop.f32.mrb[0].mxu0
    %v3107 = vadd.f32 %v2818, %v3106
    %v3108 = vpop.f32.mrb[0].mxu0
    %3109 = vmatprep.mubr.bf16.mxu0 0
    %3110 = vmatmul.mubr.bf16.gmra.mrb[0].mxu0 %v1094
    %v3111 = vpop.f32.mrb[0].mxu0
    %v3112 = vadd.f32 %v2823, %v3111
    %v3113 = vpop.f32.mrb[0].mxu0
    %v3114 = vpop.f32.mrb[0].mxu0
    %v3115 = vadd.f32 %v2826, %v3114
    %v3116 = vpop.f32.mrb[0].mxu0
    %3117 = vdwg.mxu0
    %v3118 = vld [vmem:[%s4] sm:$0x1]
    %v3119 = vld [vmem:[%s5] sm:$0x1]
    %v3120 = vadd.f32 %v2864, %v2867
    %v3121 = vadd.f32 %v3120, %v2872
    %v3122 = vadd.f32 %v3121, %v2875
    %v3123 = vadd.f32 %v3122, %v2880
    %v3124 = vadd.f32 %v3123, %v2883
    %v3125 = vadd.f32 %v3124, %v2888
    %v3126 = vadd.f32 %v3125, %v2891
    %v3127 = vadd.f32 %v3126, %v2896
    %v3128 = vadd.f32 %v3127, %v2899
    %v3129 = vadd.f32 %v3128, %v2904
    %v3130 = vadd.f32 %v3129, %v2907
    %v3131 = vadd.f32 %v3130, %v2912
    %v3132 = vadd.f32 %v3131, %v2915
    %v3133 = vadd.f32 %v3132, %v2920
    %v3134 = vadd.f32 %v3133, %v2923
    %v3135 = vadd.f32 %v3134, %v2928
    %v3136 = vadd.f32 %v3135, %v2931
    %v3137 = vadd.f32 %v3136, %v2936
    %v3138 = vadd.f32 %v3137, %v2939
    %v3139 = vadd.f32 %v3138, %v2944
    %v3140 = vadd.f32 %v3139, %v2947
    %v3141 = vadd.f32 %v3140, %v2952
    %v3142 = vadd.f32 %v3141, %v2955
    %v3143 = vadd.f32 %v3142, %v2960
    %v3144 = vadd.f32 %v3143, %v2963
    %v3145 = vadd.f32 %v3144, %v2968
    %v3146 = vadd.f32 %v3145, %v2971
    %v3147 = vadd.f32 %v3146, %v2976
    %v3148 = vadd.f32 %v3147, %v2979
    %v3149 = vadd.f32 %v3148, %v2984
    %v3150 = vadd.f32 %v3149, %v2987
    %v3151 = vadd.f32 %v3150, %v2992
    %v3152 = vadd.f32 %v3151, %v2995
    %v3153 = vadd.f32 %v3152, %v3000
    %v3154 = vadd.f32 %v3153, %v3003
    %v3155 = vadd.f32 %v3154, %v3008
    %v3156 = vadd.f32 %v3155, %v3011
    %v3157 = vadd.f32 %v3156, %v3016
    %v3158 = vadd.f32 %v3157, %v3019
    %v3159 = vadd.f32 %v3158, %v3024
    %v3160 = vadd.f32 %v3159, %v3027
    %v3161 = vadd.f32 %v3160, %v3032
    %v3162 = vadd.f32 %v3161, %v3035
    %v3163 = vadd.f32 %v3162, %v3040
    %v3164 = vadd.f32 %v3163, %v3043
    %v3165 = vadd.f32 %v3164, %v3048
    %v3166 = vadd.f32 %v3165, %v3051
    %v3167 = vadd.f32 %v3166, %v3056
    %v3168 = vadd.f32 %v3167, %v3059
    %v3169 = vadd.f32 %v3168, %v3064
    %v3170 = vadd.f32 %v3169, %v3067
    %v3171 = vadd.f32 %v3170, %v3072
    %v3172 = vadd.f32 %v3171, %v3075
    %v3173 = vadd.f32 %v3172, %v3080
    %v3174 = vadd.f32 %v3173, %v3083
    %v3175 = vadd.f32 %v3174, %v3088
    %v3176 = vadd.f32 %v3175, %v3091
    %v3177 = vadd.f32 %v3176, %v3096
    %v3178 = vadd.f32 %v3177, %v3099
    %v3179 = vadd.f32 %v3178, %v3104
    %v3180 = vadd.f32 %v3179, %v3107
    %v3181 = vadd.f32 %v3180, %v3112
    %v3182 = vadd.f32 %v3181, %v3115
    %v3183 = vrot.slane %v3182, 4
    %v3184 = vadd.f32 %v3182, %v3183
    %v3185 = vrot.slane %v3184, 2
    %v3186 = vadd.f32 %v3184, %v3185
    %v3187 = vrot.slane %v3186, 1
    %v3188 = vadd.f32 %v3186, %v3187
    %v3189 = vmul.f32 %v2864, %v2864
    %v3190 = vmul.f32 %v2867, %v2867
    %v3191 = vmul.f32 %v2872, %v2872
    %v3192 = vmul.f32 %v2875, %v2875
    %v3193 = vmul.f32 %v2880, %v2880
    %v3194 = vmul.f32 %v2883, %v2883
    %v3195 = vmul.f32 %v2888, %v2888
    %v3196 = vmul.f32 %v2891, %v2891
    %v3197 = vmul.f32 %v2896, %v2896
    %v3198 = vmul.f32 %v2899, %v2899
    %v3199 = vmul.f32 %v2904, %v2904
    %v3200 = vmul.f32 %v2907, %v2907
    %v3201 = vmul.f32 %v2912, %v2912
    %v3202 = vmul.f32 %v2915, %v2915
    %v3203 = vmul.f32 %v2920, %v2920
    %v3204 = vmul.f32 %v2923, %v2923
    %v3205 = vmul.f32 %v2928, %v2928
    %v3206 = vmul.f32 %v2931, %v2931
    %v3207 = vmul.f32 %v2936, %v2936
    %v3208 = vmul.f32 %v2939, %v2939
    %v3209 = vmul.f32 %v2944, %v2944
    %v3210 = vmul.f32 %v2947, %v2947
    %v3211 = vmul.f32 %v2952, %v2952
    %v3212 = vmul.f32 %v2955, %v2955
    %v3213 = vmul.f32 %v2960, %v2960
    %v3214 = vmul.f32 %v2963, %v2963
    %v3215 = vmul.f32 %v2968, %v2968
    %v3216 = vmul.f32 %v2971, %v2971
    %v3217 = vmul.f32 %v2976, %v2976
    %v3218 = vmul.f32 %v2979, %v2979
    %v3219 = vmul.f32 %v2984, %v2984
    %v3220 = vmul.f32 %v2987, %v2987
    %v3221 = vmul.f32 %v2992, %v2992
    %v3222 = vmul.f32 %v2995, %v2995
    %v3223 = vmul.f32 %v3000, %v3000
    %v3224 = vmul.f32 %v3003, %v3003
    %v3225 = vmul.f32 %v3008, %v3008
    %v3226 = vmul.f32 %v3011, %v3011
    %v3227 = vmul.f32 %v3016, %v3016
    %v3228 = vmul.f32 %v3019, %v3019
    %v3229 = vmul.f32 %v3024, %v3024
    %v3230 = vmul.f32 %v3027, %v3027
    %v3231 = vmul.f32 %v3032, %v3032
    %v3232 = vmul.f32 %v3035, %v3035
    %v3233 = vmul.f32 %v3040, %v3040
    %v3234 = vmul.f32 %v3043, %v3043
    %v3235 = vmul.f32 %v3048, %v3048
    %v3236 = vmul.f32 %v3051, %v3051
    %v3237 = vmul.f32 %v3056, %v3056
    %v3238 = vmul.f32 %v3059, %v3059
    %v3239 = vmul.f32 %v3064, %v3064
    %v3240 = vmul.f32 %v3067, %v3067
    %v3241 = vmul.f32 %v3072, %v3072
    %v3242 = vmul.f32 %v3075, %v3075
    %v3243 = vmul.f32 %v3080, %v3080
    %v3244 = vmul.f32 %v3083, %v3083
    %v3245 = vmul.f32 %v3088, %v3088
    %v3246 = vmul.f32 %v3091, %v3091
    %v3247 = vmul.f32 %v3096, %v3096
    %v3248 = vmul.f32 %v3099, %v3099
    %v3249 = vmul.f32 %v3104, %v3104
    %v3250 = vmul.f32 %v3107, %v3107
    %v3251 = vmul.f32 %v3112, %v3112
    %v3252 = vmul.f32 %v3115, %v3115
    %v3253 = vadd.f32 %v3189, %v3190
    %v3254 = vadd.f32 %v3253, %v3191
    %v3255 = vadd.f32 %v3254, %v3192
    %v3256 = vadd.f32 %v3255, %v3193
    %v3257 = vadd.f32 %v3256, %v3194
    %v3258 = vadd.f32 %v3257, %v3195
    %v3259 = vadd.f32 %v3258, %v3196
    %v3260 = vadd.f32 %v3259, %v3197
    %v3261 = vadd.f32 %v3260, %v3198
    %v3262 = vadd.f32 %v3261, %v3199
    %v3263 = vadd.f32 %v3262, %v3200
    %v3264 = vadd.f32 %v3263, %v3201
    %v3265 = vadd.f32 %v3264, %v3202
    %v3266 = vadd.f32 %v3265, %v3203
    %v3267 = vadd.f32 %v3266, %v3204
    %v3268 = vadd.f32 %v3267, %v3205
    %v3269 = vadd.f32 %v3268, %v3206
    %v3270 = vadd.f32 %v3269, %v3207
    %v3271 = vadd.f32 %v3270, %v3208
    %v3272 = vadd.f32 %v3271, %v3209
    %v3273 = vadd.f32 %v3272, %v3210
    %v3274 = vadd.f32 %v3273, %v3211
    %v3275 = vadd.f32 %v3274, %v3212
    %v3276 = vadd.f32 %v3275, %v3213
    %v3277 = vadd.f32 %v3276, %v3214
    %v3278 = vadd.f32 %v3277, %v3215
    %v3279 = vadd.f32 %v3278, %v3216
    %v3280 = vadd.f32 %v3279, %v3217
    %v3281 = vadd.f32 %v3280, %v3218
    %v3282 = vadd.f32 %v3281, %v3219
    %v3283 = vadd.f32 %v3282, %v3220
    %v3284 = vadd.f32 %v3283, %v3221
    %v3285 = vadd.f32 %v3284, %v3222
    %v3286 = vadd.f32 %v3285, %v3223
    %v3287 = vadd.f32 %v3286, %v3224
    %v3288 = vadd.f32 %v3287, %v3225
    %v3289 = vadd.f32 %v3288, %v3226
    %v3290 = vadd.f32 %v3289, %v3227
    %v3291 = vadd.f32 %v3290, %v3228
    %v3292 = vadd.f32 %v3291, %v3229
    %v3293 = vadd.f32 %v3292, %v3230
    %v3294 = vadd.f32 %v3293, %v3231
    %v3295 = vadd.f32 %v3294, %v3232
    %v3296 = vadd.f32 %v3295, %v3233
    %v3297 = vadd.f32 %v3296, %v3234
    %v3298 = vadd.f32 %v3297, %v3235
    %v3299 = vadd.f32 %v3298, %v3236
    %v3300 = vadd.f32 %v3299, %v3237
    %v3301 = vadd.f32 %v3300, %v3238
    %v3302 = vadd.f32 %v3301, %v3239
    %v3303 = vadd.f32 %v3302, %v3240
    %v3304 = vadd.f32 %v3303, %v3241
    %v3305 = vadd.f32 %v3304, %v3242
    %v3306 = vadd.f32 %v3305, %v3243
    %v3307 = vadd.f32 %v3306, %v3244
    %v3308 = vadd.f32 %v3307, %v3245
    %v3309 = vadd.f32 %v3308, %v3246
    %v3310 = vadd.f32 %v3309, %v3247
    %v3311 = vadd.f32 %v3310, %v3248
    %v3312 = vadd.f32 %v3311, %v3249
    %v3313 = vadd.f32 %v3312, %v3250
    %v3314 = vadd.f32 %v3313, %v3251
    %v3315 = vadd.f32 %v3314, %v3252
    %v3316 = vrot.slane %v3315, 4
    %v3317 = vadd.f32 %v3315, %v3316
    %v3318 = vrot.slane %v3317, 2
    %v3319 = vadd.f32 %v3317, %v3318
    %v3320 = vrot.slane %v3319, 1
    %v3321 = vadd.f32 %v3319, %v3320
    %v3322 = vmul.f32 %v3188, 0.001953125
    %v3323 = vmul.f32 %v3321, 0.001953125
    %v3324 = vmul.f32 %v3322, %v3322
    %v3325 = vsub.f32 %v3323, %v3324
    %v3326 = vmax.f32 %v3325, 0.0
    %v3327 = vadd.f32 %v3326, 1e-05
    %v3328 = vrsqrt.pop %v3327
    %v3329 = vmul.f32 %v3118, %v3328
    %v3330 = vmul.f32 %v3322, %v3329
    %v3331 = vsub.f32 %v3119, %v3330
    %v3333 = vlaneseq
    %v3334 = vshrl.u32 %v3333, 7
    %v3335 = vsub.s32 0, %v3334
    %v3336 = vrot.slane %v3329, %v3335
    %v3338 = vmul.f32 %v2864, %v3336
    %v3339 = vmul.f32 %v2867, %v3336
    %v3340 = vmul.f32 %v2872, %v3336
    %v3341 = vmul.f32 %v2875, %v3336
    %v3342 = vmul.f32 %v2880, %v3336
    %v3343 = vmul.f32 %v2883, %v3336
    %v3344 = vmul.f32 %v2888, %v3336
    %v3345 = vmul.f32 %v2891, %v3336
    %v3346 = vmul.f32 %v2896, %v3336
    %v3347 = vmul.f32 %v2899, %v3336
    %v3348 = vmul.f32 %v2904, %v3336
    %v3349 = vmul.f32 %v2907, %v3336
    %v3350 = vmul.f32 %v2912, %v3336
    %v3351 = vmul.f32 %v2915, %v3336
    %v3352 = vmul.f32 %v2920, %v3336
    %v3353 = vmul.f32 %v2923, %v3336
    %v3354 = vmul.f32 %v2928, %v3336
    %v3355 = vmul.f32 %v2931, %v3336
    %v3356 = vmul.f32 %v2936, %v3336
    %v3357 = vmul.f32 %v2939, %v3336
    %v3358 = vmul.f32 %v2944, %v3336
    %v3359 = vmul.f32 %v2947, %v3336
    %v3360 = vmul.f32 %v2952, %v3336
    %v3361 = vmul.f32 %v2955, %v3336
    %v3362 = vmul.f32 %v2960, %v3336
    %v3363 = vmul.f32 %v2963, %v3336
    %v3364 = vmul.f32 %v2968, %v3336
    %v3365 = vmul.f32 %v2971, %v3336
    %v3366 = vmul.f32 %v2976, %v3336
    %v3367 = vmul.f32 %v2979, %v3336
    %v3368 = vmul.f32 %v2984, %v3336
    %v3369 = vmul.f32 %v2987, %v3336
    %v3370 = vmul.f32 %v2992, %v3336
    %v3371 = vmul.f32 %v2995, %v3336
    %v3372 = vmul.f32 %v3000, %v3336
    %v3373 = vmul.f32 %v3003, %v3336
    %v3374 = vmul.f32 %v3008, %v3336
    %v3375 = vmul.f32 %v3011, %v3336
    %v3376 = vmul.f32 %v3016, %v3336
    %v3377 = vmul.f32 %v3019, %v3336
    %v3378 = vmul.f32 %v3024, %v3336
    %v3379 = vmul.f32 %v3027, %v3336
    %v3380 = vmul.f32 %v3032, %v3336
    %v3381 = vmul.f32 %v3035, %v3336
    %v3382 = vmul.f32 %v3040, %v3336
    %v3383 = vmul.f32 %v3043, %v3336
    %v3384 = vmul.f32 %v3048, %v3336
    %v3385 = vmul.f32 %v3051, %v3336
    %v3386 = vmul.f32 %v3056, %v3336
    %v3387 = vmul.f32 %v3059, %v3336
    %v3388 = vmul.f32 %v3064, %v3336
    %v3389 = vmul.f32 %v3067, %v3336
    %v3390 = vmul.f32 %v3072, %v3336
    %v3391 = vmul.f32 %v3075, %v3336
    %v3392 = vmul.f32 %v3080, %v3336
    %v3393 = vmul.f32 %v3083, %v3336
    %v3394 = vmul.f32 %v3088, %v3336
    %v3395 = vmul.f32 %v3091, %v3336
    %v3396 = vmul.f32 %v3096, %v3336
    %v3397 = vmul.f32 %v3099, %v3336
    %v3398 = vmul.f32 %v3104, %v3336
    %v3399 = vmul.f32 %v3107, %v3336
    %v3400 = vmul.f32 %v3112, %v3336
    %v3401 = vmul.f32 %v3115, %v3336
    %v3403 = vlaneseq
    %v3404 = vshrl.u32 %v3403, 7
    %v3405 = vsub.s32 0, %v3404
    %v3406 = vrot.slane %v3331, %v3405
    %v3408 = vadd.f32 %v3338, %v3406
    %v3409 = vadd.f32 %v3339, %v3406
    %v3410 = vadd.f32 %v3340, %v3406
    %v3411 = vadd.f32 %v3341, %v3406
    %v3412 = vadd.f32 %v3342, %v3406
    %v3413 = vadd.f32 %v3343, %v3406
    %v3414 = vadd.f32 %v3344, %v3406
    %v3415 = vadd.f32 %v3345, %v3406
    %v3416 = vadd.f32 %v3346, %v3406
    %v3417 = vadd.f32 %v3347, %v3406
    %v3418 = vadd.f32 %v3348, %v3406
    %v3419 = vadd.f32 %v3349, %v3406
    %v3420 = vadd.f32 %v3350, %v3406
    %v3421 = vadd.f32 %v3351, %v3406
    %v3422 = vadd.f32 %v3352, %v3406
    %v3423 = vadd.f32 %v3353, %v3406
    %v3424 = vadd.f32 %v3354, %v3406
    %v3425 = vadd.f32 %v3355, %v3406
    %v3426 = vadd.f32 %v3356, %v3406
    %v3427 = vadd.f32 %v3357, %v3406
    %v3428 = vadd.f32 %v3358, %v3406
    %v3429 = vadd.f32 %v3359, %v3406
    %v3430 = vadd.f32 %v3360, %v3406
    %v3431 = vadd.f32 %v3361, %v3406
    %v3432 = vadd.f32 %v3362, %v3406
    %v3433 = vadd.f32 %v3363, %v3406
    %v3434 = vadd.f32 %v3364, %v3406
    %v3435 = vadd.f32 %v3365, %v3406
    %v3436 = vadd.f32 %v3366, %v3406
    %v3437 = vadd.f32 %v3367, %v3406
    %v3438 = vadd.f32 %v3368, %v3406
    %v3439 = vadd.f32 %v3369, %v3406
    %v3440 = vadd.f32 %v3370, %v3406
    %v3441 = vadd.f32 %v3371, %v3406
    %v3442 = vadd.f32 %v3372, %v3406
    %v3443 = vadd.f32 %v3373, %v3406
    %v3444 = vadd.f32 %v3374, %v3406
    %v3445 = vadd.f32 %v3375, %v3406
    %v3446 = vadd.f32 %v3376, %v3406
    %v3447 = vadd.f32 %v3377, %v3406
    %v3448 = vadd.f32 %v3378, %v3406
    %v3449 = vadd.f32 %v3379, %v3406
    %v3450 = vadd.f32 %v3380, %v3406
    %v3451 = vadd.f32 %v3381, %v3406
    %v3452 = vadd.f32 %v3382, %v3406
    %v3453 = vadd.f32 %v3383, %v3406
    %v3454 = vadd.f32 %v3384, %v3406
    %v3455 = vadd.f32 %v3385, %v3406
    %v3456 = vadd.f32 %v3386, %v3406
    %v3457 = vadd.f32 %v3387, %v3406
    %v3458 = vadd.f32 %v3388, %v3406
    %v3459 = vadd.f32 %v3389, %v3406
    %v3460 = vadd.f32 %v3390, %v3406
    %v3461 = vadd.f32 %v3391, %v3406
    %v3462 = vadd.f32 %v3392, %v3406
    %v3463 = vadd.f32 %v3393, %v3406
    %v3464 = vadd.f32 %v3394, %v3406
    %v3465 = vadd.f32 %v3395, %v3406
    %v3466 = vadd.f32 %v3396, %v3406
    %v3467 = vadd.f32 %v3397, %v3406
    %v3468 = vadd.f32 %v3398, %v3406
    %v3469 = vadd.f32 %v3399, %v3406
    %v3470 = vadd.f32 %v3400, %v3406
    %v3471 = vadd.f32 %v3401, %v3406
    %v3472 = vmax.f32 %v3408, 0.0
    %v3473 = vmax.f32 %v3409, 0.0
    %v3474 = vmax.f32 %v3410, 0.0
    %v3475 = vmax.f32 %v3411, 0.0
    %v3476 = vmax.f32 %v3412, 0.0
    %v3477 = vmax.f32 %v3413, 0.0
    %v3478 = vmax.f32 %v3414, 0.0
    %v3479 = vmax.f32 %v3415, 0.0
    %v3480 = vmax.f32 %v3416, 0.0
    %v3481 = vmax.f32 %v3417, 0.0
    %v3482 = vmax.f32 %v3418, 0.0
    %v3483 = vmax.f32 %v3419, 0.0
    %v3484 = vmax.f32 %v3420, 0.0
    %v3485 = vmax.f32 %v3421, 0.0
    %v3486 = vmax.f32 %v3422, 0.0
    %v3487 = vmax.f32 %v3423, 0.0
    %v3488 = vmax.f32 %v3424, 0.0
    %v3489 = vmax.f32 %v3425, 0.0
    %v3490 = vmax.f32 %v3426, 0.0
    %v3491 = vmax.f32 %v3427, 0.0
    %v3492 = vmax.f32 %v3428, 0.0
    %v3493 = vmax.f32 %v3429, 0.0
    %v3494 = vmax.f32 %v3430, 0.0
    %v3495 = vmax.f32 %v3431, 0.0
    %v3496 = vmax.f32 %v3432, 0.0
    %v3497 = vmax.f32 %v3433, 0.0
    %v3498 = vmax.f32 %v3434, 0.0
    %v3499 = vmax.f32 %v3435, 0.0
    %v3500 = vmax.f32 %v3436, 0.0
    %v3501 = vmax.f32 %v3437, 0.0
    %v3502 = vmax.f32 %v3438, 0.0
    %v3503 = vmax.f32 %v3439, 0.0
    %v3504 = vmax.f32 %v3440, 0.0
    %v3505 = vmax.f32 %v3441, 0.0
    %v3506 = vmax.f32 %v3442, 0.0
    %v3507 = vmax.f32 %v3443, 0.0
    %v3508 = vmax.f32 %v3444, 0.0
    %v3509 = vmax.f32 %v3445, 0.0
    %v3510 = vmax.f32 %v3446, 0.0
    %v3511 = vmax.f32 %v3447, 0.0
    %v3512 = vmax.f32 %v3448, 0.0
    %v3513 = vmax.f32 %v3449, 0.0
    %v3514 = vmax.f32 %v3450, 0.0
    %v3515 = vmax.f32 %v3451, 0.0
    %v3516 = vmax.f32 %v3452, 0.0
    %v3517 = vmax.f32 %v3453, 0.0
    %v3518 = vmax.f32 %v3454, 0.0
    %v3519 = vmax.f32 %v3455, 0.0
    %v3520 = vmax.f32 %v3456, 0.0
    %v3521 = vmax.f32 %v3457, 0.0
    %v3522 = vmax.f32 %v3458, 0.0
    %v3523 = vmax.f32 %v3459, 0.0
    %v3524 = vmax.f32 %v3460, 0.0
    %v3525 = vmax.f32 %v3461, 0.0
    %v3526 = vmax.f32 %v3462, 0.0
    %v3527 = vmax.f32 %v3463, 0.0
    %v3528 = vmax.f32 %v3464, 0.0
    %v3529 = vmax.f32 %v3465, 0.0
    %v3530 = vmax.f32 %v3466, 0.0
    %v3531 = vmax.f32 %v3467, 0.0
    %v3532 = vmax.f32 %v3468, 0.0
    %v3533 = vmax.f32 %v3469, 0.0
    %v3534 = vmax.f32 %v3470, 0.0
    %v3535 = vmax.f32 %v3471, 0.0
    %3536 = vst [vmem:[#allocation2] sm:$0xf] 0
    %3537 = vst [vmem:[#allocation2 + $0x4] sm:$0xf] 0
    %3538 = vst [vmem:[#allocation2 + $0x8] sm:$0x1] 0
    %3539 = vst [vmem:[#allocation2 + $0xc] sm:$0xf] 0
    %3540 = vst [vmem:[#allocation2 + $0x10] sm:$0xf] 0
    %3541 = vst [vmem:[#allocation2 + $0x14] sm:$0x1] 0
    %3542 = vst [vmem:[#allocation2 + $0x18] sm:$0xf] 0
    %3543 = vst [vmem:[#allocation2 + $0x1c] sm:$0xf] 0
    %3544 = vst [vmem:[#allocation2 + $0x20] sm:$0x1] 0
    %3545 = vst [vmem:[#allocation2 + $0x24] sm:$0xf] 0
    %3546 = vst [vmem:[#allocation2 + $0x28] sm:$0xf] 0
    %3547 = vst [vmem:[#allocation2 + $0x2c] sm:$0x1] 0
    %3548 = vst [vmem:[#allocation2 + $0x30] sm:$0xf] 0
    %3549 = vst [vmem:[#allocation2 + $0x34] sm:$0xf] 0
    %3550 = vst [vmem:[#allocation2 + $0x38] sm:$0x1] 0
    %3551 = vst [vmem:[#allocation2 + $0x3c] sm:$0xf] 0
    %3552 = vst [vmem:[#allocation2 + $0x40] sm:$0xf] 0
    %3553 = vst [vmem:[#allocation2 + $0x44] sm:$0x1] 0
    %3554 = vst [vmem:[#allocation2 + $0x48] sm:$0xf] 0
    %3555 = vst [vmem:[#allocation2 + $0x4c] sm:$0xf] 0
    %3556 = vst [vmem:[#allocation2 + $0x50] sm:$0x1] 0
    %3557 = vst [vmem:[#allocation2 + $0x54] sm:$0xf] 0
    %3558 = vst [vmem:[#allocation2 + $0x58] sm:$0xf] 0
    %3559 = vst [vmem:[#allocation2 + $0x5c] sm:$0x1] 0
    %3560 = vst [vmem:[#allocation2 + $0x60] sm:$0xf] 0
    %3561 = vst [vmem:[#allocation2 + $0x64] sm:$0xf] 0
    %3562 = vst [vmem:[#allocation2 + $0x68] sm:$0x1] 0
    %3563 = vst [vmem:[#allocation2 + $0x6c] sm:$0xf] 0
    %3564 = vst [vmem:[#allocation2 + $0x70] sm:$0xf] 0
    %3565 = vst [vmem:[#allocation2 + $0x74] sm:$0x1] 0
    %3566 = vst [vmem:[#allocation2 + $0x78] sm:$0xf] 0
    %3567 = vst [vmem:[#allocation2 + $0x7c] sm:$0xf] 0
    %3568 = vst [vmem:[#allocation2 + $0x80] sm:$0x1] 0
    %3569 = vst [vmem:[#allocation2 + $0x84] sm:$0xf] 0
    %3570 = vst [vmem:[#allocation2 + $0x88] sm:$0xf] 0
    %3571 = vst [vmem:[#allocation2 + $0x8c] sm:$0x1] 0
    %3572 = vst [vmem:[#allocation2 + $0x90] sm:$0xf] 0
    %3573 = vst [vmem:[#allocation2 + $0x94] sm:$0xf] 0
    %3574 = vst [vmem:[#allocation2 + $0x98] sm:$0x1] 0
    %3575 = vst [vmem:[#allocation2 + $0x9c] sm:$0xf] 0
    %3576 = vst [vmem:[#allocation2 + $0xa0] sm:$0xf] 0
    %3577 = vst [vmem:[#allocation2 + $0xa4] sm:$0x1] 0
    %3578 = vst [vmem:[#allocation2 + $0xa8] sm:$0xf] 0
    %3579 = vst [vmem:[#allocation2 + $0xac] sm:$0xf] 0
    %3580 = vst [vmem:[#allocation2 + $0xb0] sm:$0x1] 0
    %3581 = vst [vmem:[#allocation2 + $0xb4] sm:$0xf] 0
    %3582 = vst [vmem:[#allocation2 + $0xb8] sm:$0xf] 0
    %3583 = vst [vmem:[#allocation2 + $0xbc] sm:$0x1] 0
    %3584 = vst [vmem:[#allocation2 + $0xc0] sm:$0xf] 0
    %3585 = vst [vmem:[#allocation2 + $0xc4] sm:$0xf] 0
    %3586 = vst [vmem:[#allocation2 + $0xc8] sm:$0x1] 0
    %3587 = vst [vmem:[#allocation2 + $0xcc] sm:$0xf] 0
    %3588 = vst [vmem:[#allocation2 + $0xd0] sm:$0xf] 0
    %3589 = vst [vmem:[#allocation2 + $0xd4] sm:$0x1] 0
    %3590 = vst [vmem:[#allocation2 + $0xd8] sm:$0xf] 0
    %3591 = vst [vmem:[#allocation2 + $0xdc] sm:$0xf] 0
    %3592 = vst [vmem:[#allocation2 + $0xe0] sm:$0x1] 0
    %3593 = vst [vmem:[#allocation2 + $0xe4] sm:$0xf] 0
    %3594 = vst [vmem:[#allocation2 + $0xe8] sm:$0xf] 0
    %3595 = vst [vmem:[#allocation2 + $0xec] sm:$0x1] 0
    %3596 = vst [vmem:[#allocation2 + $0xf0] sm:$0xf] 0
    %3597 = vst [vmem:[#allocation2 + $0xf4] sm:$0xf] 0
    %3598 = vst [vmem:[#allocation2 + $0xf8] sm:$0x1] 0
    %3599 = vst [vmem:[#allocation2 + $0xfc] sm:$0xf] 0
    %3600 = vst [vmem:[#allocation2 + $0x100] sm:$0xf] 0
    %3601 = vst [vmem:[#allocation2 + $0x104] sm:$0x1] 0
    %3602 = vst [vmem:[#allocation2 + $0x108] sm:$0xf] 0
    %3603 = vst [vmem:[#allocation2 + $0x10c] sm:$0xf] 0
    %3604 = vst [vmem:[#allocation2 + $0x110] sm:$0x1] 0
    %3605 = vst [vmem:[#allocation2 + $0x114] sm:$0xf] 0
    %3606 = vst [vmem:[#allocation2 + $0x118] sm:$0xf] 0
    %3607 = vst [vmem:[#allocation2 + $0x11c] sm:$0x1] 0
    %3608 = vst [vmem:[#allocation2 + $0x120] sm:$0xf] 0
    %3609 = vst [vmem:[#allocation2 + $0x124] sm:$0xf] 0
    %3610 = vst [vmem:[#allocation2 + $0x128] sm:$0x1] 0
    %3611 = vst [vmem:[#allocation2 + $0x12c] sm:$0xf] 0
    %3612 = vst [vmem:[#allocation2 + $0x130] sm:$0xf] 0
    %3613 = vst [vmem:[#allocation2 + $0x134] sm:$0x1] 0
    %3614 = vst [vmem:[#allocation2 + $0x138] sm:$0xf] 0
    %3615 = vst [vmem:[#allocation2 + $0x13c] sm:$0xf] 0
    %3616 = vst [vmem:[#allocation2 + $0x140] sm:$0x1] 0
    %3617 = vst [vmem:[#allocation2 + $0x144] sm:$0xf] 0
    %3618 = vst [vmem:[#allocation2 + $0x148] sm:$0xf] 0
    %3619 = vst [vmem:[#allocation2 + $0x14c] sm:$0x1] 0
    %3620 = vst [vmem:[#allocation2 + $0x150] sm:$0xf] 0
    %3621 = vst [vmem:[#allocation2 + $0x154] sm:$0xf] 0
    %3622 = vst [vmem:[#allocation2 + $0x158] sm:$0x1] 0
    %3623 = vst [vmem:[#allocation2 + $0x15c] sm:$0xf] 0
    %3624 = vst [vmem:[#allocation2 + $0x160] sm:$0xf] 0
    %3625 = vst [vmem:[#allocation2 + $0x164] sm:$0x1] 0
    %3626 = vst [vmem:[#allocation2 + $0x168] sm:$0xf] 0
    %3627 = vst [vmem:[#allocation2 + $0x16c] sm:$0xf] 0
    %3628 = vst [vmem:[#allocation2 + $0x170] sm:$0x1] 0
    %3629 = vst [vmem:[#allocation2 + $0x174] sm:$0xf] 0
    %3630 = vst [vmem:[#allocation2 + $0x178] sm:$0xf] 0
    %3631 = vst [vmem:[#allocation2 + $0x17c] sm:$0x1] 0
    %3632 = vst [vmem:[#allocation2 + $0x180] sm:$0xf] 0
    %3633 = vst [vmem:[#allocation2 + $0x184] sm:$0xf] 0
    %3634 = vst [vmem:[#allocation2 + $0x188] sm:$0x1] 0
    %3635 = vst [vmem:[#allocation2 + $0x18c] sm:$0xf] 0
    %3636 = vst [vmem:[#allocation2 + $0x190] sm:$0xf] 0
    %3637 = vst [vmem:[#allocation2 + $0x194] sm:$0x1] 0
    %3638 = vst [vmem:[#allocation2 + $0x198] sm:$0xf] 0
    %3639 = vst [vmem:[#allocation2 + $0x19c] sm:$0xf] 0
    %3640 = vst [vmem:[#allocation2 + $0x1a0] sm:$0x1] 0
    %3641 = vst [vmem:[#allocation2 + $0x1a4] sm:$0xf] 0
    %3642 = vst [vmem:[#allocation2 + $0x1a8] sm:$0xf] 0
    %3643 = vst [vmem:[#allocation2 + $0x1ac] sm:$0x1] 0
    %v3644 = vpack.c.bf16 %v3473, %v3472
    %v3645 = vpack.c.bf16 %v3475, %v3474
    %v3646 = vpack.c.bf16 %v3477, %v3476
    %v3647 = vpack.c.bf16 %v3479, %v3478
    %v3648 = vpack.c.bf16 %v3481, %v3480
    %v3649 = vpack.c.bf16 %v3483, %v3482
    %v3650 = vpack.c.bf16 %v3485, %v3484
    %v3651 = vpack.c.bf16 %v3487, %v3486
    %v3652 = vpack.c.bf16 %v3489, %v3488
    %v3653 = vpack.c.bf16 %v3491, %v3490
    %v3654 = vpack.c.bf16 %v3493, %v3492
    %v3655 = vpack.c.bf16 %v3495, %v3494
    %v3656 = vpack.c.bf16 %v3497, %v3496
    %v3657 = vpack.c.bf16 %v3499, %v3498
    %v3658 = vpack.c.bf16 %v3501, %v3500
    %v3659 = vpack.c.bf16 %v3503, %v3502
    %v3660 = vpack.c.bf16 %v3505, %v3504
    %v3661 = vpack.c.bf16 %v3507, %v3506
    %v3662 = vpack.c.bf16 %v3509, %v3508
    %v3663 = vpack.c.bf16 %v3511, %v3510
    %v3664 = vpack.c.bf16 %v3513, %v3512
    %v3665 = vpack.c.bf16 %v3515, %v3514
    %v3666 = vpack.c.bf16 %v3517, %v3516
    %v3667 = vpack.c.bf16 %v3519, %v3518
    %v3668 = vpack.c.bf16 %v3521, %v3520
    %v3669 = vpack.c.bf16 %v3523, %v3522
    %v3670 = vpack.c.bf16 %v3525, %v3524
    %v3671 = vpack.c.bf16 %v3527, %v3526
    %v3672 = vpack.c.bf16 %v3529, %v3528
    %v3673 = vpack.c.bf16 %v3531, %v3530
    %v3674 = vpack.c.bf16 %v3533, %v3532
    %v3675 = vpack.c.bf16 %v3535, %v3534
    %v3708 = vunpack.c.l.b16 %v3644
    %v3709 = vunpack.c.h.b16 %v3644
    %v3710 = vunpack.c.l.b16 %v3645
    %v3711 = vunpack.c.h.b16 %v3645
    %v3712 = vunpack.c.l.b16 %v3646
    %v3713 = vunpack.c.h.b16 %v3646
    %v3714 = vunpack.c.l.b16 %v3647
    %v3715 = vunpack.c.h.b16 %v3647
    %v3716 = vunpack.c.l.b16 %v3648
    %v3717 = vunpack.c.h.b16 %v3648
    %v3718 = vunpack.c.l.b16 %v3649
    %v3719 = vunpack.c.h.b16 %v3649
    %v3720 = vunpack.c.l.b16 %v3650
    %v3721 = vunpack.c.h.b16 %v3650
    %v3722 = vunpack.c.l.b16 %v3651
    %v3723 = vunpack.c.h.b16 %v3651
    %v3724 = vunpack.c.l.b16 %v3652
    %v3725 = vunpack.c.h.b16 %v3652
    %v3726 = vunpack.c.l.b16 %v3653
    %v3727 = vunpack.c.h.b16 %v3653
    %v3728 = vunpack.c.l.b16 %v3654
    %v3729 = vunpack.c.h.b16 %v3654
    %v3730 = vunpack.c.l.b16 %v3655
    %v3731 = vunpack.c.h.b16 %v3655
    %v3732 = vunpack.c.l.b16 %v3656
    %v3733 = vunpack.c.h.b16 %v3656
    %v3734 = vunpack.c.l.b16 %v3657
    %v3735 = vunpack.c.h.b16 %v3657
    %v3736 = vunpack.c.l.b16 %v3658
    %v3737 = vunpack.c.h.b16 %v3658
    %v3738 = vunpack.c.l.b16 %v3659
    %v3739 = vunpack.c.h.b16 %v3659
    %v3740 = vunpack.c.l.b16 %v3660
    %v3741 = vunpack.c.h.b16 %v3660
    %v3742 = vunpack.c.l.b16 %v3661
    %v3743 = vunpack.c.h.b16 %v3661
    %v3744 = vunpack.c.l.b16 %v3662
    %v3745 = vunpack.c.h.b16 %v3662
    %v3746 = vunpack.c.l.b16 %v3663
    %v3747 = vunpack.c.h.b16 %v3663
    %v3748 = vunpack.c.l.b16 %v3664
    %v3749 = vunpack.c.h.b16 %v3664
    %v3750 = vunpack.c.l.b16 %v3665
    %v3751 = vunpack.c.h.b16 %v3665
    %v3752 = vunpack.c.l.b16 %v3666
    %v3753 = vunpack.c.h.b16 %v3666
    %v3754 = vunpack.c.l.b16 %v3667
    %v3755 = vunpack.c.h.b16 %v3667
    %v3756 = vunpack.c.l.b16 %v3668
    %v3757 = vunpack.c.h.b16 %v3668
    %v3758 = vunpack.c.l.b16 %v3669
    %v3759 = vunpack.c.h.b16 %v3669
    %v3760 = vunpack.c.l.b16 %v3670
    %v3761 = vunpack.c.h.b16 %v3670
    %v3762 = vunpack.c.l.b16 %v3671
    %v3763 = vunpack.c.h.b16 %v3671
    %v3764 = vunpack.c.l.b16 %v3672
    %v3765 = vunpack.c.h.b16 %v3672
    %v3766 = vunpack.c.l.b16 %v3673
    %v3767 = vunpack.c.h.b16 %v3673
    %v3768 = vunpack.c.l.b16 %v3674
    %v3769 = vunpack.c.h.b16 %v3674
    %v3770 = vunpack.c.l.b16 %v3675
    %v3771 = vunpack.c.h.b16 %v3675
    %v3772 = vpack.c.b16 %v3708, %v3708
    %v3773 = vpack.c.b16 %v3709, %v3709
    %v3774 = vpack.c.b16 %v3710, %v3710
    %v3775 = vpack.c.b16 %v3711, %v3711
    %v3776 = vpack.c.b16 %v3712, %v3712
    %v3777 = vpack.c.b16 %v3713, %v3713
    %v3778 = vpack.c.b16 %v3714, %v3714
    %v3779 = vpack.c.b16 %v3715, %v3715
    %v3780 = vpack.c.b16 %v3716, %v3716
    %v3781 = vpack.c.b16 %v3717, %v3717
    %v3782 = vpack.c.b16 %v3718, %v3718
    %v3783 = vpack.c.b16 %v3719, %v3719
    %v3784 = vpack.c.b16 %v3720, %v3720
    %v3785 = vpack.c.b16 %v3721, %v3721
    %v3786 = vpack.c.b16 %v3722, %v3722
    %v3787 = vpack.c.b16 %v3723, %v3723
    %v3788 = vpack.c.b16 %v3724, %v3724
    %v3789 = vpack.c.b16 %v3725, %v3725
    %v3790 = vpack.c.b16 %v3726, %v3726
    %v3791 = vpack.c.b16 %v3727, %v3727
    %v3792 = vpack.c.b16 %v3728, %v3728
    %v3793 = vpack.c.b16 %v3729, %v3729
    %v3794 = vpack.c.b16 %v3730, %v3730
    %v3795 = vpack.c.b16 %v3731, %v3731
    %v3796 = vpack.c.b16 %v3732, %v3732
    %v3797 = vpack.c.b16 %v3733, %v3733
    %v3798 = vpack.c.b16 %v3734, %v3734
    %v3799 = vpack.c.b16 %v3735, %v3735
    %v3800 = vpack.c.b16 %v3736, %v3736
    %v3801 = vpack.c.b16 %v3737, %v3737
    %v3802 = vpack.c.b16 %v3738, %v3738
    %v3803 = vpack.c.b16 %v3739, %v3739
    %v3804 = vpack.c.b16 %v3740, %v3740
    %v3805 = vpack.c.b16 %v3741, %v3741
    %v3806 = vpack.c.b16 %v3742, %v3742
    %v3807 = vpack.c.b16 %v3743, %v3743
    %v3808 = vpack.c.b16 %v3744, %v3744
    %v3809 = vpack.c.b16 %v3745, %v3745
    %v3810 = vpack.c.b16 %v3746, %v3746
    %v3811 = vpack.c.b16 %v3747, %v3747
    %v3812 = vpack.c.b16 %v3748, %v3748
    %v3813 = vpack.c.b16 %v3749, %v3749
    %v3814 = vpack.c.b16 %v3750, %v3750
    %v3815 = vpack.c.b16 %v3751, %v3751
    %v3816 = vpack.c.b16 %v3752, %v3752
    %v3817 = vpack.c.b16 %v3753, %v3753
    %v3818 = vpack.c.b16 %v3754, %v3754
    %v3819 = vpack.c.b16 %v3755, %v3755
    %v3820 = vpack.c.b16 %v3756, %v3756
    %v3821 = vpack.c.b16 %v3757, %v3757
    %v3822 = vpack.c.b16 %v3758, %v3758
    %v3823 = vpack.c.b16 %v3759, %v3759
    %v3824 = vpack.c.b16 %v3760, %v3760
    %v3825 = vpack.c.b16 %v3761, %v3761
    %v3826 = vpack.c.b16 %v3762, %v3762
    %v3827 = vpack.c.b16 %v3763, %v3763
    %v3828 = vpack.c.b16 %v3764, %v3764
    %v3829 = vpack.c.b16 %v3765, %v3765
    %v3830 = vpack.c.b16 %v3766, %v3766
    %v3831 = vpack.c.b16 %v3767, %v3767
    %v3832 = vpack.c.b16 %v3768, %v3768
    %v3833 = vpack.c.b16 %v3769, %v3769
    %v3834 = vpack.c.b16 %v3770, %v3770
    %v3835 = vpack.c.b16 %v3771, %v3771
    %vm3836 = vsmask.f32 256
    %vm3837 = vsmask.f32 4368
    %vm3838 = vmor %vm3836, %vm3837
    %v3840 = vshrl.u32 %v3772, 16
    %v3842 = vrot.slane %v3840, 7
    %v3843 = vshll.u32 %v3772, 16
    %v3845 = vor.u32 %v3842, %v3843
    %v3846 = vrot.slane %v3842, 4
    %v3848 = vshrl.u32 %v3773, 16
    %v3850 = vrot.slane %v3848, 7
    %v3851 = vshll.u32 %v3773, 16
    %v3853 = vor.u32 %v3850, %v3851
    %v3854 = vsel %vm3838, %v3846, %v3853
    %v3855 = vrot.slane %v3850, 4
    %v3857 = vshrl.u32 %v3774, 16
    %v3859 = vrot.slane %v3857, 7
    %v3860 = vshll.u32 %v3774, 16
    %v3862 = vor.u32 %v3859, %v3860
    %v3863 = vrot.slane %v3859, 4
    %v3865 = vshrl.u32 %v3775, 16
    %v3867 = vrot.slane %v3865, 7
    %v3868 = vshll.u32 %v3775, 16
    %v3870 = vor.u32 %v3867, %v3868
    %v3871 = vsel %vm3838, %v3863, %v3870
    %v3872 = vrot.slane %v3867, 4
    %v3874 = vshrl.u32 %v3776, 16
    %v3876 = vrot.slane %v3874, 7
    %v3877 = vshll.u32 %v3776, 16
    %v3879 = vor.u32 %v3876, %v3877
    %v3880 = vrot.slane %v3876, 4
    %v3882 = vshrl.u32 %v3777, 16
    %v3884 = vrot.slane %v3882, 7
    %v3885 = vshll.u32 %v3777, 16
    %v3887 = vor.u32 %v3884, %v3885
    %v3888 = vsel %vm3838, %v3880, %v3887
    %v3889 = vrot.slane %v3884, 4
    %v3891 = vshrl.u32 %v3778, 16
    %v3893 = vrot.slane %v3891, 7
    %v3894 = vshll.u32 %v3778, 16
    %v3896 = vor.u32 %v3893, %v3894
    %v3897 = vrot.slane %v3893, 4
    %v3899 = vshrl.u32 %v3779, 16
    %v3901 = vrot.slane %v3899, 7
    %v3902 = vshll.u32 %v3779, 16
    %v3904 = vor.u32 %v3901, %v3902
    %v3905 = vsel %vm3838, %v3897, %v3904
    %v3906 = vrot.slane %v3901, 4
    %v3908 = vshrl.u32 %v3780, 16
    %v3910 = vrot.slane %v3908, 7
    %v3911 = vshll.u32 %v3780, 16
    %v3913 = vor.u32 %v3910, %v3911
    %v3914 = vrot.slane %v3910, 4
    %v3916 = vshrl.u32 %v3781, 16
    %v3918 = vrot.slane %v3916, 7
    %v3919 = vshll.u32 %v3781, 16
    %v3921 = vor.u32 %v3918, %v3919
    %v3922 = vsel %vm3838, %v3914, %v3921
    %v3923 = vrot.slane %v3918, 4
    %v3925 = vshrl.u32 %v3782, 16
    %v3927 = vrot.slane %v3925, 7
    %v3928 = vshll.u32 %v3782, 16
    %v3930 = vor.u32 %v3927, %v3928
    %v3931 = vrot.slane %v3927, 4
    %v3933 = vshrl.u32 %v3783, 16
    %v3935 = vrot.slane %v3933, 7
    %v3936 = vshll.u32 %v3783, 16
    %v3938 = vor.u32 %v3935, %v3936
    %v3939 = vsel %vm3838, %v3931, %v3938
    %v3940 = vrot.slane %v3935, 4
    %v3942 = vshrl.u32 %v3784, 16
    %v3944 = vrot.slane %v3942, 7
    %v3945 = vshll.u32 %v3784, 16
    %v3947 = vor.u32 %v3944, %v3945
    %v3948 = vrot.slane %v3944, 4
    %v3950 = vshrl.u32 %v3785, 16
    %v3952 = vrot.slane %v3950, 7
    %v3953 = vshll.u32 %v3785, 16
    %v3955 = vor.u32 %v3952, %v3953
    %v3956 = vsel %vm3838, %v3948, %v3955
    %v3957 = vrot.slane %v3952, 4
    %v3959 = vshrl.u32 %v3786, 16
    %v3961 = vrot.slane %v3959, 7
    %v3962 = vshll.u32 %v3786, 16
    %v3964 = vor.u32 %v3961, %v3962
    %v3965 = vrot.slane %v3961, 4
    %v3967 = vshrl.u32 %v3787, 16
    %v3969 = vrot.slane %v3967, 7
    %v3970 = vshll.u32 %v3787, 16
    %v3972 = vor.u32 %v3969, %v3970
    %v3973 = vsel %vm3838, %v3965, %v3972
    %v3974 = vrot.slane %v3969, 4
    %v3976 = vshrl.u32 %v3788, 16
    %v3978 = vrot.slane %v3976, 7
    %v3979 = vshll.u32 %v3788, 16
    %v3981 = vor.u32 %v3978, %v3979
    %v3982 = vrot.slane %v3978, 4
    %v3984 = vshrl.u32 %v3789, 16
    %v3986 = vrot.slane %v3984, 7
    %v3987 = vshll.u32 %v3789, 16
    %v3989 = vor.u32 %v3986, %v3987
    %v3990 = vsel %vm3838, %v3982, %v3989
    %v3991 = vrot.slane %v3986, 4
    %v3993 = vshrl.u32 %v3790, 16
    %v3995 = vrot.slane %v3993, 7
    %v3996 = vshll.u32 %v3790, 16
    %v3998 = vor.u32 %v3995, %v3996
    %v3999 = vrot.slane %v3995, 4
    %v4001 = vshrl.u32 %v3791, 16
    %v4003 = vrot.slane %v4001, 7
    %v4004 = vshll.u32 %v3791, 16
    %v4006 = vor.u32 %v4003, %v4004
    %v4007 = vsel %vm3838, %v3999, %v4006
    %v4008 = vrot.slane %v4003, 4
    %v4010 = vshrl.u32 %v3792, 16
    %v4012 = vrot.slane %v4010, 7
    %v4013 = vshll.u32 %v3792, 16
    %v4015 = vor.u32 %v4012, %v4013
    %v4016 = vrot.slane %v4012, 4
    %v4018 = vshrl.u32 %v3793, 16
    %v4020 = vrot.slane %v4018, 7
    %v4021 = vshll.u32 %v3793, 16
    %v4023 = vor.u32 %v4020, %v4021
    %v4024 = vsel %vm3838, %v4016, %v4023
    %v4025 = vrot.slane %v4020, 4
    %v4027 = vshrl.u32 %v3794, 16
    %v4029 = vrot.slane %v4027, 7
    %v4030 = vshll.u32 %v3794, 16
    %v4032 = vor.u32 %v4029, %v4030
    %v4033 = vrot.slane %v4029, 4
    %v4035 = vshrl.u32 %v3795, 16
    %v4037 = vrot.slane %v4035, 7
    %v4038 = vshll.u32 %v3795, 16
    %v4040 = vor.u32 %v4037, %v4038
    %v4041 = vsel %vm3838, %v4033, %v4040
    %v4042 = vrot.slane %v4037, 4
    %v4044 = vshrl.u32 %v3796, 16
    %v4046 = vrot.slane %v4044, 7
    %v4047 = vshll.u32 %v3796, 16
    %v4049 = vor.u32 %v4046, %v4047
    %v4050 = vrot.slane %v4046, 4
    %v4052 = vshrl.u32 %v3797, 16
    %v4054 = vrot.slane %v4052, 7
    %v4055 = vshll.u32 %v3797, 16
    %v4057 = vor.u32 %v4054, %v4055
    %v4058 = vsel %vm3838, %v4050, %v4057
    %v4059 = vrot.slane %v4054, 4
    %v4061 = vshrl.u32 %v3798, 16
    %v4063 = vrot.slane %v4061, 7
    %v4064 = vshll.u32 %v3798, 16
    %v4066 = vor.u32 %v4063, %v4064
    %v4067 = vrot.slane %v4063, 4
    %v4069 = vshrl.u32 %v3799, 16
    %v4071 = vrot.slane %v4069, 7
    %v4072 = vshll.u32 %v3799, 16
    %v4074 = vor.u32 %v4071, %v4072
    %v4075 = vsel %vm3838, %v4067, %v4074
    %v4076 = vrot.slane %v4071, 4
    %v4078 = vshrl.u32 %v3800, 16
    %v4080 = vrot.slane %v4078, 7
    %v4081 = vshll.u32 %v3800, 16
    %v4083 = vor.u32 %v4080, %v4081
    %v4084 = vrot.slane %v4080, 4
    %v4086 = vshrl.u32 %v3801, 16
    %v4088 = vrot.slane %v4086, 7
    %v4089 = vshll.u32 %v3801, 16
    %v4091 = vor.u32 %v4088, %v4089
    %v4092 = vsel %vm3838, %v4084, %v4091
    %v4093 = vrot.slane %v4088, 4
    %v4095 = vshrl.u32 %v3802, 16
    %v4097 = vrot.slane %v4095, 7
    %v4098 = vshll.u32 %v3802, 16
    %v4100 = vor.u32 %v4097, %v4098
    %v4101 = vrot.slane %v4097, 4
    %v4103 = vshrl.u32 %v3803, 16
    %v4105 = vrot.slane %v4103, 7
    %v4106 = vshll.u32 %v3803, 16
    %v4108 = vor.u32 %v4105, %v4106
    %v4109 = vsel %vm3838, %v4101, %v4108
    %v4110 = vrot.slane %v4105, 4
    %v4112 = vshrl.u32 %v3804, 16
    %v4114 = vrot.slane %v4112, 7
    %v4115 = vshll.u32 %v3804, 16
    %v4117 = vor.u32 %v4114, %v4115
    %v4118 = vrot.slane %v4114, 4
    %v4120 = vshrl.u32 %v3805, 16
    %v4122 = vrot.slane %v4120, 7
    %v4123 = vshll.u32 %v3805, 16
    %v4125 = vor.u32 %v4122, %v4123
    %v4126 = vsel %vm3838, %v4118, %v4125
    %v4127 = vrot.slane %v4122, 4
    %v4129 = vshrl.u32 %v3806, 16
    %v4131 = vrot.slane %v4129, 7
    %v4132 = vshll.u32 %v3806, 16
    %v4134 = vor.u32 %v4131, %v4132
    %v4135 = vrot.slane %v4131, 4
    %v4137 = vshrl.u32 %v3807, 16
    %v4139 = vrot.slane %v4137, 7
    %v4140 = vshll.u32 %v3807, 16
    %v4142 = vor.u32 %v4139, %v4140
    %v4143 = vsel %vm3838, %v4135, %v4142
    %v4144 = vrot.slane %v4139, 4
    %v4146 = vshrl.u32 %v3808, 16
    %v4148 = vrot.slane %v4146, 7
    %v4149 = vshll.u32 %v3808, 16
    %v4151 = vor.u32 %v4148, %v4149
    %v4152 = vrot.slane %v4148, 4
    %v4154 = vshrl.u32 %v3809, 16
    %v4156 = vrot.slane %v4154, 7
    %v4157 = vshll.u32 %v3809, 16
    %v4159 = vor.u32 %v4156, %v4157
    %v4160 = vsel %vm3838, %v4152, %v4159
    %v4161 = vrot.slane %v4156, 4
    %v4163 = vshrl.u32 %v3810, 16
    %v4165 = vrot.slane %v4163, 7
    %v4166 = vshll.u32 %v3810, 16
    %v4168 = vor.u32 %v4165, %v4166
    %v4169 = vrot.slane %v4165, 4
    %v4171 = vshrl.u32 %v3811, 16
    %v4173 = vrot.slane %v4171, 7
    %v4174 = vshll.u32 %v3811, 16
    %v4176 = vor.u32 %v4173, %v4174
    %v4177 = vsel %vm3838, %v4169, %v4176
    %v4178 = vrot.slane %v4173, 4
    %v4180 = vshrl.u32 %v3812, 16
    %v4182 = vrot.slane %v4180, 7
    %v4183 = vshll.u32 %v3812, 16
    %v4185 = vor.u32 %v4182, %v4183
    %v4186 = vrot.slane %v4182, 4
    %v4188 = vshrl.u32 %v3813, 16
    %v4190 = vrot.slane %v4188, 7
    %v4191 = vshll.u32 %v3813, 16
    %v4193 = vor.u32 %v4190, %v4191
    %v4194 = vsel %vm3838, %v4186, %v4193
    %v4195 = vrot.slane %v4190, 4
    %v4197 = vshrl.u32 %v3814, 16
    %v4199 = vrot.slane %v4197, 7
    %v4200 = vshll.u32 %v3814, 16
    %v4202 = vor.u32 %v4199, %v4200
    %v4203 = vrot.slane %v4199, 4
    %v4205 = vshrl.u32 %v3815, 16
    %v4207 = vrot.slane %v4205, 7
    %v4208 = vshll.u32 %v3815, 16
    %v4210 = vor.u32 %v4207, %v4208
    %v4211 = vsel %vm3838, %v4203, %v4210
    %v4212 = vrot.slane %v4207, 4
    %v4214 = vshrl.u32 %v3816, 16
    %v4216 = vrot.slane %v4214, 7
    %v4217 = vshll.u32 %v3816, 16
    %v4219 = vor.u32 %v4216, %v4217
    %v4220 = vrot.slane %v4216, 4
    %v4222 = vshrl.u32 %v3817, 16
    %v4224 = vrot.slane %v4222, 7
    %v4225 = vshll.u32 %v3817, 16
    %v4227 = vor.u32 %v4224, %v4225
    %v4228 = vsel %vm3838, %v4220, %v4227
    %v4229 = vrot.slane %v4224, 4
    %v4231 = vshrl.u32 %v3818, 16
    %v4233 = vrot.slane %v4231, 7
    %v4234 = vshll.u32 %v3818, 16
    %v4236 = vor.u32 %v4233, %v4234
    %v4237 = vrot.slane %v4233, 4
    %v4239 = vshrl.u32 %v3819, 16
    %v4241 = vrot.slane %v4239, 7
    %v4242 = vshll.u32 %v3819, 16
    %v4244 = vor.u32 %v4241, %v4242
    %v4245 = vsel %vm3838, %v4237, %v4244
    %v4246 = vrot.slane %v4241, 4
    %v4248 = vshrl.u32 %v3820, 16
    %v4250 = vrot.slane %v4248, 7
    %v4251 = vshll.u32 %v3820, 16
    %v4253 = vor.u32 %v4250, %v4251
    %v4254 = vrot.slane %v4250, 4
    %v4256 = vshrl.u32 %v3821, 16
    %v4258 = vrot.slane %v4256, 7
    %v4259 = vshll.u32 %v3821, 16
    %v4261 = vor.u32 %v4258, %v4259
    %v4262 = vsel %vm3838, %v4254, %v4261
    %v4263 = vrot.slane %v4258, 4
    %v4265 = vshrl.u32 %v3822, 16
    %v4267 = vrot.slane %v4265, 7
    %v4268 = vshll.u32 %v3822, 16
    %v4270 = vor.u32 %v4267, %v4268
    %v4271 = vrot.slane %v4267, 4
    %v4273 = vshrl.u32 %v3823, 16
    %v4275 = vrot.slane %v4273, 7
    %v4276 = vshll.u32 %v3823, 16
    %v4278 = vor.u32 %v4275, %v4276
    %v4279 = vsel %vm3838, %v4271, %v4278
    %v4280 = vrot.slane %v4275, 4
    %v4282 = vshrl.u32 %v3824, 16
    %v4284 = vrot.slane %v4282, 7
    %v4285 = vshll.u32 %v3824, 16
    %v4287 = vor.u32 %v4284, %v4285
    %v4288 = vrot.slane %v4284, 4
    %v4290 = vshrl.u32 %v3825, 16
    %v4292 = vrot.slane %v4290, 7
    %v4293 = vshll.u32 %v3825, 16
    %v4295 = vor.u32 %v4292, %v4293
    %v4296 = vsel %vm3838, %v4288, %v4295
    %v4297 = vrot.slane %v4292, 4
    %v4299 = vshrl.u32 %v3826, 16
    %v4301 = vrot.slane %v4299, 7
    %v4302 = vshll.u32 %v3826, 16
    %v4304 = vor.u32 %v4301, %v4302
    %v4305 = vrot.slane %v4301, 4
    %v4307 = vshrl.u32 %v3827, 16
    %v4309 = vrot.slane %v4307, 7
    %v4310 = vshll.u32 %v3827, 16
    %v4312 = vor.u32 %v4309, %v4310
    %v4313 = vsel %vm3838, %v4305, %v4312
    %v4314 = vrot.slane %v4309, 4
    %v4316 = vshrl.u32 %v3828, 16
    %v4318 = vrot.slane %v4316, 7
    %v4319 = vshll.u32 %v3828, 16
    %v4321 = vor.u32 %v4318, %v4319
    %v4322 = vrot.slane %v4318, 4
    %v4324 = vshrl.u32 %v3829, 16
    %v4326 = vrot.slane %v4324, 7
    %v4327 = vshll.u32 %v3829, 16
    %v4329 = vor.u32 %v4326, %v4327
    %v4330 = vsel %vm3838, %v4322, %v4329
    %v4331 = vrot.slane %v4326, 4
    %v4333 = vshrl.u32 %v3830, 16
    %v4335 = vrot.slane %v4333, 7
    %v4336 = vshll.u32 %v3830, 16
    %v4338 = vor.u32 %v4335, %v4336
    %v4339 = vrot.slane %v4335, 4
    %v4341 = vshrl.u32 %v3831, 16
    %v4343 = vrot.slane %v4341, 7
    %v4344 = vshll.u32 %v3831, 16
    %v4346 = vor.u32 %v4343, %v4344
    %v4347 = vsel %vm3838, %v4339, %v4346
    %v4348 = vrot.slane %v4343, 4
    %v4350 = vshrl.u32 %v3832, 16
    %v4352 = vrot.slane %v4350, 7
    %v4353 = vshll.u32 %v3832, 16
    %v4355 = vor.u32 %v4352, %v4353
    %v4356 = vrot.slane %v4352, 4
    %v4358 = vshrl.u32 %v3833, 16
    %v4360 = vrot.slane %v4358, 7
    %v4361 = vshll.u32 %v3833, 16
    %v4363 = vor.u32 %v4360, %v4361
    %v4364 = vsel %vm3838, %v4356, %v4363
    %v4365 = vrot.slane %v4360, 4
    %v4367 = vshrl.u32 %v3834, 16
    %v4369 = vrot.slane %v4367, 7
    %v4370 = vshll.u32 %v3834, 16
    %v4372 = vor.u32 %v4369, %v4370
    %v4373 = vrot.slane %v4369, 4
    %v4375 = vshrl.u32 %v3835, 16
    %v4377 = vrot.slane %v4375, 7
    %v4378 = vshll.u32 %v3835, 16
    %v4380 = vor.u32 %v4377, %v4378
    %v4381 = vsel %vm3838, %v4373, %v4380
    %v4382 = vrot.slane %v4377, 4
    %s4479 = scalar_lea.vmem [#allocation2], 12
    %vm4480 = vcmask 1043456
    %vm4481 = vsmask.f32 7938
    %vm4482 = vmand %vm4480, %vm4481
    %v4483 = vld [vmem:[%s4479] sm:$0xf]
    %v4484 = vsel %vm4482, %v3845, %v4483
    %4485 = vst [vmem:[%s4479] sm:$0xf] %v4484
    %4486 = vst [vmem:[%s4479 + $0x4] sm:$0xf] %v3854
    %vm4487 = vcmask 1040384
    %vm4488 = vmand %vm4487, %vm3836
    %v4489 = vld [vmem:[%s4479 + $0x8] sm:$0x1]
    %v4490 = vsel %vm4488, %v3855, %v4489
    %4491 = vst [vmem:[%s4479 + $0x8] sm:$0x1] %v4490
    %v4492 = vld [vmem:[%s4479 + $0xc] sm:$0xf]
    %v4493 = vsel %vm4482, %v3862, %v4492
    %4494 = vst [vmem:[%s4479 + $0xc] sm:$0xf] %v4493
    %4495 = vst [vmem:[%s4479 + $0x10] sm:$0xf] %v3871
    %v4496 = vld [vmem:[%s4479 + $0x14] sm:$0x1]
    %v4497 = vsel %vm4488, %v3872, %v4496
    %4498 = vst [vmem:[%s4479 + $0x14] sm:$0x1] %v4497
    %v4499 = vld [vmem:[%s4479 + $0x18] sm:$0xf]
    %v4500 = vsel %vm4482, %v3879, %v4499
    %4501 = vst [vmem:[%s4479 + $0x18] sm:$0xf] %v4500
    %4502 = vst [vmem:[%s4479 + $0x1c] sm:$0xf] %v3888
    %v4503 = vld [vmem:[%s4479 + $0x20] sm:$0x1]
    %v4504 = vsel %vm4488, %v3889, %v4503
    %4505 = vst [vmem:[%s4479 + $0x20] sm:$0x1] %v4504
    %v4506 = vld [vmem:[%s4479 + $0x24] sm:$0xf]
    %v4507 = vsel %vm4482, %v3896, %v4506
    %4508 = vst [vmem:[%s4479 + $0x24] sm:$0xf] %v4507
    %4509 = vst [vmem:[%s4479 + $0x28] sm:$0xf] %v3905
    %v4510 = vld [vmem:[%s4479 + $0x2c] sm:$0x1]
    %v4511 = vsel %vm4488, %v3906, %v4510
    %4512 = vst [vmem:[%s4479 + $0x2c] sm:$0x1] %v4511
    %v4513 = vld [vmem:[%s4479 + $0x30] sm:$0xf]
    %v4514 = vsel %vm4482, %v3913, %v4513
    %4515 = vst [vmem:[%s4479 + $0x30] sm:$0xf] %v4514
    %4516 = vst [vmem:[%s4479 + $0x34] sm:$0xf] %v3922
    %v4517 = vld [vmem:[%s4479 + $0x38] sm:$0x1]
    %v4518 = vsel %vm4488, %v3923, %v4517
    %4519 = vst [vmem:[%s4479 + $0x38] sm:$0x1] %v4518
    %v4520 = vld [vmem:[%s4479 + $0x3c] sm:$0xf]
    %v4521 = vsel %vm4482, %v3930, %v4520
    %4522 = vst [vmem:[%s4479 + $0x3c] sm:$0xf] %v4521
    %4523 = vst [vmem:[%s4479 + $0x40] sm:$0xf] %v3939
    %v4524 = vld [vmem:[%s4479 + $0x44] sm:$0x1]
    %v4525 = vsel %vm4488, %v3940, %v4524
    %4526 = vst [vmem:[%s4479 + $0x44] sm:$0x1] %v4525
    %v4527 = vld [vmem:[%s4479 + $0x48] sm:$0xf]
    %v4528 = vsel %vm4482, %v3947, %v4527
    %4529 = vst [vmem:[%s4479 + $0x48] sm:$0xf] %v4528
    %4530 = vst [vmem:[%s4479 + $0x4c] sm:$0xf] %v3956
    %v4531 = vld [vmem:[%s4479 + $0x50] sm:$0x1]
    %v4532 = vsel %vm4488, %v3957, %v4531
    %4533 = vst [vmem:[%s4479 + $0x50] sm:$0x1] %v4532
    %v4534 = vld [vmem:[%s4479 + $0x54] sm:$0xf]
    %v4535 = vsel %vm4482, %v3964, %v4534
    %4536 = vst [vmem:[%s4479 + $0x54] sm:$0xf] %v4535
    %4537 = vst [vmem:[%s4479 + $0x58] sm:$0xf] %v3973
    %v4538 = vld [vmem:[%s4479 + $0x5c] sm:$0x1]
    %v4539 = vsel %vm4488, %v3974, %v4538
    %4540 = vst [vmem:[%s4479 + $0x5c] sm:$0x1] %v4539
    %v4541 = vld [vmem:[%s4479 + $0x60] sm:$0xf]
    %v4542 = vsel %vm4482, %v3981, %v4541
    %4543 = vst [vmem:[%s4479 + $0x60] sm:$0xf] %v4542
    %4544 = vst [vmem:[%s4479 + $0x64] sm:$0xf] %v3990
    %v4545 = vld [vmem:[%s4479 + $0x68] sm:$0x1]
    %v4546 = vsel %vm4488, %v3991, %v4545
    %4547 = vst [vmem:[%s4479 + $0x68] sm:$0x1] %v4546
    %v4548 = vld [vmem:[%s4479 + $0x6c] sm:$0xf]
    %v4549 = vsel %vm4482, %v3998, %v4548
    %4550 = vst [vmem:[%s4479 + $0x6c] sm:$0xf] %v4549
    %4551 = vst [vmem:[%s4479 + $0x70] sm:$0xf] %v4007
    %v4552 = vld [vmem:[%s4479 + $0x74] sm:$0x1]
    %v4553 = vsel %vm4488, %v4008, %v4552
    %4554 = vst [vmem:[%s4479 + $0x74] sm:$0x1] %v4553
    %v4555 = vld [vmem:[%s4479 + $0x78] sm:$0xf]
    %v4556 = vsel %vm4482, %v4015, %v4555
    %4557 = vst [vmem:[%s4479 + $0x78] sm:$0xf] %v4556
    %4558 = vst [vmem:[%s4479 + $0x7c] sm:$0xf] %v4024
    %v4559 = vld [vmem:[%s4479 + $0x80] sm:$0x1]
    %v4560 = vsel %vm4488, %v4025, %v4559
    %4561 = vst [vmem:[%s4479 + $0x80] sm:$0x1] %v4560
    %v4562 = vld [vmem:[%s4479 + $0x84] sm:$0xf]
    %v4563 = vsel %vm4482, %v4032, %v4562
    %4564 = vst [vmem:[%s4479 + $0x84] sm:$0xf] %v4563
    %4565 = vst [vmem:[%s4479 + $0x88] sm:$0xf] %v4041
    %v4566 = vld [vmem:[%s4479 + $0x8c] sm:$0x1]
    %v4567 = vsel %vm4488, %v4042, %v4566
    %4568 = vst [vmem:[%s4479 + $0x8c] sm:$0x1] %v4567
    %v4569 = vld [vmem:[%s4479 + $0x90] sm:$0xf]
    %v4570 = vsel %vm4482, %v4049, %v4569
    %4571 = vst [vmem:[%s4479 + $0x90] sm:$0xf] %v4570
    %4572 = vst [vmem:[%s4479 + $0x94] sm:$0xf] %v4058
    %v4573 = vld [vmem:[%s4479 + $0x98] sm:$0x1]
    %v4574 = vsel %vm4488, %v4059, %v4573
    %4575 = vst [vmem:[%s4479 + $0x98] sm:$0x1] %v4574
    %v4576 = vld [vmem:[%s4479 + $0x9c] sm:$0xf]
    %v4577 = vsel %vm4482, %v4066, %v4576
    %4578 = vst [vmem:[%s4479 + $0x9c] sm:$0xf] %v4577
    %4579 = vst [vmem:[%s4479 + $0xa0] sm:$0xf] %v4075
    %v4580 = vld [vmem:[%s4479 + $0xa4] sm:$0x1]
    %v4581 = vsel %vm4488, %v4076, %v4580
    %4582 = vst [vmem:[%s4479 + $0xa4] sm:$0x1] %v4581
    %v4583 = vld [vmem:[%s4479 + $0xa8] sm:$0xf]
    %v4584 = vsel %vm4482, %v4083, %v4583
    %4585 = vst [vmem:[%s4479 + $0xa8] sm:$0xf] %v4584
    %4586 = vst [vmem:[%s4479 + $0xac] sm:$0xf] %v4092
    %v4587 = vld [vmem:[%s4479 + $0xb0] sm:$0x1]
    %v4588 = vsel %vm4488, %v4093, %v4587
    %4589 = vst [vmem:[%s4479 + $0xb0] sm:$0x1] %v4588
    %v4590 = vld [vmem:[%s4479 + $0xb4] sm:$0xf]
    %v4591 = vsel %vm4482, %v4100, %v4590
    %4592 = vst [vmem:[%s4479 + $0xb4] sm:$0xf] %v4591
    %4593 = vst [vmem:[%s4479 + $0xb8] sm:$0xf] %v4109
    %v4594 = vld [vmem:[%s4479 + $0xbc] sm:$0x1]
    %v4595 = vsel %vm4488, %v4110, %v4594
    %4596 = vst [vmem:[%s4479 + $0xbc] sm:$0x1] %v4595
    %v4597 = vld [vmem:[%s4479 + $0xd8] sm:$0xf]
    %v4598 = vsel %vm4482, %v4117, %v4597
    %4599 = vst [vmem:[%s4479 + $0xd8] sm:$0xf] %v4598
    %4600 = vst [vmem:[%s4479 + $0xdc] sm:$0xf] %v4126
    %v4601 = vld [vmem:[%s4479 + $0xe0] sm:$0x1]
    %v4602 = vsel %vm4488, %v4127, %v4601
    %4603 = vst [vmem:[%s4479 + $0xe0] sm:$0x1] %v4602
    %v4604 = vld [vmem:[%s4479 + $0xe4] sm:$0xf]
    %v4605 = vsel %vm4482, %v4134, %v4604
    %4606 = vst [vmem:[%s4479 + $0xe4] sm:$0xf] %v4605
    %4607 = vst [vmem:[%s4479 + $0xe8] sm:$0xf] %v4143
    %v4608 = vld [vmem:[%s4479 + $0xec] sm:$0x1]
    %v4609 = vsel %vm4488, %v4144, %v4608
    %4610 = vst [vmem:[%s4479 + $0xec] sm:$0x1] %v4609
    %v4611 = vld [vmem:[%s4479 + $0xf0] sm:$0xf]
    %v4612 = vsel %vm4482, %v4151, %v4611
    %4613 = vst [vmem:[%s4479 + $0xf0] sm:$0xf] %v4612
    %4614 = vst [vmem:[%s4479 + $0xf4] sm:$0xf] %v4160
    %v4615 = vld [vmem:[%s4479 + $0xf8] sm:$0x1]
    %v4616 = vsel %vm4488, %v4161, %v4615
    %4617 = vst [vmem:[%s4479 + $0xf8] sm:$0x1] %v4616
    %v4618 = vld [vmem:[%s4479 + $0xfc] sm:$0xf]
    %v4619 = vsel %vm4482, %v4168, %v4618
    %4620 = vst [vmem:[%s4479 + $0xfc] sm:$0xf] %v4619
    %4621 = vst [vmem:[%s4479 + $0x100] sm:$0xf] %v4177
    %v4622 = vld [vmem:[%s4479 + $0x104] sm:$0x1]
    %v4623 = vsel %vm4488, %v4178, %v4622
    %4624 = vst [vmem:[%s4479 + $0x104] sm:$0x1] %v4623
    %v4625 = vld [vmem:[%s4479 + $0x108] sm:$0xf]
    %v4626 = vsel %vm4482, %v4185, %v4625
    %4627 = vst [vmem:[%s4479 + $0x108] sm:$0xf] %v4626
    %4628 = vst [vmem:[%s4479 + $0x10c] sm:$0xf] %v4194
    %v4629 = vld [vmem:[%s4479 + $0x110] sm:$0x1]
    %v4630 = vsel %vm4488, %v4195, %v4629
    %4631 = vst [vmem:[%s4479 + $0x110] sm:$0x1] %v4630
    %v4632 = vld [vmem:[%s4479 + $0x114] sm:$0xf]
    %v4633 = vsel %vm4482, %v4202, %v4632
    %4634 = vst [vmem:[%s4479 + $0x114] sm:$0xf] %v4633
    %4635 = vst [vmem:[%s4479 + $0x118] sm:$0xf] %v4211
    %v4636 = vld [vmem:[%s4479 + $0x11c] sm:$0x1]
    %v4637 = vsel %vm4488, %v4212, %v4636
    %4638 = vst [vmem:[%s4479 + $0x11c] sm:$0x1] %v4637
    %v4639 = vld [vmem:[%s4479 + $0x120] sm:$0xf]
    %v4640 = vsel %vm4482, %v4219, %v4639
    %4641 = vst [vmem:[%s4479 + $0x120] sm:$0xf] %v4640
    %4642 = vst [vmem:[%s4479 + $0x124] sm:$0xf] %v4228
    %v4643 = vld [vmem:[%s4479 + $0x128] sm:$0x1]
    %v4644 = vsel %vm4488, %v4229, %v4643
    %4645 = vst [vmem:[%s4479 + $0x128] sm:$0x1] %v4644
    %v4646 = vld [vmem:[%s4479 + $0x12c] sm:$0xf]
    %v4647 = vsel %vm4482, %v4236, %v4646
    %4648 = vst [vmem:[%s4479 + $0x12c] sm:$0xf] %v4647
    %4649 = vst [vmem:[%s4479 + $0x130] sm:$0xf] %v4245
    %v4650 = vld [vmem:[%s4479 + $0x134] sm:$0x1]
    %v4651 = vsel %vm4488, %v4246, %v4650
    %4652 = vst [vmem:[%s4479 + $0x134] sm:$0x1] %v4651
    %v4653 = vld [vmem:[%s4479 + $0x138] sm:$0xf]
    %v4654 = vsel %vm4482, %v4253, %v4653
    %4655 = vst [vmem:[%s4479 + $0x138] sm:$0xf] %v4654
    %4656 = vst [vmem:[%s4479 + $0x13c] sm:$0xf] %v4262
    %v4657 = vld [vmem:[%s4479 + $0x140] sm:$0x1]
    %v4658 = vsel %vm4488, %v4263, %v4657
    %4659 = vst [vmem:[%s4479 + $0x140] sm:$0x1] %v4658
    %v4660 = vld [vmem:[%s4479 + $0x144] sm:$0xf]
    %v4661 = vsel %vm4482, %v4270, %v4660
    %4662 = vst [vmem:[%s4479 + $0x144] sm:$0xf] %v4661
    %4663 = vst [vmem:[%s4479 + $0x148] sm:$0xf] %v4279
    %v4664 = vld [vmem:[%s4479 + $0x14c] sm:$0x1]
    %v4665 = vsel %vm4488, %v4280, %v4664
    %4666 = vst [vmem:[%s4479 + $0x14c] sm:$0x1] %v4665
    %v4667 = vld [vmem:[%s4479 + $0x150] sm:$0xf]
    %v4668 = vsel %vm4482, %v4287, %v4667
    %4669 = vst [vmem:[%s4479 + $0x150] sm:$0xf] %v4668
    %4670 = vst [vmem:[%s4479 + $0x154] sm:$0xf] %v4296
    %v4671 = vld [vmem:[%s4479 + $0x158] sm:$0x1]
    %v4672 = vsel %vm4488, %v4297, %v4671
    %4673 = vst [vmem:[%s4479 + $0x158] sm:$0x1] %v4672
    %v4674 = vld [vmem:[%s4479 + $0x15c] sm:$0xf]
    %v4675 = vsel %vm4482, %v4304, %v4674
    %4676 = vst [vmem:[%s4479 + $0x15c] sm:$0xf] %v4675
    %4677 = vst [vmem:[%s4479 + $0x160] sm:$0xf] %v4313
    %v4678 = vld [vmem:[%s4479 + $0x164] sm:$0x1]
    %v4679 = vsel %vm4488, %v4314, %v4678
    %4680 = vst [vmem:[%s4479 + $0x164] sm:$0x1] %v4679
    %v4681 = vld [vmem:[%s4479 + $0x168] sm:$0xf]
    %v4682 = vsel %vm4482, %v4321, %v4681
    %4683 = vst [vmem:[%s4479 + $0x168] sm:$0xf] %v4682
    %4684 = vst [vmem:[%s4479 + $0x16c] sm:$0xf] %v4330
    %v4685 = vld [vmem:[%s4479 + $0x170] sm:$0x1]
    %v4686 = vsel %vm4488, %v4331, %v4685
    %4687 = vst [vmem:[%s4479 + $0x170] sm:$0x1] %v4686
    %v4688 = vld [vmem:[%s4479 + $0x174] sm:$0xf]
    %v4689 = vsel %vm4482, %v4338, %v4688
    %4690 = vst [vmem:[%s4479 + $0x174] sm:$0xf] %v4689
    %4691 = vst [vmem:[%s4479 + $0x178] sm:$0xf] %v4347
    %v4692 = vld [vmem:[%s4479 + $0x17c] sm:$0x1]
    %v4693 = vsel %vm4488, %v4348, %v4692
    %4694 = vst [vmem:[%s4479 + $0x17c] sm:$0x1] %v4693
    %v4695 = vld [vmem:[%s4479 + $0x180] sm:$0xf]
    %v4696 = vsel %vm4482, %v4355, %v4695
    %4697 = vst [vmem:[%s4479 + $0x180] sm:$0xf] %v4696
    %4698 = vst [vmem:[%s4479 + $0x184] sm:$0xf] %v4364
    %v4699 = vld [vmem:[%s4479 + $0x188] sm:$0x1]
    %v4700 = vsel %vm4488, %v4365, %v4699
    %4701 = vst [vmem:[%s4479 + $0x188] sm:$0x1] %v4700
    %v4702 = vld [vmem:[%s4479 + $0x18c] sm:$0xf]
    %v4703 = vsel %vm4482, %v4372, %v4702
    %4704 = vst [vmem:[%s4479 + $0x18c] sm:$0xf] %v4703
    %4705 = vst [vmem:[%s4479 + $0x190] sm:$0xf] %v4381
    %v4706 = vld [vmem:[%s4479 + $0x194] sm:$0x1]
    %v4707 = vsel %vm4488, %v4382, %v4706
    %4708 = vst [vmem:[%s4479 + $0x194] sm:$0x1] %v4707
    %v4709 = vld [vmem:[#allocation2] sm:$0xf]
    %v4710 = vld [vmem:[#allocation2 + $0x4] sm:$0xf]
    %v4711 = vld [vmem:[#allocation2 + $0x8] sm:$0x1]
    %v4712 = vld [vmem:[#allocation2 + $0xc] sm:$0xf]
    %v4713 = vld [vmem:[#allocation2 + $0x10] sm:$0xf]
    %v4714 = vld [vmem:[#allocation2 + $0x14] sm:$0x1]
    %v4715 = vld [vmem:[#allocation2 + $0x18] sm:$0xf]
    %v4716 = vld [vmem:[#allocation2 + $0x1c] sm:$0xf]
    %v4717 = vld [vmem:[#allocation2 + $0x20] sm:$0x1]
    %v4718 = vld [vmem:[#allocation2 + $0x24] sm:$0xf]
    %v4719 = vld [vmem:[#allocation2 + $0x28] sm:$0xf]
    %v4720 = vld [vmem:[#allocation2 + $0x2c] sm:$0x1]
    %v4721 = vld [vmem:[#allocation2 + $0x30] sm:$0xf]
    %v4722 = vld [vmem:[#allocation2 + $0x34] sm:$0xf]
    %v4723 = vld [vmem:[#allocation2 + $0x38] sm:$0x1]
    %v4724 = vld [vmem:[#allocation2 + $0x3c] sm:$0xf]
    %v4725 = vld [vmem:[#allocation2 + $0x40] sm:$0xf]
    %v4726 = vld [vmem:[#allocation2 + $0x44] sm:$0x1]
    %v4727 = vld [vmem:[#allocation2 + $0x48] sm:$0xf]
    %v4728 = vld [vmem:[#allocation2 + $0x4c] sm:$0xf]
    %v4729 = vld [vmem:[#allocation2 + $0x50] sm:$0x1]
    %v4730 = vld [vmem:[#allocation2 + $0x54] sm:$0xf]
    %v4731 = vld [vmem:[#allocation2 + $0x58] sm:$0xf]
    %v4732 = vld [vmem:[#allocation2 + $0x5c] sm:$0x1]
    %v4733 = vld [vmem:[#allocation2 + $0x60] sm:$0xf]
    %v4734 = vld [vmem:[#allocation2 + $0x64] sm:$0xf]
    %v4735 = vld [vmem:[#allocation2 + $0x68] sm:$0x1]
    %v4736 = vld [vmem:[#allocation2 + $0x6c] sm:$0xf]
    %v4737 = vld [vmem:[#allocation2 + $0x70] sm:$0xf]
    %v4738 = vld [vmem:[#allocation2 + $0x74] sm:$0x1]
    %v4739 = vld [vmem:[#allocation2 + $0x78] sm:$0xf]
    %v4740 = vld [vmem:[#allocation2 + $0x7c] sm:$0xf]
    %v4741 = vld [vmem:[#allocation2 + $0x80] sm:$0x1]
    %v4742 = vld [vmem:[#allocation2 + $0x84] sm:$0xf]
    %v4743 = vld [vmem:[#allocation2 + $0x88] sm:$0xf]
    %v4744 = vld [vmem:[#allocation2 + $0x8c] sm:$0x1]
    %v4745 = vld [vmem:[#allocation2 + $0x90] sm:$0xf]
    %v4746 = vld [vmem:[#allocation2 + $0x94] sm:$0xf]
    %v4747 = vld [vmem:[#allocation2 + $0x98] sm:$0x1]
    %v4748 = vld [vmem:[#allocation2 + $0x9c] sm:$0xf]
    %v4749 = vld [vmem:[#allocation2 + $0xa0] sm:$0xf]
    %v4750 = vld [vmem:[#allocation2 + $0xa4] sm:$0x1]
    %v4751 = vld [vmem:[#allocation2 + $0xa8] sm:$0xf]
    %v4752 = vld [vmem:[#allocation2 + $0xac] sm:$0xf]
    %v4753 = vld [vmem:[#allocation2 + $0xb0] sm:$0x1]
    %v4754 = vld [vmem:[#allocation2 + $0xb4] sm:$0xf]
    %v4755 = vld [vmem:[#allocation2 + $0xb8] sm:$0xf]
    %v4756 = vld [vmem:[#allocation2 + $0xbc] sm:$0x1]
    %v4757 = vld [vmem:[#allocation2 + $0xc0] sm:$0xf]
    %v4758 = vld [vmem:[#allocation2 + $0xc4] sm:$0xf]
    %v4759 = vld [vmem:[#allocation2 + $0xc8] sm:$0x1]
    %v4760 = vld [vmem:[#allocation2 + $0xcc] sm:$0xf]
    %v4761 = vld [vmem:[#allocation2 + $0xd0] sm:$0xf]
    %v4762 = vld [vmem:[#allocation2 + $0xd4] sm:$0x1]
    %v4763 = vld [vmem:[#allocation2 + $0xd8] sm:$0xf]
    %v4764 = vld [vmem:[#allocation2 + $0xdc] sm:$0xf]
    %v4765 = vld [vmem:[#allocation2 + $0xe0] sm:$0x1]
    %v4766 = vld [vmem:[#allocation2 + $0xe4] sm:$0xf]
    %v4767 = vld [vmem:[#allocation2 + $0xe8] sm:$0xf]
    %v4768 = vld [vmem:[#allocation2 + $0xec] sm:$0x1]
    %v4769 = vld [vmem:[#allocation2 + $0xf0] sm:$0xf]
    %v4770 = vld [vmem:[#allocation2 + $0xf4] sm:$0xf]
    %v4771 = vld [vmem:[#allocation2 + $0xf8] sm:$0x1]
    %v4772 = vld [vmem:[#allocation2 + $0xfc] sm:$0xf]
    %v4773 = vld [vmem:[#allocation2 + $0x100] sm:$0xf]
    %v4774 = vld [vmem:[#allocation2 + $0x104] sm:$0x1]
    %v4775 = vld [vmem:[#allocation2 + $0x108] sm:$0xf]
    %v4776 = vld [vmem:[#allocation2 + $0x10c] sm:$0xf]
    %v4777 = vld [vmem:[#allocation2 + $0x110] sm:$0x1]
    %v4778 = vld [vmem:[#allocation2 + $0x114] sm:$0xf]
    %v4779 = vld [vmem:[#allocation2 + $0x118] sm:$0xf]
    %v4780 = vld [vmem:[#allocation2 + $0x11c] sm:$0x1]
    %v4781 = vld [vmem:[#allocation2 + $0x120] sm:$0xf]
    %v4782 = vld [vmem:[#allocation2 + $0x124] sm:$0xf]
    %v4783 = vld [vmem:[#allocation2 + $0x128] sm:$0x1]
    %v4784 = vld [vmem:[#allocation2 + $0x12c] sm:$0xf]
    %v4785 = vld [vmem:[#allocation2 + $0x130] sm:$0xf]
    %v4786 = vld [vmem:[#allocation2 + $0x134] sm:$0x1]
    %v4787 = vld [vmem:[#allocation2 + $0x138] sm:$0xf]
    %v4788 = vld [vmem:[#allocation2 + $0x13c] sm:$0xf]
    %v4789 = vld [vmem:[#allocation2 + $0x140] sm:$0x1]
    %v4790 = vld [vmem:[#allocation2 + $0x144] sm:$0xf]
    %v4791 = vld [vmem:[#allocation2 + $0x148] sm:$0xf]
    %v4792 = vld [vmem:[#allocation2 + $0x14c] sm:$0x1]
    %v4793 = vld [vmem:[#allocation2 + $0x150] sm:$0xf]
    %v4794 = vld [vmem:[#allocation2 + $0x154] sm:$0xf]
    %v4795 = vld [vmem:[#allocation2 + $0x158] sm:$0x1]
    %v4796 = vld [vmem:[#allocation2 + $0x15c] sm:$0xf]
    %v4797 = vld [vmem:[#allocation2 + $0x160] sm:$0xf]
    %v4798 = vld [vmem:[#allocation2 + $0x164] sm:$0x1]
    %v4799 = vld [vmem:[#allocation2 + $0x168] sm:$0xf]
    %v4800 = vld [vmem:[#allocation2 + $0x16c] sm:$0xf]
    %v4801 = vld [vmem:[#allocation2 + $0x170] sm:$0x1]
    %v4802 = vld [vmem:[#allocation2 + $0x174] sm:$0xf]
    %v4803 = vld [vmem:[#allocation2 + $0x178] sm:$0xf]
    %v4804 = vld [vmem:[#allocation2 + $0x17c] sm:$0x1]
    %v4805 = vld [vmem:[#allocation2 + $0x180] sm:$0xf]
    %v4806 = vld [vmem:[#allocation2 + $0x184] sm:$0xf]
    %v4807 = vld [vmem:[#allocation2 + $0x188] sm:$0x1]
    %v4808 = vld [vmem:[#allocation2 + $0x18c] sm:$0xf]
    %v4809 = vld [vmem:[#allocation2 + $0x190] sm:$0xf]
    %v4810 = vld [vmem:[#allocation2 + $0x194] sm:$0x1]
    %v4811 = vld [vmem:[#allocation2 + $0x198] sm:$0xf]
    %v4812 = vld [vmem:[#allocation2 + $0x19c] sm:$0xf]
    %v4813 = vld [vmem:[#allocation2 + $0x1a0] sm:$0x1]
    %v4814 = vld [vmem:[#allocation2 + $0x1a4] sm:$0xf]
    %v4815 = vld [vmem:[#allocation2 + $0x1a8] sm:$0xf]
    %v4816 = vld [vmem:[#allocation2 + $0x1ac] sm:$0x1]
    %v4881 = vunpack.c.l.b16 %v4709
    %v4882 = vunpack.c.l.b16 %v4710
    %v4883 = vunpack.c.l.b16 %v4712
    %v4884 = vunpack.c.l.b16 %v4713
    %v4885 = vunpack.c.l.b16 %v4715
    %v4886 = vunpack.c.l.b16 %v4716
    %v4887 = vunpack.c.l.b16 %v4718
    %v4888 = vunpack.c.l.b16 %v4719
    %v4889 = vunpack.c.l.b16 %v4721
    %v4890 = vunpack.c.l.b16 %v4722
    %v4891 = vunpack.c.l.b16 %v4724
    %v4892 = vunpack.c.l.b16 %v4725
    %v4893 = vunpack.c.l.b16 %v4727
    %v4894 = vunpack.c.l.b16 %v4728
    %v4895 = vunpack.c.l.b16 %v4730
    %v4896 = vunpack.c.l.b16 %v4731
    %v4897 = vunpack.c.l.b16 %v4733
    %v4898 = vunpack.c.l.b16 %v4734
    %v4899 = vunpack.c.l.b16 %v4736
    %v4900 = vunpack.c.l.b16 %v4737
    %v4901 = vunpack.c.l.b16 %v4739
    %v4902 = vunpack.c.l.b16 %v4740
    %v4903 = vunpack.c.l.b16 %v4742
    %v4904 = vunpack.c.l.b16 %v4743
    %v4905 = vunpack.c.l.b16 %v4745
    %v4906 = vunpack.c.l.b16 %v4746
    %v4907 = vunpack.c.l.b16 %v4748
    %v4908 = vunpack.c.l.b16 %v4749
    %v4909 = vunpack.c.l.b16 %v4751
    %v4910 = vunpack.c.l.b16 %v4752
    %v4911 = vunpack.c.l.b16 %v4754
    %v4912 = vunpack.c.l.b16 %v4755
    %v4913 = vunpack.c.l.b16 %v4763
    %v4914 = vunpack.c.l.b16 %v4764
    %v4915 = vunpack.c.l.b16 %v4766
    %v4916 = vunpack.c.l.b16 %v4767
    %v4917 = vunpack.c.l.b16 %v4769
    %v4918 = vunpack.c.l.b16 %v4770
    %v4919 = vunpack.c.l.b16 %v4772
    %v4920 = vunpack.c.l.b16 %v4773
    %v4921 = vunpack.c.l.b16 %v4775
    %v4922 = vunpack.c.l.b16 %v4776
    %v4923 = vunpack.c.l.b16 %v4778
    %v4924 = vunpack.c.l.b16 %v4779
    %v4925 = vunpack.c.l.b16 %v4781
    %v4926 = vunpack.c.l.b16 %v4782
    %v4927 = vunpack.c.l.b16 %v4784
    %v4928 = vunpack.c.l.b16 %v4785
    %v4929 = vunpack.c.l.b16 %v4787
    %v4930 = vunpack.c.l.b16 %v4788
    %v4931 = vunpack.c.l.b16 %v4790
    %v4932 = vunpack.c.l.b16 %v4791
    %v4933 = vunpack.c.l.b16 %v4793
    %v4934 = vunpack.c.l.b16 %v4794
    %v4935 = vunpack.c.l.b16 %v4796
    %v4936 = vunpack.c.l.b16 %v4797
    %v4937 = vunpack.c.l.b16 %v4799
    %v4938 = vunpack.c.l.b16 %v4800
    %v4939 = vunpack.c.l.b16 %v4802
    %v4940 = vunpack.c.l.b16 %v4803
    %v4941 = vunpack.c.l.b16 %v4805
    %v4942 = vunpack.c.l.b16 %v4806
    %v4943 = vunpack.c.l.b16 %v4808
    %v4944 = vunpack.c.l.b16 %v4809
    %v4945 = vpack.c.b16 %v4882, %v4881
    %v4946 = vpack.c.b16 %v4884, %v4883
    %v4947 = vpack.c.b16 %v4886, %v4885
    %v4948 = vpack.c.b16 %v4888, %v4887
    %v4949 = vpack.c.b16 %v4890, %v4889
    %v4950 = vpack.c.b16 %v4892, %v4891
    %v4951 = vpack.c.b16 %v4894, %v4893
    %v4952 = vpack.c.b16 %v4896, %v4895
    %v4953 = vpack.c.b16 %v4898, %v4897
    %v4954 = vpack.c.b16 %v4900, %v4899
    %v4955 = vpack.c.b16 %v4902, %v4901
    %v4956 = vpack.c.b16 %v4904, %v4903
    %v4957 = vpack.c.b16 %v4906, %v4905
    %v4958 = vpack.c.b16 %v4908, %v4907
    %v4959 = vpack.c.b16 %v4910, %v4909
    %v4960 = vpack.c.b16 %v4912, %v4911
    %v4961 = vpack.c.b16 %v4914, %v4913
    %v4962 = vpack.c.b16 %v4916, %v4915
    %v4963 = vpack.c.b16 %v4918, %v4917
    %v4964 = vpack.c.b16 %v4920, %v4919
    %v4965 = vpack.c.b16 %v4922, %v4921
    %v4966 = vpack.c.b16 %v4924, %v4923
    %v4967 = vpack.c.b16 %v4926, %v4925
    %v4968 = vpack.c.b16 %v4928, %v4927
    %v4969 = vpack.c.b16 %v4930, %v4929
    %v4970 = vpack.c.b16 %v4932, %v4931
    %v4971 = vpack.c.b16 %v4934, %v4933
    %v4972 = vpack.c.b16 %v4936, %v4935
    %v4973 = vpack.c.b16 %v4938, %v4937
    %v4974 = vpack.c.b16 %v4940, %v4939
    %v4975 = vpack.c.b16 %v4942, %v4941
    %v4976 = vpack.c.b16 %v4944, %v4943
    %v5041 = vunpack.c.l.b16 %v4711
    %v5042 = vunpack.c.l.b16 %v4714
    %v5043 = vunpack.c.l.b16 %v4717
    %v5044 = vunpack.c.l.b16 %v4720
    %v5045 = vunpack.c.l.b16 %v4723
    %v5046 = vunpack.c.l.b16 %v4726
    %v5047 = vunpack.c.l.b16 %v4729
    %v5048 = vunpack.c.l.b16 %v4732
    %v5049 = vunpack.c.l.b16 %v4735
    %v5050 = vunpack.c.l.b16 %v4738
    %v5051 = vunpack.c.l.b16 %v4741
    %v5052 = vunpack.c.l.b16 %v4744
    %v5053 = vunpack.c.l.b16 %v4747
    %v5054 = vunpack.c.l.b16 %v4750
    %v5055 = vunpack.c.l.b16 %v4753
    %v5056 = vunpack.c.l.b16 %v4756
    %v5057 = vunpack.c.l.b16 %v4765
    %v5058 = vunpack.c.l.b16 %v4768
    %v5059 = vunpack.c.l.b16 %v4771
    %v5060 = vunpack.c.l.b16 %v4774
    %v5061 = vunpack.c.l.b16 %v4777
    %v5062 = vunpack.c.l.b16 %v4780
    %v5063 = vunpack.c.l.b16 %v4783
    %v5064 = vunpack.c.l.b16 %v4786
    %v5065 = vunpack.c.l.b16 %v4789
    %v5066 = vunpack.c.l.b16 %v4792
    %v5067 = vunpack.c.l.b16 %v4795
    %v5068 = vunpack.c.l.b16 %v4798
    %v5069 = vunpack.c.l.b16 %v4801
    %v5070 = vunpack.c.l.b16 %v4804
    %v5071 = vunpack.c.l.b16 %v4807
    %v5072 = vunpack.c.l.b16 %v4810
    %v5073 = vpack.c.b16 %v5041, %v5041
    %v5074 = vpack.c.b16 %v5042, %v5042
    %v5075 = vpack.c.b16 %v5043, %v5043
    %v5076 = vpack.c.b16 %v5044, %v5044
    %v5077 = vpack.c.b16 %v5045, %v5045
    %v5078 = vpack.c.b16 %v5046, %v5046
    %v5079 = vpack.c.b16 %v5047, %v5047
    %v5080 = vpack.c.b16 %v5048, %v5048
    %v5081 = vpack.c.b16 %v5049, %v5049
    %v5082 = vpack.c.b16 %v5050, %v5050
    %v5083 = vpack.c.b16 %v5051, %v5051
    %v5084 = vpack.c.b16 %v5052, %v5052
    %v5085 = vpack.c.b16 %v5053, %v5053
    %v5086 = vpack.c.b16 %v5054, %v5054
    %v5087 = vpack.c.b16 %v5055, %v5055
    %v5088 = vpack.c.b16 %v5056, %v5056
    %v5089 = vpack.c.b16 %v5057, %v5057
    %v5090 = vpack.c.b16 %v5058, %v5058
    %v5091 = vpack.c.b16 %v5059, %v5059
    %v5092 = vpack.c.b16 %v5060, %v5060
    %v5093 = vpack.c.b16 %v5061, %v5061
    %v5094 = vpack.c.b16 %v5062, %v5062
    %v5095 = vpack.c.b16 %v5063, %v5063
    %v5096 = vpack.c.b16 %v5064, %v5064
    %v5097 = vpack.c.b16 %v5065, %v5065
    %v5098 = vpack.c.b16 %v5066, %v5066
    %v5099 = vpack.c.b16 %v5067, %v5067
    %v5100 = vpack.c.b16 %v5068, %v5068
    %v5101 = vpack.c.b16 %v5069, %v5069
    %v5102 = vpack.c.b16 %v5070, %v5070
    %v5103 = vpack.c.b16 %v5071, %v5071
    %v5104 = vpack.c.b16 %v5072, %v5072
    %v5106 = vshrl.u32 %v4945, 16
    %v5108 = vshll.u32 %v4945, 16
    %v5110 = vrot.slane %v5108, 1
    %v5111 = vor.u32 %v5106, %v5110
    %v5113 = vshll.u32 %v5073, 16
    %v5115 = vrot.slane %v5113, 1
    %v5116 = vsel %vm447, %v5111, %v5115
    %v5118 = vshrl.u32 %v4946, 16
    %v5120 = vshll.u32 %v4946, 16
    %v5122 = vrot.slane %v5120, 1
    %v5123 = vor.u32 %v5118, %v5122
    %v5125 = vshll.u32 %v5074, 16
    %v5127 = vrot.slane %v5125, 1
    %v5128 = vsel %vm447, %v5123, %v5127
    %v5130 = vshrl.u32 %v4947, 16
    %v5132 = vshll.u32 %v4947, 16
    %v5134 = vrot.slane %v5132, 1
    %v5135 = vor.u32 %v5130, %v5134
    %v5137 = vshll.u32 %v5075, 16
    %v5139 = vrot.slane %v5137, 1
    %v5140 = vsel %vm447, %v5135, %v5139
    %v5142 = vshrl.u32 %v4948, 16
    %v5144 = vshll.u32 %v4948, 16
    %v5146 = vrot.slane %v5144, 1
    %v5147 = vor.u32 %v5142, %v5146
    %v5149 = vshll.u32 %v5076, 16
    %v5151 = vrot.slane %v5149, 1
    %v5152 = vsel %vm447, %v5147, %v5151
    %v5154 = vshrl.u32 %v4949, 16
    %v5156 = vshll.u32 %v4949, 16
    %v5158 = vrot.slane %v5156, 1
    %v5159 = vor.u32 %v5154, %v5158
    %v5161 = vshll.u32 %v5077, 16
    %v5163 = vrot.slane %v5161, 1
    %v5164 = vsel %vm447, %v5159, %v5163
    %v5166 = vshrl.u32 %v4950, 16
    %v5168 = vshll.u32 %v4950, 16
    %v5170 = vrot.slane %v5168, 1
    %v5171 = vor.u32 %v5166, %v5170
    %v5173 = vshll.u32 %v5078, 16
    %v5175 = vrot.slane %v5173, 1
    %v5176 = vsel %vm447, %v5171, %v5175
    %v5178 = vshrl.u32 %v4951, 16
    %v5180 = vshll.u32 %v4951, 16
    %v5182 = vrot.slane %v5180, 1
    %v5183 = vor.u32 %v5178, %v5182
    %v5185 = vshll.u32 %v5079, 16
    %v5187 = vrot.slane %v5185, 1
    %v5188 = vsel %vm447, %v5183, %v5187
    %v5190 = vshrl.u32 %v4952, 16
    %v5192 = vshll.u32 %v4952, 16
    %v5194 = vrot.slane %v5192, 1
    %v5195 = vor.u32 %v5190, %v5194
    %v5197 = vshll.u32 %v5080, 16
    %v5199 = vrot.slane %v5197, 1
    %v5200 = vsel %vm447, %v5195, %v5199
    %v5202 = vshrl.u32 %v4953, 16
    %v5204 = vshll.u32 %v4953, 16
    %v5206 = vrot.slane %v5204, 1
    %v5207 = vor.u32 %v5202, %v5206
    %v5209 = vshll.u32 %v5081, 16
    %v5211 = vrot.slane %v5209, 1
    %v5212 = vsel %vm447, %v5207, %v5211
    %v5214 = vshrl.u32 %v4954, 16
    %v5216 = vshll.u32 %v4954, 16
    %v5218 = vrot.slane %v5216, 1
    %v5219 = vor.u32 %v5214, %v5218
    %v5221 = vshll.u32 %v5082, 16
    %v5223 = vrot.slane %v5221, 1
    %v5224 = vsel %vm447, %v5219, %v5223
    %v5226 = vshrl.u32 %v4955, 16
    %v5228 = vshll.u32 %v4955, 16
    %v5230 = vrot.slane %v5228, 1
    %v5231 = vor.u32 %v5226, %v5230
    %v5233 = vshll.u32 %v5083, 16
    %v5235 = vrot.slane %v5233, 1
    %v5236 = vsel %vm447, %v5231, %v5235
    %v5238 = vshrl.u32 %v4956, 16
    %v5240 = vshll.u32 %v4956, 16
    %v5242 = vrot.slane %v5240, 1
    %v5243 = vor.u32 %v5238, %v5242
    %v5245 = vshll.u32 %v5084, 16
    %v5247 = vrot.slane %v5245, 1
    %v5248 = vsel %vm447, %v5243, %v5247
    %v5250 = vshrl.u32 %v4957, 16
    %v5252 = vshll.u32 %v4957, 16
    %v5254 = vrot.slane %v5252, 1
    %v5255 = vor.u32 %v5250, %v5254
    %v5257 = vshll.u32 %v5085, 16
    %v5259 = vrot.slane %v5257, 1
    %v5260 = vsel %vm447, %v5255, %v5259
    %v5262 = vshrl.u32 %v4958, 16
    %v5264 = vshll.u32 %v4958, 16
    %v5266 = vrot.slane %v5264, 1
    %v5267 = vor.u32 %v5262, %v5266
    %v5269 = vshll.u32 %v5086, 16
    %v5271 = vrot.slane %v5269, 1
    %v5272 = vsel %vm447, %v5267, %v5271
    %v5274 = vshrl.u32 %v4959, 16
    %v5276 = vshll.u32 %v4959, 16
    %v5278 = vrot.slane %v5276, 1
    %v5279 = vor.u32 %v5274, %v5278
    %v5281 = vshll.u32 %v5087, 16
    %v5283 = vrot.slane %v5281, 1
    %v5284 = vsel %vm447, %v5279, %v5283
    %v5286 = vshrl.u32 %v4960, 16
    %v5288 = vshll.u32 %v4960, 16
    %v5290 = vrot.slane %v5288, 1
    %v5291 = vor.u32 %v5286, %v5290
    %v5293 = vshll.u32 %v5088, 16
    %v5295 = vrot.slane %v5293, 1
    %v5296 = vsel %vm447, %v5291, %v5295
    %v5298 = vshrl.u32 %v4961, 16
    %v5300 = vshll.u32 %v4961, 16
    %v5302 = vrot.slane %v5300, 1
    %v5303 = vor.u32 %v5298, %v5302
    %v5305 = vshll.u32 %v5089, 16
    %v5307 = vrot.slane %v5305, 1
    %v5308 = vsel %vm447, %v5303, %v5307
    %v5310 = vshrl.u32 %v4962, 16
    %v5312 = vshll.u32 %v4962, 16
    %v5314 = vrot.slane %v5312, 1
    %v5315 = vor.u32 %v5310, %v5314
    %v5317 = vshll.u32 %v5090, 16
    %v5319 = vrot.slane %v5317, 1
    %v5320 = vsel %vm447, %v5315, %v5319
    %v5322 = vshrl.u32 %v4963, 16
    %v5324 = vshll.u32 %v4963, 16
    %v5326 = vrot.slane %v5324, 1
    %v5327 = vor.u32 %v5322, %v5326
    %v5329 = vshll.u32 %v5091, 16
    %v5331 = vrot.slane %v5329, 1
    %v5332 = vsel %vm447, %v5327, %v5331
    %v5334 = vshrl.u32 %v4964, 16
    %v5336 = vshll.u32 %v4964, 16
    %v5338 = vrot.slane %v5336, 1
    %v5339 = vor.u32 %v5334, %v5338
    %v5341 = vshll.u32 %v5092, 16
    %v5343 = vrot.slane %v5341, 1
    %v5344 = vsel %vm447, %v5339, %v5343
    %v5346 = vshrl.u32 %v4965, 16
    %v5348 = vshll.u32 %v4965, 16
    %v5350 = vrot.slane %v5348, 1
    %v5351 = vor.u32 %v5346, %v5350
    %v5353 = vshll.u32 %v5093, 16
    %v5355 = vrot.slane %v5353, 1
    %v5356 = vsel %vm447, %v5351, %v5355
    %v5358 = vshrl.u32 %v4966, 16
    %v5360 = vshll.u32 %v4966, 16
    %v5362 = vrot.slane %v5360, 1
    %v5363 = vor.u32 %v5358, %v5362
    %v5365 = vshll.u32 %v5094, 16
    %v5367 = vrot.slane %v5365, 1
    %v5368 = vsel %vm447, %v5363, %v5367
    %v5370 = vshrl.u32 %v4967, 16
    %v5372 = vshll.u32 %v4967, 16
    %v5374 = vrot.slane %v5372, 1
    %v5375 = vor.u32 %v5370, %v5374
    %v5377 = vshll.u32 %v5095, 16
    %v5379 = vrot.slane %v5377, 1
    %v5380 = vsel %vm447, %v5375, %v5379
    %v5382 = vshrl.u32 %v4968, 16
    %v5384 = vshll.u32 %v4968, 16
    %v5386 = vrot.slane %v5384, 1
    %v5387 = vor.u32 %v5382, %v5386
    %v5389 = vshll.u32 %v5096, 16
    %v5391 = vrot.slane %v5389, 1
    %v5392 = vsel %vm447, %v5387, %v5391
    %v5394 = vshrl.u32 %v4969, 16
    %v5396 = vshll.u32 %v4969, 16
    %v5398 = vrot.slane %v5396, 1
    %v5399 = vor.u32 %v5394, %v5398
    %v5401 = vshll.u32 %v5097, 16
    %v5403 = vrot.slane %v5401, 1
    %v5404 = vsel %vm447, %v5399, %v5403
    %v5406 = vshrl.u32 %v4970, 16
    %v5408 = vshll.u32 %v4970, 16
    %v5410 = vrot.slane %v5408, 1
    %v5411 = vor.u32 %v5406, %v5410
    %v5413 = vshll.u32 %v5098, 16
    %v5415 = vrot.slane %v5413, 1
    %v5416 = vsel %vm447, %v5411, %v5415
    %v5418 = vshrl.u32 %v4971, 16
    %v5420 = vshll.u32 %v4971, 16
    %v5422 = vrot.slane %v5420, 1
    %v5423 = vor.u32 %v5418, %v5422
    %v5425 = vshll.u32 %v5099, 16
    %v5427 = vrot.slane %v5425, 1
    %v5428 = vsel %vm447, %v5423, %v5427
    %v5430 = vshrl.u32 %v4972, 16
    %v5432 = vshll.u32 %v4972, 16
    %v5434 = vrot.slane %v5432, 1
    %v5435 = vor.u32 %v5430, %v5434
    %v5437 = vshll.u32 %v5100, 16
    %v5439 = vrot.slane %v5437, 1
    %v5440 = vsel %vm447, %v5435, %v5439
    %v5442 = vshrl.u32 %v4973, 16
    %v5444 = vshll.u32 %v4973, 16
    %v5446 = vrot.slane %v5444, 1
    %v5447 = vor.u32 %v5442, %v5446
    %v5449 = vshll.u32 %v5101, 16
    %v5451 = vrot.slane %v5449, 1
    %v5452 = vsel %vm447, %v5447, %v5451
    %v5454 = vshrl.u32 %v4974, 16
    %v5456 = vshll.u32 %v4974, 16
    %v5458 = vrot.slane %v5456, 1
    %v5459 = vor.u32 %v5454, %v5458
    %v5461 = vshll.u32 %v5102, 16
    %v5463 = vrot.slane %v5461, 1
    %v5464 = vsel %vm447, %v5459, %v5463
    %v5466 = vshrl.u32 %v4975, 16
    %v5468 = vshll.u32 %v4975, 16
    %v5470 = vrot.slane %v5468, 1
    %v5471 = vor.u32 %v5466, %v5470
    %v5473 = vshll.u32 %v5103, 16
    %v5475 = vrot.slane %v5473, 1
    %v5476 = vsel %vm447, %v5471, %v5475
    %v5478 = vshrl.u32 %v4976, 16
    %v5480 = vshll.u32 %v4976, 16
    %v5482 = vrot.slane %v5480, 1
    %v5483 = vor.u32 %v5478, %v5482
    %v5485 = vshll.u32 %v5104, 16
    %v5487 = vrot.slane %v5485, 1
    %v5488 = vsel %vm447, %v5483, %v5487
    %v5521 = vrot.slane %v4945, 1
    %v5522 = vrot.slane %v5073, 1
    %v5523 = vsel %vm864, %v5521, %v5522
    %v5524 = vrot.slane %v4946, 1
    %v5525 = vrot.slane %v5074, 1
    %v5526 = vsel %vm864, %v5524, %v5525
    %v5527 = vrot.slane %v4947, 1
    %v5528 = vrot.slane %v5075, 1
    %v5529 = vsel %vm864, %v5527, %v5528
    %v5530 = vrot.slane %v4948, 1
    %v5531 = vrot.slane %v5076, 1
    %v5532 = vsel %vm864, %v5530, %v5531
    %v5533 = vrot.slane %v4949, 1
    %v5534 = vrot.slane %v5077, 1
    %v5535 = vsel %vm864, %v5533, %v5534
    %v5536 = vrot.slane %v4950, 1
    %v5537 = vrot.slane %v5078, 1
    %v5538 = vsel %vm864, %v5536, %v5537
    %v5539 = vrot.slane %v4951, 1
    %v5540 = vrot.slane %v5079, 1
    %v5541 = vsel %vm864, %v5539, %v5540
    %v5542 = vrot.slane %v4952, 1
    %v5543 = vrot.slane %v5080, 1
    %v5544 = vsel %vm864, %v5542, %v5543
    %v5545 = vrot.slane %v4953, 1
    %v5546 = vrot.slane %v5081, 1
    %v5547 = vsel %vm864, %v5545, %v5546
    %v5548 = vrot.slane %v4954, 1
    %v5549 = vrot.slane %v5082, 1
    %v5550 = vsel %vm864, %v5548, %v5549
    %v5551 = vrot.slane %v4955, 1
    %v5552 = vrot.slane %v5083, 1
    %v5553 = vsel %vm864, %v5551, %v5552
    %v5554 = vrot.slane %v4956, 1
    %v5555 = vrot.slane %v5084, 1
    %v5556 = vsel %vm864, %v5554, %v5555
    %v5557 = vrot.slane %v4957, 1
    %v5558 = vrot.slane %v5085, 1
    %v5559 = vsel %vm864, %v5557, %v5558
    %v5560 = vrot.slane %v4958, 1
    %v5561 = vrot.slane %v5086, 1
    %v5562 = vsel %vm864, %v5560, %v5561
    %v5563 = vrot.slane %v4959, 1
    %v5564 = vrot.slane %v5087, 1
    %v5565 = vsel %vm864, %v5563, %v5564
    %v5566 = vrot.slane %v4960, 1
    %v5567 = vrot.slane %v5088, 1
    %v5568 = vsel %vm864, %v5566, %v5567
    %v5569 = vrot.slane %v4961, 1
    %v5570 = vrot.slane %v5089, 1
    %v5571 = vsel %vm864, %v5569, %v5570
    %v5572 = vrot.slane %v4962, 1
    %v5573 = vrot.slane %v5090, 1
    %v5574 = vsel %vm864, %v5572, %v5573
    %v5575 = vrot.slane %v4963, 1
    %v5576 = vrot.slane %v5091, 1
    %v5577 = vsel %vm864, %v5575, %v5576
    %v5578 = vrot.slane %v4964, 1
    %v5579 = vrot.slane %v5092, 1
    %v5580 = vsel %vm864, %v5578, %v5579
    %v5581 = vrot.slane %v4965, 1
    %v5582 = vrot.slane %v5093, 1
    %v5583 = vsel %vm864, %v5581, %v5582
    %v5584 = vrot.slane %v4966, 1
    %v5585 = vrot.slane %v5094, 1
    %v5586 = vsel %vm864, %v5584, %v5585
    %v5587 = vrot.slane %v4967, 1
    %v5588 = vrot.slane %v5095, 1
    %v5589 = vsel %vm864, %v5587, %v5588
    %v5590 = vrot.slane %v4968, 1
    %v5591 = vrot.slane %v5096, 1
    %v5592 = vsel %vm864, %v5590, %v5591
    %v5593 = vrot.slane %v4969, 1
    %v5594 = vrot.slane %v5097, 1
    %v5595 = vsel %vm864, %v5593, %v5594
    %v5596 = vrot.slane %v4970, 1
    %v5597 = vrot.slane %v5098, 1
    %v5598 = vsel %vm864, %v5596, %v5597
    %v5599 = vrot.slane %v4971, 1
    %v5600 = vrot.slane %v5099, 1
    %v5601 = vsel %vm864, %v5599, %v5600
    %v5602 = vrot.slane %v4972, 1
    %v5603 = vrot.slane %v5100, 1
    %v5604 = vsel %vm864, %v5602, %v5603
    %v5605 = vrot.slane %v4973, 1
    %v5606 = vrot.slane %v5101, 1
    %v5607 = vsel %vm864, %v5605, %v5606
    %v5608 = vrot.slane %v4974, 1
    %v5609 = vrot.slane %v5102, 1
    %v5610 = vsel %vm864, %v5608, %v5609
    %v5611 = vrot.slane %v4975, 1
    %v5612 = vrot.slane %v5103, 1
    %v5613 = vsel %vm864, %v5611, %v5612
    %v5614 = vrot.slane %v4976, 1
    %v5615 = vrot.slane %v5104, 1
    %v5616 = vsel %vm864, %v5614, %v5615
    %v5653 = vunpack.c.l.b16 %v4757
    %v5654 = vunpack.c.l.b16 %v4758
    %v5655 = vunpack.c.l.b16 %v4811
    %v5656 = vunpack.c.l.b16 %v4812
    %v5657 = vpack.c.b16 %v5654, %v5653
    %v5658 = vpack.c.b16 %v5656, %v5655
    %v5663 = vunpack.c.l.b16 %v4759
    %v5664 = vunpack.c.l.b16 %v4813
    %v5665 = vpack.c.b16 %v5663, %v5663
    %v5666 = vpack.c.b16 %v5664, %v5664
    %v5668 = vshrl.u32 %v5657, 16
    %v5670 = vshll.u32 %v5657, 16
    %v5672 = vrot.slane %v5670, 1
    %v5673 = vor.u32 %v5668, %v5672
    %v5675 = vshll.u32 %v5665, 16
    %v5677 = vrot.slane %v5675, 1
    %v5678 = vsel %vm447, %v5673, %v5677
    %v5680 = vshrl.u32 %v5658, 16
    %v5682 = vshll.u32 %v5658, 16
    %v5684 = vrot.slane %v5682, 1
    %v5685 = vor.u32 %v5680, %v5684
    %v5687 = vshll.u32 %v5666, 16
    %v5689 = vrot.slane %v5687, 1
    %v5690 = vsel %vm447, %v5685, %v5689
    %v5693 = vrot.slane %v5657, 1
    %v5694 = vrot.slane %v5665, 1
    %v5695 = vsel %vm864, %v5693, %v5694
    %v5696 = vrot.slane %v5658, 1
    %v5697 = vrot.slane %v5666, 1
    %v5698 = vsel %vm864, %v5696, %v5697
    %v5705 = vunpack.c.l.b16 %v4760
    %v5706 = vunpack.c.l.b16 %v4761
    %v5707 = vunpack.c.l.b16 %v4814
    %v5708 = vunpack.c.l.b16 %v4815
    %v5709 = vpack.c.b16 %v5706, %v5705
    %v5710 = vpack.c.b16 %v5708, %v5707
    %v5715 = vunpack.c.l.b16 %v4762
    %v5716 = vunpack.c.l.b16 %v4816
    %v5717 = vpack.c.b16 %v5715, %v5715
    %v5718 = vpack.c.b16 %v5716, %v5716
    %v5720 = vshrl.u32 %v5709, 16
    %v5722 = vshll.u32 %v5709, 16
    %v5724 = vrot.slane %v5722, 1
    %v5725 = vor.u32 %v5720, %v5724
    %v5727 = vshll.u32 %v5717, 16
    %v5729 = vrot.slane %v5727, 1
    %v5730 = vsel %vm447, %v5725, %v5729
    %v5732 = vshrl.u32 %v5710, 16
    %v5734 = vshll.u32 %v5710, 16
    %v5736 = vrot.slane %v5734, 1
    %v5737 = vor.u32 %v5732, %v5736
    %v5739 = vshll.u32 %v5718, 16
    %v5741 = vrot.slane %v5739, 1
    %v5742 = vsel %vm447, %v5737, %v5741
    %v5745 = vrot.slane %v5709, 1
    %v5746 = vrot.slane %v5717, 1
    %v5747 = vsel %vm864, %v5745, %v5746
    %v5748 = vrot.slane %v5710, 1
    %v5749 = vrot.slane %v5718, 1
    %v5750 = vsel %vm864, %v5748, %v5749
    %v5753 = vld [vmem:[#allocation3] sm:$0xf]
    %v5754 = vld [vmem:[#allocation3 + $0x4] sm:$0xf]
    %v5755 = vld [vmem:[#allocation3 + $0x8] sm:$0xf]
    %v5756 = vld [vmem:[#allocation3 + $0xc] sm:$0xf]
    %v5757 = vld [vmem:[#allocation3 + $0x10] sm:$0xf]
    %v5758 = vld [vmem:[#allocation3 + $0x14] sm:$0xf]
    %v5759 = vld [vmem:[#allocation3 + $0x18] sm:$0xf]
    %v5760 = vld [vmem:[#allocation3 + $0x1c] sm:$0xf]
    %v5761 = vld [vmem:[#allocation3 + $0x20] sm:$0xf]
    %v5762 = vld [vmem:[#allocation3 + $0x24] sm:$0xf]
    %v5763 = vld [vmem:[#allocation3 + $0x28] sm:$0xf]
    %v5764 = vld [vmem:[#allocation3 + $0x2c] sm:$0xf]
    %v5765 = vld [vmem:[#allocation3 + $0x30] sm:$0xf]
    %v5766 = vld [vmem:[#allocation3 + $0x34] sm:$0xf]
    %v5767 = vld [vmem:[#allocation3 + $0x38] sm:$0xf]
    %v5768 = vld [vmem:[#allocation3 + $0x3c] sm:$0xf]
    %v5769 = vld [vmem:[#allocation3 + $0x40] sm:$0xf]
    %v5770 = vld [vmem:[#allocation3 + $0x44] sm:$0xf]
    %v5771 = vld [vmem:[#allocation3 + $0x48] sm:$0xf]
    %v5772 = vld [vmem:[#allocation3 + $0x4c] sm:$0xf]
    %v5773 = vld [vmem:[#allocation3 + $0x50] sm:$0xf]
    %v5774 = vld [vmem:[#allocation3 + $0x54] sm:$0xf]
    %v5775 = vld [vmem:[#allocation3 + $0x58] sm:$0xf]
    %v5776 = vld [vmem:[#allocation3 + $0x5c] sm:$0xf]
    %v5777 = vld [vmem:[#allocation3 + $0x60] sm:$0xf]
    %v5778 = vld [vmem:[#allocation3 + $0x64] sm:$0xf]
    %v5779 = vld [vmem:[#allocation3 + $0x68] sm:$0xf]
    %v5780 = vld [vmem:[#allocation3 + $0x6c] sm:$0xf]
    %v5781 = vld [vmem:[#allocation3 + $0x70] sm:$0xf]
    %v5782 = vld [vmem:[#allocation3 + $0x74] sm:$0xf]
    %v5783 = vld [vmem:[#allocation3 + $0x78] sm:$0xf]
    %v5784 = vld [vmem:[#allocation3 + $0x7c] sm:$0xf]
    %v5785 = vld [vmem:[#allocation3 + $0x80] sm:$0xf]
    %v5786 = vld [vmem:[#allocation3 + $0x84] sm:$0xf]
    %v5787 = vld [vmem:[#allocation3 + $0x88] sm:$0xf]
    %v5788 = vld [vmem:[#allocation3 + $0x8c] sm:$0xf]
    %v5789 = vld [vmem:[#allocation3 + $0x90] sm:$0xf]
    %v5790 = vld [vmem:[#allocation3 + $0x94] sm:$0xf]
    %v5791 = vld [vmem:[#allocation3 + $0x98] sm:$0xf]
    %v5792 = vld [vmem:[#allocation3 + $0x9c] sm:$0xf]
    %v5793 = vld [vmem:[#allocation3 + $0xa0] sm:$0xf]
    %v5794 = vld [vmem:[#allocation3 + $0xa4] sm:$0xf]
    %v5795 = vld [vmem:[#allocation3 + $0xa8] sm:$0xf]
    %v5796 = vld [vmem:[#allocation3 + $0xac] sm:$0xf]
    %v5797 = vld [vmem:[#allocation3 + $0xb0] sm:$0xf]
    %v5798 = vld [vmem:[#allocation3 + $0xb4] sm:$0xf]
    %v5799 = vld [vmem:[#allocation3 + $0xb8] sm:$0xf]
    %v5800 = vld [vmem:[#allocation3 + $0xbc] sm:$0xf]
    %v5801 = vld [vmem:[#allocation3 + $0xc0] sm:$0xf]
    %v5802 = vld [vmem:[#allocation3 + $0xc4] sm:$0xf]
    %v5803 = vld [vmem:[#allocation3 + $0xc8] sm:$0xf]
    %v5804 = vld [vmem:[#allocation3 + $0xcc] sm:$0xf]
    %v5805 = vld [vmem:[#allocation3 + $0xd0] sm:$0xf]
    %v5806 = vld [vmem:[#allocation3 + $0xd4] sm:$0xf]
    %v5807 = vld [vmem:[#allocation3 + $0xd8] sm:$0xf]
    %v5808 = vld [vmem:[#allocation3 + $0xdc] sm:$0xf]
    %v5809 = vld [vmem:[#allocation3 + $0xe0] sm:$0xf]
    %v5810 = vld [vmem:[#allocation3 + $0xe4] sm:$0xf]
    %v5811 = vld [vmem:[#allocation3 + $0xe8] sm:$0xf]
    %v5812 = vld [vmem:[#allocation3 + $0xec] sm:$0xf]
    %v5813 = vld [vmem:[#allocation3 + $0xf0] sm:$0xf]
    %v5814 = vld [vmem:[#allocation3 + $0xf4] sm:$0xf]
    %v5815 = vld [vmem:[#allocation3 + $0xf8] sm:$0xf]
    %v5816 = vld [vmem:[#allocation3 + $0xfc] sm:$0xf]
    %v5817 = vld [vmem:[#allocation3 + $0x100] sm:$0xf]
    %v5818 = vld [vmem:[#allocation3 + $0x104] sm:$0xf]
    %v5819 = vld [vmem:[#allocation3 + $0x108] sm:$0xf]
    %v5820 = vld [vmem:[#allocation3 + $0x10c] sm:$0xf]
    %v5821 = vld [vmem:[#allocation3 + $0x110] sm:$0xf]
    %v5822 = vld [vmem:[#allocation3 + $0x114] sm:$0xf]
    %v5823 = vld [vmem:[#allocation3 + $0x118] sm:$0xf]
    %v5824 = vld [vmem:[#allocation3 + $0x11c] sm:$0xf]
    %v5825 = vld [vmem:[#allocation3 + $0x120] sm:$0xf]
    %v5826 = vld [vmem:[#allocation3 + $0x124] sm:$0xf]
    %v5827 = vld [vmem:[#allocation3 + $0x128] sm:$0xf]
    %v5828 = vld [vmem:[#allocation3 + $0x12c] sm:$0xf]
    %v5829 = vld [vmem:[#allocation3 + $0x130] sm:$0xf]
    %v5830 = vld [vmem:[#allocation3 + $0x134] sm:$0xf]
    %v5831 = vld [vmem:[#allocation3 + $0x138] sm:$0xf]
    %v5832 = vld [vmem:[#allocation3 + $0x13c] sm:$0xf]
    %v5833 = vld [vmem:[#allocation3 + $0x140] sm:$0xf]
    %v5834 = vld [vmem:[#allocation3 + $0x144] sm:$0xf]
    %v5835 = vld [vmem:[#allocation3 + $0x148] sm:$0xf]
    %v5836 = vld [vmem:[#allocation3 + $0x14c] sm:$0xf]
    %v5837 = vld [vmem:[#allocation3 + $0x150] sm:$0xf]
    %v5838 = vld [vmem:[#allocation3 + $0x154] sm:$0xf]
    %v5839 = vld [vmem:[#allocation3 + $0x158] sm:$0xf]
    %v5840 = vld [vmem:[#allocation3 + $0x15c] sm:$0xf]
    %v5841 = vld [vmem:[#allocation3 + $0x160] sm:$0xf]
    %v5842 = vld [vmem:[#allocation3 + $0x164] sm:$0xf]
    %v5843 = vld [vmem:[#allocation3 + $0x168] sm:$0xf]
    %v5844 = vld [vmem:[#allocation3 + $0x16c] sm:$0xf]
    %v5845 = vld [vmem:[#allocation3 + $0x170] sm:$0xf]
    %v5846 = vld [vmem:[#allocation3 + $0x174] sm:$0xf]
    %v5847 = vld [vmem:[#allocation3 + $0x178] sm:$0xf]
    %v5848 = vld [vmem:[#allocation3 + $0x17c] sm:$0xf]
    %v5849 = vld [vmem:[#allocation3 + $0x180] sm:$0xf]
    %v5850 = vld [vmem:[#allocation3 + $0x184] sm:$0xf]
    %v5851 = vld [vmem:[#allocation3 + $0x188] sm:$0xf]
    %v5852 = vld [vmem:[#allocation3 + $0x18c] sm:$0xf]
    %v5853 = vld [vmem:[#allocation3 + $0x190] sm:$0xf]
    %v5854 = vld [vmem:[#allocation3 + $0x194] sm:$0xf]
    %v5855 = vld [vmem:[#allocation3 + $0x198] sm:$0xf]
    %v5856 = vld [vmem:[#allocation3 + $0x19c] sm:$0xf]
    %v5857 = vld [vmem:[#allocation3 + $0x1a0] sm:$0xf]
    %v5858 = vld [vmem:[#allocation3 + $0x1a4] sm:$0xf]
    %v5859 = vld [vmem:[#allocation3 + $0x1a8] sm:$0xf]
    %v5860 = vld [vmem:[#allocation3 + $0x1ac] sm:$0xf]
    %v5861 = vld [vmem:[#allocation3 + $0x1b0] sm:$0xf]
    %v5862 = vld [vmem:[#allocation3 + $0x1b4] sm:$0xf]
    %v5863 = vld [vmem:[#allocation3 + $0x1b8] sm:$0xf]
    %v5864 = vld [vmem:[#allocation3 + $0x1bc] sm:$0xf]
    %v5865 = vld [vmem:[#allocation3 + $0x1c0] sm:$0xf]
    %v5866 = vld [vmem:[#allocation3 + $0x1c4] sm:$0xf]
    %v5867 = vld [vmem:[#allocation3 + $0x1c8] sm:$0xf]
    %v5868 = vld [vmem:[#allocation3 + $0x1cc] sm:$0xf]
    %v5869 = vld [vmem:[#allocation3 + $0x1d0] sm:$0xf]
    %v5870 = vld [vmem:[#allocation3 + $0x1d4] sm:$0xf]
    %v5871 = vld [vmem:[#allocation3 + $0x1d8] sm:$0xf]
    %v5872 = vld [vmem:[#allocation3 + $0x1dc] sm:$0xf]
    %v5873 = vld [vmem:[#allocation3 + $0x1e0] sm:$0xf]
    %v5874 = vld [vmem:[#allocation3 + $0x1e4] sm:$0xf]
    %v5875 = vld [vmem:[#allocation3 + $0x1e8] sm:$0xf]
    %v5876 = vld [vmem:[#allocation3 + $0x1ec] sm:$0xf]
    %v5877 = vld [vmem:[#allocation3 + $0x1f0] sm:$0xf]
    %v5878 = vld [vmem:[#allocation3 + $0x1f4] sm:$0xf]
    %v5879 = vld [vmem:[#allocation3 + $0x1f8] sm:$0xf]
    %v5880 = vld [vmem:[#allocation3 + $0x1fc] sm:$0xf]
    %v5881 = vld [vmem:[#allocation3 + $0x200] sm:$0xf]
    %v5882 = vld [vmem:[#allocation3 + $0x204] sm:$0xf]
    %v5883 = vld [vmem:[#allocation3 + $0x208] sm:$0xf]
    %v5884 = vld [vmem:[#allocation3 + $0x20c] sm:$0xf]
    %v5885 = vld [vmem:[#allocation3 + $0x210] sm:$0xf]
    %v5886 = vld [vmem:[#allocation3 + $0x214] sm:$0xf]
    %v5887 = vld [vmem:[#allocation3 + $0x218] sm:$0xf]
    %v5888 = vld [vmem:[#allocation3 + $0x21c] sm:$0xf]
    %v5889 = vld [vmem:[#allocation3 + $0x220] sm:$0xf]
    %v5890 = vld [vmem:[#allocation3 + $0x224] sm:$0xf]
    %v5891 = vld [vmem:[#allocation3 + $0x228] sm:$0xf]
    %v5892 = vld [vmem:[#allocation3 + $0x22c] sm:$0xf]
    %v5893 = vld [vmem:[#allocation3 + $0x230] sm:$0xf]
    %v5894 = vld [vmem:[#allocation3 + $0x234] sm:$0xf]
    %v5895 = vld [vmem:[#allocation3 + $0x238] sm:$0xf]
    %v5896 = vld [vmem:[#allocation3 + $0x23c] sm:$0xf]
    %v6041 = vunpack.c.l.b16 %v5753
    %v6042 = vunpack.c.l.b16 %v5754
    %v6043 = vunpack.c.l.b16 %v5755
    %v6044 = vunpack.c.l.b16 %v5756
    %v6045 = vunpack.c.l.b16 %v5757
    %v6046 = vunpack.c.l.b16 %v5758
    %v6047 = vunpack.c.l.b16 %v5759
    %v6048 = vunpack.c.l.b16 %v5760
    %v6049 = vunpack.c.l.b16 %v5761
    %v6050 = vunpack.c.l.b16 %v5762
    %v6051 = vunpack.c.l.b16 %v5763
    %v6052 = vunpack.c.l.b16 %v5764
    %v6053 = vunpack.c.l.b16 %v5765
    %v6054 = vunpack.c.l.b16 %v5766
    %v6055 = vunpack.c.l.b16 %v5767
    %v6056 = vunpack.c.l.b16 %v5768
    %v6057 = vunpack.c.l.b16 %v5769
    %v6058 = vunpack.c.l.b16 %v5770
    %v6059 = vunpack.c.l.b16 %v5771
    %v6060 = vunpack.c.l.b16 %v5772
    %v6061 = vunpack.c.l.b16 %v5773
    %v6062 = vunpack.c.l.b16 %v5774
    %v6063 = vunpack.c.l.b16 %v5775
    %v6064 = vunpack.c.l.b16 %v5776
    %v6065 = vunpack.c.l.b16 %v5777
    %v6066 = vunpack.c.l.b16 %v5778
    %v6067 = vunpack.c.l.b16 %v5779
    %v6068 = vunpack.c.l.b16 %v5780
    %v6069 = vunpack.c.l.b16 %v5781
    %v6070 = vunpack.c.l.b16 %v5782
    %v6071 = vunpack.c.l.b16 %v5783
    %v6072 = vunpack.c.l.b16 %v5784
    %v6073 = vunpack.c.l.b16 %v5785
    %v6074 = vunpack.c.l.b16 %v5786
    %v6075 = vunpack.c.l.b16 %v5787
    %v6076 = vunpack.c.l.b16 %v5788
    %v6077 = vunpack.c.l.b16 %v5789
    %v6078 = vunpack.c.l.b16 %v5790
    %v6079 = vunpack.c.l.b16 %v5791
    %v6080 = vunpack.c.l.b16 %v5792
    %v6081 = vunpack.c.l.b16 %v5793
    %v6082 = vunpack.c.l.b16 %v5794
    %v6083 = vunpack.c.l.b16 %v5795
    %v6084 = vunpack.c.l.b16 %v5796
    %v6085 = vunpack.c.l.b16 %v5797
    %v6086 = vunpack.c.l.b16 %v5798
    %v6087 = vunpack.c.l.b16 %v5799
    %v6088 = vunpack.c.l.b16 %v5800
    %v6089 = vunpack.c.l.b16 %v5801
    %v6090 = vunpack.c.l.b16 %v5802
    %v6091 = vunpack.c.l.b16 %v5803
    %v6092 = vunpack.c.l.b16 %v5804
    %v6093 = vunpack.c.l.b16 %v5805
    %v6094 = vunpack.c.l.b16 %v5806
    %v6095 = vunpack.c.l.b16 %v5807
    %v6096 = vunpack.c.l.b16 %v5808
    %v6097 = vunpack.c.l.b16 %v5809
    %v6098 = vunpack.c.l.b16 %v5810
    %v6099 = vunpack.c.l.b16 %v5811
    %v6100 = vunpack.c.l.b16 %v5812
    %v6101 = vunpack.c.l.b16 %v5813
    %v6102 = vunpack.c.l.b16 %v5814
    %v6103 = vunpack.c.l.b16 %v5815
    %v6104 = vunpack.c.l.b16 %v5816
    %v6105 = vunpack.c.l.b16 %v5817
    %v6106 = vunpack.c.l.b16 %v5818
    %v6107 = vunpack.c.l.b16 %v5819
    %v6108 = vunpack.c.l.b16 %v5820
    %v6109 = vunpack.c.l.b16 %v5821
    %v6110 = vunpack.c.l.b16 %v5822
    %v6111 = vunpack.c.l.b16 %v5823
    %v6112 = vunpack.c.l.b16 %v5824
    %v6113 = vunpack.c.l.b16 %v5825
    %v6114 = vunpack.c.l.b16 %v5826
    %v6115 = vunpack.c.l.b16 %v5827
    %v6116 = vunpack.c.l.b16 %v5828
    %v6117 = vunpack.c.l.b16 %v5829
    %v6118 = vunpack.c.l.b16 %v5830
    %v6119 = vunpack.c.l.b16 %v5831
    %v6120 = vunpack.c.l.b16 %v5832
    %v6121 = vunpack.c.l.b16 %v5833
    %v6122 = vunpack.c.l.b16 %v5834
    %v6123 = vunpack.c.l.b16 %v5835
    %v6124 = vunpack.c.l.b16 %v5836
    %v6125 = vunpack.c.l.b16 %v5837
    %v6126 = vunpack.c.l.b16 %v5838
    %v6127 = vunpack.c.l.b16 %v5839
    %v6128 = vunpack.c.l.b16 %v5840
    %v6129 = vunpack.c.l.b16 %v5841
    %v6130 = vunpack.c.l.b16 %v5842
    %v6131 = vunpack.c.l.b16 %v5843
    %v6132 = vunpack.c.l.b16 %v5844
    %v6133 = vunpack.c.l.b16 %v5845
    %v6134 = vunpack.c.l.b16 %v5846
    %v6135 = vunpack.c.l.b16 %v5847
    %v6136 = vunpack.c.l.b16 %v5848
    %v6137 = vunpack.c.l.b16 %v5849
    %v6138 = vunpack.c.l.b16 %v5850
    %v6139 = vunpack.c.l.b16 %v5851
    %v6140 = vunpack.c.l.b16 %v5852
    %v6141 = vunpack.c.l.b16 %v5853
    %v6142 = vunpack.c.l.b16 %v5854
    %v6143 = vunpack.c.l.b16 %v5855
    %v6144 = vunpack.c.l.b16 %v5856
    %v6145 = vunpack.c.l.b16 %v5857
    %v6146 = vunpack.c.l.b16 %v5858
    %v6147 = vunpack.c.l.b16 %v5859
    %v6148 = vunpack.c.l.b16 %v5860
    %v6149 = vunpack.c.l.b16 %v5861
    %v6150 = vunpack.c.l.b16 %v5862
    %v6151 = vunpack.c.l.b16 %v5863
    %v6152 = vunpack.c.l.b16 %v5864
    %v6153 = vunpack.c.l.b16 %v5865
    %v6154 = vunpack.c.l.b16 %v5866
    %v6155 = vunpack.c.l.b16 %v5867
    %v6156 = vunpack.c.l.b16 %v5868
    %v6157 = vunpack.c.l.b16 %v5869
    %v6158 = vunpack.c.l.b16 %v5870
    %v6159 = vunpack.c.l.b16 %v5871
    %v6160 = vunpack.c.l.b16 %v5872
    %v6161 = vunpack.c.l.b16 %v5873
    %v6162 = vunpack.c.l.b16 %v5874
    %v6163 = vunpack.c.l.b16 %v5875
    %v6164 = vunpack.c.l.b16 %v5876
    %v6165 = vunpack.c.l.b16 %v5877
    %v6166 = vunpack.c.l.b16 %v5878
    %v6167 = vunpack.c.l.b16 %v5879
    %v6168 = vunpack.c.l.b16 %v5880
    %v6169 = vunpack.c.l.b16 %v5881
    %v6170 = vunpack.c.l.b16 %v5882
    %v6171 = vunpack.c.l.b16 %v5883
    %v6172 = vunpack.c.l.b16 %v5884
    %v6173 = vunpack.c.l.b16 %v5885
    %v6174 = vunpack.c.l.b16 %v5886
    %v6175 = vunpack.c.l.b16 %v5887
    %v6176 = vunpack.c.l.b16 %v5888
    %v6177 = vunpack.c.l.b16 %v5889
    %v6178 = vunpack.c.l.b16 %v5890
    %v6179 = vunpack.c.l.b16 %v5891
    %v6180 = vunpack.c.l.b16 %v5892
    %v6181 = vunpack.c.l.b16 %v5893
    %v6182 = vunpack.c.l.b16 %v5894
    %v6183 = vunpack.c.l.b16 %v5895
    %v6184 = vunpack.c.l.b16 %v5896
    %v6185 = vpack.c.b16 %v6042, %v6041
    %v6186 = vpack.c.b16 %v6044, %v6043
    %v6187 = vpack.c.b16 %v6046, %v6045
    %v6188 = vpack.c.b16 %v6048, %v6047
    %v6189 = vpack.c.b16 %v6050, %v6049
    %v6190 = vpack.c.b16 %v6052, %v6051
    %v6191 = vpack.c.b16 %v6054, %v6053
    %v6192 = vpack.c.b16 %v6056, %v6055
    %v6193 = vpack.c.b16 %v6058, %v6057
    %v6194 = vpack.c.b16 %v6060, %v6059
    %v6195 = vpack.c.b16 %v6062, %v6061
    %v6196 = vpack.c.b16 %v6064, %v6063
    %v6197 = vpack.c.b16 %v6066, %v6065
    %v6198 = vpack.c.b16 %v6068, %v6067
    %v6199 = vpack.c.b16 %v6070, %v6069
    %v6200 = vpack.c.b16 %v6072, %v6071
    %v6201 = vpack.c.b16 %v6074, %v6073
    %v6202 = vpack.c.b16 %v6076, %v6075
    %v6203 = vpack.c.b16 %v6078, %v6077
    %v6204 = vpack.c.b16 %v6080, %v6079
    %v6205 = vpack.c.b16 %v6082, %v6081
    %v6206 = vpack.c.b16 %v6084, %v6083
    %v6207 = vpack.c.b16 %v6086, %v6085
    %v6208 = vpack.c.b16 %v6088, %v6087
    %v6209 = vpack.c.b16 %v6090, %v6089
    %v6210 = vpack.c.b16 %v6092, %v6091
    %v6211 = vpack.c.b16 %v6094, %v6093
    %v6212 = vpack.c.b16 %v6096, %v6095
    %v6213 = vpack.c.b16 %v6098, %v6097
    %v6214 = vpack.c.b16 %v6100, %v6099
    %v6215 = vpack.c.b16 %v6102, %v6101
    %v6216 = vpack.c.b16 %v6104, %v6103
    %v6217 = vpack.c.b16 %v6106, %v6105
    %v6218 = vpack.c.b16 %v6108, %v6107
    %v6219 = vpack.c.b16 %v6110, %v6109
    %v6220 = vpack.c.b16 %v6112, %v6111
    %v6221 = vpack.c.b16 %v6114, %v6113
    %v6222 = vpack.c.b16 %v6116, %v6115
    %v6223 = vpack.c.b16 %v6118, %v6117
    %v6224 = vpack.c.b16 %v6120, %v6119
    %v6225 = vpack.c.b16 %v6122, %v6121
    %v6226 = vpack.c.b16 %v6124, %v6123
    %v6227 = vpack.c.b16 %v6126, %v6125
    %v6228 = vpack.c.b16 %v6128, %v6127
    %v6229 = vpack.c.b16 %v6130, %v6129
    %v6230 = vpack.c.b16 %v6132, %v6131
    %v6231 = vpack.c.b16 %v6134, %v6133
    %v6232 = vpack.c.b16 %v6136, %v6135
    %v6233 = vpack.c.b16 %v6138, %v6137
    %v6234 = vpack.c.b16 %v6140, %v6139
    %v6235 = vpack.c.b16 %v6142, %v6141
    %v6236 = vpack.c.b16 %v6144, %v6143
    %v6237 = vpack.c.b16 %v6146, %v6145
    %v6238 = vpack.c.b16 %v6148, %v6147
    %v6239 = vpack.c.b16 %v6150, %v6149
    %v6240 = vpack.c.b16 %v6152, %v6151
    %v6241 = vpack.c.b16 %v6154, %v6153
    %v6242 = vpack.c.b16 %v6156, %v6155
    %v6243 = vpack.c.b16 %v6158, %v6157
    %v6244 = vpack.c.b16 %v6160, %v6159
    %v6245 = vpack.c.b16 %v6162, %v6161
    %v6246 = vpack.c.b16 %v6164, %v6163
    %v6247 = vpack.c.b16 %v6166, %v6165
    %v6248 = vpack.c.b16 %v6168, %v6167
    %v6249 = vpack.c.b16 %v6170, %v6169
    %v6250 = vpack.c.b16 %v6172, %v6171
    %v6251 = vpack.c.b16 %v6174, %v6173
    %v6252 = vpack.c.b16 %v6176, %v6175
    %v6253 = vpack.c.b16 %v6178, %v6177
    %v6254 = vpack.c.b16 %v6180, %v6179
    %v6255 = vpack.c.b16 %v6182, %v6181
    %v6256 = vpack.c.b16 %v6184, %v6183
    %6329 = vmatprep.subr.bf16.mxu0 0
    %6330 = vmatpush1.bf16.msra.mxu0 %v6185
    %6331 = vmatprep.subr.bf16.mxu0 0
    %6332 = vmatpush1.bf16.msra.mxu0 %v6186
    %6333 = vmatprep.subr.bf16.mxu0 0
    %6334 = vmatpush1.bf16.msra.mxu0 %v6187
    %6335 = vmatprep.subr.bf16.mxu0 0
    %6336 = vmatpush1.bf16.msra.mxu0 %v6188
    %6337 = vmatprep.subr.bf16.mxu0 0
    %6338 = vmatpush1.bf16.msra.mxu0 %v6189
    %6339 = vmatprep.subr.bf16.mxu0 0
    %6340 = vmatpush1.bf16.msra.mxu0 %v6190
    %6341 = vmatprep.subr.bf16.mxu0 0
    %6342 = vmatpush1.bf16.msra.mxu0 %v6191
    %6343 = vmatprep.subr.bf16.mxu0 0
    %6344 = vmatpush1.bf16.msra.mxu0 %v6192
    %6345 = vmatprep.subr.bf16.mxu0 0
    %6346 = vmatpush1.bf16.msra.mxu0 %v6193
    %6347 = vmatprep.subr.bf16.mxu0 0
    %6348 = vmatpush1.bf16.msra.mxu0 %v6194
    %6349 = vmatprep.subr.bf16.mxu0 0
    %6350 = vmatpush1.bf16.msra.mxu0 %v6195
    %6351 = vmatprep.subr.bf16.mxu0 0
    %6352 = vmatpush1.bf16.msra.mxu0 %v6196
    %6353 = vmatprep.subr.bf16.mxu0 0
    %6354 = vmatpush1.bf16.msra.mxu0 %v6197
    %6355 = vmatprep.subr.bf16.mxu0 0
    %6356 = vmatpush1.bf16.msra.mxu0 %v6198
    %6357 = vmatprep.subr.bf16.mxu0 0
    %6358 = vmatpush1.bf16.msra.mxu0 %v6199
    %6359 = vmatprep.subr.bf16.mxu0 0
    %6360 = vmatpush1.bf16.msra.mxu0 %v6200
    %6361 = vmatprep.mubr.bf16.mxu0 %v5116
    %6362 = vmatmul.mubr.bf16.gmra.mrb[0].mxu0 %v4945
    %v6363 = vpop.f32.mrb[0].mxu0
    %v6364 = vadd.f32 0.0, %v6363
    %v6365 = vpop.f32.mrb[0].mxu0
    %v6366 = vpop.f32.mrb[0].mxu0
    %v6367 = vadd.f32 0.0, %v6366
    %v6368 = vpop.f32.mrb[0].mxu0
    %6369 = vmatprep.mubr.bf16.mxu0 %v5128
    %6370 = vmatmul.mubr.bf16.gmra.mrb[0].mxu0 %v4946
    %v6371 = vpop.f32.mrb[0].mxu0
    %v6372 = vadd.f32 0.0, %v6371
    %v6373 = vpop.f32.mrb[0].mxu0
    %v6374 = vpop.f32.mrb[0].mxu0
    %v6375 = vadd.f32 0.0, %v6374
    %v6376 = vpop.f32.mrb[0].mxu0
    %6377 = vmatprep.mubr.bf16.mxu0 %v5140
    %6378 = vmatmul.mubr.bf16.gmra.mrb[0].mxu0 %v4947
    %v6379 = vpop.f32.mrb[0].mxu0
    %v6380 = vadd.f32 0.0, %v6379
    %v6381 = vpop.f32.mrb[0].mxu0
    %v6382 = vpop.f32.mrb[0].mxu0
    %v6383 = vadd.f32 0.0, %v6382
    %v6384 = vpop.f32.mrb[0].mxu0
    %6385 = vmatprep.mubr.bf16.mxu0 %v5152
    %6386 = vmatmul.mubr.bf16.gmra.mrb[0].mxu0 %v4948
    %v6387 = vpop.f32.mrb[0].mxu0
    %v6388 = vadd.f32 0.0, %v6387
    %v6389 = vpop.f32.mrb[0].mxu0
    %v6390 = vpop.f32.mrb[0].mxu0
    %v6391 = vadd.f32 0.0, %v6390
    %v6392 = vpop.f32.mrb[0].mxu0
    %6393 = vmatprep.mubr.bf16.mxu0 %v5164
    %6394 = vmatmul.mubr.bf16.gmra.mrb[0].mxu0 %v4949
    %v6395 = vpop.f32.mrb[0].mxu0
    %v6396 = vadd.f32 0.0, %v6395
    %v6397 = vpop.f32.mrb[0].mxu0
    %v6398 = vpop.f32.mrb[0].mxu0
    %v6399 = vadd.f32 0.0, %v6398
    %v6400 = vpop.f32.mrb[0].mxu0
    %6401 = vmatprep.mubr.bf16.mxu0 %v5176
    %6402 = vmatmul.mubr.bf16.gmra.mrb[0].mxu0 %v4950
    %v6403 = vpop.f32.mrb[0].mxu0
    %v6404 = vadd.f32 0.0, %v6403
    %v6405 = vpop.f32.mrb[0].mxu0
    %v6406 = vpop.f32.mrb[0].mxu0
    %v6407 = vadd.f32 0.0, %v6406
    %v6408 = vpop.f32.mrb[0].mxu0
    %6409 = vmatprep.mubr.bf16.mxu0 %v5188
    %6410 = vmatmul.mubr.bf16.gmra.mrb[0].mxu0 %v4951
    %v6411 = vpop.f32.mrb[0].mxu0
    %v6412 = vadd.f32 0.0, %v6411
    %v6413 = vpop.f32.mrb[0].mxu0
    %v6414 = vpop.f32.mrb[0].mxu0
    %v6415 = vadd.f32 0.0, %v6414
    %v6416 = vpop.f32.mrb[0].mxu0
    %6417 = vmatprep.mubr.bf16.mxu0 %v5200
    %6418 = vmatmul.mubr.bf16.gmra.mrb[0].mxu0 %v4952
    %v6419 = vpop.f32.mrb[0].mxu0
    %v6420 = vadd.f32 0.0, %v6419
    %v6421 = vpop.f32.mrb[0].mxu0
    %v6422 = vpop.f32.mrb[0].mxu0
    %v6423 = vadd.f32 0.0, %v6422
    %v6424 = vpop.f32.mrb[0].mxu0
    %6425 = vmatprep.mubr.bf16.mxu0 %v5212
    %6426 = vmatmul.mubr.bf16.gmra.mrb[0].mxu0 %v4953
    %v6427 = vpop.f32.mrb[0].mxu0
    %v6428 = vadd.f32 0.0, %v6427
    %v6429 = vpop.f32.mrb[0].mxu0
    %v6430 = vpop.f32.mrb[0].mxu0
    %v6431 = vadd.f32 0.0, %v6430
    %v6432 = vpop.f32.mrb[0].mxu0
    %6433 = vmatprep.mubr.bf16.mxu0 %v5224
    %6434 = vmatmul.mubr.bf16.gmra.mrb[0].mxu0 %v4954
    %v6435 = vpop.f32.mrb[0].mxu0
    %v6436 = vadd.f32 0.0, %v6435
    %v6437 = vpop.f32.mrb[0].mxu0
    %v6438 = vpop.f32.mrb[0].mxu0
    %v6439 = vadd.f32 0.0, %v6438
    %v6440 = vpop.f32.mrb[0].mxu0
    %6441 = vmatprep.mubr.bf16.mxu0 %v5236
    %6442 = vmatmul.mubr.bf16.gmra.mrb[0].mxu0 %v4955
    %v6443 = vpop.f32.mrb[0].mxu0
    %v6444 = vadd.f32 0.0, %v6443
    %v6445 = vpop.f32.mrb[0].mxu0
    %v6446 = vpop.f32.mrb[0].mxu0
    %v6447 = vadd.f32 0.0, %v6446
    %v6448 = vpop.f32.mrb[0].mxu0
    %6449 = vmatprep.mubr.bf16.mxu0 %v5248
    %6450 = vmatmul.mubr.bf16.gmra.mrb[0].mxu0 %v4956
    %v6451 = vpop.f32.mrb[0].mxu0
    %v6452 = vadd.f32 0.0, %v6451
    %v6453 = vpop.f32.mrb[0].mxu0
    %v6454 = vpop.f32.mrb[0].mxu0
    %v6455 = vadd.f32 0.0, %v6454
    %v6456 = vpop.f32.mrb[0].mxu0
    %6457 = vmatprep.mubr.bf16.mxu0 %v5260
    %6458 = vmatmul.mubr.bf16.gmra.mrb[0].mxu0 %v4957
    %v6459 = vpop.f32.mrb[0].mxu0
    %v6460 = vadd.f32 0.0, %v6459
    %v6461 = vpop.f32.mrb[0].mxu0
    %v6462 = vpop.f32.mrb[0].mxu0
    %v6463 = vadd.f32 0.0, %v6462
    %v6464 = vpop.f32.mrb[0].mxu0
    %6465 = vmatprep.mubr.bf16.mxu0 %v5272
    %6466 = vmatmul.mubr.bf16.gmra.mrb[0].mxu0 %v4958
    %v6467 = vpop.f32.mrb[0].mxu0
    %v6468 = vadd.f32 0.0, %v6467
    %v6469 = vpop.f32.mrb[0].mxu0
    %v6470 = vpop.f32.mrb[0].mxu0
    %v6471 = vadd.f32 0.0, %v6470
    %v6472 = vpop.f32.mrb[0].mxu0
    %6473 = vmatprep.mubr.bf16.mxu0 %v5284
    %6474 = vmatmul.mubr.bf16.gmra.mrb[0].mxu0 %v4959
    %v6475 = vpop.f32.mrb[0].mxu0
    %v6476 = vadd.f32 0.0, %v6475
    %v6477 = vpop.f32.mrb[0].mxu0
    %v6478 = vpop.f32.mrb[0].mxu0
    %v6479 = vadd.f32 0.0, %v6478
    %v6480 = vpop.f32.mrb[0].mxu0
    %6481 = vmatprep.mubr.bf16.mxu0 %v5296
    %6482 = vmatmul.mubr.bf16.gmra.mrb[0].mxu0 %v4960
    %v6483 = vpop.f32.mrb[0].mxu0
    %v6484 = vadd.f32 0.0, %v6483
    %v6485 = vpop.f32.mrb[0].mxu0
    %v6486 = vpop.f32.mrb[0].mxu0
    %v6487 = vadd.f32 0.0, %v6486
    %v6488 = vpop.f32.mrb[0].mxu0
    %6489 = vmatprep.mubr.bf16.mxu0 %v5308
    %6490 = vmatmul.mubr.bf16.gmra.mrb[0].mxu0 %v4961
    %v6491 = vpop.f32.mrb[0].mxu0
    %v6492 = vadd.f32 0.0, %v6491
    %v6493 = vpop.f32.mrb[0].mxu0
    %v6494 = vpop.f32.mrb[0].mxu0
    %v6495 = vadd.f32 0.0, %v6494
    %v6496 = vpop.f32.mrb[0].mxu0
    %6497 = vmatprep.mubr.bf16.mxu0 %v5320
    %6498 = vmatmul.mubr.bf16.gmra.mrb[0].mxu0 %v4962
    %v6499 = vpop.f32.mrb[0].mxu0
    %v6500 = vadd.f32 0.0, %v6499
    %v6501 = vpop.f32.mrb[0].mxu0
    %v6502 = vpop.f32.mrb[0].mxu0
    %v6503 = vadd.f32 0.0, %v6502
    %v6504 = vpop.f32.mrb[0].mxu0
    %6505 = vmatprep.mubr.bf16.mxu0 %v5332
    %6506 = vmatmul.mubr.bf16.gmra.mrb[0].mxu0 %v4963
    %v6507 = vpop.f32.mrb[0].mxu0
    %v6508 = vadd.f32 0.0, %v6507
    %v6509 = vpop.f32.mrb[0].mxu0
    %v6510 = vpop.f32.mrb[0].mxu0
    %v6511 = vadd.f32 0.0, %v6510
    %v6512 = vpop.f32.mrb[0].mxu0
    %6513 = vmatprep.mubr.bf16.mxu0 %v5344
    %6514 = vmatmul.mubr.bf16.gmra.mrb[0].mxu0 %v4964
    %v6515 = vpop.f32.mrb[0].mxu0
    %v6516 = vadd.f32 0.0, %v6515
    %v6517 = vpop.f32.mrb[0].mxu0
    %v6518 = vpop.f32.mrb[0].mxu0
    %v6519 = vadd.f32 0.0, %v6518
    %v6520 = vpop.f32.mrb[0].mxu0
    %6521 = vmatprep.mubr.bf16.mxu0 %v5356
    %6522 = vmatmul.mubr.bf16.gmra.mrb[0].mxu0 %v4965
    %v6523 = vpop.f32.mrb[0].mxu0
    %v6524 = vadd.f32 0.0, %v6523
    %v6525 = vpop.f32.mrb[0].mxu0
    %v6526 = vpop.f32.mrb[0].mxu0
    %v6527 = vadd.f32 0.0, %v6526
    %v6528 = vpop.f32.mrb[0].mxu0
    %6529 = vmatprep.mubr.bf16.mxu0 %v5368
    %6530 = vmatmul.mubr.bf16.gmra.mrb[0].mxu0 %v4966
    %v6531 = vpop.f32.mrb[0].mxu0
    %v6532 = vadd.f32 0.0, %v6531
    %v6533 = vpop.f32.mrb[0].mxu0
    %v6534 = vpop.f32.mrb[0].mxu0
    %v6535 = vadd.f32 0.0, %v6534
    %v6536 = vpop.f32.mrb[0].mxu0
    %6537 = vmatprep.mubr.bf16.mxu0 %v5380
    %6538 = vmatmul.mubr.bf16.gmra.mrb[0].mxu0 %v4967
    %v6539 = vpop.f32.mrb[0].mxu0
    %v6540 = vadd.f32 0.0, %v6539
    %v6541 = vpop.f32.mrb[0].mxu0
    %v6542 = vpop.f32.mrb[0].mxu0
    %v6543 = vadd.f32 0.0, %v6542
    %v6544 = vpop.f32.mrb[0].mxu0
    %6545 = vmatprep.mubr.bf16.mxu0 %v5392
    %6546 = vmatmul.mubr.bf16.gmra.mrb[0].mxu0 %v4968
    %v6547 = vpop.f32.mrb[0].mxu0
    %v6548 = vadd.f32 0.0, %v6547
    %v6549 = vpop.f32.mrb[0].mxu0
    %v6550 = vpop.f32.mrb[0].mxu0
    %v6551 = vadd.f32 0.0, %v6550
    %v6552 = vpop.f32.mrb[0].mxu0
    %6553 = vmatprep.mubr.bf16.mxu0 %v5404
    %6554 = vmatmul.mubr.bf16.gmra.mrb[0].mxu0 %v4969
    %v6555 = vpop.f32.mrb[0].mxu0
    %v6556 = vadd.f32 0.0, %v6555
    %v6557 = vpop.f32.mrb[0].mxu0
    %v6558 = vpop.f32.mrb[0].mxu0
    %v6559 = vadd.f32 0.0, %v6558
    %v6560 = vpop.f32.mrb[0].mxu0
    %6561 = vmatprep.mubr.bf16.mxu0 %v5416
    %6562 = vmatmul.mubr.bf16.gmra.mrb[0].mxu0 %v4970
    %v6563 = vpop.f32.mrb[0].mxu0
    %v6564 = vadd.f32 0.0, %v6563
    %v6565 = vpop.f32.mrb[0].mxu0
    %v6566 = vpop.f32.mrb[0].mxu0
    %v6567 = vadd.f32 0.0, %v6566
    %v6568 = vpop.f32.mrb[0].mxu0
    %6569 = vmatprep.mubr.bf16.mxu0 %v5428
    %6570 = vmatmul.mubr.bf16.gmra.mrb[0].mxu0 %v4971
    %v6571 = vpop.f32.mrb[0].mxu0
    %v6572 = vadd.f32 0.0, %v6571
    %v6573 = vpop.f32.mrb[0].mxu0
    %v6574 = vpop.f32.mrb[0].mxu0
    %v6575 = vadd.f32 0.0, %v6574
    %v6576 = vpop.f32.mrb[0].mxu0
    %6577 = vmatprep.mubr.bf16.mxu0 %v5440
    %6578 = vmatmul.mubr.bf16.gmra.mrb[0].mxu0 %v4972
    %v6579 = vpop.f32.mrb[0].mxu0
    %v6580 = vadd.f32 0.0, %v6579
    %v6581 = vpop.f32.mrb[0].mxu0
    %v6582 = vpop.f32.mrb[0].mxu0
    %v6583 = vadd.f32 0.0, %v6582
    %v6584 = vpop.f32.mrb[0].mxu0
    %6585 = vmatprep.mubr.bf16.mxu0 %v5452
    %6586 = vmatmul.mubr.bf16.gmra.mrb[0].mxu0 %v4973
    %v6587 = vpop.f32.mrb[0].mxu0
    %v6588 = vadd.f32 0.0, %v6587
    %v6589 = vpop.f32.mrb[0].mxu0
    %v6590 = vpop.f32.mrb[0].mxu0
    %v6591 = vadd.f32 0.0, %v6590
    %v6592 = vpop.f32.mrb[0].mxu0
    %6593 = vmatprep.mubr.bf16.mxu0 %v5464
    %6594 = vmatmul.mubr.bf16.gmra.mrb[0].mxu0 %v4974
    %v6595 = vpop.f32.mrb[0].mxu0
    %v6596 = vadd.f32 0.0, %v6595
    %v6597 = vpop.f32.mrb[0].mxu0
    %v6598 = vpop.f32.mrb[0].mxu0
    %v6599 = vadd.f32 0.0, %v6598
    %v6600 = vpop.f32.mrb[0].mxu0
    %6601 = vmatprep.mubr.bf16.mxu0 %v5476
    %6602 = vmatmul.mubr.bf16.gmra.mrb[0].mxu0 %v4975
    %v6603 = vpop.f32.mrb[0].mxu0
    %v6604 = vadd.f32 0.0, %v6603
    %v6605 = vpop.f32.mrb[0].mxu0
    %v6606 = vpop.f32.mrb[0].mxu0
    %v6607 = vadd.f32 0.0, %v6606
    %v6608 = vpop.f32.mrb[0].mxu0
    %6609 = vmatprep.mubr.bf16.mxu0 %v5488
    %6610 = vmatmul.mubr.bf16.gmra.mrb[0].mxu0 %v4976
    %v6611 = vpop.f32.mrb[0].mxu0
    %v6612 = vadd.f32 0.0, %v6611
    %v6613 = vpop.f32.mrb[0].mxu0
    %v6614 = vpop.f32.mrb[0].mxu0
    %v6615 = vadd.f32 0.0, %v6614
    %v6616 = vpop.f32.mrb[0].mxu0
    %6617 = vdwg.mxu0
    %6618 = vmatprep.subr.bf16.mxu0 0
    %6619 = vmatpush1.bf16.msra.mxu0 %v6201
    %6620 = vmatprep.subr.bf16.mxu0 0
    %6621 = vmatpush1.bf16.msra.mxu0 %v6202
    %6622 = vmatprep.subr.bf16.mxu0 0
    %6623 = vmatpush1.bf16.msra.mxu0 %v6203
    %6624 = vmatprep.subr.bf16.mxu0 0
    %6625 = vmatpush1.bf16.msra.mxu0 %v6204
    %6626 = vmatprep.subr.bf16.mxu0 0
    %6627 = vmatpush1.bf16.msra.mxu0 %v6205
    %6628 = vmatprep.subr.bf16.mxu0 0
    %6629 = vmatpush1.bf16.msra.mxu0 %v6206
    %6630 = vmatprep.subr.bf16.mxu0 0
    %6631 = vmatpush1.bf16.msra.mxu0 %v6207
    %6632 = vmatprep.subr.bf16.mxu0 0
    %6633 = vmatpush1.bf16.msra.mxu0 %v6208
    %6634 = vmatprep.subr.bf16.mxu0 0
    %6635 = vmatpush1.bf16.msra.mxu0 %v6209
    %6636 = vmatprep.subr.bf16.mxu0 0
    %6637 = vmatpush1.bf16.msra.mxu0 %v6210
    %6638 = vmatprep.subr.bf16.mxu0 0
    %6639 = vmatpush1.bf16.msra.mxu0 %v6211
    %6640 = vmatprep.subr.bf16.mxu0 0
    %6641 = vmatpush1.bf16.msra.mxu0 %v6212
    %6642 = vmatprep.subr.bf16.mxu0 0
    %6643 = vmatpush1.bf16.msra.mxu0 %v6213
    %6644 = vmatprep.subr.bf16.mxu0 0
    %6645 = vmatpush1.bf16.msra.mxu0 %v6214
    %6646 = vmatprep.subr.bf16.mxu0 0
    %6647 = vmatpush1.bf16.msra.mxu0 %v6215
    %6648 = vmatprep.subr.bf16.mxu0 0
    %6649 = vmatpush1.bf16.msra.mxu0 %v6216
    %6650 = vmatprep.mubr.bf16.mxu0 %v4946
    %6651 = vmatmul.mubr.bf16.gmra.mrb[0].mxu0 %v5523
    %v6652 = vpop.f32.mrb[0].mxu0
    %v6653 = vadd.f32 %v6364, %v6652
    %v6654 = vpop.f32.mrb[0].mxu0
    %v6655 = vpop.f32.mrb[0].mxu0
    %v6656 = vadd.f32 %v6367, %v6655
    %v6657 = vpop.f32.mrb[0].mxu0
    %6658 = vmatprep.mubr.bf16.mxu0 %v4947
    %6659 = vmatmul.mubr.bf16.gmra.mrb[0].mxu0 %v5526
    %v6660 = vpop.f32.mrb[0].mxu0
    %v6661 = vadd.f32 %v6372, %v6660
    %v6662 = vpop.f32.mrb[0].mxu0
    %v6663 = vpop.f32.mrb[0].mxu0
    %v6664 = vadd.f32 %v6375, %v6663
    %v6665 = vpop.f32.mrb[0].mxu0
    %6666 = vmatprep.mubr.bf16.mxu0 %v4948
    %6667 = vmatmul.mubr.bf16.gmra.mrb[0].mxu0 %v5529
    %v6668 = vpop.f32.mrb[0].mxu0
    %v6669 = vadd.f32 %v6380, %v6668
    %v6670 = vpop.f32.mrb[0].mxu0
    %v6671 = vpop.f32.mrb[0].mxu0
    %v6672 = vadd.f32 %v6383, %v6671
    %v6673 = vpop.f32.mrb[0].mxu0
    %6674 = vmatprep.mubr.bf16.mxu0 %v4949
    %6675 = vmatmul.mubr.bf16.gmra.mrb[0].mxu0 %v5532
    %v6676 = vpop.f32.mrb[0].mxu0
    %v6677 = vadd.f32 %v6388, %v6676
    %v6678 = vpop.f32.mrb[0].mxu0
    %v6679 = vpop.f32.mrb[0].mxu0
    %v6680 = vadd.f32 %v6391, %v6679
    %v6681 = vpop.f32.mrb[0].mxu0
    %6682 = vmatprep.mubr.bf16.mxu0 %v4950
    %6683 = vmatmul.mubr.bf16.gmra.mrb[0].mxu0 %v5535
    %v6684 = vpop.f32.mrb[0].mxu0
    %v6685 = vadd.f32 %v6396, %v6684
    %v6686 = vpop.f32.mrb[0].mxu0
    %v6687 = vpop.f32.mrb[0].mxu0
    %v6688 = vadd.f32 %v6399, %v6687
    %v6689 = vpop.f32.mrb[0].mxu0
    %6690 = vmatprep.mubr.bf16.mxu0 %v4951
    %6691 = vmatmul.mubr.bf16.gmra.mrb[0].mxu0 %v5538
    %v6692 = vpop.f32.mrb[0].mxu0
    %v6693 = vadd.f32 %v6404, %v6692
    %v6694 = vpop.f32.mrb[0].mxu0
    %v6695 = vpop.f32.mrb[0].mxu0
    %v6696 = vadd.f32 %v6407, %v6695
    %v6697 = vpop.f32.mrb[0].mxu0
    %6698 = vmatprep.mubr.bf16.mxu0 %v4952
    %6699 = vmatmul.mubr.bf16.gmra.mrb[0].mxu0 %v5541
    %v6700 = vpop.f32.mrb[0].mxu0
    %v6701 = vadd.f32 %v6412, %v6700
    %v6702 = vpop.f32.mrb[0].mxu0
    %v6703 = vpop.f32.mrb[0].mxu0
    %v6704 = vadd.f32 %v6415, %v6703
    %v6705 = vpop.f32.mrb[0].mxu0
    %6706 = vmatprep.mubr.bf16.mxu0 %v4953
    %6707 = vmatmul.mubr.bf16.gmra.mrb[0].mxu0 %v5544
    %v6708 = vpop.f32.mrb[0].mxu0
    %v6709 = vadd.f32 %v6420, %v6708
    %v6710 = vpop.f32.mrb[0].mxu0
    %v6711 = vpop.f32.mrb[0].mxu0
    %v6712 = vadd.f32 %v6423, %v6711
    %v6713 = vpop.f32.mrb[0].mxu0
    %6714 = vmatprep.mubr.bf16.mxu0 %v4954
    %6715 = vmatmul.mubr.bf16.gmra.mrb[0].mxu0 %v5547
    %v6716 = vpop.f32.mrb[0].mxu0
    %v6717 = vadd.f32 %v6428, %v6716
    %v6718 = vpop.f32.mrb[0].mxu0
    %v6719 = vpop.f32.mrb[0].mxu0
    %v6720 = vadd.f32 %v6431, %v6719
    %v6721 = vpop.f32.mrb[0].mxu0
    %6722 = vmatprep.mubr.bf16.mxu0 %v4955
    %6723 = vmatmul.mubr.bf16.gmra.mrb[0].mxu0 %v5550
    %v6724 = vpop.f32.mrb[0].mxu0
    %v6725 = vadd.f32 %v6436, %v6724
    %v6726 = vpop.f32.mrb[0].mxu0
    %v6727 = vpop.f32.mrb[0].mxu0
    %v6728 = vadd.f32 %v6439, %v6727
    %v6729 = vpop.f32.mrb[0].mxu0
    %6730 = vmatprep.mubr.bf16.mxu0 %v4956
    %6731 = vmatmul.mubr.bf16.gmra.mrb[0].mxu0 %v5553
    %v6732 = vpop.f32.mrb[0].mxu0
    %v6733 = vadd.f32 %v6444, %v6732
    %v6734 = vpop.f32.mrb[0].mxu0
    %v6735 = vpop.f32.mrb[0].mxu0
    %v6736 = vadd.f32 %v6447, %v6735
    %v6737 = vpop.f32.mrb[0].mxu0
    %6738 = vmatprep.mubr.bf16.mxu0 %v4957
    %6739 = vmatmul.mubr.bf16.gmra.mrb[0].mxu0 %v5556
    %v6740 = vpop.f32.mrb[0].mxu0
    %v6741 = vadd.f32 %v6452, %v6740
    %v6742 = vpop.f32.mrb[0].mxu0
    %v6743 = vpop.f32.mrb[0].mxu0
    %v6744 = vadd.f32 %v6455, %v6743
    %v6745 = vpop.f32.mrb[0].mxu0
    %6746 = vmatprep.mubr.bf16.mxu0 %v4958
    %6747 = vmatmul.mubr.bf16.gmra.mrb[0].mxu0 %v5559
    %v6748 = vpop.f32.mrb[0].mxu0
    %v6749 = vadd.f32 %v6460, %v6748
    %v6750 = vpop.f32.mrb[0].mxu0
    %v6751 = vpop.f32.mrb[0].mxu0
    %v6752 = vadd.f32 %v6463, %v6751
    %v6753 = vpop.f32.mrb[0].mxu0
    %6754 = vmatprep.mubr.bf16.mxu0 %v4959
    %6755 = vmatmul.mubr.bf16.gmra.mrb[0].mxu0 %v5562
    %v6756 = vpop.f32.mrb[0].mxu0
    %v6757 = vadd.f32 %v6468, %v6756
    %v6758 = vpop.f32.mrb[0].mxu0
    %v6759 = vpop.f32.mrb[0].mxu0
    %v6760 = vadd.f32 %v6471, %v6759
    %v6761 = vpop.f32.mrb[0].mxu0
    %6762 = vmatprep.mubr.bf16.mxu0 %v4960
    %6763 = vmatmul.mubr.bf16.gmra.mrb[0].mxu0 %v5565
    %v6764 = vpop.f32.mrb[0].mxu0
    %v6765 = vadd.f32 %v6476, %v6764
    %v6766 = vpop.f32.mrb[0].mxu0
    %v6767 = vpop.f32.mrb[0].mxu0
    %v6768 = vadd.f32 %v6479, %v6767
    %v6769 = vpop.f32.mrb[0].mxu0
    %6770 = vmatprep.mubr.bf16.mxu0 %v5657
    %6771 = vmatmul.mubr.bf16.gmra.mrb[0].mxu0 %v5568
    %v6772 = vpop.f32.mrb[0].mxu0
    %v6773 = vadd.f32 %v6484, %v6772
    %v6774 = vpop.f32.mrb[0].mxu0
    %v6775 = vpop.f32.mrb[0].mxu0
    %v6776 = vadd.f32 %v6487, %v6775
    %v6777 = vpop.f32.mrb[0].mxu0
    %6778 = vmatprep.mubr.bf16.mxu0 %v4962
    %6779 = vmatmul.mubr.bf16.gmra.mrb[0].mxu0 %v5571
    %v6780 = vpop.f32.mrb[0].mxu0
    %v6781 = vadd.f32 %v6492, %v6780
    %v6782 = vpop.f32.mrb[0].mxu0
    %v6783 = vpop.f32.mrb[0].mxu0
    %v6784 = vadd.f32 %v6495, %v6783
    %v6785 = vpop.f32.mrb[0].mxu0
    %6786 = vmatprep.mubr.bf16.mxu0 %v4963
    %6787 = vmatmul.mubr.bf16.gmra.mrb[0].mxu0 %v5574
    %v6788 = vpop.f32.mrb[0].mxu0
    %v6789 = vadd.f32 %v6500, %v6788
    %v6790 = vpop.f32.mrb[0].mxu0
    %v6791 = vpop.f32.mrb[0].mxu0
    %v6792 = vadd.f32 %v6503, %v6791
    %v6793 = vpop.f32.mrb[0].mxu0
    %6794 = vmatprep.mubr.bf16.mxu0 %v4964
    %6795 = vmatmul.mubr.bf16.gmra.mrb[0].mxu0 %v5577
    %v6796 = vpop.f32.mrb[0].mxu0
    %v6797 = vadd.f32 %v6508, %v6796
    %v6798 = vpop.f32.mrb[0].mxu0
    %v6799 = vpop.f32.mrb[0].mxu0
    %v6800 = vadd.f32 %v6511, %v6799
    %v6801 = vpop.f32.mrb[0].mxu0
    %6802 = vmatprep.mubr.bf16.mxu0 %v4965
    %6803 = vmatmul.mubr.bf16.gmra.mrb[0].mxu0 %v5580
    %v6804 = vpop.f32.mrb[0].mxu0
    %v6805 = vadd.f32 %v6516, %v6804
    %v6806 = vpop.f32.mrb[0].mxu0
    %v6807 = vpop.f32.mrb[0].mxu0
    %v6808 = vadd.f32 %v6519, %v6807
    %v6809 = vpop.f32.mrb[0].mxu0
    %6810 = vmatprep.mubr.bf16.mxu0 %v4966
    %6811 = vmatmul.mubr.bf16.gmra.mrb[0].mxu0 %v5583
    %v6812 = vpop.f32.mrb[0].mxu0
    %v6813 = vadd.f32 %v6524, %v6812
    %v6814 = vpop.f32.mrb[0].mxu0
    %v6815 = vpop.f32.mrb[0].mxu0
    %v6816 = vadd.f32 %v6527, %v6815
    %v6817 = vpop.f32.mrb[0].mxu0
    %6818 = vmatprep.mubr.bf16.mxu0 %v4967
    %6819 = vmatmul.mubr.bf16.gmra.mrb[0].mxu0 %v5586
    %v6820 = vpop.f32.mrb[0].mxu0
    %v6821 = vadd.f32 %v6532, %v6820
    %v6822 = vpop.f32.mrb[0].mxu0
    %v6823 = vpop.f32.mrb[0].mxu0
    %v6824 = vadd.f32 %v6535, %v6823
    %v6825 = vpop.f32.mrb[0].mxu0
    %6826 = vmatprep.mubr.bf16.mxu0 %v4968
    %6827 = vmatmul.mubr.bf16.gmra.mrb[0].mxu0 %v5589
    %v6828 = vpop.f32.mrb[0].mxu0
    %v6829 = vadd.f32 %v6540, %v6828
    %v6830 = vpop.f32.mrb[0].mxu0
    %v6831 = vpop.f32.mrb[0].mxu0
    %v6832 = vadd.f32 %v6543, %v6831
    %v6833 = vpop.f32.mrb[0].mxu0
    %6834 = vmatprep.mubr.bf16.mxu0 %v4969
    %6835 = vmatmul.mubr.bf16.gmra.mrb[0].mxu0 %v5592
    %v6836 = vpop.f32.mrb[0].mxu0
    %v6837 = vadd.f32 %v6548, %v6836
    %v6838 = vpop.f32.mrb[0].mxu0
    %v6839 = vpop.f32.mrb[0].mxu0
    %v6840 = vadd.f32 %v6551, %v6839
    %v6841 = vpop.f32.mrb[0].mxu0
    %6842 = vmatprep.mubr.bf16.mxu0 %v4970
    %6843 = vmatmul.mubr.bf16.gmra.mrb[0].mxu0 %v5595
    %v6844 = vpop.f32.mrb[0].mxu0
    %v6845 = vadd.f32 %v6556, %v6844
    %v6846 = vpop.f32.mrb[0].mxu0
    %v6847 = vpop.f32.mrb[0].mxu0
    %v6848 = vadd.f32 %v6559, %v6847
    %v6849 = vpop.f32.mrb[0].mxu0
    %6850 = vmatprep.mubr.bf16.mxu0 %v4971
    %6851 = vmatmul.mubr.bf16.gmra.mrb[0].mxu0 %v5598
    %v6852 = vpop.f32.mrb[0].mxu0
    %v6853 = vadd.f32 %v6564, %v6852
    %v6854 = vpop.f32.mrb[0].mxu0
    %v6855 = vpop.f32.mrb[0].mxu0
    %v6856 = vadd.f32 %v6567, %v6855
    %v6857 = vpop.f32.mrb[0].mxu0
    %6858 = vmatprep.mubr.bf16.mxu0 %v4972
    %6859 = vmatmul.mubr.bf16.gmra.mrb[0].mxu0 %v5601
    %v6860 = vpop.f32.mrb[0].mxu0
    %v6861 = vadd.f32 %v6572, %v6860
    %v6862 = vpop.f32.mrb[0].mxu0
    %v6863 = vpop.f32.mrb[0].mxu0
    %v6864 = vadd.f32 %v6575, %v6863
    %v6865 = vpop.f32.mrb[0].mxu0
    %6866 = vmatprep.mubr.bf16.mxu0 %v4973
    %6867 = vmatmul.mubr.bf16.gmra.mrb[0].mxu0 %v5604
    %v6868 = vpop.f32.mrb[0].mxu0
    %v6869 = vadd.f32 %v6580, %v6868
    %v6870 = vpop.f32.mrb[0].mxu0
    %v6871 = vpop.f32.mrb[0].mxu0
    %v6872 = vadd.f32 %v6583, %v6871
    %v6873 = vpop.f32.mrb[0].mxu0
    %6874 = vmatprep.mubr.bf16.mxu0 %v4974
    %6875 = vmatmul.mubr.bf16.gmra.mrb[0].mxu0 %v5607
    %v6876 = vpop.f32.mrb[0].mxu0
    %v6877 = vadd.f32 %v6588, %v6876
    %v6878 = vpop.f32.mrb[0].mxu0
    %v6879 = vpop.f32.mrb[0].mxu0
    %v6880 = vadd.f32 %v6591, %v6879
    %v6881 = vpop.f32.mrb[0].mxu0
    %6882 = vmatprep.mubr.bf16.mxu0 %v4975
    %6883 = vmatmul.mubr.bf16.gmra.mrb[0].mxu0 %v5610
    %v6884 = vpop.f32.mrb[0].mxu0
    %v6885 = vadd.f32 %v6596, %v6884
    %v6886 = vpop.f32.mrb[0].mxu0
    %v6887 = vpop.f32.mrb[0].mxu0
    %v6888 = vadd.f32 %v6599, %v6887
    %v6889 = vpop.f32.mrb[0].mxu0
    %6890 = vmatprep.mubr.bf16.mxu0 %v4976
    %6891 = vmatmul.mubr.bf16.gmra.mrb[0].mxu0 %v5613
    %v6892 = vpop.f32.mrb[0].mxu0
    %v6893 = vadd.f32 %v6604, %v6892
    %v6894 = vpop.f32.mrb[0].mxu0
    %v6895 = vpop.f32.mrb[0].mxu0
    %v6896 = vadd.f32 %v6607, %v6895
    %v6897 = vpop.f32.mrb[0].mxu0
    %6898 = vmatprep.mubr.bf16.mxu0 %v5658
    %6899 = vmatmul.mubr.bf16.gmra.mrb[0].mxu0 %v5616
    %v6900 = vpop.f32.mrb[0].mxu0
    %v6901 = vadd.f32 %v6612, %v6900
    %v6902 = vpop.f32.mrb[0].mxu0
    %v6903 = vpop.f32.mrb[0].mxu0
    %v6904 = vadd.f32 %v6615, %v6903
    %v6905 = vpop.f32.mrb[0].mxu0
    %6906 = vdwg.mxu0
    %6907 = vmatprep.subr.bf16.mxu0 0
    %6908 = vmatpush1.bf16.msra.mxu0 %v6217
    %6909 = vmatprep.subr.bf16.mxu0 0
    %6910 = vmatpush1.bf16.msra.mxu0 %v6218
    %6911 = vmatprep.subr.bf16.mxu0 0
    %6912 = vmatpush1.bf16.msra.mxu0 %v6219
    %6913 = vmatprep.subr.bf16.mxu0 0
    %6914 = vmatpush1.bf16.msra.mxu0 %v6220
    %6915 = vmatprep.subr.bf16.mxu0 0
    %6916 = vmatpush1.bf16.msra.mxu0 %v6221
    %6917 = vmatprep.subr.bf16.mxu0 0
    %6918 = vmatpush1.bf16.msra.mxu0 %v6222
    %6919 = vmatprep.subr.bf16.mxu0 0
    %6920 = vmatpush1.bf16.msra.mxu0 %v6223
    %6921 = vmatprep.subr.bf16.mxu0 0
    %6922 = vmatpush1.bf16.msra.mxu0 %v6224
    %6923 = vmatprep.subr.bf16.mxu0 0
    %6924 = vmatpush1.bf16.msra.mxu0 %v6225
    %6925 = vmatprep.subr.bf16.mxu0 0
    %6926 = vmatpush1.bf16.msra.mxu0 %v6226
    %6927 = vmatprep.subr.bf16.mxu0 0
    %6928 = vmatpush1.bf16.msra.mxu0 %v6227
    %6929 = vmatprep.subr.bf16.mxu0 0
    %6930 = vmatpush1.bf16.msra.mxu0 %v6228
    %6931 = vmatprep.subr.bf16.mxu0 0
    %6932 = vmatpush1.bf16.msra.mxu0 %v6229
    %6933 = vmatprep.subr.bf16.mxu0 0
    %6934 = vmatpush1.bf16.msra.mxu0 %v6230
    %6935 = vmatprep.subr.bf16.mxu0 0
    %6936 = vmatpush1.bf16.msra.mxu0 %v6231
    %6937 = vmatprep.subr.bf16.mxu0 0
    %6938 = vmatpush1.bf16.msra.mxu0 %v6232
    %6939 = vmatprep.mubr.bf16.mxu0 %v5526
    %6940 = vmatmul.mubr.bf16.gmra.mrb[0].mxu0 %v5128
    %v6941 = vpop.f32.mrb[0].mxu0
    %v6942 = vadd.f32 %v6653, %v6941
    %v6943 = vpop.f32.mrb[0].mxu0
    %v6944 = vpop.f32.mrb[0].mxu0
    %v6945 = vadd.f32 %v6656, %v6944
    %v6946 = vpop.f32.mrb[0].mxu0
    %6947 = vmatprep.mubr.bf16.mxu0 %v5529
    %6948 = vmatmul.mubr.bf16.gmra.mrb[0].mxu0 %v5140
    %v6949 = vpop.f32.mrb[0].mxu0
    %v6950 = vadd.f32 %v6661, %v6949
    %v6951 = vpop.f32.mrb[0].mxu0
    %v6952 = vpop.f32.mrb[0].mxu0
    %v6953 = vadd.f32 %v6664, %v6952
    %v6954 = vpop.f32.mrb[0].mxu0
    %6955 = vmatprep.mubr.bf16.mxu0 %v5532
    %6956 = vmatmul.mubr.bf16.gmra.mrb[0].mxu0 %v5152
    %v6957 = vpop.f32.mrb[0].mxu0
    %v6958 = vadd.f32 %v6669, %v6957
    %v6959 = vpop.f32.mrb[0].mxu0
    %v6960 = vpop.f32.mrb[0].mxu0
    %v6961 = vadd.f32 %v6672, %v6960
    %v6962 = vpop.f32.mrb[0].mxu0
    %6963 = vmatprep.mubr.bf16.mxu0 %v5535
    %6964 = vmatmul.mubr.bf16.gmra.mrb[0].mxu0 %v5164
    %v6965 = vpop.f32.mrb[0].mxu0
    %v6966 = vadd.f32 %v6677, %v6965
    %v6967 = vpop.f32.mrb[0].mxu0
    %v6968 = vpop.f32.mrb[0].mxu0
    %v6969 = vadd.f32 %v6680, %v6968
    %v6970 = vpop.f32.mrb[0].mxu0
    %6971 = vmatprep.mubr.bf16.mxu0 %v5538
    %6972 = vmatmul.mubr.bf16.gmra.mrb[0].mxu0 %v5176
    %v6973 = vpop.f32.mrb[0].mxu0
    %v6974 = vadd.f32 %v6685, %v6973
    %v6975 = vpop.f32.mrb[0].mxu0
    %v6976 = vpop.f32.mrb[0].mxu0
    %v6977 = vadd.f32 %v6688, %v6976
    %v6978 = vpop.f32.mrb[0].mxu0
    %6979 = vmatprep.mubr.bf16.mxu0 %v5541
    %6980 = vmatmul.mubr.bf16.gmra.mrb[0].mxu0 %v5188
    %v6981 = vpop.f32.mrb[0].mxu0
    %v6982 = vadd.f32 %v6693, %v6981
    %v6983 = vpop.f32.mrb[0].mxu0
    %v6984 = vpop.f32.mrb[0].mxu0
    %v6985 = vadd.f32 %v6696, %v6984
    %v6986 = vpop.f32.mrb[0].mxu0
    %6987 = vmatprep.mubr.bf16.mxu0 %v5544
    %6988 = vmatmul.mubr.bf16.gmra.mrb[0].mxu0 %v5200
    %v6989 = vpop.f32.mrb[0].mxu0
    %v6990 = vadd.f32 %v6701, %v6989
    %v6991 = vpop.f32.mrb[0].mxu0
    %v6992 = vpop.f32.mrb[0].mxu0
    %v6993 = vadd.f32 %v6704, %v6992
    %v6994 = vpop.f32.mrb[0].mxu0
    %6995 = vmatprep.mubr.bf16.mxu0 %v5547
    %6996 = vmatmul.mubr.bf16.gmra.mrb[0].mxu0 %v5212
    %v6997 = vpop.f32.mrb[0].mxu0
    %v6998 = vadd.f32 %v6709, %v6997
    %v6999 = vpop.f32.mrb[0].mxu0
    %v7000 = vpop.f32.mrb[0].mxu0
    %v7001 = vadd.f32 %v6712, %v7000
    %v7002 = vpop.f32.mrb[0].mxu0
    %7003 = vmatprep.mubr.bf16.mxu0 %v5550
    %7004 = vmatmul.mubr.bf16.gmra.mrb[0].mxu0 %v5224
    %v7005 = vpop.f32.mrb[0].mxu0
    %v7006 = vadd.f32 %v6717, %v7005
    %v7007 = vpop.f32.mrb[0].mxu0
    %v7008 = vpop.f32.mrb[0].mxu0
    %v7009 = vadd.f32 %v6720, %v7008
    %v7010 = vpop.f32.mrb[0].mxu0
    %7011 = vmatprep.mubr.bf16.mxu0 %v5553
    %7012 = vmatmul.mubr.bf16.gmra.mrb[0].mxu0 %v5236
    %v7013 = vpop.f32.mrb[0].mxu0
    %v7014 = vadd.f32 %v6725, %v7013
    %v7015 = vpop.f32.mrb[0].mxu0
    %v7016 = vpop.f32.mrb[0].mxu0
    %v7017 = vadd.f32 %v6728, %v7016
    %v7018 = vpop.f32.mrb[0].mxu0
    %7019 = vmatprep.mubr.bf16.mxu0 %v5556
    %7020 = vmatmul.mubr.bf16.gmra.mrb[0].mxu0 %v5248
    %v7021 = vpop.f32.mrb[0].mxu0
    %v7022 = vadd.f32 %v6733, %v7021
    %v7023 = vpop.f32.mrb[0].mxu0
    %v7024 = vpop.f32.mrb[0].mxu0
    %v7025 = vadd.f32 %v6736, %v7024
    %v7026 = vpop.f32.mrb[0].mxu0
    %7027 = vmatprep.mubr.bf16.mxu0 %v5559
    %7028 = vmatmul.mubr.bf16.gmra.mrb[0].mxu0 %v5260
    %v7029 = vpop.f32.mrb[0].mxu0
    %v7030 = vadd.f32 %v6741, %v7029
    %v7031 = vpop.f32.mrb[0].mxu0
    %v7032 = vpop.f32.mrb[0].mxu0
    %v7033 = vadd.f32 %v6744, %v7032
    %v7034 = vpop.f32.mrb[0].mxu0
    %7035 = vmatprep.mubr.bf16.mxu0 %v5562
    %7036 = vmatmul.mubr.bf16.gmra.mrb[0].mxu0 %v5272
    %v7037 = vpop.f32.mrb[0].mxu0
    %v7038 = vadd.f32 %v6749, %v7037
    %v7039 = vpop.f32.mrb[0].mxu0
    %v7040 = vpop.f32.mrb[0].mxu0
    %v7041 = vadd.f32 %v6752, %v7040
    %v7042 = vpop.f32.mrb[0].mxu0
    %7043 = vmatprep.mubr.bf16.mxu0 %v5565
    %7044 = vmatmul.mubr.bf16.gmra.mrb[0].mxu0 %v5284
    %v7045 = vpop.f32.mrb[0].mxu0
    %v7046 = vadd.f32 %v6757, %v7045
    %v7047 = vpop.f32.mrb[0].mxu0
    %v7048 = vpop.f32.mrb[0].mxu0
    %v7049 = vadd.f32 %v6760, %v7048
    %v7050 = vpop.f32.mrb[0].mxu0
    %7051 = vmatprep.mubr.bf16.mxu0 %v5568
    %7052 = vmatmul.mubr.bf16.gmra.mrb[0].mxu0 %v5296
    %v7053 = vpop.f32.mrb[0].mxu0
    %v7054 = vadd.f32 %v6765, %v7053
    %v7055 = vpop.f32.mrb[0].mxu0
    %v7056 = vpop.f32.mrb[0].mxu0
    %v7057 = vadd.f32 %v6768, %v7056
    %v7058 = vpop.f32.mrb[0].mxu0
    %7059 = vmatprep.mubr.bf16.mxu0 %v5695
    %7060 = vmatmul.mubr.bf16.gmra.mrb[0].mxu0 %v5678
    %v7061 = vpop.f32.mrb[0].mxu0
    %v7062 = vadd.f32 %v6773, %v7061
    %v7063 = vpop.f32.mrb[0].mxu0
    %v7064 = vpop.f32.mrb[0].mxu0
    %v7065 = vadd.f32 %v6776, %v7064
    %v7066 = vpop.f32.mrb[0].mxu0
    %7067 = vmatprep.mubr.bf16.mxu0 %v5574
    %7068 = vmatmul.mubr.bf16.gmra.mrb[0].mxu0 %v5320
    %v7069 = vpop.f32.mrb[0].mxu0
    %v7070 = vadd.f32 %v6781, %v7069
    %v7071 = vpop.f32.mrb[0].mxu0
    %v7072 = vpop.f32.mrb[0].mxu0
    %v7073 = vadd.f32 %v6784, %v7072
    %v7074 = vpop.f32.mrb[0].mxu0
    %7075 = vmatprep.mubr.bf16.mxu0 %v5577
    %7076 = vmatmul.mubr.bf16.gmra.mrb[0].mxu0 %v5332
    %v7077 = vpop.f32.mrb[0].mxu0
    %v7078 = vadd.f32 %v6789, %v7077
    %v7079 = vpop.f32.mrb[0].mxu0
    %v7080 = vpop.f32.mrb[0].mxu0
    %v7081 = vadd.f32 %v6792, %v7080
    %v7082 = vpop.f32.mrb[0].mxu0
    %7083 = vmatprep.mubr.bf16.mxu0 %v5580
    %7084 = vmatmul.mubr.bf16.gmra.mrb[0].mxu0 %v5344
    %v7085 = vpop.f32.mrb[0].mxu0
    %v7086 = vadd.f32 %v6797, %v7085
    %v7087 = vpop.f32.mrb[0].mxu0
    %v7088 = vpop.f32.mrb[0].mxu0
    %v7089 = vadd.f32 %v6800, %v7088
    %v7090 = vpop.f32.mrb[0].mxu0
    %7091 = vmatprep.mubr.bf16.mxu0 %v5583
    %7092 = vmatmul.mubr.bf16.gmra.mrb[0].mxu0 %v5356
    %v7093 = vpop.f32.mrb[0].mxu0
    %v7094 = vadd.f32 %v6805, %v7093
    %v7095 = vpop.f32.mrb[0].mxu0
    %v7096 = vpop.f32.mrb[0].mxu0
    %v7097 = vadd.f32 %v6808, %v7096
    %v7098 = vpop.f32.mrb[0].mxu0
    %7099 = vmatprep.mubr.bf16.mxu0 %v5586
    %7100 = vmatmul.mubr.bf16.gmra.mrb[0].mxu0 %v5368
    %v7101 = vpop.f32.mrb[0].mxu0
    %v7102 = vadd.f32 %v6813, %v7101
    %v7103 = vpop.f32.mrb[0].mxu0
    %v7104 = vpop.f32.mrb[0].mxu0
    %v7105 = vadd.f32 %v6816, %v7104
    %v7106 = vpop.f32.mrb[0].mxu0
    %7107 = vmatprep.mubr.bf16.mxu0 %v5589
    %7108 = vmatmul.mubr.bf16.gmra.mrb[0].mxu0 %v5380
    %v7109 = vpop.f32.mrb[0].mxu0
    %v7110 = vadd.f32 %v6821, %v7109
    %v7111 = vpop.f32.mrb[0].mxu0
    %v7112 = vpop.f32.mrb[0].mxu0
    %v7113 = vadd.f32 %v6824, %v7112
    %v7114 = vpop.f32.mrb[0].mxu0
    %7115 = vmatprep.mubr.bf16.mxu0 %v5592
    %7116 = vmatmul.mubr.bf16.gmra.mrb[0].mxu0 %v5392
    %v7117 = vpop.f32.mrb[0].mxu0
    %v7118 = vadd.f32 %v6829, %v7117
    %v7119 = vpop.f32.mrb[0].mxu0
    %v7120 = vpop.f32.mrb[0].mxu0
    %v7121 = vadd.f32 %v6832, %v7120
    %v7122 = vpop.f32.mrb[0].mxu0
    %7123 = vmatprep.mubr.bf16.mxu0 %v5595
    %7124 = vmatmul.mubr.bf16.gmra.mrb[0].mxu0 %v5404
    %v7125 = vpop.f32.mrb[0].mxu0
    %v7126 = vadd.f32 %v6837, %v7125
    %v7127 = vpop.f32.mrb[0].mxu0
    %v7128 = vpop.f32.mrb[0].mxu0
    %v7129 = vadd.f32 %v6840, %v7128
    %v7130 = vpop.f32.mrb[0].mxu0
    %7131 = vmatprep.mubr.bf16.mxu0 %v5598
    %7132 = vmatmul.mubr.bf16.gmra.mrb[0].mxu0 %v5416
    %v7133 = vpop.f32.mrb[0].mxu0
    %v7134 = vadd.f32 %v6845, %v7133
    %v7135 = vpop.f32.mrb[0].mxu0
    %v7136 = vpop.f32.mrb[0].mxu0
    %v7137 = vadd.f32 %v6848, %v7136
    %v7138 = vpop.f32.mrb[0].mxu0
    %7139 = vmatprep.mubr.bf16.mxu0 %v5601
    %7140 = vmatmul.mubr.bf16.gmra.mrb[0].mxu0 %v5428
    %v7141 = vpop.f32.mrb[0].mxu0
    %v7142 = vadd.f32 %v6853, %v7141
    %v7143 = vpop.f32.mrb[0].mxu0
    %v7144 = vpop.f32.mrb[0].mxu0
    %v7145 = vadd.f32 %v6856, %v7144
    %v7146 = vpop.f32.mrb[0].mxu0
    %7147 = vmatprep.mubr.bf16.mxu0 %v5604
    %7148 = vmatmul.mubr.bf16.gmra.mrb[0].mxu0 %v5440
    %v7149 = vpop.f32.mrb[0].mxu0
    %v7150 = vadd.f32 %v6861, %v7149
    %v7151 = vpop.f32.mrb[0].mxu0
    %v7152 = vpop.f32.mrb[0].mxu0
    %v7153 = vadd.f32 %v6864, %v7152
    %v7154 = vpop.f32.mrb[0].mxu0
    %7155 = vmatprep.mubr.bf16.mxu0 %v5607
    %7156 = vmatmul.mubr.bf16.gmra.mrb[0].mxu0 %v5452
    %v7157 = vpop.f32.mrb[0].mxu0
    %v7158 = vadd.f32 %v6869, %v7157
    %v7159 = vpop.f32.mrb[0].mxu0
    %v7160 = vpop.f32.mrb[0].mxu0
    %v7161 = vadd.f32 %v6872, %v7160
    %v7162 = vpop.f32.mrb[0].mxu0
    %7163 = vmatprep.mubr.bf16.mxu0 %v5610
    %7164 = vmatmul.mubr.bf16.gmra.mrb[0].mxu0 %v5464
    %v7165 = vpop.f32.mrb[0].mxu0
    %v7166 = vadd.f32 %v6877, %v7165
    %v7167 = vpop.f32.mrb[0].mxu0
    %v7168 = vpop.f32.mrb[0].mxu0
    %v7169 = vadd.f32 %v6880, %v7168
    %v7170 = vpop.f32.mrb[0].mxu0
    %7171 = vmatprep.mubr.bf16.mxu0 %v5613
    %7172 = vmatmul.mubr.bf16.gmra.mrb[0].mxu0 %v5476
    %v7173 = vpop.f32.mrb[0].mxu0
    %v7174 = vadd.f32 %v6885, %v7173
    %v7175 = vpop.f32.mrb[0].mxu0
    %v7176 = vpop.f32.mrb[0].mxu0
    %v7177 = vadd.f32 %v6888, %v7176
    %v7178 = vpop.f32.mrb[0].mxu0
    %7179 = vmatprep.mubr.bf16.mxu0 %v5616
    %7180 = vmatmul.mubr.bf16.gmra.mrb[0].mxu0 %v5488
    %v7181 = vpop.f32.mrb[0].mxu0
    %v7182 = vadd.f32 %v6893, %v7181
    %v7183 = vpop.f32.mrb[0].mxu0
    %v7184 = vpop.f32.mrb[0].mxu0
    %v7185 = vadd.f32 %v6896, %v7184
    %v7186 = vpop.f32.mrb[0].mxu0
    %7187 = vmatprep.mubr.bf16.mxu0 %v5698
    %7188 = vmatmul.mubr.bf16.gmra.mrb[0].mxu0 %v5690
    %v7189 = vpop.f32.mrb[0].mxu0
    %v7190 = vadd.f32 %v6901, %v7189
    %v7191 = vpop.f32.mrb[0].mxu0
    %v7192 = vpop.f32.mrb[0].mxu0
    %v7193 = vadd.f32 %v6904, %v7192
    %v7194 = vpop.f32.mrb[0].mxu0
    %7195 = vdwg.mxu0
    %7196 = vmatprep.subr.bf16.mxu0 0
    %7197 = vmatpush1.bf16.msra.mxu0 %v6233
    %7198 = vmatprep.subr.bf16.mxu0 0
    %7199 = vmatpush1.bf16.msra.mxu0 %v6234
    %7200 = vmatprep.subr.bf16.mxu0 0
    %7201 = vmatpush1.bf16.msra.mxu0 %v6235
    %7202 = vmatprep.subr.bf16.mxu0 0
    %7203 = vmatpush1.bf16.msra.mxu0 %v6236
    %7204 = vmatprep.subr.bf16.mxu0 0
    %7205 = vmatpush1.bf16.msra.mxu0 %v6237
    %7206 = vmatprep.subr.bf16.mxu0 0
    %7207 = vmatpush1.bf16.msra.mxu0 %v6238
    %7208 = vmatprep.subr.bf16.mxu0 0
    %7209 = vmatpush1.bf16.msra.mxu0 %v6239
    %7210 = vmatprep.subr.bf16.mxu0 0
    %7211 = vmatpush1.bf16.msra.mxu0 %v6240
    %7212 = vmatprep.subr.bf16.mxu0 0
    %7213 = vmatpush1.bf16.msra.mxu0 %v6241
    %7214 = vmatprep.subr.bf16.mxu0 0
    %7215 = vmatpush1.bf16.msra.mxu0 %v6242
    %7216 = vmatprep.subr.bf16.mxu0 0
    %7217 = vmatpush1.bf16.msra.mxu0 %v6243
    %7218 = vmatprep.subr.bf16.mxu0 0
    %7219 = vmatpush1.bf16.msra.mxu0 %v6244
    %7220 = vmatprep.subr.bf16.mxu0 0
    %7221 = vmatpush1.bf16.msra.mxu0 %v6245
    %7222 = vmatprep.subr.bf16.mxu0 0
    %7223 = vmatpush1.bf16.msra.mxu0 %v6246
    %7224 = vmatprep.subr.bf16.mxu0 0
    %7225 = vmatpush1.bf16.msra.mxu0 %v6247
    %7226 = vmatprep.subr.bf16.mxu0 0
    %7227 = vmatpush1.bf16.msra.mxu0 %v6248
    %7228 = vmatprep.mubr.bf16.mxu0 %v5140
    %7229 = vmatmul.mubr.bf16.gmra.mrb[0].mxu0 %v4947
    %v7230 = vpop.f32.mrb[0].mxu0
    %v7231 = vadd.f32 %v6942, %v7230
    %v7232 = vpop.f32.mrb[0].mxu0
    %v7233 = vpop.f32.mrb[0].mxu0
    %v7234 = vadd.f32 %v6945, %v7233
    %v7235 = vpop.f32.mrb[0].mxu0
    %7236 = vmatprep.mubr.bf16.mxu0 %v5152
    %7237 = vmatmul.mubr.bf16.gmra.mrb[0].mxu0 %v4948
    %v7238 = vpop.f32.mrb[0].mxu0
    %v7239 = vadd.f32 %v6950, %v7238
    %v7240 = vpop.f32.mrb[0].mxu0
    %v7241 = vpop.f32.mrb[0].mxu0
    %v7242 = vadd.f32 %v6953, %v7241
    %v7243 = vpop.f32.mrb[0].mxu0
    %7244 = vmatprep.mubr.bf16.mxu0 %v5164
    %7245 = vmatmul.mubr.bf16.gmra.mrb[0].mxu0 %v4949
    %v7246 = vpop.f32.mrb[0].mxu0
    %v7247 = vadd.f32 %v6958, %v7246
    %v7248 = vpop.f32.mrb[0].mxu0
    %v7249 = vpop.f32.mrb[0].mxu0
    %v7250 = vadd.f32 %v6961, %v7249
    %v7251 = vpop.f32.mrb[0].mxu0
    %7252 = vmatprep.mubr.bf16.mxu0 %v5176
    %7253 = vmatmul.mubr.bf16.gmra.mrb[0].mxu0 %v4950
    %v7254 = vpop.f32.mrb[0].mxu0
    %v7255 = vadd.f32 %v6966, %v7254
    %v7256 = vpop.f32.mrb[0].mxu0
    %v7257 = vpop.f32.mrb[0].mxu0
    %v7258 = vadd.f32 %v6969, %v7257
    %v7259 = vpop.f32.mrb[0].mxu0
    %7260 = vmatprep.mubr.bf16.mxu0 %v5188
    %7261 = vmatmul.mubr.bf16.gmra.mrb[0].mxu0 %v4951
    %v7262 = vpop.f32.mrb[0].mxu0
    %v7263 = vadd.f32 %v6974, %v7262
    %v7264 = vpop.f32.mrb[0].mxu0
    %v7265 = vpop.f32.mrb[0].mxu0
    %v7266 = vadd.f32 %v6977, %v7265
    %v7267 = vpop.f32.mrb[0].mxu0
    %7268 = vmatprep.mubr.bf16.mxu0 %v5200
    %7269 = vmatmul.mubr.bf16.gmra.mrb[0].mxu0 %v4952
    %v7270 = vpop.f32.mrb[0].mxu0
    %v7271 = vadd.f32 %v6982, %v7270
    %v7272 = vpop.f32.mrb[0].mxu0
    %v7273 = vpop.f32.mrb[0].mxu0
    %v7274 = vadd.f32 %v6985, %v7273
    %v7275 = vpop.f32.mrb[0].mxu0
    %7276 = vmatprep.mubr.bf16.mxu0 %v5212
    %7277 = vmatmul.mubr.bf16.gmra.mrb[0].mxu0 %v4953
    %v7278 = vpop.f32.mrb[0].mxu0
    %v7279 = vadd.f32 %v6990, %v7278
    %v7280 = vpop.f32.mrb[0].mxu0
    %v7281 = vpop.f32.mrb[0].mxu0
    %v7282 = vadd.f32 %v6993, %v7281
    %v7283 = vpop.f32.mrb[0].mxu0
    %7284 = vmatprep.mubr.bf16.mxu0 %v5224
    %7285 = vmatmul.mubr.bf16.gmra.mrb[0].mxu0 %v4954
    %v7286 = vpop.f32.mrb[0].mxu0
    %v7287 = vadd.f32 %v6998, %v7286
    %v7288 = vpop.f32.mrb[0].mxu0
    %v7289 = vpop.f32.mrb[0].mxu0
    %v7290 = vadd.f32 %v7001, %v7289
    %v7291 = vpop.f32.mrb[0].mxu0
    %7292 = vmatprep.mubr.bf16.mxu0 %v5236
    %7293 = vmatmul.mubr.bf16.gmra.mrb[0].mxu0 %v4955
    %v7294 = vpop.f32.mrb[0].mxu0
    %v7295 = vadd.f32 %v7006, %v7294
    %v7296 = vpop.f32.mrb[0].mxu0
    %v7297 = vpop.f32.mrb[0].mxu0
    %v7298 = vadd.f32 %v7009, %v7297
    %v7299 = vpop.f32.mrb[0].mxu0
    %7300 = vmatprep.mubr.bf16.mxu0 %v5248
    %7301 = vmatmul.mubr.bf16.gmra.mrb[0].mxu0 %v4956
    %v7302 = vpop.f32.mrb[0].mxu0
    %v7303 = vadd.f32 %v7014, %v7302
    %v7304 = vpop.f32.mrb[0].mxu0
    %v7305 = vpop.f32.mrb[0].mxu0
    %v7306 = vadd.f32 %v7017, %v7305
    %v7307 = vpop.f32.mrb[0].mxu0
    %7308 = vmatprep.mubr.bf16.mxu0 %v5260
    %7309 = vmatmul.mubr.bf16.gmra.mrb[0].mxu0 %v4957
    %v7310 = vpop.f32.mrb[0].mxu0
    %v7311 = vadd.f32 %v7022, %v7310
    %v7312 = vpop.f32.mrb[0].mxu0
    %v7313 = vpop.f32.mrb[0].mxu0
    %v7314 = vadd.f32 %v7025, %v7313
    %v7315 = vpop.f32.mrb[0].mxu0
    %7316 = vmatprep.mubr.bf16.mxu0 %v5272
    %7317 = vmatmul.mubr.bf16.gmra.mrb[0].mxu0 %v4958
    %v7318 = vpop.f32.mrb[0].mxu0
    %v7319 = vadd.f32 %v7030, %v7318
    %v7320 = vpop.f32.mrb[0].mxu0
    %v7321 = vpop.f32.mrb[0].mxu0
    %v7322 = vadd.f32 %v7033, %v7321
    %v7323 = vpop.f32.mrb[0].mxu0
    %7324 = vmatprep.mubr.bf16.mxu0 %v5284
    %7325 = vmatmul.mubr.bf16.gmra.mrb[0].mxu0 %v4959
    %v7326 = vpop.f32.mrb[0].mxu0
    %v7327 = vadd.f32 %v7038, %v7326
    %v7328 = vpop.f32.mrb[0].mxu0
    %v7329 = vpop.f32.mrb[0].mxu0
    %v7330 = vadd.f32 %v7041, %v7329
    %v7331 = vpop.f32.mrb[0].mxu0
    %7332 = vmatprep.mubr.bf16.mxu0 %v5296
    %7333 = vmatmul.mubr.bf16.gmra.mrb[0].mxu0 %v4960
    %v7334 = vpop.f32.mrb[0].mxu0
    %v7335 = vadd.f32 %v7046, %v7334
    %v7336 = vpop.f32.mrb[0].mxu0
    %v7337 = vpop.f32.mrb[0].mxu0
    %v7338 = vadd.f32 %v7049, %v7337
    %v7339 = vpop.f32.mrb[0].mxu0
    %7340 = vmatprep.mubr.bf16.mxu0 %v5678
    %7341 = vmatmul.mubr.bf16.gmra.mrb[0].mxu0 %v5657
    %v7342 = vpop.f32.mrb[0].mxu0
    %v7343 = vadd.f32 %v7054, %v7342
    %v7344 = vpop.f32.mrb[0].mxu0
    %v7345 = vpop.f32.mrb[0].mxu0
    %v7346 = vadd.f32 %v7057, %v7345
    %v7347 = vpop.f32.mrb[0].mxu0
    %7348 = vmatprep.mubr.bf16.mxu0 %v5730
    %7349 = vmatmul.mubr.bf16.gmra.mrb[0].mxu0 %v5709
    %v7350 = vpop.f32.mrb[0].mxu0
    %v7351 = vadd.f32 %v7062, %v7350
    %v7352 = vpop.f32.mrb[0].mxu0
    %v7353 = vpop.f32.mrb[0].mxu0
    %v7354 = vadd.f32 %v7065, %v7353
    %v7355 = vpop.f32.mrb[0].mxu0
    %7356 = vmatprep.mubr.bf16.mxu0 %v5332
    %7357 = vmatmul.mubr.bf16.gmra.mrb[0].mxu0 %v4963
    %v7358 = vpop.f32.mrb[0].mxu0
    %v7359 = vadd.f32 %v7070, %v7358
    %v7360 = vpop.f32.mrb[0].mxu0
    %v7361 = vpop.f32.mrb[0].mxu0
    %v7362 = vadd.f32 %v7073, %v7361
    %v7363 = vpop.f32.mrb[0].mxu0
    %7364 = vmatprep.mubr.bf16.mxu0 %v5344
    %7365 = vmatmul.mubr.bf16.gmra.mrb[0].mxu0 %v4964
    %v7366 = vpop.f32.mrb[0].mxu0
    %v7367 = vadd.f32 %v7078, %v7366
    %v7368 = vpop.f32.mrb[0].mxu0
    %v7369 = vpop.f32.mrb[0].mxu0
    %v7370 = vadd.f32 %v7081, %v7369
    %v7371 = vpop.f32.mrb[0].mxu0
    %7372 = vmatprep.mubr.bf16.mxu0 %v5356
    %7373 = vmatmul.mubr.bf16.gmra.mrb[0].mxu0 %v4965
    %v7374 = vpop.f32.mrb[0].mxu0
    %v7375 = vadd.f32 %v7086, %v7374
    %v7376 = vpop.f32.mrb[0].mxu0
    %v7377 = vpop.f32.mrb[0].mxu0
    %v7378 = vadd.f32 %v7089, %v7377
    %v7379 = vpop.f32.mrb[0].mxu0
    %7380 = vmatprep.mubr.bf16.mxu0 %v5368
    %7381 = vmatmul.mubr.bf16.gmra.mrb[0].mxu0 %v4966
    %v7382 = vpop.f32.mrb[0].mxu0
    %v7383 = vadd.f32 %v7094, %v7382
    %v7384 = vpop.f32.mrb[0].mxu0
    %v7385 = vpop.f32.mrb[0].mxu0
    %v7386 = vadd.f32 %v7097, %v7385
    %v7387 = vpop.f32.mrb[0].mxu0
    %7388 = vmatprep.mubr.bf16.mxu0 %v5380
    %7389 = vmatmul.mubr.bf16.gmra.mrb[0].mxu0 %v4967
    %v7390 = vpop.f32.mrb[0].mxu0
    %v7391 = vadd.f32 %v7102, %v7390
    %v7392 = vpop.f32.mrb[0].mxu0
    %v7393 = vpop.f32.mrb[0].mxu0
    %v7394 = vadd.f32 %v7105, %v7393
    %v7395 = vpop.f32.mrb[0].mxu0
    %7396 = vmatprep.mubr.bf16.mxu0 %v5392
    %7397 = vmatmul.mubr.bf16.gmra.mrb[0].mxu0 %v4968
    %v7398 = vpop.f32.mrb[0].mxu0
    %v7399 = vadd.f32 %v7110, %v7398
    %v7400 = vpop.f32.mrb[0].mxu0
    %v7401 = vpop.f32.mrb[0].mxu0
    %v7402 = vadd.f32 %v7113, %v7401
    %v7403 = vpop.f32.mrb[0].mxu0
    %7404 = vmatprep.mubr.bf16.mxu0 %v5404
    %7405 = vmatmul.mubr.bf16.gmra.mrb[0].mxu0 %v4969
    %v7406 = vpop.f32.mrb[0].mxu0
    %v7407 = vadd.f32 %v7118, %v7406
    %v7408 = vpop.f32.mrb[0].mxu0
    %v7409 = vpop.f32.mrb[0].mxu0
    %v7410 = vadd.f32 %v7121, %v7409
    %v7411 = vpop.f32.mrb[0].mxu0
    %7412 = vmatprep.mubr.bf16.mxu0 %v5416
    %7413 = vmatmul.mubr.bf16.gmra.mrb[0].mxu0 %v4970
    %v7414 = vpop.f32.mrb[0].mxu0
    %v7415 = vadd.f32 %v7126, %v7414
    %v7416 = vpop.f32.mrb[0].mxu0
    %v7417 = vpop.f32.mrb[0].mxu0
    %v7418 = vadd.f32 %v7129, %v7417
    %v7419 = vpop.f32.mrb[0].mxu0
    %7420 = vmatprep.mubr.bf16.mxu0 %v5428
    %7421 = vmatmul.mubr.bf16.gmra.mrb[0].mxu0 %v4971
    %v7422 = vpop.f32.mrb[0].mxu0
    %v7423 = vadd.f32 %v7134, %v7422
    %v7424 = vpop.f32.mrb[0].mxu0
    %v7425 = vpop.f32.mrb[0].mxu0
    %v7426 = vadd.f32 %v7137, %v7425
    %v7427 = vpop.f32.mrb[0].mxu0
    %7428 = vmatprep.mubr.bf16.mxu0 %v5440
    %7429 = vmatmul.mubr.bf16.gmra.mrb[0].mxu0 %v4972
    %v7430 = vpop.f32.mrb[0].mxu0
    %v7431 = vadd.f32 %v7142, %v7430
    %v7432 = vpop.f32.mrb[0].mxu0
    %v7433 = vpop.f32.mrb[0].mxu0
    %v7434 = vadd.f32 %v7145, %v7433
    %v7435 = vpop.f32.mrb[0].mxu0
    %7436 = vmatprep.mubr.bf16.mxu0 %v5452
    %7437 = vmatmul.mubr.bf16.gmra.mrb[0].mxu0 %v4973
    %v7438 = vpop.f32.mrb[0].mxu0
    %v7439 = vadd.f32 %v7150, %v7438
    %v7440 = vpop.f32.mrb[0].mxu0
    %v7441 = vpop.f32.mrb[0].mxu0
    %v7442 = vadd.f32 %v7153, %v7441
    %v7443 = vpop.f32.mrb[0].mxu0
    %7444 = vmatprep.mubr.bf16.mxu0 %v5464
    %7445 = vmatmul.mubr.bf16.gmra.mrb[0].mxu0 %v4974
    %v7446 = vpop.f32.mrb[0].mxu0
    %v7447 = vadd.f32 %v7158, %v7446
    %v7448 = vpop.f32.mrb[0].mxu0
    %v7449 = vpop.f32.mrb[0].mxu0
    %v7450 = vadd.f32 %v7161, %v7449
    %v7451 = vpop.f32.mrb[0].mxu0
    %7452 = vmatprep.mubr.bf16.mxu0 %v5476
    %7453 = vmatmul.mubr.bf16.gmra.mrb[0].mxu0 %v4975
    %v7454 = vpop.f32.mrb[0].mxu0
    %v7455 = vadd.f32 %v7166, %v7454
    %v7456 = vpop.f32.mrb[0].mxu0
    %v7457 = vpop.f32.mrb[0].mxu0
    %v7458 = vadd.f32 %v7169, %v7457
    %v7459 = vpop.f32.mrb[0].mxu0
    %7460 = vmatprep.mubr.bf16.mxu0 %v5488
    %7461 = vmatmul.mubr.bf16.gmra.mrb[0].mxu0 %v4976
    %v7462 = vpop.f32.mrb[0].mxu0
    %v7463 = vadd.f32 %v7174, %v7462
    %v7464 = vpop.f32.mrb[0].mxu0
    %v7465 = vpop.f32.mrb[0].mxu0
    %v7466 = vadd.f32 %v7177, %v7465
    %v7467 = vpop.f32.mrb[0].mxu0
    %7468 = vmatprep.mubr.bf16.mxu0 %v5690
    %7469 = vmatmul.mubr.bf16.gmra.mrb[0].mxu0 %v5658
    %v7470 = vpop.f32.mrb[0].mxu0
    %v7471 = vadd.f32 %v7182, %v7470
    %v7472 = vpop.f32.mrb[0].mxu0
    %v7473 = vpop.f32.mrb[0].mxu0
    %v7474 = vadd.f32 %v7185, %v7473
    %v7475 = vpop.f32.mrb[0].mxu0
    %7476 = vmatprep.mubr.bf16.mxu0 %v5742
    %7477 = vmatmul.mubr.bf16.gmra.mrb[0].mxu0 %v5710
    %v7478 = vpop.f32.mrb[0].mxu0
    %v7479 = vadd.f32 %v7190, %v7478
    %v7480 = vpop.f32.mrb[0].mxu0
    %v7481 = vpop.f32.mrb[0].mxu0
    %v7482 = vadd.f32 %v7193, %v7481
    %v7483 = vpop.f32.mrb[0].mxu0
    %7484 = vdwg.mxu0
    %7485 = vmatprep.subr.bf16.mxu0 0
    %7486 = vmatpush1.bf16.msra.mxu0 %v6249
    %7487 = vmatprep.subr.bf16.mxu0 0
    %7488 = vmatpush1.bf16.msra.mxu0 %v6250
    %7489 = vmatprep.subr.bf16.mxu0 0
    %7490 = vmatpush1.bf16.msra.mxu0 %v6251
    %7491 = vmatprep.subr.bf16.mxu0 0
    %7492 = vmatpush1.bf16.msra.mxu0 %v6252
    %7493 = vmatprep.subr.bf16.mxu0 0
    %7494 = vmatpush1.bf16.msra.mxu0 %v6253
    %7495 = vmatprep.subr.bf16.mxu0 0
    %7496 = vmatpush1.bf16.msra.mxu0 %v6254
    %7497 = vmatprep.subr.bf16.mxu0 0
    %7498 = vmatpush1.bf16.msra.mxu0 %v6255
    %7499 = vmatprep.subr.bf16.mxu0 0
    %7500 = vmatpush1.bf16.msra.mxu0 %v6256
    %7501 = vmatprep.subr.bf16.mxu0 0
    %7502 = vmatpush1.bf16.msra.mxu0 0
    %7503 = vmatprep.subr.bf16.mxu0 0
    %7504 = vmatpush1.bf16.msra.mxu0 0
    %7505 = vmatprep.subr.bf16.mxu0 0
    %7506 = vmatpush1.bf16.msra.mxu0 0
    %7507 = vmatprep.subr.bf16.mxu0 0
    %7508 = vmatpush1.bf16.msra.mxu0 0
    %7509 = vmatprep.subr.bf16.mxu0 0
    %7510 = vmatpush1.bf16.msra.mxu0 0
    %7511 = vmatprep.subr.bf16.mxu0 0
    %7512 = vmatpush1.bf16.msra.mxu0 0
    %7513 = vmatprep.subr.bf16.mxu0 0
    %7514 = vmatpush1.bf16.msra.mxu0 0
    %7515 = vmatprep.subr.bf16.mxu0 0
    %7516 = vmatpush1.bf16.msra.mxu0 0
    %7517 = vmatprep.mubr.bf16.mxu0 0
    %7518 = vmatmul.mubr.bf16.gmra.mrb[0].mxu0 %v5529
    %v7519 = vpop.f32.mrb[0].mxu0
    %v7520 = vadd.f32 %v7231, %v7519
    %v7521 = vpop.f32.mrb[0].mxu0
    %v7522 = vpop.f32.mrb[0].mxu0
    %v7523 = vadd.f32 %v7234, %v7522
    %v7524 = vpop.f32.mrb[0].mxu0
    %7525 = vmatprep.mubr.bf16.mxu0 0
    %7526 = vmatmul.mubr.bf16.gmra.mrb[0].mxu0 %v5532
    %v7527 = vpop.f32.mrb[0].mxu0
    %v7528 = vadd.f32 %v7239, %v7527
    %v7529 = vpop.f32.mrb[0].mxu0
    %v7530 = vpop.f32.mrb[0].mxu0
    %v7531 = vadd.f32 %v7242, %v7530
    %v7532 = vpop.f32.mrb[0].mxu0
    %7533 = vmatprep.mubr.bf16.mxu0 0
    %7534 = vmatmul.mubr.bf16.gmra.mrb[0].mxu0 %v5535
    %v7535 = vpop.f32.mrb[0].mxu0
    %v7536 = vadd.f32 %v7247, %v7535
    %v7537 = vpop.f32.mrb[0].mxu0
    %v7538 = vpop.f32.mrb[0].mxu0
    %v7539 = vadd.f32 %v7250, %v7538
    %v7540 = vpop.f32.mrb[0].mxu0
    %7541 = vmatprep.mubr.bf16.mxu0 0
    %7542 = vmatmul.mubr.bf16.gmra.mrb[0].mxu0 %v5538
    %v7543 = vpop.f32.mrb[0].mxu0
    %v7544 = vadd.f32 %v7255, %v7543
    %v7545 = vpop.f32.mrb[0].mxu0
    %v7546 = vpop.f32.mrb[0].mxu0
    %v7547 = vadd.f32 %v7258, %v7546
    %v7548 = vpop.f32.mrb[0].mxu0
    %7549 = vmatprep.mubr.bf16.mxu0 0
    %7550 = vmatmul.mubr.bf16.gmra.mrb[0].mxu0 %v5541
    %v7551 = vpop.f32.mrb[0].mxu0
    %v7552 = vadd.f32 %v7263, %v7551
    %v7553 = vpop.f32.mrb[0].mxu0
    %v7554 = vpop.f32.mrb[0].mxu0
    %v7555 = vadd.f32 %v7266, %v7554
    %v7556 = vpop.f32.mrb[0].mxu0
    %7557 = vmatprep.mubr.bf16.mxu0 0
    %7558 = vmatmul.mubr.bf16.gmra.mrb[0].mxu0 %v5544
    %v7559 = vpop.f32.mrb[0].mxu0
    %v7560 = vadd.f32 %v7271, %v7559
    %v7561 = vpop.f32.mrb[0].mxu0
    %v7562 = vpop.f32.mrb[0].mxu0
    %v7563 = vadd.f32 %v7274, %v7562
    %v7564 = vpop.f32.mrb[0].mxu0
    %7565 = vmatprep.mubr.bf16.mxu0 0
    %7566 = vmatmul.mubr.bf16.gmra.mrb[0].mxu0 %v5547
    %v7567 = vpop.f32.mrb[0].mxu0
    %v7568 = vadd.f32 %v7279, %v7567
    %v7569 = vpop.f32.mrb[0].mxu0
    %v7570 = vpop.f32.mrb[0].mxu0
    %v7571 = vadd.f32 %v7282, %v7570
    %v7572 = vpop.f32.mrb[0].mxu0
    %7573 = vmatprep.mubr.bf16.mxu0 0
    %7574 = vmatmul.mubr.bf16.gmra.mrb[0].mxu0 %v5550
    %v7575 = vpop.f32.mrb[0].mxu0
    %v7576 = vadd.f32 %v7287, %v7575
    %v7577 = vpop.f32.mrb[0].mxu0
    %v7578 = vpop.f32.mrb[0].mxu0
    %v7579 = vadd.f32 %v7290, %v7578
    %v7580 = vpop.f32.mrb[0].mxu0
    %7581 = vmatprep.mubr.bf16.mxu0 0
    %7582 = vmatmul.mubr.bf16.gmra.mrb[0].mxu0 %v5553
    %v7583 = vpop.f32.mrb[0].mxu0
    %v7584 = vadd.f32 %v7295, %v7583
    %v7585 = vpop.f32.mrb[0].mxu0
    %v7586 = vpop.f32.mrb[0].mxu0
    %v7587 = vadd.f32 %v7298, %v7586
    %v7588 = vpop.f32.mrb[0].mxu0
    %7589 = vmatprep.mubr.bf16.mxu0 0
    %7590 = vmatmul.mubr.bf16.gmra.mrb[0].mxu0 %v5556
    %v7591 = vpop.f32.mrb[0].mxu0
    %v7592 = vadd.f32 %v7303, %v7591
    %v7593 = vpop.f32.mrb[0].mxu0
    %v7594 = vpop.f32.mrb[0].mxu0
    %v7595 = vadd.f32 %v7306, %v7594
    %v7596 = vpop.f32.mrb[0].mxu0
    %7597 = vmatprep.mubr.bf16.mxu0 0
    %7598 = vmatmul.mubr.bf16.gmra.mrb[0].mxu0 %v5559
    %v7599 = vpop.f32.mrb[0].mxu0
    %v7600 = vadd.f32 %v7311, %v7599
    %v7601 = vpop.f32.mrb[0].mxu0
    %v7602 = vpop.f32.mrb[0].mxu0
    %v7603 = vadd.f32 %v7314, %v7602
    %v7604 = vpop.f32.mrb[0].mxu0
    %7605 = vmatprep.mubr.bf16.mxu0 0
    %7606 = vmatmul.mubr.bf16.gmra.mrb[0].mxu0 %v5562
    %v7607 = vpop.f32.mrb[0].mxu0
    %v7608 = vadd.f32 %v7319, %v7607
    %v7609 = vpop.f32.mrb[0].mxu0
    %v7610 = vpop.f32.mrb[0].mxu0
    %v7611 = vadd.f32 %v7322, %v7610
    %v7612 = vpop.f32.mrb[0].mxu0
    %7613 = vmatprep.mubr.bf16.mxu0 0
    %7614 = vmatmul.mubr.bf16.gmra.mrb[0].mxu0 %v5565
    %v7615 = vpop.f32.mrb[0].mxu0
    %v7616 = vadd.f32 %v7327, %v7615
    %v7617 = vpop.f32.mrb[0].mxu0
    %v7618 = vpop.f32.mrb[0].mxu0
    %v7619 = vadd.f32 %v7330, %v7618
    %v7620 = vpop.f32.mrb[0].mxu0
    %7621 = vmatprep.mubr.bf16.mxu0 0
    %7622 = vmatmul.mubr.bf16.gmra.mrb[0].mxu0 %v5568
    %v7623 = vpop.f32.mrb[0].mxu0
    %v7624 = vadd.f32 %v7335, %v7623
    %v7625 = vpop.f32.mrb[0].mxu0
    %v7626 = vpop.f32.mrb[0].mxu0
    %v7627 = vadd.f32 %v7338, %v7626
    %v7628 = vpop.f32.mrb[0].mxu0
    %7629 = vmatprep.mubr.bf16.mxu0 0
    %7630 = vmatmul.mubr.bf16.gmra.mrb[0].mxu0 %v5695
    %v7631 = vpop.f32.mrb[0].mxu0
    %v7632 = vadd.f32 %v7343, %v7631
    %v7633 = vpop.f32.mrb[0].mxu0
    %v7634 = vpop.f32.mrb[0].mxu0
    %v7635 = vadd.f32 %v7346, %v7634
    %v7636 = vpop.f32.mrb[0].mxu0
    %7637 = vmatprep.mubr.bf16.mxu0 0
    %7638 = vmatmul.mubr.bf16.gmra.mrb[0].mxu0 %v5747
    %v7639 = vpop.f32.mrb[0].mxu0
    %v7640 = vadd.f32 %v7351, %v7639
    %v7641 = vpop.f32.mrb[0].mxu0
    %v7642 = vpop.f32.mrb[0].mxu0
    %v7643 = vadd.f32 %v7354, %v7642
    %v7644 = vpop.f32.mrb[0].mxu0
    %7645 = vmatprep.mubr.bf16.mxu0 0
    %7646 = vmatmul.mubr.bf16.gmra.mrb[0].mxu0 %v5577
    %v7647 = vpop.f32.mrb[0].mxu0
    %v7648 = vadd.f32 %v7359, %v7647
    %v7649 = vpop.f32.mrb[0].mxu0
    %v7650 = vpop.f32.mrb[0].mxu0
    %v7651 = vadd.f32 %v7362, %v7650
    %v7652 = vpop.f32.mrb[0].mxu0
    %7653 = vmatprep.mubr.bf16.mxu0 0
    %7654 = vmatmul.mubr.bf16.gmra.mrb[0].mxu0 %v5580
    %v7655 = vpop.f32.mrb[0].mxu0
    %v7656 = vadd.f32 %v7367, %v7655
    %v7657 = vpop.f32.mrb[0].mxu0
    %v7658 = vpop.f32.mrb[0].mxu0
    %v7659 = vadd.f32 %v7370, %v7658
    %v7660 = vpop.f32.mrb[0].mxu0
    %7661 = vmatprep.mubr.bf16.mxu0 0
    %7662 = vmatmul.mubr.bf16.gmra.mrb[0].mxu0 %v5583
    %v7663 = vpop.f32.mrb[0].mxu0
    %v7664 = vadd.f32 %v7375, %v7663
    %v7665 = vpop.f32.mrb[0].mxu0
    %v7666 = vpop.f32.mrb[0].mxu0
    %v7667 = vadd.f32 %v7378, %v7666
    %v7668 = vpop.f32.mrb[0].mxu0
    %7669 = vmatprep.mubr.bf16.mxu0 0
    %7670 = vmatmul.mubr.bf16.gmra.mrb[0].mxu0 %v5586
    %v7671 = vpop.f32.mrb[0].mxu0
    %v7672 = vadd.f32 %v7383, %v7671
    %v7673 = vpop.f32.mrb[0].mxu0
    %v7674 = vpop.f32.mrb[0].mxu0
    %v7675 = vadd.f32 %v7386, %v7674
    %v7676 = vpop.f32.mrb[0].mxu0
    %7677 = vmatprep.mubr.bf16.mxu0 0
    %7678 = vmatmul.mubr.bf16.gmra.mrb[0].mxu0 %v5589
    %v7679 = vpop.f32.mrb[0].mxu0
    %v7680 = vadd.f32 %v7391, %v7679
    %v7681 = vpop.f32.mrb[0].mxu0
    %v7682 = vpop.f32.mrb[0].mxu0
    %v7683 = vadd.f32 %v7394, %v7682
    %v7684 = vpop.f32.mrb[0].mxu0
    %7685 = vmatprep.mubr.bf16.mxu0 0
    %7686 = vmatmul.mubr.bf16.gmra.mrb[0].mxu0 %v5592
    %v7687 = vpop.f32.mrb[0].mxu0
    %v7688 = vadd.f32 %v7399, %v7687
    %v7689 = vpop.f32.mrb[0].mxu0
    %v7690 = vpop.f32.mrb[0].mxu0
    %v7691 = vadd.f32 %v7402, %v7690
    %v7692 = vpop.f32.mrb[0].mxu0
    %7693 = vmatprep.mubr.bf16.mxu0 0
    %7694 = vmatmul.mubr.bf16.gmra.mrb[0].mxu0 %v5595
    %v7695 = vpop.f32.mrb[0].mxu0
    %v7696 = vadd.f32 %v7407, %v7695
    %v7697 = vpop.f32.mrb[0].mxu0
    %v7698 = vpop.f32.mrb[0].mxu0
    %v7699 = vadd.f32 %v7410, %v7698
    %v7700 = vpop.f32.mrb[0].mxu0
    %7701 = vmatprep.mubr.bf16.mxu0 0
    %7702 = vmatmul.mubr.bf16.gmra.mrb[0].mxu0 %v5598
    %v7703 = vpop.f32.mrb[0].mxu0
    %v7704 = vadd.f32 %v7415, %v7703
    %v7705 = vpop.f32.mrb[0].mxu0
    %v7706 = vpop.f32.mrb[0].mxu0
    %v7707 = vadd.f32 %v7418, %v7706
    %v7708 = vpop.f32.mrb[0].mxu0
    %7709 = vmatprep.mubr.bf16.mxu0 0
    %7710 = vmatmul.mubr.bf16.gmra.mrb[0].mxu0 %v5601
    %v7711 = vpop.f32.mrb[0].mxu0
    %v7712 = vadd.f32 %v7423, %v7711
    %v7713 = vpop.f32.mrb[0].mxu0
    %v7714 = vpop.f32.mrb[0].mxu0
    %v7715 = vadd.f32 %v7426, %v7714
    %v7716 = vpop.f32.mrb[0].mxu0
    %7717 = vmatprep.mubr.bf16.mxu0 0
    %7718 = vmatmul.mubr.bf16.gmra.mrb[0].mxu0 %v5604
    %v7719 = vpop.f32.mrb[0].mxu0
    %v7720 = vadd.f32 %v7431, %v7719
    %v7721 = vpop.f32.mrb[0].mxu0
    %v7722 = vpop.f32.mrb[0].mxu0
    %v7723 = vadd.f32 %v7434, %v7722
    %v7724 = vpop.f32.mrb[0].mxu0
    %7725 = vmatprep.mubr.bf16.mxu0 0
    %7726 = vmatmul.mubr.bf16.gmra.mrb[0].mxu0 %v5607
    %v7727 = vpop.f32.mrb[0].mxu0
    %v7728 = vadd.f32 %v7439, %v7727
    %v7729 = vpop.f32.mrb[0].mxu0
    %v7730 = vpop.f32.mrb[0].mxu0
    %v7731 = vadd.f32 %v7442, %v7730
    %v7732 = vpop.f32.mrb[0].mxu0
    %7733 = vmatprep.mubr.bf16.mxu0 0
    %7734 = vmatmul.mubr.bf16.gmra.mrb[0].mxu0 %v5610
    %v7735 = vpop.f32.mrb[0].mxu0
    %v7736 = vadd.f32 %v7447, %v7735
    %v7737 = vpop.f32.mrb[0].mxu0
    %v7738 = vpop.f32.mrb[0].mxu0
    %v7739 = vadd.f32 %v7450, %v7738
    %v7740 = vpop.f32.mrb[0].mxu0
    %7741 = vmatprep.mubr.bf16.mxu0 0
    %7742 = vmatmul.mubr.bf16.gmra.mrb[0].mxu0 %v5613
    %v7743 = vpop.f32.mrb[0].mxu0
    %v7744 = vadd.f32 %v7455, %v7743
    %v7745 = vpop.f32.mrb[0].mxu0
    %v7746 = vpop.f32.mrb[0].mxu0
    %v7747 = vadd.f32 %v7458, %v7746
    %v7748 = vpop.f32.mrb[0].mxu0
    %7749 = vmatprep.mubr.bf16.mxu0 0
    %7750 = vmatmul.mubr.bf16.gmra.mrb[0].mxu0 %v5616
    %v7751 = vpop.f32.mrb[0].mxu0
    %v7752 = vadd.f32 %v7463, %v7751
    %v7753 = vpop.f32.mrb[0].mxu0
    %v7754 = vpop.f32.mrb[0].mxu0
    %v7755 = vadd.f32 %v7466, %v7754
    %v7756 = vpop.f32.mrb[0].mxu0
    %7757 = vmatprep.mubr.bf16.mxu0 0
    %7758 = vmatmul.mubr.bf16.gmra.mrb[0].mxu0 %v5698
    %v7759 = vpop.f32.mrb[0].mxu0
    %v7760 = vadd.f32 %v7471, %v7759
    %v7761 = vpop.f32.mrb[0].mxu0
    %v7762 = vpop.f32.mrb[0].mxu0
    %v7763 = vadd.f32 %v7474, %v7762
    %v7764 = vpop.f32.mrb[0].mxu0
    %7765 = vmatprep.mubr.bf16.mxu0 0
    %7766 = vmatmul.mubr.bf16.gmra.mrb[0].mxu0 %v5750
    %v7767 = vpop.f32.mrb[0].mxu0
    %v7768 = vadd.f32 %v7479, %v7767
    %v7769 = vpop.f32.mrb[0].mxu0
    %v7770 = vpop.f32.mrb[0].mxu0
    %v7771 = vadd.f32 %v7482, %v7770
    %v7772 = vpop.f32.mrb[0].mxu0
    %7773 = vdwg.mxu0
    %v7774 = vld [vmem:[%s6] sm:$0x1]
    %v7775 = vld [vmem:[%s7] sm:$0x1]
    %v7776 = vadd.f32 %v7520, %v7523
    %v7777 = vadd.f32 %v7776, %v7528
    %v7778 = vadd.f32 %v7777, %v7531
    %v7779 = vadd.f32 %v7778, %v7536
    %v7780 = vadd.f32 %v7779, %v7539
    %v7781 = vadd.f32 %v7780, %v7544
    %v7782 = vadd.f32 %v7781, %v7547
    %v7783 = vadd.f32 %v7782, %v7552
    %v7784 = vadd.f32 %v7783, %v7555
    %v7785 = vadd.f32 %v7784, %v7560
    %v7786 = vadd.f32 %v7785, %v7563
    %v7787 = vadd.f32 %v7786, %v7568
    %v7788 = vadd.f32 %v7787, %v7571
    %v7789 = vadd.f32 %v7788, %v7576
    %v7790 = vadd.f32 %v7789, %v7579
    %v7791 = vadd.f32 %v7790, %v7584
    %v7792 = vadd.f32 %v7791, %v7587
    %v7793 = vadd.f32 %v7792, %v7592
    %v7794 = vadd.f32 %v7793, %v7595
    %v7795 = vadd.f32 %v7794, %v7600
    %v7796 = vadd.f32 %v7795, %v7603
    %v7797 = vadd.f32 %v7796, %v7608
    %v7798 = vadd.f32 %v7797, %v7611
    %v7799 = vadd.f32 %v7798, %v7616
    %v7800 = vadd.f32 %v7799, %v7619
    %v7801 = vadd.f32 %v7800, %v7624
    %v7802 = vadd.f32 %v7801, %v7627
    %v7803 = vadd.f32 %v7802, %v7632
    %v7804 = vadd.f32 %v7803, %v7635
    %v7805 = vadd.f32 %v7804, %v7640
    %v7806 = vadd.f32 %v7805, %v7643
    %v7807 = vadd.f32 %v7806, %v7648
    %v7808 = vadd.f32 %v7807, %v7651
    %v7809 = vadd.f32 %v7808, %v7656
    %v7810 = vadd.f32 %v7809, %v7659
    %v7811 = vadd.f32 %v7810, %v7664
    %v7812 = vadd.f32 %v7811, %v7667
    %v7813 = vadd.f32 %v7812, %v7672
    %v7814 = vadd.f32 %v7813, %v7675
    %v7815 = vadd.f32 %v7814, %v7680
    %v7816 = vadd.f32 %v7815, %v7683
    %v7817 = vadd.f32 %v7816, %v7688
    %v7818 = vadd.f32 %v7817, %v7691
    %v7819 = vadd.f32 %v7818, %v7696
    %v7820 = vadd.f32 %v7819, %v7699
    %v7821 = vadd.f32 %v7820, %v7704
    %v7822 = vadd.f32 %v7821, %v7707
    %v7823 = vadd.f32 %v7822, %v7712
    %v7824 = vadd.f32 %v7823, %v7715
    %v7825 = vadd.f32 %v7824, %v7720
    %v7826 = vadd.f32 %v7825, %v7723
    %v7827 = vadd.f32 %v7826, %v7728
    %v7828 = vadd.f32 %v7827, %v7731
    %v7829 = vadd.f32 %v7828, %v7736
    %v7830 = vadd.f32 %v7829, %v7739
    %v7831 = vadd.f32 %v7830, %v7744
    %v7832 = vadd.f32 %v7831, %v7747
    %v7833 = vadd.f32 %v7832, %v7752
    %v7834 = vadd.f32 %v7833, %v7755
    %v7835 = vadd.f32 %v7834, %v7760
    %v7836 = vadd.f32 %v7835, %v7763
    %v7837 = vadd.f32 %v7836, %v7768
    %v7838 = vadd.f32 %v7837, %v7771
    %v7839 = vrot.slane %v7838, 4
    %v7840 = vadd.f32 %v7838, %v7839
    %v7841 = vrot.slane %v7840, 2
    %v7842 = vadd.f32 %v7840, %v7841
    %v7843 = vrot.slane %v7842, 1
    %v7844 = vadd.f32 %v7842, %v7843
    %v7845 = vmul.f32 %v7520, %v7520
    %v7846 = vmul.f32 %v7523, %v7523
    %v7847 = vmul.f32 %v7528, %v7528
    %v7848 = vmul.f32 %v7531, %v7531
    %v7849 = vmul.f32 %v7536, %v7536
    %v7850 = vmul.f32 %v7539, %v7539
    %v7851 = vmul.f32 %v7544, %v7544
    %v7852 = vmul.f32 %v7547, %v7547
    %v7853 = vmul.f32 %v7552, %v7552
    %v7854 = vmul.f32 %v7555, %v7555
    %v7855 = vmul.f32 %v7560, %v7560
    %v7856 = vmul.f32 %v7563, %v7563
    %v7857 = vmul.f32 %v7568, %v7568
    %v7858 = vmul.f32 %v7571, %v7571
    %v7859 = vmul.f32 %v7576, %v7576
    %v7860 = vmul.f32 %v7579, %v7579
    %v7861 = vmul.f32 %v7584, %v7584
    %v7862 = vmul.f32 %v7587, %v7587
    %v7863 = vmul.f32 %v7592, %v7592
    %v7864 = vmul.f32 %v7595, %v7595
    %v7865 = vmul.f32 %v7600, %v7600
    %v7866 = vmul.f32 %v7603, %v7603
    %v7867 = vmul.f32 %v7608, %v7608
    %v7868 = vmul.f32 %v7611, %v7611
    %v7869 = vmul.f32 %v7616, %v7616
    %v7870 = vmul.f32 %v7619, %v7619
    %v7871 = vmul.f32 %v7624, %v7624
    %v7872 = vmul.f32 %v7627, %v7627
    %v7873 = vmul.f32 %v7632, %v7632
    %v7874 = vmul.f32 %v7635, %v7635
    %v7875 = vmul.f32 %v7640, %v7640
    %v7876 = vmul.f32 %v7643, %v7643
    %v7877 = vmul.f32 %v7648, %v7648
    %v7878 = vmul.f32 %v7651, %v7651
    %v7879 = vmul.f32 %v7656, %v7656
    %v7880 = vmul.f32 %v7659, %v7659
    %v7881 = vmul.f32 %v7664, %v7664
    %v7882 = vmul.f32 %v7667, %v7667
    %v7883 = vmul.f32 %v7672, %v7672
    %v7884 = vmul.f32 %v7675, %v7675
    %v7885 = vmul.f32 %v7680, %v7680
    %v7886 = vmul.f32 %v7683, %v7683
    %v7887 = vmul.f32 %v7688, %v7688
    %v7888 = vmul.f32 %v7691, %v7691
    %v7889 = vmul.f32 %v7696, %v7696
    %v7890 = vmul.f32 %v7699, %v7699
    %v7891 = vmul.f32 %v7704, %v7704
    %v7892 = vmul.f32 %v7707, %v7707
    %v7893 = vmul.f32 %v7712, %v7712
    %v7894 = vmul.f32 %v7715, %v7715
    %v7895 = vmul.f32 %v7720, %v7720
    %v7896 = vmul.f32 %v7723, %v7723
    %v7897 = vmul.f32 %v7728, %v7728
    %v7898 = vmul.f32 %v7731, %v7731
    %v7899 = vmul.f32 %v7736, %v7736
    %v7900 = vmul.f32 %v7739, %v7739
    %v7901 = vmul.f32 %v7744, %v7744
    %v7902 = vmul.f32 %v7747, %v7747
    %v7903 = vmul.f32 %v7752, %v7752
    %v7904 = vmul.f32 %v7755, %v7755
    %v7905 = vmul.f32 %v7760, %v7760
    %v7906 = vmul.f32 %v7763, %v7763
    %v7907 = vmul.f32 %v7768, %v7768
    %v7908 = vmul.f32 %v7771, %v7771
    %v7909 = vadd.f32 %v7845, %v7846
    %v7910 = vadd.f32 %v7909, %v7847
    %v7911 = vadd.f32 %v7910, %v7848
    %v7912 = vadd.f32 %v7911, %v7849
    %v7913 = vadd.f32 %v7912, %v7850
    %v7914 = vadd.f32 %v7913, %v7851
    %v7915 = vadd.f32 %v7914, %v7852
    %v7916 = vadd.f32 %v7915, %v7853
    %v7917 = vadd.f32 %v7916, %v7854
    %v7918 = vadd.f32 %v7917, %v7855
    %v7919 = vadd.f32 %v7918, %v7856
    %v7920 = vadd.f32 %v7919, %v7857
    %v7921 = vadd.f32 %v7920, %v7858
    %v7922 = vadd.f32 %v7921, %v7859
    %v7923 = vadd.f32 %v7922, %v7860
    %v7924 = vadd.f32 %v7923, %v7861
    %v7925 = vadd.f32 %v7924, %v7862
    %v7926 = vadd.f32 %v7925, %v7863
    %v7927 = vadd.f32 %v7926, %v7864
    %v7928 = vadd.f32 %v7927, %v7865
    %v7929 = vadd.f32 %v7928, %v7866
    %v7930 = vadd.f32 %v7929, %v7867
    %v7931 = vadd.f32 %v7930, %v7868
    %v7932 = vadd.f32 %v7931, %v7869
    %v7933 = vadd.f32 %v7932, %v7870
    %v7934 = vadd.f32 %v7933, %v7871
    %v7935 = vadd.f32 %v7934, %v7872
    %v7936 = vadd.f32 %v7935, %v7873
    %v7937 = vadd.f32 %v7936, %v7874
    %v7938 = vadd.f32 %v7937, %v7875
    %v7939 = vadd.f32 %v7938, %v7876
    %v7940 = vadd.f32 %v7939, %v7877
    %v7941 = vadd.f32 %v7940, %v7878
    %v7942 = vadd.f32 %v7941, %v7879
    %v7943 = vadd.f32 %v7942, %v7880
    %v7944 = vadd.f32 %v7943, %v7881
    %v7945 = vadd.f32 %v7944, %v7882
    %v7946 = vadd.f32 %v7945, %v7883
    %v7947 = vadd.f32 %v7946, %v7884
    %v7948 = vadd.f32 %v7947, %v7885
    %v7949 = vadd.f32 %v7948, %v7886
    %v7950 = vadd.f32 %v7949, %v7887
    %v7951 = vadd.f32 %v7950, %v7888
    %v7952 = vadd.f32 %v7951, %v7889
    %v7953 = vadd.f32 %v7952, %v7890
    %v7954 = vadd.f32 %v7953, %v7891
    %v7955 = vadd.f32 %v7954, %v7892
    %v7956 = vadd.f32 %v7955, %v7893
    %v7957 = vadd.f32 %v7956, %v7894
    %v7958 = vadd.f32 %v7957, %v7895
    %v7959 = vadd.f32 %v7958, %v7896
    %v7960 = vadd.f32 %v7959, %v7897
    %v7961 = vadd.f32 %v7960, %v7898
    %v7962 = vadd.f32 %v7961, %v7899
    %v7963 = vadd.f32 %v7962, %v7900
    %v7964 = vadd.f32 %v7963, %v7901
    %v7965 = vadd.f32 %v7964, %v7902
    %v7966 = vadd.f32 %v7965, %v7903
    %v7967 = vadd.f32 %v7966, %v7904
    %v7968 = vadd.f32 %v7967, %v7905
    %v7969 = vadd.f32 %v7968, %v7906
    %v7970 = vadd.f32 %v7969, %v7907
    %v7971 = vadd.f32 %v7970, %v7908
    %v7972 = vrot.slane %v7971, 4
    %v7973 = vadd.f32 %v7971, %v7972
    %v7974 = vrot.slane %v7973, 2
    %v7975 = vadd.f32 %v7973, %v7974
    %v7976 = vrot.slane %v7975, 1
    %v7977 = vadd.f32 %v7975, %v7976
    %v7978 = vmul.f32 %v7844, 0.001953125
    %v7979 = vmul.f32 %v7977, 0.001953125
    %v7980 = vmul.f32 %v7978, %v7978
    %v7981 = vsub.f32 %v7979, %v7980
    %v7982 = vmax.f32 %v7981, 0.0
    %v7983 = vadd.f32 %v7982, 1e-05
    %v7984 = vrsqrt.pop %v7983
    %v7985 = vmul.f32 %v7774, %v7984
    %v7986 = vmul.f32 %v7978, %v7985
    %v7987 = vsub.f32 %v7775, %v7986
    %v7989 = vlaneseq
    %v7990 = vshrl.u32 %v7989, 7
    %v7991 = vsub.s32 0, %v7990
    %v7992 = vrot.slane %v7985, %v7991
    %v7994 = vmul.f32 %v7520, %v7992
    %v7995 = vmul.f32 %v7523, %v7992
    %v7996 = vmul.f32 %v7528, %v7992
    %v7997 = vmul.f32 %v7531, %v7992
    %v7998 = vmul.f32 %v7536, %v7992
    %v7999 = vmul.f32 %v7539, %v7992
    %v8000 = vmul.f32 %v7544, %v7992
    %v8001 = vmul.f32 %v7547, %v7992
    %v8002 = vmul.f32 %v7552, %v7992
    %v8003 = vmul.f32 %v7555, %v7992
    %v8004 = vmul.f32 %v7560, %v7992
    %v8005 = vmul.f32 %v7563, %v7992
    %v8006 = vmul.f32 %v7568, %v7992
    %v8007 = vmul.f32 %v7571, %v7992
    %v8008 = vmul.f32 %v7576, %v7992
    %v8009 = vmul.f32 %v7579, %v7992
    %v8010 = vmul.f32 %v7584, %v7992
    %v8011 = vmul.f32 %v7587, %v7992
    %v8012 = vmul.f32 %v7592, %v7992
    %v8013 = vmul.f32 %v7595, %v7992
    %v8014 = vmul.f32 %v7600, %v7992
    %v8015 = vmul.f32 %v7603, %v7992
    %v8016 = vmul.f32 %v7608, %v7992
    %v8017 = vmul.f32 %v7611, %v7992
    %v8018 = vmul.f32 %v7616, %v7992
    %v8019 = vmul.f32 %v7619, %v7992
    %v8020 = vmul.f32 %v7624, %v7992
    %v8021 = vmul.f32 %v7627, %v7992
    %v8022 = vmul.f32 %v7632, %v7992
    %v8023 = vmul.f32 %v7635, %v7992
    %v8024 = vmul.f32 %v7640, %v7992
    %v8025 = vmul.f32 %v7643, %v7992
    %v8026 = vmul.f32 %v7648, %v7992
    %v8027 = vmul.f32 %v7651, %v7992
    %v8028 = vmul.f32 %v7656, %v7992
    %v8029 = vmul.f32 %v7659, %v7992
    %v8030 = vmul.f32 %v7664, %v7992
    %v8031 = vmul.f32 %v7667, %v7992
    %v8032 = vmul.f32 %v7672, %v7992
    %v8033 = vmul.f32 %v7675, %v7992
    %v8034 = vmul.f32 %v7680, %v7992
    %v8035 = vmul.f32 %v7683, %v7992
    %v8036 = vmul.f32 %v7688, %v7992
    %v8037 = vmul.f32 %v7691, %v7992
    %v8038 = vmul.f32 %v7696, %v7992
    %v8039 = vmul.f32 %v7699, %v7992
    %v8040 = vmul.f32 %v7704, %v7992
    %v8041 = vmul.f32 %v7707, %v7992
    %v8042 = vmul.f32 %v7712, %v7992
    %v8043 = vmul.f32 %v7715, %v7992
    %v8044 = vmul.f32 %v7720, %v7992
    %v8045 = vmul.f32 %v7723, %v7992
    %v8046 = vmul.f32 %v7728, %v7992
    %v8047 = vmul.f32 %v7731, %v7992
    %v8048 = vmul.f32 %v7736, %v7992
    %v8049 = vmul.f32 %v7739, %v7992
    %v8050 = vmul.f32 %v7744, %v7992
    %v8051 = vmul.f32 %v7747, %v7992
    %v8052 = vmul.f32 %v7752, %v7992
    %v8053 = vmul.f32 %v7755, %v7992
    %v8054 = vmul.f32 %v7760, %v7992
    %v8055 = vmul.f32 %v7763, %v7992
    %v8056 = vmul.f32 %v7768, %v7992
    %v8057 = vmul.f32 %v7771, %v7992
    %v8059 = vlaneseq
    %v8060 = vshrl.u32 %v8059, 7
    %v8061 = vsub.s32 0, %v8060
    %v8062 = vrot.slane %v7987, %v8061
    %v8064 = vadd.f32 %v7994, %v8062
    %v8065 = vadd.f32 %v7995, %v8062
    %v8066 = vadd.f32 %v7996, %v8062
    %v8067 = vadd.f32 %v7997, %v8062
    %v8068 = vadd.f32 %v7998, %v8062
    %v8069 = vadd.f32 %v7999, %v8062
    %v8070 = vadd.f32 %v8000, %v8062
    %v8071 = vadd.f32 %v8001, %v8062
    %v8072 = vadd.f32 %v8002, %v8062
    %v8073 = vadd.f32 %v8003, %v8062
    %v8074 = vadd.f32 %v8004, %v8062
    %v8075 = vadd.f32 %v8005, %v8062
    %v8076 = vadd.f32 %v8006, %v8062
    %v8077 = vadd.f32 %v8007, %v8062
    %v8078 = vadd.f32 %v8008, %v8062
    %v8079 = vadd.f32 %v8009, %v8062
    %v8080 = vadd.f32 %v8010, %v8062
    %v8081 = vadd.f32 %v8011, %v8062
    %v8082 = vadd.f32 %v8012, %v8062
    %v8083 = vadd.f32 %v8013, %v8062
    %v8084 = vadd.f32 %v8014, %v8062
    %v8085 = vadd.f32 %v8015, %v8062
    %v8086 = vadd.f32 %v8016, %v8062
    %v8087 = vadd.f32 %v8017, %v8062
    %v8088 = vadd.f32 %v8018, %v8062
    %v8089 = vadd.f32 %v8019, %v8062
    %v8090 = vadd.f32 %v8020, %v8062
    %v8091 = vadd.f32 %v8021, %v8062
    %v8092 = vadd.f32 %v8022, %v8062
    %v8093 = vadd.f32 %v8023, %v8062
    %v8094 = vadd.f32 %v8024, %v8062
    %v8095 = vadd.f32 %v8025, %v8062
    %v8096 = vadd.f32 %v8026, %v8062
    %v8097 = vadd.f32 %v8027, %v8062
    %v8098 = vadd.f32 %v8028, %v8062
    %v8099 = vadd.f32 %v8029, %v8062
    %v8100 = vadd.f32 %v8030, %v8062
    %v8101 = vadd.f32 %v8031, %v8062
    %v8102 = vadd.f32 %v8032, %v8062
    %v8103 = vadd.f32 %v8033, %v8062
    %v8104 = vadd.f32 %v8034, %v8062
    %v8105 = vadd.f32 %v8035, %v8062
    %v8106 = vadd.f32 %v8036, %v8062
    %v8107 = vadd.f32 %v8037, %v8062
    %v8108 = vadd.f32 %v8038, %v8062
    %v8109 = vadd.f32 %v8039, %v8062
    %v8110 = vadd.f32 %v8040, %v8062
    %v8111 = vadd.f32 %v8041, %v8062
    %v8112 = vadd.f32 %v8042, %v8062
    %v8113 = vadd.f32 %v8043, %v8062
    %v8114 = vadd.f32 %v8044, %v8062
    %v8115 = vadd.f32 %v8045, %v8062
    %v8116 = vadd.f32 %v8046, %v8062
    %v8117 = vadd.f32 %v8047, %v8062
    %v8118 = vadd.f32 %v8048, %v8062
    %v8119 = vadd.f32 %v8049, %v8062
    %v8120 = vadd.f32 %v8050, %v8062
    %v8121 = vadd.f32 %v8051, %v8062
    %v8122 = vadd.f32 %v8052, %v8062
    %v8123 = vadd.f32 %v8053, %v8062
    %v8124 = vadd.f32 %v8054, %v8062
    %v8125 = vadd.f32 %v8055, %v8062
    %v8126 = vadd.f32 %v8056, %v8062
    %v8127 = vadd.f32 %v8057, %v8062
    %vm8128 = vsmask.f32 3328
    %vm8129 = vsmask.f32 7440
    %vm8130 = vmor %vm8128, %vm8129
    %v8132 = vshrl.u32 %v54, 16
    %v8134 = vrot.slane %v8132, 4
    %v8135 = vshll.u32 %v54, 16
    %v8137 = vrot.slane %v8135, 5
    %v8138 = vor.u32 %v8134, %v8137
    %v8139 = vrot.slane %v8138, 4
    %v8141 = vshll.u32 %v55, 16
    %v8143 = vrot.slane %v8141, 5
    %v8144 = vsel %vm8130, %v8139, %v8143
    %v8145 = vshrl.u32 %v55, 16
    %v8147 = vrot.slane %v8145, 4
    %v8148 = vor.u32 %v8147, %v8143
    %v8149 = vrot.slane %v8148, 4
    %v8151 = vshll.u32 %v56, 16
    %v8153 = vrot.slane %v8151, 5
    %v8154 = vsel %vm8130, %v8149, %v8153
    %v8156 = vshrl.u32 %v57, 16
    %v8158 = vrot.slane %v8156, 4
    %v8159 = vshll.u32 %v57, 16
    %v8161 = vrot.slane %v8159, 5
    %v8162 = vor.u32 %v8158, %v8161
    %v8163 = vrot.slane %v8162, 4
    %v8165 = vshll.u32 %v58, 16
    %v8167 = vrot.slane %v8165, 5
    %v8168 = vsel %vm8130, %v8163, %v8167
    %v8169 = vshrl.u32 %v58, 16
    %v8171 = vrot.slane %v8169, 4
    %v8172 = vor.u32 %v8171, %v8167
    %v8173 = vrot.slane %v8172, 4
    %v8175 = vshll.u32 %v59, 16
    %v8177 = vrot.slane %v8175, 5
    %v8178 = vsel %vm8130, %v8173, %v8177
    %v8180 = vshrl.u32 %v60, 16
    %v8182 = vrot.slane %v8180, 4
    %v8183 = vshll.u32 %v60, 16
    %v8185 = vrot.slane %v8183, 5
    %v8186 = vor.u32 %v8182, %v8185
    %v8187 = vrot.slane %v8186, 4
    %v8189 = vshll.u32 %v61, 16
    %v8191 = vrot.slane %v8189, 5
    %v8192 = vsel %vm8130, %v8187, %v8191
    %v8193 = vshrl.u32 %v61, 16
    %v8195 = vrot.slane %v8193, 4
    %v8196 = vor.u32 %v8195, %v8191
    %v8197 = vrot.slane %v8196, 4
    %v8199 = vshll.u32 %v62, 16
    %v8201 = vrot.slane %v8199, 5
    %v8202 = vsel %vm8130, %v8197, %v8201
    %v8204 = vshrl.u32 %v63, 16
    %v8206 = vrot.slane %v8204, 4
    %v8207 = vshll.u32 %v63, 16
    %v8209 = vrot.slane %v8207, 5
    %v8210 = vor.u32 %v8206, %v8209
    %v8211 = vrot.slane %v8210, 4
    %v8213 = vshll.u32 %v64, 16
    %v8215 = vrot.slane %v8213, 5
    %v8216 = vsel %vm8130, %v8211, %v8215
    %v8217 = vshrl.u32 %v64, 16
    %v8219 = vrot.slane %v8217, 4
    %v8220 = vor.u32 %v8219, %v8215
    %v8221 = vrot.slane %v8220, 4
    %v8223 = vshll.u32 %v65, 16
    %v8225 = vrot.slane %v8223, 5
    %v8226 = vsel %vm8130, %v8221, %v8225
    %v8228 = vshrl.u32 %v66, 16
    %v8230 = vrot.slane %v8228, 4
    %v8231 = vshll.u32 %v66, 16
    %v8233 = vrot.slane %v8231, 5
    %v8234 = vor.u32 %v8230, %v8233
    %v8235 = vrot.slane %v8234, 4
    %v8237 = vshll.u32 %v67, 16
    %v8239 = vrot.slane %v8237, 5
    %v8240 = vsel %vm8130, %v8235, %v8239
    %v8241 = vshrl.u32 %v67, 16
    %v8243 = vrot.slane %v8241, 4
    %v8244 = vor.u32 %v8243, %v8239
    %v8245 = vrot.slane %v8244, 4
    %v8247 = vshll.u32 %v68, 16
    %v8249 = vrot.slane %v8247, 5
    %v8250 = vsel %vm8130, %v8245, %v8249
    %v8252 = vshrl.u32 %v69, 16
    %v8254 = vrot.slane %v8252, 4
    %v8255 = vshll.u32 %v69, 16
    %v8257 = vrot.slane %v8255, 5
    %v8258 = vor.u32 %v8254, %v8257
    %v8259 = vrot.slane %v8258, 4
    %v8261 = vshll.u32 %v70, 16
    %v8263 = vrot.slane %v8261, 5
    %v8264 = vsel %vm8130, %v8259, %v8263
    %v8265 = vshrl.u32 %v70, 16
    %v8267 = vrot.slane %v8265, 4
    %v8268 = vor.u32 %v8267, %v8263
    %v8269 = vrot.slane %v8268, 4
    %v8271 = vshll.u32 %v71, 16
    %v8273 = vrot.slane %v8271, 5
    %v8274 = vsel %vm8130, %v8269, %v8273
    %v8276 = vshrl.u32 %v72, 16
    %v8278 = vrot.slane %v8276, 4
    %v8279 = vshll.u32 %v72, 16
    %v8281 = vrot.slane %v8279, 5
    %v8282 = vor.u32 %v8278, %v8281
    %v8283 = vrot.slane %v8282, 4
    %v8285 = vshll.u32 %v73, 16
    %v8287 = vrot.slane %v8285, 5
    %v8288 = vsel %vm8130, %v8283, %v8287
    %v8289 = vshrl.u32 %v73, 16
    %v8291 = vrot.slane %v8289, 4
    %v8292 = vor.u32 %v8291, %v8287
    %v8293 = vrot.slane %v8292, 4
    %v8295 = vshll.u32 %v74, 16
    %v8297 = vrot.slane %v8295, 5
    %v8298 = vsel %vm8130, %v8293, %v8297
    %v8300 = vshrl.u32 %v75, 16
    %v8302 = vrot.slane %v8300, 4
    %v8303 = vshll.u32 %v75, 16
    %v8305 = vrot.slane %v8303, 5
    %v8306 = vor.u32 %v8302, %v8305
    %v8307 = vrot.slane %v8306, 4
    %v8309 = vshll.u32 %v76, 16
    %v8311 = vrot.slane %v8309, 5
    %v8312 = vsel %vm8130, %v8307, %v8311
    %v8313 = vshrl.u32 %v76, 16
    %v8315 = vrot.slane %v8313, 4
    %v8316 = vor.u32 %v8315, %v8311
    %v8317 = vrot.slane %v8316, 4
    %v8319 = vshll.u32 %v77, 16
    %v8321 = vrot.slane %v8319, 5
    %v8322 = vsel %vm8130, %v8317, %v8321
    %v8324 = vshrl.u32 %v78, 16
    %v8326 = vrot.slane %v8324, 4
    %v8327 = vshll.u32 %v78, 16
    %v8329 = vrot.slane %v8327, 5
    %v8330 = vor.u32 %v8326, %v8329
    %v8331 = vrot.slane %v8330, 4
    %v8333 = vshll.u32 %v79, 16
    %v8335 = vrot.slane %v8333, 5
    %v8336 = vsel %vm8130, %v8331, %v8335
    %v8337 = vshrl.u32 %v79, 16
    %v8339 = vrot.slane %v8337, 4
    %v8340 = vor.u32 %v8339, %v8335
    %v8341 = vrot.slane %v8340, 4
    %v8343 = vshll.u32 %v80, 16
    %v8345 = vrot.slane %v8343, 5
    %v8346 = vsel %vm8130, %v8341, %v8345
    %v8348 = vshrl.u32 %v81, 16
    %v8350 = vrot.slane %v8348, 4
    %v8351 = vshll.u32 %v81, 16
    %v8353 = vrot.slane %v8351, 5
    %v8354 = vor.u32 %v8350, %v8353
    %v8355 = vrot.slane %v8354, 4
    %v8357 = vshll.u32 %v82, 16
    %v8359 = vrot.slane %v8357, 5
    %v8360 = vsel %vm8130, %v8355, %v8359
    %v8361 = vshrl.u32 %v82, 16
    %v8363 = vrot.slane %v8361, 4
    %v8364 = vor.u32 %v8363, %v8359
    %v8365 = vrot.slane %v8364, 4
    %v8367 = vshll.u32 %v83, 16
    %v8369 = vrot.slane %v8367, 5
    %v8370 = vsel %vm8130, %v8365, %v8369
    %v8372 = vshrl.u32 %v84, 16
    %v8374 = vrot.slane %v8372, 4
    %v8375 = vshll.u32 %v84, 16
    %v8377 = vrot.slane %v8375, 5
    %v8378 = vor.u32 %v8374, %v8377
    %v8379 = vrot.slane %v8378, 4
    %v8381 = vshll.u32 %v85, 16
    %v8383 = vrot.slane %v8381, 5
    %v8384 = vsel %vm8130, %v8379, %v8383
    %v8385 = vshrl.u32 %v85, 16
    %v8387 = vrot.slane %v8385, 4
    %v8388 = vor.u32 %v8387, %v8383
    %v8389 = vrot.slane %v8388, 4
    %v8391 = vshll.u32 %v86, 16
    %v8393 = vrot.slane %v8391, 5
    %v8394 = vsel %vm8130, %v8389, %v8393
    %v8396 = vshrl.u32 %v87, 16
    %v8398 = vrot.slane %v8396, 4
    %v8399 = vshll.u32 %v87, 16
    %v8401 = vrot.slane %v8399, 5
    %v8402 = vor.u32 %v8398, %v8401
    %v8403 = vrot.slane %v8402, 4
    %v8405 = vshll.u32 %v88, 16
    %v8407 = vrot.slane %v8405, 5
    %v8408 = vsel %vm8130, %v8403, %v8407
    %v8409 = vshrl.u32 %v88, 16
    %v8411 = vrot.slane %v8409, 4
    %v8412 = vor.u32 %v8411, %v8407
    %v8413 = vrot.slane %v8412, 4
    %v8415 = vshll.u32 %v89, 16
    %v8417 = vrot.slane %v8415, 5
    %v8418 = vsel %vm8130, %v8413, %v8417
    %v8420 = vshrl.u32 %v90, 16
    %v8422 = vrot.slane %v8420, 4
    %v8423 = vshll.u32 %v90, 16
    %v8425 = vrot.slane %v8423, 5
    %v8426 = vor.u32 %v8422, %v8425
    %v8427 = vrot.slane %v8426, 4
    %v8429 = vshll.u32 %v91, 16
    %v8431 = vrot.slane %v8429, 5
    %v8432 = vsel %vm8130, %v8427, %v8431
    %v8433 = vshrl.u32 %v91, 16
    %v8435 = vrot.slane %v8433, 4
    %v8436 = vor.u32 %v8435, %v8431
    %v8437 = vrot.slane %v8436, 4
    %v8439 = vshll.u32 %v92, 16
    %v8441 = vrot.slane %v8439, 5
    %v8442 = vsel %vm8130, %v8437, %v8441
    %v8444 = vshrl.u32 %v93, 16
    %v8446 = vrot.slane %v8444, 4
    %v8447 = vshll.u32 %v93, 16
    %v8449 = vrot.slane %v8447, 5
    %v8450 = vor.u32 %v8446, %v8449
    %v8451 = vrot.slane %v8450, 4
    %v8453 = vshll.u32 %v94, 16
    %v8455 = vrot.slane %v8453, 5
    %v8456 = vsel %vm8130, %v8451, %v8455
    %v8457 = vshrl.u32 %v94, 16
    %v8459 = vrot.slane %v8457, 4
    %v8460 = vor.u32 %v8459, %v8455
    %v8461 = vrot.slane %v8460, 4
    %v8463 = vshll.u32 %v95, 16
    %v8465 = vrot.slane %v8463, 5
    %v8466 = vsel %vm8130, %v8461, %v8465
    %v8468 = vshrl.u32 %v96, 16
    %v8470 = vrot.slane %v8468, 4
    %v8471 = vshll.u32 %v96, 16
    %v8473 = vrot.slane %v8471, 5
    %v8474 = vor.u32 %v8470, %v8473
    %v8475 = vrot.slane %v8474, 4
    %v8477 = vshll.u32 %v97, 16
    %v8479 = vrot.slane %v8477, 5
    %v8480 = vsel %vm8130, %v8475, %v8479
    %v8481 = vshrl.u32 %v97, 16
    %v8483 = vrot.slane %v8481, 4
    %v8484 = vor.u32 %v8483, %v8479
    %v8485 = vrot.slane %v8484, 4
    %v8487 = vshll.u32 %v98, 16
    %v8489 = vrot.slane %v8487, 5
    %v8490 = vsel %vm8130, %v8485, %v8489
    %v8492 = vshrl.u32 %v99, 16
    %v8494 = vrot.slane %v8492, 4
    %v8495 = vshll.u32 %v99, 16
    %v8497 = vrot.slane %v8495, 5
    %v8498 = vor.u32 %v8494, %v8497
    %v8499 = vrot.slane %v8498, 4
    %v8501 = vshll.u32 %v100, 16
    %v8503 = vrot.slane %v8501, 5
    %v8504 = vsel %vm8130, %v8499, %v8503
    %v8505 = vshrl.u32 %v100, 16
    %v8507 = vrot.slane %v8505, 4
    %v8508 = vor.u32 %v8507, %v8503
    %v8509 = vrot.slane %v8508, 4
    %v8511 = vshll.u32 %v101, 16
    %v8513 = vrot.slane %v8511, 5
    %v8514 = vsel %vm8130, %v8509, %v8513
    %v8516 = vshrl.u32 %v108, 16
    %v8518 = vrot.slane %v8516, 4
    %v8519 = vshll.u32 %v108, 16
    %v8521 = vrot.slane %v8519, 5
    %v8522 = vor.u32 %v8518, %v8521
    %v8523 = vrot.slane %v8522, 4
    %v8525 = vshll.u32 %v109, 16
    %v8527 = vrot.slane %v8525, 5
    %v8528 = vsel %vm8130, %v8523, %v8527
    %v8529 = vshrl.u32 %v109, 16
    %v8531 = vrot.slane %v8529, 4
    %v8532 = vor.u32 %v8531, %v8527
    %v8533 = vrot.slane %v8532, 4
    %v8535 = vshll.u32 %v110, 16
    %v8537 = vrot.slane %v8535, 5
    %v8538 = vsel %vm8130, %v8533, %v8537
    %v8540 = vshrl.u32 %v111, 16
    %v8542 = vrot.slane %v8540, 4
    %v8543 = vshll.u32 %v111, 16
    %v8545 = vrot.slane %v8543, 5
    %v8546 = vor.u32 %v8542, %v8545
    %v8547 = vrot.slane %v8546, 4
    %v8549 = vshll.u32 %v112, 16
    %v8551 = vrot.slane %v8549, 5
    %v8552 = vsel %vm8130, %v8547, %v8551
    %v8553 = vshrl.u32 %v112, 16
    %v8555 = vrot.slane %v8553, 4
    %v8556 = vor.u32 %v8555, %v8551
    %v8557 = vrot.slane %v8556, 4
    %v8559 = vshll.u32 %v113, 16
    %v8561 = vrot.slane %v8559, 5
    %v8562 = vsel %vm8130, %v8557, %v8561
    %v8564 = vshrl.u32 %v114, 16
    %v8566 = vrot.slane %v8564, 4
    %v8567 = vshll.u32 %v114, 16
    %v8569 = vrot.slane %v8567, 5
    %v8570 = vor.u32 %v8566, %v8569
    %v8571 = vrot.slane %v8570, 4
    %v8573 = vshll.u32 %v115, 16
    %v8575 = vrot.slane %v8573, 5
    %v8576 = vsel %vm8130, %v8571, %v8575
    %v8577 = vshrl.u32 %v115, 16
    %v8579 = vrot.slane %v8577, 4
    %v8580 = vor.u32 %v8579, %v8575
    %v8581 = vrot.slane %v8580, 4
    %v8583 = vshll.u32 %v116, 16
    %v8585 = vrot.slane %v8583, 5
    %v8586 = vsel %vm8130, %v8581, %v8585
    %v8588 = vshrl.u32 %v117, 16
    %v8590 = vrot.slane %v8588, 4
    %v8591 = vshll.u32 %v117, 16
    %v8593 = vrot.slane %v8591, 5
    %v8594 = vor.u32 %v8590, %v8593
    %v8595 = vrot.slane %v8594, 4
    %v8597 = vshll.u32 %v118, 16
    %v8599 = vrot.slane %v8597, 5
    %v8600 = vsel %vm8130, %v8595, %v8599
    %v8601 = vshrl.u32 %v118, 16
    %v8603 = vrot.slane %v8601, 4
    %v8604 = vor.u32 %v8603, %v8599
    %v8605 = vrot.slane %v8604, 4
    %v8607 = vshll.u32 %v119, 16
    %v8609 = vrot.slane %v8607, 5
    %v8610 = vsel %vm8130, %v8605, %v8609
    %v8612 = vshrl.u32 %v120, 16
    %v8614 = vrot.slane %v8612, 4
    %v8615 = vshll.u32 %v120, 16
    %v8617 = vrot.slane %v8615, 5
    %v8618 = vor.u32 %v8614, %v8617
    %v8619 = vrot.slane %v8618, 4
    %v8621 = vshll.u32 %v121, 16
    %v8623 = vrot.slane %v8621, 5
    %v8624 = vsel %vm8130, %v8619, %v8623
    %v8625 = vshrl.u32 %v121, 16
    %v8627 = vrot.slane %v8625, 4
    %v8628 = vor.u32 %v8627, %v8623
    %v8629 = vrot.slane %v8628, 4
    %v8631 = vshll.u32 %v122, 16
    %v8633 = vrot.slane %v8631, 5
    %v8634 = vsel %vm8130, %v8629, %v8633
    %v8636 = vshrl.u32 %v123, 16
    %v8638 = vrot.slane %v8636, 4
    %v8639 = vshll.u32 %v123, 16
    %v8641 = vrot.slane %v8639, 5
    %v8642 = vor.u32 %v8638, %v8641
    %v8643 = vrot.slane %v8642, 4
    %v8645 = vshll.u32 %v124, 16
    %v8647 = vrot.slane %v8645, 5
    %v8648 = vsel %vm8130, %v8643, %v8647
    %v8649 = vshrl.u32 %v124, 16
    %v8651 = vrot.slane %v8649, 4
    %v8652 = vor.u32 %v8651, %v8647
    %v8653 = vrot.slane %v8652, 4
    %v8655 = vshll.u32 %v125, 16
    %v8657 = vrot.slane %v8655, 5
    %v8658 = vsel %vm8130, %v8653, %v8657
    %v8660 = vshrl.u32 %v126, 16
    %v8662 = vrot.slane %v8660, 4
    %v8663 = vshll.u32 %v126, 16
    %v8665 = vrot.slane %v8663, 5
    %v8666 = vor.u32 %v8662, %v8665
    %v8667 = vrot.slane %v8666, 4
    %v8669 = vshll.u32 %v127, 16
    %v8671 = vrot.slane %v8669, 5
    %v8672 = vsel %vm8130, %v8667, %v8671
    %v8673 = vshrl.u32 %v127, 16
    %v8675 = vrot.slane %v8673, 4
    %v8676 = vor.u32 %v8675, %v8671
    %v8677 = vrot.slane %v8676, 4
    %v8679 = vshll.u32 %v128, 16
    %v8681 = vrot.slane %v8679, 5
    %v8682 = vsel %vm8130, %v8677, %v8681
    %v8684 = vshrl.u32 %v129, 16
    %v8686 = vrot.slane %v8684, 4
    %v8687 = vshll.u32 %v129, 16
    %v8689 = vrot.slane %v8687, 5
    %v8690 = vor.u32 %v8686, %v8689
    %v8691 = vrot.slane %v8690, 4
    %v8693 = vshll.u32 %v130, 16
    %v8695 = vrot.slane %v8693, 5
    %v8696 = vsel %vm8130, %v8691, %v8695
    %v8697 = vshrl.u32 %v130, 16
    %v8699 = vrot.slane %v8697, 4
    %v8700 = vor.u32 %v8699, %v8695
    %v8701 = vrot.slane %v8700, 4
    %v8703 = vshll.u32 %v131, 16
    %v8705 = vrot.slane %v8703, 5
    %v8706 = vsel %vm8130, %v8701, %v8705
    %v8708 = vshrl.u32 %v132, 16
    %v8710 = vrot.slane %v8708, 4
    %v8711 = vshll.u32 %v132, 16
    %v8713 = vrot.slane %v8711, 5
    %v8714 = vor.u32 %v8710, %v8713
    %v8715 = vrot.slane %v8714, 4
    %v8717 = vshll.u32 %v133, 16
    %v8719 = vrot.slane %v8717, 5
    %v8720 = vsel %vm8130, %v8715, %v8719
    %v8721 = vshrl.u32 %v133, 16
    %v8723 = vrot.slane %v8721, 4
    %v8724 = vor.u32 %v8723, %v8719
    %v8725 = vrot.slane %v8724, 4
    %v8727 = vshll.u32 %v134, 16
    %v8729 = vrot.slane %v8727, 5
    %v8730 = vsel %vm8130, %v8725, %v8729
    %v8732 = vshrl.u32 %v135, 16
    %v8734 = vrot.slane %v8732, 4
    %v8735 = vshll.u32 %v135, 16
    %v8737 = vrot.slane %v8735, 5
    %v8738 = vor.u32 %v8734, %v8737
    %v8739 = vrot.slane %v8738, 4
    %v8741 = vshll.u32 %v136, 16
    %v8743 = vrot.slane %v8741, 5
    %v8744 = vsel %vm8130, %v8739, %v8743
    %v8745 = vshrl.u32 %v136, 16
    %v8747 = vrot.slane %v8745, 4
    %v8748 = vor.u32 %v8747, %v8743
    %v8749 = vrot.slane %v8748, 4
    %v8751 = vshll.u32 %v137, 16
    %v8753 = vrot.slane %v8751, 5
    %v8754 = vsel %vm8130, %v8749, %v8753
    %v8756 = vshrl.u32 %v138, 16
    %v8758 = vrot.slane %v8756, 4
    %v8759 = vshll.u32 %v138, 16
    %v8761 = vrot.slane %v8759, 5
    %v8762 = vor.u32 %v8758, %v8761
    %v8763 = vrot.slane %v8762, 4
    %v8765 = vshll.u32 %v139, 16
    %v8767 = vrot.slane %v8765, 5
    %v8768 = vsel %vm8130, %v8763, %v8767
    %v8769 = vshrl.u32 %v139, 16
    %v8771 = vrot.slane %v8769, 4
    %v8772 = vor.u32 %v8771, %v8767
    %v8773 = vrot.slane %v8772, 4
    %v8775 = vshll.u32 %v140, 16
    %v8777 = vrot.slane %v8775, 5
    %v8778 = vsel %vm8130, %v8773, %v8777
    %v8780 = vshrl.u32 %v141, 16
    %v8782 = vrot.slane %v8780, 4
    %v8783 = vshll.u32 %v141, 16
    %v8785 = vrot.slane %v8783, 5
    %v8786 = vor.u32 %v8782, %v8785
    %v8787 = vrot.slane %v8786, 4
    %v8789 = vshll.u32 %v142, 16
    %v8791 = vrot.slane %v8789, 5
    %v8792 = vsel %vm8130, %v8787, %v8791
    %v8793 = vshrl.u32 %v142, 16
    %v8795 = vrot.slane %v8793, 4
    %v8796 = vor.u32 %v8795, %v8791
    %v8797 = vrot.slane %v8796, 4
    %v8799 = vshll.u32 %v143, 16
    %v8801 = vrot.slane %v8799, 5
    %v8802 = vsel %vm8130, %v8797, %v8801
    %v8804 = vshrl.u32 %v144, 16
    %v8806 = vrot.slane %v8804, 4
    %v8807 = vshll.u32 %v144, 16
    %v8809 = vrot.slane %v8807, 5
    %v8810 = vor.u32 %v8806, %v8809
    %v8811 = vrot.slane %v8810, 4
    %v8813 = vshll.u32 %v145, 16
    %v8815 = vrot.slane %v8813, 5
    %v8816 = vsel %vm8130, %v8811, %v8815
    %v8817 = vshrl.u32 %v145, 16
    %v8819 = vrot.slane %v8817, 4
    %v8820 = vor.u32 %v8819, %v8815
    %v8821 = vrot.slane %v8820, 4
    %v8823 = vshll.u32 %v146, 16
    %v8825 = vrot.slane %v8823, 5
    %v8826 = vsel %vm8130, %v8821, %v8825
    %v8828 = vshrl.u32 %v147, 16
    %v8830 = vrot.slane %v8828, 4
    %v8831 = vshll.u32 %v147, 16
    %v8833 = vrot.slane %v8831, 5
    %v8834 = vor.u32 %v8830, %v8833
    %v8835 = vrot.slane %v8834, 4
    %v8837 = vshll.u32 %v148, 16
    %v8839 = vrot.slane %v8837, 5
    %v8840 = vsel %vm8130, %v8835, %v8839
    %v8841 = vshrl.u32 %v148, 16
    %v8843 = vrot.slane %v8841, 4
    %v8844 = vor.u32 %v8843, %v8839
    %v8845 = vrot.slane %v8844, 4
    %v8847 = vshll.u32 %v149, 16
    %v8849 = vrot.slane %v8847, 5
    %v8850 = vsel %vm8130, %v8845, %v8849
    %v8852 = vshrl.u32 %v150, 16
    %v8854 = vrot.slane %v8852, 4
    %v8855 = vshll.u32 %v150, 16
    %v8857 = vrot.slane %v8855, 5
    %v8858 = vor.u32 %v8854, %v8857
    %v8859 = vrot.slane %v8858, 4
    %v8861 = vshll.u32 %v151, 16
    %v8863 = vrot.slane %v8861, 5
    %v8864 = vsel %vm8130, %v8859, %v8863
    %v8865 = vshrl.u32 %v151, 16
    %v8867 = vrot.slane %v8865, 4
    %v8868 = vor.u32 %v8867, %v8863
    %v8869 = vrot.slane %v8868, 4
    %v8871 = vshll.u32 %v152, 16
    %v8873 = vrot.slane %v8871, 5
    %v8874 = vsel %vm8130, %v8869, %v8873
    %v8876 = vshrl.u32 %v153, 16
    %v8878 = vrot.slane %v8876, 4
    %v8879 = vshll.u32 %v153, 16
    %v8881 = vrot.slane %v8879, 5
    %v8882 = vor.u32 %v8878, %v8881
    %v8883 = vrot.slane %v8882, 4
    %v8885 = vshll.u32 %v154, 16
    %v8887 = vrot.slane %v8885, 5
    %v8888 = vsel %vm8130, %v8883, %v8887
    %v8889 = vshrl.u32 %v154, 16
    %v8891 = vrot.slane %v8889, 4
    %v8892 = vor.u32 %v8891, %v8887
    %v8893 = vrot.slane %v8892, 4
    %v8895 = vshll.u32 %v155, 16
    %v8897 = vrot.slane %v8895, 5
    %v8898 = vsel %vm8130, %v8893, %v8897
    %v8899 = vld [vmem:[%s3] sm:$0xf]
    %v8900 = vld [vmem:[%s3 + $0x4] sm:$0xf]
    %v8901 = vld [vmem:[%s3 + $0x8] sm:$0xf]
    %v8902 = vld [vmem:[%s3 + $0xc] sm:$0xf]
    %v8903 = vld [vmem:[%s3 + $0x10] sm:$0xf]
    %v8904 = vld [vmem:[%s3 + $0x14] sm:$0xf]
    %v8905 = vld [vmem:[%s3 + $0x18] sm:$0xf]
    %v8906 = vld [vmem:[%s3 + $0x1c] sm:$0xf]
    %v8907 = vld [vmem:[%s3 + $0x20] sm:$0xf]
    %v8908 = vld [vmem:[%s3 + $0x24] sm:$0xf]
    %v8909 = vld [vmem:[%s3 + $0x28] sm:$0xf]
    %v8910 = vld [vmem:[%s3 + $0x2c] sm:$0xf]
    %v8911 = vld [vmem:[%s3 + $0x30] sm:$0xf]
    %v8912 = vld [vmem:[%s3 + $0x34] sm:$0xf]
    %v8913 = vld [vmem:[%s3 + $0x38] sm:$0xf]
    %v8914 = vld [vmem:[%s3 + $0x3c] sm:$0xf]
    %v8915 = vunpack.c.l.b16 %v8144
    %v8916 = vunpack.c.l.b16 %v8154
    %v8917 = vunpack.c.l.b16 %v8168
    %v8918 = vunpack.c.l.b16 %v8178
    %v8919 = vunpack.c.l.b16 %v8192
    %v8920 = vunpack.c.l.b16 %v8202
    %v8921 = vunpack.c.l.b16 %v8216
    %v8922 = vunpack.c.l.b16 %v8226
    %v8923 = vunpack.c.l.b16 %v8240
    %v8924 = vunpack.c.l.b16 %v8250
    %v8925 = vunpack.c.l.b16 %v8264
    %v8926 = vunpack.c.l.b16 %v8274
    %v8927 = vunpack.c.l.b16 %v8288
    %v8928 = vunpack.c.l.b16 %v8298
    %v8929 = vunpack.c.l.b16 %v8312
    %v8930 = vunpack.c.l.b16 %v8322
    %v8931 = vunpack.c.l.b16 %v8336
    %v8932 = vunpack.c.l.b16 %v8346
    %v8933 = vunpack.c.l.b16 %v8360
    %v8934 = vunpack.c.l.b16 %v8370
    %v8935 = vunpack.c.l.b16 %v8384
    %v8936 = vunpack.c.l.b16 %v8394
    %v8937 = vunpack.c.l.b16 %v8408
    %v8938 = vunpack.c.l.b16 %v8418
    %v8939 = vunpack.c.l.b16 %v8432
    %v8940 = vunpack.c.l.b16 %v8442
    %v8941 = vunpack.c.l.b16 %v8456
    %v8942 = vunpack.c.l.b16 %v8466
    %v8943 = vunpack.c.l.b16 %v8480
    %v8944 = vunpack.c.l.b16 %v8490
    %v8945 = vunpack.c.l.b16 %v8504
    %v8946 = vunpack.c.l.b16 %v8514
    %v8947 = vunpack.c.l.b16 %v8528
    %v8948 = vunpack.c.l.b16 %v8538
    %v8949 = vunpack.c.l.b16 %v8552
    %v8950 = vunpack.c.l.b16 %v8562
    %v8951 = vunpack.c.l.b16 %v8576
    %v8952 = vunpack.c.l.b16 %v8586
    %v8953 = vunpack.c.l.b16 %v8600
    %v8954 = vunpack.c.l.b16 %v8610
    %v8955 = vunpack.c.l.b16 %v8624
    %v8956 = vunpack.c.l.b16 %v8634
    %v8957 = vunpack.c.l.b16 %v8648
    %v8958 = vunpack.c.l.b16 %v8658
    %v8959 = vunpack.c.l.b16 %v8672
    %v8960 = vunpack.c.l.b16 %v8682
    %v8961 = vunpack.c.l.b16 %v8696
    %v8962 = vunpack.c.l.b16 %v8706
    %v8963 = vunpack.c.l.b16 %v8720
    %v8964 = vunpack.c.l.b16 %v8730
    %v8965 = vunpack.c.l.b16 %v8744
    %v8966 = vunpack.c.l.b16 %v8754
    %v8967 = vunpack.c.l.b16 %v8768
    %v8968 = vunpack.c.l.b16 %v8778
    %v8969 = vunpack.c.l.b16 %v8792
    %v8970 = vunpack.c.l.b16 %v8802
    %v8971 = vunpack.c.l.b16 %v8816
    %v8972 = vunpack.c.l.b16 %v8826
    %v8973 = vunpack.c.l.b16 %v8840
    %v8974 = vunpack.c.l.b16 %v8850
    %v8975 = vunpack.c.l.b16 %v8864
    %v8976 = vunpack.c.l.b16 %v8874
    %v8977 = vunpack.c.l.b16 %v8888
    %v8978 = vunpack.c.l.b16 %v8898
    %v8979 = vpack.c.b16 %v8916, %v8915
    %v8980 = vpack.c.b16 %v8918, %v8917
    %v8981 = vpack.c.b16 %v8920, %v8919
    %v8982 = vpack.c.b16 %v8922, %v8921
    %v8983 = vpack.c.b16 %v8924, %v8923
    %v8984 = vpack.c.b16 %v8926, %v8925
    %v8985 = vpack.c.b16 %v8928, %v8927
    %v8986 = vpack.c.b16 %v8930, %v8929
    %v8987 = vpack.c.b16 %v8932, %v8931
    %v8988 = vpack.c.b16 %v8934, %v8933
    %v8989 = vpack.c.b16 %v8936, %v8935
    %v8990 = vpack.c.b16 %v8938, %v8937
    %v8991 = vpack.c.b16 %v8940, %v8939
    %v8992 = vpack.c.b16 %v8942, %v8941
    %v8993 = vpack.c.b16 %v8944, %v8943
    %v8994 = vpack.c.b16 %v8946, %v8945
    %v8995 = vpack.c.b16 %v8948, %v8947
    %v8996 = vpack.c.b16 %v8950, %v8949
    %v8997 = vpack.c.b16 %v8952, %v8951
    %v8998 = vpack.c.b16 %v8954, %v8953
    %v8999 = vpack.c.b16 %v8956, %v8955
    %v9000 = vpack.c.b16 %v8958, %v8957
    %v9001 = vpack.c.b16 %v8960, %v8959
    %v9002 = vpack.c.b16 %v8962, %v8961
    %v9003 = vpack.c.b16 %v8964, %v8963
    %v9004 = vpack.c.b16 %v8966, %v8965
    %v9005 = vpack.c.b16 %v8968, %v8967
    %v9006 = vpack.c.b16 %v8970, %v8969
    %v9007 = vpack.c.b16 %v8972, %v8971
    %v9008 = vpack.c.b16 %v8974, %v8973
    %v9009 = vpack.c.b16 %v8976, %v8975
    %v9010 = vpack.c.b16 %v8978, %v8977
    %v9059 = vunpack.c.l.b16 %v8899
    %v9060 = vunpack.c.l.b16 %v8900
    %v9061 = vunpack.c.l.b16 %v8901
    %v9062 = vunpack.c.l.b16 %v8902
    %v9063 = vunpack.c.l.b16 %v8903
    %v9064 = vunpack.c.l.b16 %v8904
    %v9065 = vunpack.c.l.b16 %v8905
    %v9066 = vunpack.c.l.b16 %v8906
    %v9067 = vunpack.c.l.b16 %v8907
    %v9068 = vunpack.c.l.b16 %v8908
    %v9069 = vunpack.c.l.b16 %v8909
    %v9070 = vunpack.c.l.b16 %v8910
    %v9071 = vunpack.c.l.b16 %v8911
    %v9072 = vunpack.c.l.b16 %v8912
    %v9073 = vunpack.c.l.b16 %v8913
    %v9074 = vunpack.c.l.b16 %v8914
    %v9075 = vpack.c.b16 %v9060, %v9059
    %v9076 = vpack.c.b16 %v9062, %v9061
    %v9077 = vpack.c.b16 %v9064, %v9063
    %v9078 = vpack.c.b16 %v9066, %v9065
    %v9079 = vpack.c.b16 %v9068, %v9067
    %v9080 = vpack.c.b16 %v9070, %v9069
    %v9081 = vpack.c.b16 %v9072, %v9071
    %v9082 = vpack.c.b16 %v9074, %v9073
    %9091 = vmatprep.subr.bf16.mxu0 0
    %9092 = vmatpush1.bf16.msra.mxu0 %v9075
    %9093 = vmatprep.subr.bf16.mxu0 0
    %9094 = vmatpush1.bf16.msra.mxu0 %v9076
    %9095 = vmatprep.subr.bf16.mxu0 0
    %9096 = vmatpush1.bf16.msra.mxu0 %v9077
    %9097 = vmatprep.subr.bf16.mxu0 0
    %9098 = vmatpush1.bf16.msra.mxu0 %v9078
    %9099 = vmatprep.subr.bf16.mxu0 0
    %9100 = vmatpush1.bf16.msra.mxu0 %v9079
    %9101 = vmatprep.subr.bf16.mxu0 0
    %9102 = vmatpush1.bf16.msra.mxu0 %v9080
    %9103 = vmatprep.subr.bf16.mxu0 0
    %9104 = vmatpush1.bf16.msra.mxu0 %v9081
    %9105 = vmatprep.subr.bf16.mxu0 0
    %9106 = vmatpush1.bf16.msra.mxu0 %v9082
    %9107 = vmatprep.subr.bf16.mxu0 0
    %9108 = vmatpush1.bf16.msra.mxu0 0
    %9109 = vmatprep.subr.bf16.mxu0 0
    %9110 = vmatpush1.bf16.msra.mxu0 0
    %9111 = vmatprep.subr.bf16.mxu0 0
    %9112 = vmatpush1.bf16.msra.mxu0 0
    %9113 = vmatprep.subr.bf16.mxu0 0
    %9114 = vmatpush1.bf16.msra.mxu0 0
    %9115 = vmatprep.subr.bf16.mxu0 0
    %9116 = vmatpush1.bf16.msra.mxu0 0
    %9117 = vmatprep.subr.bf16.mxu0 0
    %9118 = vmatpush1.bf16.msra.mxu0 0
    %9119 = vmatprep.subr.bf16.mxu0 0
    %9120 = vmatpush1.bf16.msra.mxu0 0
    %9121 = vmatprep.subr.bf16.mxu0 0
    %9122 = vmatpush1.bf16.msra.mxu0 0
    %9123 = vmatprep.mubr.bf16.mxu0 0
    %9124 = vmatmul.mubr.bf16.gmra.mrb[0].mxu0 %v8979
    %v9125 = vpop.f32.mrb[0].mxu0
    %v9126 = vadd.f32 0.0, %v9125
    %v9127 = vpop.f32.mrb[0].mxu0
    %v9128 = vpop.f32.mrb[0].mxu0
    %v9129 = vadd.f32 0.0, %v9128
    %v9130 = vpop.f32.mrb[0].mxu0
    %9131 = vmatprep.mubr.bf16.mxu0 0
    %9132 = vmatmul.mubr.bf16.gmra.mrb[0].mxu0 %v8980
    %v9133 = vpop.f32.mrb[0].mxu0
    %v9134 = vadd.f32 0.0, %v9133
    %v9135 = vpop.f32.mrb[0].mxu0
    %v9136 = vpop.f32.mrb[0].mxu0
    %v9137 = vadd.f32 0.0, %v9136
    %v9138 = vpop.f32.mrb[0].mxu0
    %9139 = vmatprep.mubr.bf16.mxu0 0
    %9140 = vmatmul.mubr.bf16.gmra.mrb[0].mxu0 %v8981
    %v9141 = vpop.f32.mrb[0].mxu0
    %v9142 = vadd.f32 0.0, %v9141
    %v9143 = vpop.f32.mrb[0].mxu0
    %v9144 = vpop.f32.mrb[0].mxu0
    %v9145 = vadd.f32 0.0, %v9144
    %v9146 = vpop.f32.mrb[0].mxu0
    %9147 = vmatprep.mubr.bf16.mxu0 0
    %9148 = vmatmul.mubr.bf16.gmra.mrb[0].mxu0 %v8982
    %v9149 = vpop.f32.mrb[0].mxu0
    %v9150 = vadd.f32 0.0, %v9149
    %v9151 = vpop.f32.mrb[0].mxu0
    %v9152 = vpop.f32.mrb[0].mxu0
    %v9153 = vadd.f32 0.0, %v9152
    %v9154 = vpop.f32.mrb[0].mxu0
    %9155 = vmatprep.mubr.bf16.mxu0 0
    %9156 = vmatmul.mubr.bf16.gmra.mrb[0].mxu0 %v8983
    %v9157 = vpop.f32.mrb[0].mxu0
    %v9158 = vadd.f32 0.0, %v9157
    %v9159 = vpop.f32.mrb[0].mxu0
    %v9160 = vpop.f32.mrb[0].mxu0
    %v9161 = vadd.f32 0.0, %v9160
    %v9162 = vpop.f32.mrb[0].mxu0
    %9163 = vmatprep.mubr.bf16.mxu0 0
    %9164 = vmatmul.mubr.bf16.gmra.mrb[0].mxu0 %v8984
    %v9165 = vpop.f32.mrb[0].mxu0
    %v9166 = vadd.f32 0.0, %v9165
    %v9167 = vpop.f32.mrb[0].mxu0
    %v9168 = vpop.f32.mrb[0].mxu0
    %v9169 = vadd.f32 0.0, %v9168
    %v9170 = vpop.f32.mrb[0].mxu0
    %9171 = vmatprep.mubr.bf16.mxu0 0
    %9172 = vmatmul.mubr.bf16.gmra.mrb[0].mxu0 %v8985
    %v9173 = vpop.f32.mrb[0].mxu0
    %v9174 = vadd.f32 0.0, %v9173
    %v9175 = vpop.f32.mrb[0].mxu0
    %v9176 = vpop.f32.mrb[0].mxu0
    %v9177 = vadd.f32 0.0, %v9176
    %v9178 = vpop.f32.mrb[0].mxu0
    %9179 = vmatprep.mubr.bf16.mxu0 0
    %9180 = vmatmul.mubr.bf16.gmra.mrb[0].mxu0 %v8986
    %v9181 = vpop.f32.mrb[0].mxu0
    %v9182 = vadd.f32 0.0, %v9181
    %v9183 = vpop.f32.mrb[0].mxu0
    %v9184 = vpop.f32.mrb[0].mxu0
    %v9185 = vadd.f32 0.0, %v9184
    %v9186 = vpop.f32.mrb[0].mxu0
    %9187 = vmatprep.mubr.bf16.mxu0 0
    %9188 = vmatmul.mubr.bf16.gmra.mrb[0].mxu0 %v8987
    %v9189 = vpop.f32.mrb[0].mxu0
    %v9190 = vadd.f32 0.0, %v9189
    %v9191 = vpop.f32.mrb[0].mxu0
    %v9192 = vpop.f32.mrb[0].mxu0
    %v9193 = vadd.f32 0.0, %v9192
    %v9194 = vpop.f32.mrb[0].mxu0
    %9195 = vmatprep.mubr.bf16.mxu0 0
    %9196 = vmatmul.mubr.bf16.gmra.mrb[0].mxu0 %v8988
    %v9197 = vpop.f32.mrb[0].mxu0
    %v9198 = vadd.f32 0.0, %v9197
    %v9199 = vpop.f32.mrb[0].mxu0
    %v9200 = vpop.f32.mrb[0].mxu0
    %v9201 = vadd.f32 0.0, %v9200
    %v9202 = vpop.f32.mrb[0].mxu0
    %9203 = vmatprep.mubr.bf16.mxu0 0
    %9204 = vmatmul.mubr.bf16.gmra.mrb[0].mxu0 %v8989
    %v9205 = vpop.f32.mrb[0].mxu0
    %v9206 = vadd.f32 0.0, %v9205
    %v9207 = vpop.f32.mrb[0].mxu0
    %v9208 = vpop.f32.mrb[0].mxu0
    %v9209 = vadd.f32 0.0, %v9208
    %v9210 = vpop.f32.mrb[0].mxu0
    %9211 = vmatprep.mubr.bf16.mxu0 0
    %9212 = vmatmul.mubr.bf16.gmra.mrb[0].mxu0 %v8990
    %v9213 = vpop.f32.mrb[0].mxu0
    %v9214 = vadd.f32 0.0, %v9213
    %v9215 = vpop.f32.mrb[0].mxu0
    %v9216 = vpop.f32.mrb[0].mxu0
    %v9217 = vadd.f32 0.0, %v9216
    %v9218 = vpop.f32.mrb[0].mxu0
    %9219 = vmatprep.mubr.bf16.mxu0 0
    %9220 = vmatmul.mubr.bf16.gmra.mrb[0].mxu0 %v8991
    %v9221 = vpop.f32.mrb[0].mxu0
    %v9222 = vadd.f32 0.0, %v9221
    %v9223 = vpop.f32.mrb[0].mxu0
    %v9224 = vpop.f32.mrb[0].mxu0
    %v9225 = vadd.f32 0.0, %v9224
    %v9226 = vpop.f32.mrb[0].mxu0
    %9227 = vmatprep.mubr.bf16.mxu0 0
    %9228 = vmatmul.mubr.bf16.gmra.mrb[0].mxu0 %v8992
    %v9229 = vpop.f32.mrb[0].mxu0
    %v9230 = vadd.f32 0.0, %v9229
    %v9231 = vpop.f32.mrb[0].mxu0
    %v9232 = vpop.f32.mrb[0].mxu0
    %v9233 = vadd.f32 0.0, %v9232
    %v9234 = vpop.f32.mrb[0].mxu0
    %9235 = vmatprep.mubr.bf16.mxu0 0
    %9236 = vmatmul.mubr.bf16.gmra.mrb[0].mxu0 %v8993
    %v9237 = vpop.f32.mrb[0].mxu0
    %v9238 = vadd.f32 0.0, %v9237
    %v9239 = vpop.f32.mrb[0].mxu0
    %v9240 = vpop.f32.mrb[0].mxu0
    %v9241 = vadd.f32 0.0, %v9240
    %v9242 = vpop.f32.mrb[0].mxu0
    %9243 = vmatprep.mubr.bf16.mxu0 0
    %9244 = vmatmul.mubr.bf16.gmra.mrb[0].mxu0 %v8994
    %v9245 = vpop.f32.mrb[0].mxu0
    %v9246 = vadd.f32 0.0, %v9245
    %v9247 = vpop.f32.mrb[0].mxu0
    %v9248 = vpop.f32.mrb[0].mxu0
    %v9249 = vadd.f32 0.0, %v9248
    %v9250 = vpop.f32.mrb[0].mxu0
    %9251 = vmatprep.mubr.bf16.mxu0 0
    %9252 = vmatmul.mubr.bf16.gmra.mrb[0].mxu0 %v8995
    %v9253 = vpop.f32.mrb[0].mxu0
    %v9254 = vadd.f32 0.0, %v9253
    %v9255 = vpop.f32.mrb[0].mxu0
    %v9256 = vpop.f32.mrb[0].mxu0
    %v9257 = vadd.f32 0.0, %v9256
    %v9258 = vpop.f32.mrb[0].mxu0
    %9259 = vmatprep.mubr.bf16.mxu0 0
    %9260 = vmatmul.mubr.bf16.gmra.mrb[0].mxu0 %v8996
    %v9261 = vpop.f32.mrb[0].mxu0
    %v9262 = vadd.f32 0.0, %v9261
    %v9263 = vpop.f32.mrb[0].mxu0
    %v9264 = vpop.f32.mrb[0].mxu0
    %v9265 = vadd.f32 0.0, %v9264
    %v9266 = vpop.f32.mrb[0].mxu0
    %9267 = vmatprep.mubr.bf16.mxu0 0
    %9268 = vmatmul.mubr.bf16.gmra.mrb[0].mxu0 %v8997
    %v9269 = vpop.f32.mrb[0].mxu0
    %v9270 = vadd.f32 0.0, %v9269
    %v9271 = vpop.f32.mrb[0].mxu0
    %v9272 = vpop.f32.mrb[0].mxu0
    %v9273 = vadd.f32 0.0, %v9272
    %v9274 = vpop.f32.mrb[0].mxu0
    %9275 = vmatprep.mubr.bf16.mxu0 0
    %9276 = vmatmul.mubr.bf16.gmra.mrb[0].mxu0 %v8998
    %v9277 = vpop.f32.mrb[0].mxu0
    %v9278 = vadd.f32 0.0, %v9277
    %v9279 = vpop.f32.mrb[0].mxu0
    %v9280 = vpop.f32.mrb[0].mxu0
    %v9281 = vadd.f32 0.0, %v9280
    %v9282 = vpop.f32.mrb[0].mxu0
    %9283 = vmatprep.mubr.bf16.mxu0 0
    %9284 = vmatmul.mubr.bf16.gmra.mrb[0].mxu0 %v8999
    %v9285 = vpop.f32.mrb[0].mxu0
    %v9286 = vadd.f32 0.0, %v9285
    %v9287 = vpop.f32.mrb[0].mxu0
    %v9288 = vpop.f32.mrb[0].mxu0
    %v9289 = vadd.f32 0.0, %v9288
    %v9290 = vpop.f32.mrb[0].mxu0
    %9291 = vmatprep.mubr.bf16.mxu0 0
    %9292 = vmatmul.mubr.bf16.gmra.mrb[0].mxu0 %v9000
    %v9293 = vpop.f32.mrb[0].mxu0
    %v9294 = vadd.f32 0.0, %v9293
    %v9295 = vpop.f32.mrb[0].mxu0
    %v9296 = vpop.f32.mrb[0].mxu0
    %v9297 = vadd.f32 0.0, %v9296
    %v9298 = vpop.f32.mrb[0].mxu0
    %9299 = vmatprep.mubr.bf16.mxu0 0
    %9300 = vmatmul.mubr.bf16.gmra.mrb[0].mxu0 %v9001
    %v9301 = vpop.f32.mrb[0].mxu0
    %v9302 = vadd.f32 0.0, %v9301
    %v9303 = vpop.f32.mrb[0].mxu0
    %v9304 = vpop.f32.mrb[0].mxu0
    %v9305 = vadd.f32 0.0, %v9304
    %v9306 = vpop.f32.mrb[0].mxu0
    %9307 = vmatprep.mubr.bf16.mxu0 0
    %9308 = vmatmul.mubr.bf16.gmra.mrb[0].mxu0 %v9002
    %v9309 = vpop.f32.mrb[0].mxu0
    %v9310 = vadd.f32 0.0, %v9309
    %v9311 = vpop.f32.mrb[0].mxu0
    %v9312 = vpop.f32.mrb[0].mxu0
    %v9313 = vadd.f32 0.0, %v9312
    %v9314 = vpop.f32.mrb[0].mxu0
    %9315 = vmatprep.mubr.bf16.mxu0 0
    %9316 = vmatmul.mubr.bf16.gmra.mrb[0].mxu0 %v9003
    %v9317 = vpop.f32.mrb[0].mxu0
    %v9318 = vadd.f32 0.0, %v9317
    %v9319 = vpop.f32.mrb[0].mxu0
    %v9320 = vpop.f32.mrb[0].mxu0
    %v9321 = vadd.f32 0.0, %v9320
    %v9322 = vpop.f32.mrb[0].mxu0
    %9323 = vmatprep.mubr.bf16.mxu0 0
    %9324 = vmatmul.mubr.bf16.gmra.mrb[0].mxu0 %v9004
    %v9325 = vpop.f32.mrb[0].mxu0
    %v9326 = vadd.f32 0.0, %v9325
    %v9327 = vpop.f32.mrb[0].mxu0
    %v9328 = vpop.f32.mrb[0].mxu0
    %v9329 = vadd.f32 0.0, %v9328
    %v9330 = vpop.f32.mrb[0].mxu0
    %9331 = vmatprep.mubr.bf16.mxu0 0
    %9332 = vmatmul.mubr.bf16.gmra.mrb[0].mxu0 %v9005
    %v9333 = vpop.f32.mrb[0].mxu0
    %v9334 = vadd.f32 0.0, %v9333
    %v9335 = vpop.f32.mrb[0].mxu0
    %v9336 = vpop.f32.mrb[0].mxu0
    %v9337 = vadd.f32 0.0, %v9336
    %v9338 = vpop.f32.mrb[0].mxu0
    %9339 = vmatprep.mubr.bf16.mxu0 0
    %9340 = vmatmul.mubr.bf16.gmra.mrb[0].mxu0 %v9006
    %v9341 = vpop.f32.mrb[0].mxu0
    %v9342 = vadd.f32 0.0, %v9341
    %v9343 = vpop.f32.mrb[0].mxu0
    %v9344 = vpop.f32.mrb[0].mxu0
    %v9345 = vadd.f32 0.0, %v9344
    %v9346 = vpop.f32.mrb[0].mxu0
    %9347 = vmatprep.mubr.bf16.mxu0 0
    %9348 = vmatmul.mubr.bf16.gmra.mrb[0].mxu0 %v9007
    %v9349 = vpop.f32.mrb[0].mxu0
    %v9350 = vadd.f32 0.0, %v9349
    %v9351 = vpop.f32.mrb[0].mxu0
    %v9352 = vpop.f32.mrb[0].mxu0
    %v9353 = vadd.f32 0.0, %v9352
    %v9354 = vpop.f32.mrb[0].mxu0
    %9355 = vmatprep.mubr.bf16.mxu0 0
    %9356 = vmatmul.mubr.bf16.gmra.mrb[0].mxu0 %v9008
    %v9357 = vpop.f32.mrb[0].mxu0
    %v9358 = vadd.f32 0.0, %v9357
    %v9359 = vpop.f32.mrb[0].mxu0
    %v9360 = vpop.f32.mrb[0].mxu0
    %v9361 = vadd.f32 0.0, %v9360
    %v9362 = vpop.f32.mrb[0].mxu0
    %9363 = vmatprep.mubr.bf16.mxu0 0
    %9364 = vmatmul.mubr.bf16.gmra.mrb[0].mxu0 %v9009
    %v9365 = vpop.f32.mrb[0].mxu0
    %v9366 = vadd.f32 0.0, %v9365
    %v9367 = vpop.f32.mrb[0].mxu0
    %v9368 = vpop.f32.mrb[0].mxu0
    %v9369 = vadd.f32 0.0, %v9368
    %v9370 = vpop.f32.mrb[0].mxu0
    %9371 = vmatprep.mubr.bf16.mxu0 0
    %9372 = vmatmul.mubr.bf16.gmra.mrb[0].mxu0 %v9010
    %v9373 = vpop.f32.mrb[0].mxu0
    %v9374 = vadd.f32 0.0, %v9373
    %v9375 = vpop.f32.mrb[0].mxu0
    %v9376 = vpop.f32.mrb[0].mxu0
    %v9377 = vadd.f32 0.0, %v9376
    %v9378 = vpop.f32.mrb[0].mxu0
    %9379 = vdwg.mxu0
    %v9380 = vld [vmem:[%s8] sm:$0x1]
    %v9381 = vld [vmem:[%s9] sm:$0x1]
    %v9382 = vadd.f32 %v9126, %v9129
    %v9383 = vadd.f32 %v9382, %v9134
    %v9384 = vadd.f32 %v9383, %v9137
    %v9385 = vadd.f32 %v9384, %v9142
    %v9386 = vadd.f32 %v9385, %v9145
    %v9387 = vadd.f32 %v9386, %v9150
    %v9388 = vadd.f32 %v9387, %v9153
    %v9389 = vadd.f32 %v9388, %v9158
    %v9390 = vadd.f32 %v9389, %v9161
    %v9391 = vadd.f32 %v9390, %v9166
    %v9392 = vadd.f32 %v9391, %v9169
    %v9393 = vadd.f32 %v9392, %v9174
    %v9394 = vadd.f32 %v9393, %v9177
    %v9395 = vadd.f32 %v9394, %v9182
    %v9396 = vadd.f32 %v9395, %v9185
    %v9397 = vadd.f32 %v9396, %v9190
    %v9398 = vadd.f32 %v9397, %v9193
    %v9399 = vadd.f32 %v9398, %v9198
    %v9400 = vadd.f32 %v9399, %v9201
    %v9401 = vadd.f32 %v9400, %v9206
    %v9402 = vadd.f32 %v9401, %v9209
    %v9403 = vadd.f32 %v9402, %v9214
    %v9404 = vadd.f32 %v9403, %v9217
    %v9405 = vadd.f32 %v9404, %v9222
    %v9406 = vadd.f32 %v9405, %v9225
    %v9407 = vadd.f32 %v9406, %v9230
    %v9408 = vadd.f32 %v9407, %v9233
    %v9409 = vadd.f32 %v9408, %v9238
    %v9410 = vadd.f32 %v9409, %v9241
    %v9411 = vadd.f32 %v9410, %v9246
    %v9412 = vadd.f32 %v9411, %v9249
    %v9413 = vadd.f32 %v9412, %v9254
    %v9414 = vadd.f32 %v9413, %v9257
    %v9415 = vadd.f32 %v9414, %v9262
    %v9416 = vadd.f32 %v9415, %v9265
    %v9417 = vadd.f32 %v9416, %v9270
    %v9418 = vadd.f32 %v9417, %v9273
    %v9419 = vadd.f32 %v9418, %v9278
    %v9420 = vadd.f32 %v9419, %v9281
    %v9421 = vadd.f32 %v9420, %v9286
    %v9422 = vadd.f32 %v9421, %v9289
    %v9423 = vadd.f32 %v9422, %v9294
    %v9424 = vadd.f32 %v9423, %v9297
    %v9425 = vadd.f32 %v9424, %v9302
    %v9426 = vadd.f32 %v9425, %v9305
    %v9427 = vadd.f32 %v9426, %v9310
    %v9428 = vadd.f32 %v9427, %v9313
    %v9429 = vadd.f32 %v9428, %v9318
    %v9430 = vadd.f32 %v9429, %v9321
    %v9431 = vadd.f32 %v9430, %v9326
    %v9432 = vadd.f32 %v9431, %v9329
    %v9433 = vadd.f32 %v9432, %v9334
    %v9434 = vadd.f32 %v9433, %v9337
    %v9435 = vadd.f32 %v9434, %v9342
    %v9436 = vadd.f32 %v9435, %v9345
    %v9437 = vadd.f32 %v9436, %v9350
    %v9438 = vadd.f32 %v9437, %v9353
    %v9439 = vadd.f32 %v9438, %v9358
    %v9440 = vadd.f32 %v9439, %v9361
    %v9441 = vadd.f32 %v9440, %v9366
    %v9442 = vadd.f32 %v9441, %v9369
    %v9443 = vadd.f32 %v9442, %v9374
    %v9444 = vadd.f32 %v9443, %v9377
    %v9445 = vrot.slane %v9444, 4
    %v9446 = vadd.f32 %v9444, %v9445
    %v9447 = vrot.slane %v9446, 2
    %v9448 = vadd.f32 %v9446, %v9447
    %v9449 = vrot.slane %v9448, 1
    %v9450 = vadd.f32 %v9448, %v9449
    %v9451 = vmul.f32 %v9126, %v9126
    %v9452 = vmul.f32 %v9129, %v9129
    %v9453 = vmul.f32 %v9134, %v9134
    %v9454 = vmul.f32 %v9137, %v9137
    %v9455 = vmul.f32 %v9142, %v9142
    %v9456 = vmul.f32 %v9145, %v9145
    %v9457 = vmul.f32 %v9150, %v9150
    %v9458 = vmul.f32 %v9153, %v9153
    %v9459 = vmul.f32 %v9158, %v9158
    %v9460 = vmul.f32 %v9161, %v9161
    %v9461 = vmul.f32 %v9166, %v9166
    %v9462 = vmul.f32 %v9169, %v9169
    %v9463 = vmul.f32 %v9174, %v9174
    %v9464 = vmul.f32 %v9177, %v9177
    %v9465 = vmul.f32 %v9182, %v9182
    %v9466 = vmul.f32 %v9185, %v9185
    %v9467 = vmul.f32 %v9190, %v9190
    %v9468 = vmul.f32 %v9193, %v9193
    %v9469 = vmul.f32 %v9198, %v9198
    %v9470 = vmul.f32 %v9201, %v9201
    %v9471 = vmul.f32 %v9206, %v9206
    %v9472 = vmul.f32 %v9209, %v9209
    %v9473 = vmul.f32 %v9214, %v9214
    %v9474 = vmul.f32 %v9217, %v9217
    %v9475 = vmul.f32 %v9222, %v9222
    %v9476 = vmul.f32 %v9225, %v9225
    %v9477 = vmul.f32 %v9230, %v9230
    %v9478 = vmul.f32 %v9233, %v9233
    %v9479 = vmul.f32 %v9238, %v9238
    %v9480 = vmul.f32 %v9241, %v9241
    %v9481 = vmul.f32 %v9246, %v9246
    %v9482 = vmul.f32 %v9249, %v9249
    %v9483 = vmul.f32 %v9254, %v9254
    %v9484 = vmul.f32 %v9257, %v9257
    %v9485 = vmul.f32 %v9262, %v9262
    %v9486 = vmul.f32 %v9265, %v9265
    %v9487 = vmul.f32 %v9270, %v9270
    %v9488 = vmul.f32 %v9273, %v9273
    %v9489 = vmul.f32 %v9278, %v9278
    %v9490 = vmul.f32 %v9281, %v9281
    %v9491 = vmul.f32 %v9286, %v9286
    %v9492 = vmul.f32 %v9289, %v9289
    %v9493 = vmul.f32 %v9294, %v9294
    %v9494 = vmul.f32 %v9297, %v9297
    %v9495 = vmul.f32 %v9302, %v9302
    %v9496 = vmul.f32 %v9305, %v9305
    %v9497 = vmul.f32 %v9310, %v9310
    %v9498 = vmul.f32 %v9313, %v9313
    %v9499 = vmul.f32 %v9318, %v9318
    %v9500 = vmul.f32 %v9321, %v9321
    %v9501 = vmul.f32 %v9326, %v9326
    %v9502 = vmul.f32 %v9329, %v9329
    %v9503 = vmul.f32 %v9334, %v9334
    %v9504 = vmul.f32 %v9337, %v9337
    %v9505 = vmul.f32 %v9342, %v9342
    %v9506 = vmul.f32 %v9345, %v9345
    %v9507 = vmul.f32 %v9350, %v9350
    %v9508 = vmul.f32 %v9353, %v9353
    %v9509 = vmul.f32 %v9358, %v9358
    %v9510 = vmul.f32 %v9361, %v9361
    %v9511 = vmul.f32 %v9366, %v9366
    %v9512 = vmul.f32 %v9369, %v9369
    %v9513 = vmul.f32 %v9374, %v9374
    %v9514 = vmul.f32 %v9377, %v9377
    %v9515 = vadd.f32 %v9451, %v9452
    %v9516 = vadd.f32 %v9515, %v9453
    %v9517 = vadd.f32 %v9516, %v9454
    %v9518 = vadd.f32 %v9517, %v9455
    %v9519 = vadd.f32 %v9518, %v9456
    %v9520 = vadd.f32 %v9519, %v9457
    %v9521 = vadd.f32 %v9520, %v9458
    %v9522 = vadd.f32 %v9521, %v9459
    %v9523 = vadd.f32 %v9522, %v9460
    %v9524 = vadd.f32 %v9523, %v9461
    %v9525 = vadd.f32 %v9524, %v9462
    %v9526 = vadd.f32 %v9525, %v9463
    %v9527 = vadd.f32 %v9526, %v9464
    %v9528 = vadd.f32 %v9527, %v9465
    %v9529 = vadd.f32 %v9528, %v9466
    %v9530 = vadd.f32 %v9529, %v9467
    %v9531 = vadd.f32 %v9530, %v9468
    %v9532 = vadd.f32 %v9531, %v9469
    %v9533 = vadd.f32 %v9532, %v9470
    %v9534 = vadd.f32 %v9533, %v9471
    %v9535 = vadd.f32 %v9534, %v9472
    %v9536 = vadd.f32 %v9535, %v9473
    %v9537 = vadd.f32 %v9536, %v9474
    %v9538 = vadd.f32 %v9537, %v9475
    %v9539 = vadd.f32 %v9538, %v9476
    %v9540 = vadd.f32 %v9539, %v9477
    %v9541 = vadd.f32 %v9540, %v9478
    %v9542 = vadd.f32 %v9541, %v9479
    %v9543 = vadd.f32 %v9542, %v9480
    %v9544 = vadd.f32 %v9543, %v9481
    %v9545 = vadd.f32 %v9544, %v9482
    %v9546 = vadd.f32 %v9545, %v9483
    %v9547 = vadd.f32 %v9546, %v9484
    %v9548 = vadd.f32 %v9547, %v9485
    %v9549 = vadd.f32 %v9548, %v9486
    %v9550 = vadd.f32 %v9549, %v9487
    %v9551 = vadd.f32 %v9550, %v9488
    %v9552 = vadd.f32 %v9551, %v9489
    %v9553 = vadd.f32 %v9552, %v9490
    %v9554 = vadd.f32 %v9553, %v9491
    %v9555 = vadd.f32 %v9554, %v9492
    %v9556 = vadd.f32 %v9555, %v9493
    %v9557 = vadd.f32 %v9556, %v9494
    %v9558 = vadd.f32 %v9557, %v9495
    %v9559 = vadd.f32 %v9558, %v9496
    %v9560 = vadd.f32 %v9559, %v9497
    %v9561 = vadd.f32 %v9560, %v9498
    %v9562 = vadd.f32 %v9561, %v9499
    %v9563 = vadd.f32 %v9562, %v9500
    %v9564 = vadd.f32 %v9563, %v9501
    %v9565 = vadd.f32 %v9564, %v9502
    %v9566 = vadd.f32 %v9565, %v9503
    %v9567 = vadd.f32 %v9566, %v9504
    %v9568 = vadd.f32 %v9567, %v9505
    %v9569 = vadd.f32 %v9568, %v9506
    %v9570 = vadd.f32 %v9569, %v9507
    %v9571 = vadd.f32 %v9570, %v9508
    %v9572 = vadd.f32 %v9571, %v9509
    %v9573 = vadd.f32 %v9572, %v9510
    %v9574 = vadd.f32 %v9573, %v9511
    %v9575 = vadd.f32 %v9574, %v9512
    %v9576 = vadd.f32 %v9575, %v9513
    %v9577 = vadd.f32 %v9576, %v9514
    %v9578 = vrot.slane %v9577, 4
    %v9579 = vadd.f32 %v9577, %v9578
    %v9580 = vrot.slane %v9579, 2
    %v9581 = vadd.f32 %v9579, %v9580
    %v9582 = vrot.slane %v9581, 1
    %v9583 = vadd.f32 %v9581, %v9582
    %v9584 = vmul.f32 %v9450, 0.001953125
    %v9585 = vmul.f32 %v9583, 0.001953125
    %v9586 = vmul.f32 %v9584, %v9584
    %v9587 = vsub.f32 %v9585, %v9586
    %v9588 = vmax.f32 %v9587, 0.0
    %v9589 = vadd.f32 %v9588, 1e-05
    %v9590 = vrsqrt.pop %v9589
    %v9591 = vmul.f32 %v9380, %v9590
    %v9592 = vmul.f32 %v9584, %v9591
    %v9593 = vsub.f32 %v9381, %v9592
    %v9595 = vlaneseq
    %v9596 = vshrl.u32 %v9595, 7
    %v9597 = vsub.s32 0, %v9596
    %v9598 = vrot.slane %v9591, %v9597
    %v9600 = vmul.f32 %v9126, %v9598
    %v9601 = vmul.f32 %v9129, %v9598
    %v9602 = vmul.f32 %v9134, %v9598
    %v9603 = vmul.f32 %v9137, %v9598
    %v9604 = vmul.f32 %v9142, %v9598
    %v9605 = vmul.f32 %v9145, %v9598
    %v9606 = vmul.f32 %v9150, %v9598
    %v9607 = vmul.f32 %v9153, %v9598
    %v9608 = vmul.f32 %v9158, %v9598
    %v9609 = vmul.f32 %v9161, %v9598
    %v9610 = vmul.f32 %v9166, %v9598
    %v9611 = vmul.f32 %v9169, %v9598
    %v9612 = vmul.f32 %v9174, %v9598
    %v9613 = vmul.f32 %v9177, %v9598
    %v9614 = vmul.f32 %v9182, %v9598
    %v9615 = vmul.f32 %v9185, %v9598
    %v9616 = vmul.f32 %v9190, %v9598
    %v9617 = vmul.f32 %v9193, %v9598
    %v9618 = vmul.f32 %v9198, %v9598
    %v9619 = vmul.f32 %v9201, %v9598
    %v9620 = vmul.f32 %v9206, %v9598
    %v9621 = vmul.f32 %v9209, %v9598
    %v9622 = vmul.f32 %v9214, %v9598
    %v9623 = vmul.f32 %v9217, %v9598
    %v9624 = vmul.f32 %v9222, %v9598
    %v9625 = vmul.f32 %v9225, %v9598
    %v9626 = vmul.f32 %v9230, %v9598
    %v9627 = vmul.f32 %v9233, %v9598
    %v9628 = vmul.f32 %v9238, %v9598
    %v9629 = vmul.f32 %v9241, %v9598
    %v9630 = vmul.f32 %v9246, %v9598
    %v9631 = vmul.f32 %v9249, %v9598
    %v9632 = vmul.f32 %v9254, %v9598
    %v9633 = vmul.f32 %v9257, %v9598
    %v9634 = vmul.f32 %v9262, %v9598
    %v9635 = vmul.f32 %v9265, %v9598
    %v9636 = vmul.f32 %v9270, %v9598
    %v9637 = vmul.f32 %v9273, %v9598
    %v9638 = vmul.f32 %v9278, %v9598
    %v9639 = vmul.f32 %v9281, %v9598
    %v9640 = vmul.f32 %v9286, %v9598
    %v9641 = vmul.f32 %v9289, %v9598
    %v9642 = vmul.f32 %v9294, %v9598
    %v9643 = vmul.f32 %v9297, %v9598
    %v9644 = vmul.f32 %v9302, %v9598
    %v9645 = vmul.f32 %v9305, %v9598
    %v9646 = vmul.f32 %v9310, %v9598
    %v9647 = vmul.f32 %v9313, %v9598
    %v9648 = vmul.f32 %v9318, %v9598
    %v9649 = vmul.f32 %v9321, %v9598
    %v9650 = vmul.f32 %v9326, %v9598
    %v9651 = vmul.f32 %v9329, %v9598
    %v9652 = vmul.f32 %v9334, %v9598
    %v9653 = vmul.f32 %v9337, %v9598
    %v9654 = vmul.f32 %v9342, %v9598
    %v9655 = vmul.f32 %v9345, %v9598
    %v9656 = vmul.f32 %v9350, %v9598
    %v9657 = vmul.f32 %v9353, %v9598
    %v9658 = vmul.f32 %v9358, %v9598
    %v9659 = vmul.f32 %v9361, %v9598
    %v9660 = vmul.f32 %v9366, %v9598
    %v9661 = vmul.f32 %v9369, %v9598
    %v9662 = vmul.f32 %v9374, %v9598
    %v9663 = vmul.f32 %v9377, %v9598
    %v9665 = vlaneseq
    %v9666 = vshrl.u32 %v9665, 7
    %v9667 = vsub.s32 0, %v9666
    %v9668 = vrot.slane %v9593, %v9667
    %v9670 = vadd.f32 %v9600, %v9668
    %v9671 = vadd.f32 %v9601, %v9668
    %v9672 = vadd.f32 %v9602, %v9668
    %v9673 = vadd.f32 %v9603, %v9668
    %v9674 = vadd.f32 %v9604, %v9668
    %v9675 = vadd.f32 %v9605, %v9668
    %v9676 = vadd.f32 %v9606, %v9668
    %v9677 = vadd.f32 %v9607, %v9668
    %v9678 = vadd.f32 %v9608, %v9668
    %v9679 = vadd.f32 %v9609, %v9668
    %v9680 = vadd.f32 %v9610, %v9668
    %v9681 = vadd.f32 %v9611, %v9668
    %v9682 = vadd.f32 %v9612, %v9668
    %v9683 = vadd.f32 %v9613, %v9668
    %v9684 = vadd.f32 %v9614, %v9668
    %v9685 = vadd.f32 %v9615, %v9668
    %v9686 = vadd.f32 %v9616, %v9668
    %v9687 = vadd.f32 %v9617, %v9668
    %v9688 = vadd.f32 %v9618, %v9668
    %v9689 = vadd.f32 %v9619, %v9668
    %v9690 = vadd.f32 %v9620, %v9668
    %v9691 = vadd.f32 %v9621, %v9668
    %v9692 = vadd.f32 %v9622, %v9668
    %v9693 = vadd.f32 %v9623, %v9668
    %v9694 = vadd.f32 %v9624, %v9668
    %v9695 = vadd.f32 %v9625, %v9668
    %v9696 = vadd.f32 %v9626, %v9668
    %v9697 = vadd.f32 %v9627, %v9668
    %v9698 = vadd.f32 %v9628, %v9668
    %v9699 = vadd.f32 %v9629, %v9668
    %v9700 = vadd.f32 %v9630, %v9668
    %v9701 = vadd.f32 %v9631, %v9668
    %v9702 = vadd.f32 %v9632, %v9668
    %v9703 = vadd.f32 %v9633, %v9668
    %v9704 = vadd.f32 %v9634, %v9668
    %v9705 = vadd.f32 %v9635, %v9668
    %v9706 = vadd.f32 %v9636, %v9668
    %v9707 = vadd.f32 %v9637, %v9668
    %v9708 = vadd.f32 %v9638, %v9668
    %v9709 = vadd.f32 %v9639, %v9668
    %v9710 = vadd.f32 %v9640, %v9668
    %v9711 = vadd.f32 %v9641, %v9668
    %v9712 = vadd.f32 %v9642, %v9668
    %v9713 = vadd.f32 %v9643, %v9668
    %v9714 = vadd.f32 %v9644, %v9668
    %v9715 = vadd.f32 %v9645, %v9668
    %v9716 = vadd.f32 %v9646, %v9668
    %v9717 = vadd.f32 %v9647, %v9668
    %v9718 = vadd.f32 %v9648, %v9668
    %v9719 = vadd.f32 %v9649, %v9668
    %v9720 = vadd.f32 %v9650, %v9668
    %v9721 = vadd.f32 %v9651, %v9668
    %v9722 = vadd.f32 %v9652, %v9668
    %v9723 = vadd.f32 %v9653, %v9668
    %v9724 = vadd.f32 %v9654, %v9668
    %v9725 = vadd.f32 %v9655, %v9668
    %v9726 = vadd.f32 %v9656, %v9668
    %v9727 = vadd.f32 %v9657, %v9668
    %v9728 = vadd.f32 %v9658, %v9668
    %v9729 = vadd.f32 %v9659, %v9668
    %v9730 = vadd.f32 %v9660, %v9668
    %v9731 = vadd.f32 %v9661, %v9668
    %v9732 = vadd.f32 %v9662, %v9668
    %v9733 = vadd.f32 %v9663, %v9668
    %v9734 = vadd.f32 %v8064, %v9670
    %v9735 = vadd.f32 %v8065, %v9671
    %v9736 = vadd.f32 %v8066, %v9672
    %v9737 = vadd.f32 %v8067, %v9673
    %v9738 = vadd.f32 %v8068, %v9674
    %v9739 = vadd.f32 %v8069, %v9675
    %v9740 = vadd.f32 %v8070, %v9676
    %v9741 = vadd.f32 %v8071, %v9677
    %v9742 = vadd.f32 %v8072, %v9678
    %v9743 = vadd.f32 %v8073, %v9679
    %v9744 = vadd.f32 %v8074, %v9680
    %v9745 = vadd.f32 %v8075, %v9681
    %v9746 = vadd.f32 %v8076, %v9682
    %v9747 = vadd.f32 %v8077, %v9683
    %v9748 = vadd.f32 %v8078, %v9684
    %v9749 = vadd.f32 %v8079, %v9685
    %v9750 = vadd.f32 %v8080, %v9686
    %v9751 = vadd.f32 %v8081, %v9687
    %v9752 = vadd.f32 %v8082, %v9688
    %v9753 = vadd.f32 %v8083, %v9689
    %v9754 = vadd.f32 %v8084, %v9690
    %v9755 = vadd.f32 %v8085, %v9691
    %v9756 = vadd.f32 %v8086, %v9692
    %v9757 = vadd.f32 %v8087, %v9693
    %v9758 = vadd.f32 %v8088, %v9694
    %v9759 = vadd.f32 %v8089, %v9695
    %v9760 = vadd.f32 %v8090, %v9696
    %v9761 = vadd.f32 %v8091, %v9697
    %v9762 = vadd.f32 %v8092, %v9698
    %v9763 = vadd.f32 %v8093, %v9699
    %v9764 = vadd.f32 %v8094, %v9700
    %v9765 = vadd.f32 %v8095, %v9701
    %v9766 = vadd.f32 %v8096, %v9702
    %v9767 = vadd.f32 %v8097, %v9703
    %v9768 = vadd.f32 %v8098, %v9704
    %v9769 = vadd.f32 %v8099, %v9705
    %v9770 = vadd.f32 %v8100, %v9706
    %v9771 = vadd.f32 %v8101, %v9707
    %v9772 = vadd.f32 %v8102, %v9708
    %v9773 = vadd.f32 %v8103, %v9709
    %v9774 = vadd.f32 %v8104, %v9710
    %v9775 = vadd.f32 %v8105, %v9711
    %v9776 = vadd.f32 %v8106, %v9712
    %v9777 = vadd.f32 %v8107, %v9713
    %v9778 = vadd.f32 %v8108, %v9714
    %v9779 = vadd.f32 %v8109, %v9715
    %v9780 = vadd.f32 %v8110, %v9716
    %v9781 = vadd.f32 %v8111, %v9717
    %v9782 = vadd.f32 %v8112, %v9718
    %v9783 = vadd.f32 %v8113, %v9719
    %v9784 = vadd.f32 %v8114, %v9720
    %v9785 = vadd.f32 %v8115, %v9721
    %v9786 = vadd.f32 %v8116, %v9722
    %v9787 = vadd.f32 %v8117, %v9723
    %v9788 = vadd.f32 %v8118, %v9724
    %v9789 = vadd.f32 %v8119, %v9725
    %v9790 = vadd.f32 %v8120, %v9726
    %v9791 = vadd.f32 %v8121, %v9727
    %v9792 = vadd.f32 %v8122, %v9728
    %v9793 = vadd.f32 %v8123, %v9729
    %v9794 = vadd.f32 %v8124, %v9730
    %v9795 = vadd.f32 %v8125, %v9731
    %v9796 = vadd.f32 %v8126, %v9732
    %v9797 = vadd.f32 %v8127, %v9733
    %v9798 = vmax.f32 %v9734, 0.0
    %v9799 = vmax.f32 %v9735, 0.0
    %v9800 = vmax.f32 %v9736, 0.0
    %v9801 = vmax.f32 %v9737, 0.0
    %v9802 = vmax.f32 %v9738, 0.0
    %v9803 = vmax.f32 %v9739, 0.0
    %v9804 = vmax.f32 %v9740, 0.0
    %v9805 = vmax.f32 %v9741, 0.0
    %v9806 = vmax.f32 %v9742, 0.0
    %v9807 = vmax.f32 %v9743, 0.0
    %v9808 = vmax.f32 %v9744, 0.0
    %v9809 = vmax.f32 %v9745, 0.0
    %v9810 = vmax.f32 %v9746, 0.0
    %v9811 = vmax.f32 %v9747, 0.0
    %v9812 = vmax.f32 %v9748, 0.0
    %v9813 = vmax.f32 %v9749, 0.0
    %v9814 = vmax.f32 %v9750, 0.0
    %v9815 = vmax.f32 %v9751, 0.0
    %v9816 = vmax.f32 %v9752, 0.0
    %v9817 = vmax.f32 %v9753, 0.0
    %v9818 = vmax.f32 %v9754, 0.0
    %v9819 = vmax.f32 %v9755, 0.0
    %v9820 = vmax.f32 %v9756, 0.0
    %v9821 = vmax.f32 %v9757, 0.0
    %v9822 = vmax.f32 %v9758, 0.0
    %v9823 = vmax.f32 %v9759, 0.0
    %v9824 = vmax.f32 %v9760, 0.0
    %v9825 = vmax.f32 %v9761, 0.0
    %v9826 = vmax.f32 %v9762, 0.0
    %v9827 = vmax.f32 %v9763, 0.0
    %v9828 = vmax.f32 %v9764, 0.0
    %v9829 = vmax.f32 %v9765, 0.0
    %v9830 = vmax.f32 %v9766, 0.0
    %v9831 = vmax.f32 %v9767, 0.0
    %v9832 = vmax.f32 %v9768, 0.0
    %v9833 = vmax.f32 %v9769, 0.0
    %v9834 = vmax.f32 %v9770, 0.0
    %v9835 = vmax.f32 %v9771, 0.0
    %v9836 = vmax.f32 %v9772, 0.0
    %v9837 = vmax.f32 %v9773, 0.0
    %v9838 = vmax.f32 %v9774, 0.0
    %v9839 = vmax.f32 %v9775, 0.0
    %v9840 = vmax.f32 %v9776, 0.0
    %v9841 = vmax.f32 %v9777, 0.0
    %v9842 = vmax.f32 %v9778, 0.0
    %v9843 = vmax.f32 %v9779, 0.0
    %v9844 = vmax.f32 %v9780, 0.0
    %v9845 = vmax.f32 %v9781, 0.0
    %v9846 = vmax.f32 %v9782, 0.0
    %v9847 = vmax.f32 %v9783, 0.0
    %v9848 = vmax.f32 %v9784, 0.0
    %v9849 = vmax.f32 %v9785, 0.0
    %v9850 = vmax.f32 %v9786, 0.0
    %v9851 = vmax.f32 %v9787, 0.0
    %v9852 = vmax.f32 %v9788, 0.0
    %v9853 = vmax.f32 %v9789, 0.0
    %v9854 = vmax.f32 %v9790, 0.0
    %v9855 = vmax.f32 %v9791, 0.0
    %v9856 = vmax.f32 %v9792, 0.0
    %v9857 = vmax.f32 %v9793, 0.0
    %v9858 = vmax.f32 %v9794, 0.0
    %v9859 = vmax.f32 %v9795, 0.0
    %v9860 = vmax.f32 %v9796, 0.0
    %v9861 = vmax.f32 %v9797, 0.0
    %9862 = vst [vmem:[#allocation6] sm:$0xff] %v9798
    %9863 = vst [vmem:[#allocation6 + $0x8] sm:$0xff] %v9799
    %9864 = vst [vmem:[#allocation6 + $0x10] sm:$0xff] %v9800
    %9865 = vst [vmem:[#allocation6 + $0x18] sm:$0xff] %v9801
    %9866 = vst [vmem:[#allocation6 + $0x20] sm:$0xff] %v9802
    %9867 = vst [vmem:[#allocation6 + $0x28] sm:$0xff] %v9803
    %9868 = vst [vmem:[#allocation6 + $0x30] sm:$0xff] %v9804
    %9869 = vst [vmem:[#allocation6 + $0x38] sm:$0xff] %v9805
    %9870 = vst [vmem:[#allocation6 + $0x40] sm:$0xff] %v9806
    %9871 = vst [vmem:[#allocation6 + $0x48] sm:$0xff] %v9807
    %9872 = vst [vmem:[#allocation6 + $0x50] sm:$0xff] %v9808
    %9873 = vst [vmem:[#allocation6 + $0x58] sm:$0xff] %v9809
    %9874 = vst [vmem:[#allocation6 + $0x60] sm:$0xff] %v9810
    %9875 = vst [vmem:[#allocation6 + $0x68] sm:$0xff] %v9811
    %9876 = vst [vmem:[#allocation6 + $0x70] sm:$0xff] %v9812
    %9877 = vst [vmem:[#allocation6 + $0x78] sm:$0xff] %v9813
    %9878 = vst [vmem:[#allocation6 + $0x80] sm:$0xff] %v9814
    %9879 = vst [vmem:[#allocation6 + $0x88] sm:$0xff] %v9815
    %9880 = vst [vmem:[#allocation6 + $0x90] sm:$0xff] %v9816
    %9881 = vst [vmem:[#allocation6 + $0x98] sm:$0xff] %v9817
    %9882 = vst [vmem:[#allocation6 + $0xa0] sm:$0xff] %v9818
    %9883 = vst [vmem:[#allocation6 + $0xa8] sm:$0xff] %v9819
    %9884 = vst [vmem:[#allocation6 + $0xb0] sm:$0xff] %v9820
    %9885 = vst [vmem:[#allocation6 + $0xb8] sm:$0xff] %v9821
    %9886 = vst [vmem:[#allocation6 + $0xc0] sm:$0xff] %v9822
    %9887 = vst [vmem:[#allocation6 + $0xc8] sm:$0xff] %v9823
    %9888 = vst [vmem:[#allocation6 + $0xd0] sm:$0xff] %v9824
    %9889 = vst [vmem:[#allocation6 + $0xd8] sm:$0xff] %v9825
    %9890 = vst [vmem:[#allocation6 + $0xe0] sm:$0xff] %v9826
    %9891 = vst [vmem:[#allocation6 + $0xe8] sm:$0xff] %v9827
    %9892 = vst [vmem:[#allocation6 + $0xf0] sm:$0xff] %v9828
    %9893 = vst [vmem:[#allocation6 + $0xf8] sm:$0xff] %v9829
    %9894 = vst [vmem:[#allocation6 + $0x100] sm:$0xff] %v9830
    %9895 = vst [vmem:[#allocation6 + $0x108] sm:$0xff] %v9831
    %9896 = vst [vmem:[#allocation6 + $0x110] sm:$0xff] %v9832
    %9897 = vst [vmem:[#allocation6 + $0x118] sm:$0xff] %v9833
    %9898 = vst [vmem:[#allocation6 + $0x120] sm:$0xff] %v9834
    %9899 = vst [vmem:[#allocation6 + $0x128] sm:$0xff] %v9835
    %9900 = vst [vmem:[#allocation6 + $0x130] sm:$0xff] %v9836
    %9901 = vst [vmem:[#allocation6 + $0x138] sm:$0xff] %v9837
    %9902 = vst [vmem:[#allocation6 + $0x140] sm:$0xff] %v9838
    %9903 = vst [vmem:[#allocation6 + $0x148] sm:$0xff] %v9839
    %9904 = vst [vmem:[#allocation6 + $0x150] sm:$0xff] %v9840
    %9905 = vst [vmem:[#allocation6 + $0x158] sm:$0xff] %v9841
    %9906 = vst [vmem:[#allocation6 + $0x160] sm:$0xff] %v9842
    %9907 = vst [vmem:[#allocation6 + $0x168] sm:$0xff] %v9843
    %9908 = vst [vmem:[#allocation6 + $0x170] sm:$0xff] %v9844
    %9909 = vst [vmem:[#allocation6 + $0x178] sm:$0xff] %v9845
    %9910 = vst [vmem:[#allocation6 + $0x180] sm:$0xff] %v9846
    %9911 = vst [vmem:[#allocation6 + $0x188] sm:$0xff] %v9847
    %9912 = vst [vmem:[#allocation6 + $0x190] sm:$0xff] %v9848
    %9913 = vst [vmem:[#allocation6 + $0x198] sm:$0xff] %v9849
    %9914 = vst [vmem:[#allocation6 + $0x1a0] sm:$0xff] %v9850
    %9915 = vst [vmem:[#allocation6 + $0x1a8] sm:$0xff] %v9851
    %9916 = vst [vmem:[#allocation6 + $0x1b0] sm:$0xff] %v9852
    %9917 = vst [vmem:[#allocation6 + $0x1b8] sm:$0xff] %v9853
    %9918 = vst [vmem:[#allocation6 + $0x1c0] sm:$0xff] %v9854
    %9919 = vst [vmem:[#allocation6 + $0x1c8] sm:$0xff] %v9855
    %9920 = vst [vmem:[#allocation6 + $0x1d0] sm:$0xff] %v9856
    %9921 = vst [vmem:[#allocation6 + $0x1d8] sm:$0xff] %v9857
    %9922 = vst [vmem:[#allocation6 + $0x1e0] sm:$0xff] %v9858
    %9923 = vst [vmem:[#allocation6 + $0x1e8] sm:$0xff] %v9859
    %9924 = vst [vmem:[#allocation6 + $0x1f0] sm:$0xff] %v9860
    %9925 = vst [vmem:[#allocation6 + $0x1f8] sm:$0xff] %v9861
    // Predicated region
    $region46: #{tpu_custom_call.1} parent=1 // pred_check
      _
    $region47: #{tpu_custom_call.1} parent=1 // pred_check_branch
      %9927 = sbr.rel (0) target = $region49
    $region48: #{tpu_custom_call.1} parent=1 // pred_region
      %s9929 = ssub.s32 8192, 8192
      %9930 = vsyncadd [#allocation5], %s9929
      %s9931 = sshll.u32 [#allocation6], 4
      %s9932 = int_to_ptr.vmem [resolvable:$true] %s9931
      %9937 = dma.vmem_to_hbm [thread:$0]  %s9932, 8192, %s10, [#allocation5], 128, 128, 8
    $region49: #{tpu_custom_call.1} parent=1 // pred_fallthru
      _
    // Predicated region
    $region50: #{tpu_custom_call.1} parent=1 // pred_check
      _
    $region51: #{tpu_custom_call.1} parent=1 // pred_check_branch
      %9939 = sbr.rel (0) target = $region53
    $region52: #{tpu_custom_call.1} parent=1 // pred_region
      %9940 = dma.done [#allocation5], 8192
    $region53: #{tpu_custom_call.1} parent=1 // pred_fallthru
      _
    %9941 = vsyncpa [#allocation4], 1
    %9942 = vsyncpa [#allocation5], 1

</llo_original>
